<compile_context>
chip_gen: v7x
topology: tpu7x:2x2x1
jax: 0.10.0
libtpu: 0.0.40
codegen_flags: <defaults>
</compile_context>

<pallas_src>
import functools

import jax
import jax.numpy as jnp
from jax.experimental import pallas as pl
from jax.experimental.pallas import tpu as pltpu


# ----------------------------------------------------------------------------
# Kernel 1: fused conv block = im2col-GEMM + folded BN + ReLU + 2x2 max-pool.
# cols_ref: (4*M4p, Kp) -- the 4 pool-window-position groups stacked along M
# (each M4p rows, M4p a multiple of 8).  One GEMM, folded-BN+ReLU epilogue,
# then three elementwise maxima over sublane-aligned slabs = 2x2 max-pool.
# ----------------------------------------------------------------------------
def _conv_block_kernel(cols_ref, w_ref, s_ref, t_ref, o_ref, *, m4p, m4):
    y = jnp.dot(cols_ref[...], w_ref[...], preferred_element_type=jnp.float32)
    y = jnp.maximum(y * s_ref[...] + t_ref[...], 0.0)        # folded BN + ReLU (f32)
    p01 = jnp.maximum(y[0 * m4p:1 * m4p], y[1 * m4p:2 * m4p])
    p23 = jnp.maximum(y[2 * m4p:3 * m4p], y[3 * m4p:4 * m4p])
    o_ref[...] = jnp.maximum(p01, p23)[:m4].astype(o_ref.dtype)


def conv_bn_relu_pool(cols, w, scale, shift, m4):
    """cols: (N, 4*M4p, Kp) bf16; w: (Kp, C) bf16; scale/shift: (1, C) f32.
    Returns pooled activations (N, m4, C) bf16 (row m = i*Wp + j)."""
    N, m4x4, Kp = cols.shape
    m4p = m4x4 // 4
    C = w.shape[1]
    flops = int(2 * N * m4x4 * Kp * C)
    bytes_accessed = int(cols.size * 2 + w.size * 2 + 2 * C * 4 + N * m4 * C * 2)
    kernel = functools.partial(_conv_block_kernel, m4p=m4p, m4=m4)
    return pl.pallas_call(
        kernel,
        out_shape=jax.ShapeDtypeStruct((N, m4, C), jnp.bfloat16),
        grid=(N,),
        in_specs=[
            pl.BlockSpec((None, m4x4, Kp), lambda n: (n, 0, 0)),
            pl.BlockSpec((Kp, C), lambda n: (0, 0)),   # constant index -> fetched once
            pl.BlockSpec((1, C), lambda n: (0, 0)),
            pl.BlockSpec((1, C), lambda n: (0, 0)),
        ],
        out_specs=pl.BlockSpec((None, m4, C), lambda n: (n, 0, 0)),
        compiler_params=pltpu.CompilerParams(
            dimension_semantics=("parallel",)),
        cost_estimate=pl.CostEstimate(
            flops=flops, transcendentals=0, bytes_accessed=bytes_accessed),
    )(cols, w, scale, shift)


# ----------------------------------------------------------------------------
# Kernel 2: fused MLP head (Linear+ReLU, Linear+ReLU, Linear).
# Dropout is the inference-mode identity.
# ----------------------------------------------------------------------------
def _mlp_kernel(x_ref, w1_ref, b1_ref, w2_ref, b2_ref, w3_ref, b3_ref, o_ref):
    h = jnp.dot(x_ref[...], w1_ref[...], preferred_element_type=jnp.float32)
    h = jnp.maximum(h + b1_ref[...], 0.0)
    h = jnp.dot(h.astype(w2_ref.dtype), w2_ref[...],
                preferred_element_type=jnp.float32)
    h = jnp.maximum(h + b2_ref[...], 0.0)
    h = jnp.dot(h.astype(w3_ref.dtype), w3_ref[...],
                preferred_element_type=jnp.float32)
    o_ref[...] = h + b3_ref[...]


_VMEM = pl.BlockSpec(memory_space=pltpu.MemorySpace.VMEM)


def fused_mlp(x, w1, b1, w2, b2, w3, b3):
    N = x.shape[0]
    n_out = w3.shape[1]
    flops = int(2 * N * (w1.shape[0] * w1.shape[1]
                         + w2.shape[0] * w2.shape[1]
                         + w3.shape[0] * w3.shape[1]))
    bytes_accessed = int((x.size + w1.size + w2.size + w3.size) * 2
                         + (b1.size + b2.size + b3.size) * 4 + N * n_out * 4)
    return pl.pallas_call(
        _mlp_kernel,
        out_shape=jax.ShapeDtypeStruct((N, n_out), jnp.float32),
        in_specs=[_VMEM] * 7,
        out_specs=_VMEM,
        cost_estimate=pl.CostEstimate(
            flops=flops, transcendentals=0, bytes_accessed=bytes_accessed),
    )(x, w1, b1, w2, b2, w3, b3)


# ----------------------------------------------------------------------------
# Wrapper-side plumbing (layout only; all heavy math runs in the kernels)
# ----------------------------------------------------------------------------
def im2col_pool_merged(x, k, m_pad=8, k_pad=16):
    """Valid, stride-1 im2col of NHWC x, rows grouped by 2x2 pool position and
    stacked along M.

    Returns cols: (N, 4*M4p, Kp); group g = 2*di+dj occupies rows
    [g*M4p, (g+1)*M4p) and holds the patches of conv output position
    (2i+di, 2j+dj) at row i*Wp + j.  Feature order (kh, kw, cin) matches HWIO
    weight flattening; K zero-padded to a multiple of k_pad, M4 to m_pad.
    """
    N, H, W, C = x.shape
    Ho, Wo = H - k + 1, W - k + 1
    Hp, Wp = Ho // 2, Wo // 2
    slabs = [x[:, i:i + Ho, j:j + Wo, :] for i in range(k) for j in range(k)]
    patches = jnp.concatenate(slabs, axis=-1)                 # (N,Ho,Wo,k*k*C)
    K = k * k * C
    pad = (-K) % k_pad
    if pad:
        patches = jnp.pad(patches, ((0, 0), (0, 0), (0, 0), (0, pad)))
    Kp = K + pad
    patches = patches.reshape(N, Hp, 2, Wp, 2, Kp)
    patches = patches.transpose(0, 2, 4, 1, 3, 5)             # (N,2,2,Hp,Wp,Kp)
    M4 = Hp * Wp
    M4p = M4 + ((-M4) % m_pad)
    cols = patches.reshape(N, 4, M4, Kp)
    if M4p != M4:
        cols = jnp.pad(cols, ((0, 0), (0, 0), (0, M4p - M4), (0, 0)))
    return cols.reshape(N, 4 * M4p, Kp), (Hp, Wp)


def pad_k(w, mult):
    """Zero-pad the K (rows) dimension of a (K, C) weight to a multiple of mult."""
    K = w.shape[0]
    pad = (-K) % mult
    if pad:
        w = jnp.pad(w, ((0, pad), (0, 0)))
    return w


def fold_bn(conv_bias, gamma, beta, mean, var, eps=1e-5):
    """Fold conv bias + eval-mode BatchNorm into per-channel scale/shift."""
    scale = gamma / jnp.sqrt(var + eps)
    shift = (conv_bias - mean) * scale + beta
    return scale, shift


# ----------------------------------------------------------------------------
# Parameters: f32 masters (PyTorch-equivalent layout) + one-time preparation
# ----------------------------------------------------------------------------
def init_params(key):
    ks = jax.random.split(key, 18)

    def w(k, shape, fan_in):
        return jax.random.normal(k, shape, jnp.float32) / jnp.sqrt(float(fan_in))

    p = {}
    # Conv2d(3, 16, 3): HWIO (3,3,3,16) flattened to (27, 16)
    p["w1"] = w(ks[0], (3, 3, 3, 16), 27).reshape(27, 16)
    p["b1"] = 0.1 * jax.random.normal(ks[1], (16,), jnp.float32)
    p["g1"] = 1.0 + 0.1 * jax.random.normal(ks[2], (16,), jnp.float32)
    p["be1"] = 0.1 * jax.random.normal(ks[3], (16,), jnp.float32)
    p["m1"] = 0.1 * jax.random.normal(ks[4], (16,), jnp.float32)
    p["v1"] = 1.0 + 0.1 * jax.random.uniform(ks[5], (16,), jnp.float32)
    # Conv2d(16, 32, 3): HWIO (3,3,16,32) -> (144, 32)
    p["w2"] = w(ks[6], (3, 3, 16, 32), 144).reshape(144, 32)
    p["b2"] = 0.1 * jax.random.normal(ks[7], (32,), jnp.float32)
    p["g2"] = 1.0 + 0.1 * jax.random.normal(ks[8], (32,), jnp.float32)
    p["be2"] = 0.1 * jax.random.normal(ks[9], (32,), jnp.float32)
    p["m2"] = 0.1 * jax.random.normal(ks[10], (32,), jnp.float32)
    p["v2"] = 1.0 + 0.1 * jax.random.uniform(ks[11], (32,), jnp.float32)
    # Linear(6272,128) in PyTorch flatten order (c*196 + h*14 + w), Linear(128,64), Linear(64,10)
    p["wfc1"] = w(ks[12], (6272, 128), 6272)
    p["bfc1"] = 0.1 * jax.random.normal(ks[13], (128,), jnp.float32)
    p["wfc2"] = w(ks[14], (128, 64), 128)
    p["bfc2"] = 0.1 * jax.random.normal(ks[15], (64,), jnp.float32)
    p["wfc3"] = w(ks[16], (64, 10), 64)
    p["bfc3"] = 0.1 * jax.random.normal(ks[17], (10,), jnp.float32)
    return p


def prepare_params(p):
    """One-time preprocessing (NOT in the per-forward path): K-padding, bf16
    casts, BN folding, bias reshapes, and FC1 row permutation to NHWC flatten
    order (so the forward needs no NCHW relayout)."""
    q = {}
    # Conv weights: K padded to a multiple of 16, bf16.
    q["w1"] = pad_k(p["w1"], 16).astype(jnp.bfloat16)           # (32, 16)
    q["w2"] = pad_k(p["w2"], 16).astype(jnp.bfloat16)           # (144, 32)
    # Folded BN scale/shift as (1, C) f32.
    s1, t1 = fold_bn(p["b1"], p["g1"], p["be1"], p["m1"], p["v1"])
    s2, t2 = fold_bn(p["b2"], p["g2"], p["be2"], p["m2"], p["v2"])
    q["s1"], q["t1"] = s1.reshape(1, -1).astype(jnp.float32), t1.reshape(1, -1).astype(jnp.float32)
    q["s2"], q["t2"] = s2.reshape(1, -1).astype(jnp.float32), t2.reshape(1, -1).astype(jnp.float32)
    # FC1: permute rows from PyTorch flatten order (c,h,w) to NHWC order (h,w,c).
    q["wfc1"] = (p["wfc1"].reshape(32, 14, 14, 128)
                 .transpose(1, 2, 0, 3).reshape(6272, 128).astype(jnp.bfloat16))
    q["wfc2"] = p["wfc2"].astype(jnp.bfloat16)
    q["wfc3"] = p["wfc3"].astype(jnp.bfloat16)
    q["bfc1"] = p["bfc1"].reshape(1, -1).astype(jnp.float32)
    q["bfc2"] = p["bfc2"].reshape(1, -1).astype(jnp.float32)
    q["bfc3"] = p["bfc3"].reshape(1, -1).astype(jnp.float32)
    return jax.tree_util.tree_map(jnp.asarray, q)


# ----------------------------------------------------------------------------
# Forward pass (operates on pre-prepared params only)
# ----------------------------------------------------------------------------
def cnn_forward(x_nchw, q):
    # NCHW -> NHWC + bf16 (kept to match the PyTorch interface; drop if the
    # caller can supply NHWC bf16 directly).
    x = jnp.transpose(x_nchw, (0, 2, 3, 1)).astype(jnp.bfloat16)   # (N,62,62,3)
    N = x.shape[0]

    # --- Conv1 + BN1 + ReLU + MaxPool (one fused kernel) ---
    cols1, (Hp1, Wp1) = im2col_pool_merged(x, 3)                   # (N, 4*904, 32)
    y = conv_bn_relu_pool(cols1, q["w1"], q["s1"], q["t1"], m4=Hp1 * Wp1)
    y = y.reshape(N, Hp1, Wp1, 16)                                 # (N,30,30,16)

    # --- Conv2 + BN2 + ReLU + MaxPool (one fused kernel) ---
    cols2, (Hp2, Wp2) = im2col_pool_merged(y, 3)                   # (N, 4*200, 144)
    y = conv_bn_relu_pool(cols2, q["w2"], q["s2"], q["t2"], m4=Hp2 * Wp2)

    # --- Flatten in NHWC order (wfc1 rows were permuted to match) ---
    y = y.reshape(N, Hp2 * Wp2 * 32)                               # (N, 6272) bf16

    # --- Fused FC head: Linear+ReLU, Linear+ReLU, Linear (Dropout = identity) ---
    return fused_mlp(y, q["wfc1"], q["bfc1"], q["wfc2"], q["bfc2"],
                     q["wfc3"], q["bfc3"])


if __name__ == "__main__":
    key = jax.random.PRNGKey(0)
    kx, kp = jax.random.split(key)
    # Input spatial 62x62 is forced by Linear(6272,128): 62->60->30->28->14.
    x = jax.random.normal(kx, (2, 3, 62, 62), jnp.float32)
    params = init_params(kp)
    prepared = prepare_params(params)     # one-time, outside the jitted forward

    fwd = jax.jit(cnn_forward)
    logits = jax.block_until_ready(fwd(x, prepared))

    assert logits.shape == (2, 10), logits.shape
    assert bool(jnp.all(jnp.isfinite(logits)))
    print("KERNEL_OK")
</pallas_src>

<mosaic_0001>
module attributes {stable_mosaic.version = 11 : i64} {
  func.func @_conv_block_kernel(%arg0: i32, %arg1: memref<1x3616x32xbf16, #tpu.memory_space<vmem>>, %arg2: memref<32x16xbf16, #tpu.memory_space<vmem>>, %arg3: memref<1x16xf32, #tpu.memory_space<vmem>>, %arg4: memref<1x16xf32, #tpu.memory_space<vmem>>, %arg5: memref<1x900x16xbf16, #tpu.memory_space<vmem>>) attributes {dimension_semantics = [#tpu.dimension_semantics<parallel>], iteration_bounds = array<i64: 2>, scalar_prefetch = 0 : i64, scratch_operands = 0 : i64, tpu.core_type = #tpu.core_type<tc>, window_params = [{transform_indices = @transform_0, window_bounds = array<i64: 1, 3616, 32>}, {pipeline_mode = #tpu.pipeline_mode<synchronous>, transform_indices = @transform_1, window_bounds = array<i64: 32, 16>}, {pipeline_mode = #tpu.pipeline_mode<synchronous>, transform_indices = @transform_2, window_bounds = array<i64: 1, 16>}, {pipeline_mode = #tpu.pipeline_mode<synchronous>, transform_indices = @transform_3, window_bounds = array<i64: 1, 16>}, {transform_indices = @transform_4, window_bounds = array<i64: 1, 900, 16>}]} {
    %c0 = arith.constant 0 : index
    %c0_0 = arith.constant 0 : index
    %c0_1 = arith.constant 0 : index
    %0 = vector.load %arg1[%c0, %c0_0, %c0_1] : memref<1x3616x32xbf16, #tpu.memory_space<vmem>>, vector<1x3616x32xbf16>
    %1 = vector.shape_cast %0 : vector<1x3616x32xbf16> to vector<3616x32xbf16>
    %c0_2 = arith.constant 0 : index
    %c0_3 = arith.constant 0 : index
    %2 = vector.load %arg2[%c0_2, %c0_3] : memref<32x16xbf16, #tpu.memory_space<vmem>>, vector<32x16xbf16>
    %cst = arith.constant dense<0.000000e+00> : vector<3616x16xf32>
    %3 = tpu.matmul %1, %2, %cst {dimension_numbers = #tpu.dot_dimension_numbers<[1], [0], [0], [1], [0, 0, 1, 1], [], []>} : vector<3616x32xbf16>, vector<32x16xbf16>, vector<3616x16xf32> -> vector<3616x16xf32>
    %c0_4 = arith.constant 0 : index
    %c0_5 = arith.constant 0 : index
    %4 = vector.load %arg3[%c0_4, %c0_5] : memref<1x16xf32, #tpu.memory_space<vmem>>, vector<1x16xf32>
    %5 = vector.broadcast %4 : vector<1x16xf32> to vector<3616x16xf32>
    %6 = arith.mulf %3, %5 : vector<3616x16xf32>
    %c0_6 = arith.constant 0 : index
    %c0_7 = arith.constant 0 : index
    %7 = vector.load %arg4[%c0_6, %c0_7] : memref<1x16xf32, #tpu.memory_space<vmem>>, vector<1x16xf32>
    %8 = vector.broadcast %7 : vector<1x16xf32> to vector<3616x16xf32>
    %9 = arith.addf %6, %8 : vector<3616x16xf32>
    %cst_8 = arith.constant 0.000000e+00 : f32
    %10 = vector.broadcast %cst_8 : f32 to vector<3616x16xf32>
    %11 = arith.maximumf %9, %10 : vector<3616x16xf32>
    %12 = vector.extract_strided_slice %11 {offsets = [0, 0], sizes = [904, 16], strides = [1, 1]} : vector<3616x16xf32> to vector<904x16xf32>
    %13 = vector.extract_strided_slice %11 {offsets = [904, 0], sizes = [904, 16], strides = [1, 1]} : vector<3616x16xf32> to vector<904x16xf32>
    %14 = arith.maximumf %12, %13 : vector<904x16xf32>
    %15 = vector.extract_strided_slice %11 {offsets = [1808, 0], sizes = [904, 16], strides = [1, 1]} : vector<3616x16xf32> to vector<904x16xf32>
    %16 = vector.extract_strided_slice %11 {offsets = [2712, 0], sizes = [904, 16], strides = [1, 1]} : vector<3616x16xf32> to vector<904x16xf32>
    %17 = arith.maximumf %15, %16 : vector<904x16xf32>
    %18 = arith.maximumf %14, %17 : vector<904x16xf32>
    %19 = vector.extract_strided_slice %18 {offsets = [0, 0], sizes = [900, 16], strides = [1, 1]} : vector<904x16xf32> to vector<900x16xf32>
    %20 = arith.truncf %19 : vector<900x16xf32> to vector<900x16xbf16>
    %c0_9 = arith.constant 0 : index
    %c0_10 = arith.constant 0 : index
    %c0_11 = arith.constant 0 : index
    %21 = vector.load %arg5[%c0_9, %c0_10, %c0_11] : memref<1x900x16xbf16, #tpu.memory_space<vmem>>, vector<1x900x16xbf16>
    %22 = vector.shape_cast %21 : vector<1x900x16xbf16> to vector<900x16xbf16>
    %23 = vector.shape_cast %20 : vector<900x16xbf16> to vector<1x900x16xbf16>
    tpu.vector_store %arg5[%c0_9, %c0_10, %c0_11], %23 {strides = array<i32>} : memref<1x900x16xbf16, #tpu.memory_space<vmem>>, vector<1x900x16xbf16>,
    return
  }
  func.func @transform_0(%arg0: i32) -> (i32, i32, i32) {
    %c0_i32 = arith.constant 0 : i32
    %c0_i32_0 = arith.constant 0 : i32
    %c0_i32_1 = arith.constant 0 : i32
    return %arg0, %c0_i32, %c0_i32_0 : i32, i32, i32
  }
  func.func @transform_1(%arg0: i32) -> (i32, i32) {
    %c0_i32 = arith.constant 0 : i32
    %c0_i32_0 = arith.constant 0 : i32
    %c0_i32_1 = arith.constant 0 : i32
    return %c0_i32, %c0_i32_0 : i32, i32
  }
  func.func @transform_2(%arg0: i32) -> (i32, i32) {
    %c0_i32 = arith.constant 0 : i32
    %c0_i32_0 = arith.constant 0 : i32
    %c0_i32_1 = arith.constant 0 : i32
    return %c0_i32, %c0_i32_0 : i32, i32
  }
  func.func @transform_3(%arg0: i32) -> (i32, i32) {
    %c0_i32 = arith.constant 0 : i32
    %c0_i32_0 = arith.constant 0 : i32
    %c0_i32_1 = arith.constant 0 : i32
    return %c0_i32, %c0_i32_0 : i32, i32
  }
  func.func @transform_4(%arg0: i32) -> (i32, i32, i32) {
    %c0_i32 = arith.constant 0 : i32
    %c0_i32_0 = arith.constant 0 : i32
    %c0_i32_1 = arith.constant 0 : i32
    return %arg0, %c0_i32, %c0_i32_0 : i32, i32, i32
  }
}

module attributes {stable_mosaic.version = 11 : i64} {
  func.func @_conv_block_kernel(%arg0: i32, %arg1: memref<1x800x144xbf16, #tpu.memory_space<vmem>>, %arg2: memref<144x32xbf16, #tpu.memory_space<vmem>>, %arg3: memref<1x32xf32, #tpu.memory_space<vmem>>, %arg4: memref<1x32xf32, #tpu.memory_space<vmem>>, %arg5: memref<1x196x32xbf16, #tpu.memory_space<vmem>>) attributes {dimension_semantics = [#tpu.dimension_semantics<parallel>], iteration_bounds = array<i64: 2>, scalar_prefetch = 0 : i64, scratch_operands = 0 : i64, tpu.core_type = #tpu.core_type<tc>, window_params = [{transform_indices = @transform_0, window_bounds = array<i64: 1, 800, 144>}, {pipeline_mode = #tpu.pipeline_mode<synchronous>, transform_indices = @transform_1, window_bounds = array<i64: 144, 32>}, {pipeline_mode = #tpu.pipeline_mode<synchronous>, transform_indices = @transform_2, window_bounds = array<i64: 1, 32>}, {pipeline_mode = #tpu.pipeline_mode<synchronous>, transform_indices = @transform_3, window_bounds = array<i64: 1, 32>}, {transform_indices = @transform_4, window_bounds = array<i64: 1, 196, 32>}]} {
    %c0 = arith.constant 0 : index
    %c0_0 = arith.constant 0 : index
    %c0_1 = arith.constant 0 : index
    %0 = vector.load %arg1[%c0, %c0_0, %c0_1] : memref<1x800x144xbf16, #tpu.memory_space<vmem>>, vector<1x800x144xbf16>
    %1 = vector.shape_cast %0 : vector<1x800x144xbf16> to vector<800x144xbf16>
    %c0_2 = arith.constant 0 : index
    %c0_3 = arith.constant 0 : index
    %2 = vector.load %arg2[%c0_2, %c0_3] : memref<144x32xbf16, #tpu.memory_space<vmem>>, vector<144x32xbf16>
    %cst = arith.constant dense<0.000000e+00> : vector<800x32xf32>
    %3 = tpu.matmul %1, %2, %cst {dimension_numbers = #tpu.dot_dimension_numbers<[1], [0], [0], [1], [0, 0, 1, 1], [], []>} : vector<800x144xbf16>, vector<144x32xbf16>, vector<800x32xf32> -> vector<800x32xf32>
    %c0_4 = arith.constant 0 : index
    %c0_5 = arith.constant 0 : index
    %4 = vector.load %arg3[%c0_4, %c0_5] : memref<1x32xf32, #tpu.memory_space<vmem>>, vector<1x32xf32>
    %5 = vector.broadcast %4 : vector<1x32xf32> to vector<800x32xf32>
    %6 = arith.mulf %3, %5 : vector<800x32xf32>
    %c0_6 = arith.constant 0 : index
    %c0_7 = arith.constant 0 : index
    %7 = vector.load %arg4[%c0_6, %c0_7] : memref<1x32xf32, #tpu.memory_space<vmem>>, vector<1x32xf32>
    %8 = vector.broadcast %7 : vector<1x32xf32> to vector<800x32xf32>
    %9 = arith.addf %6, %8 : vector<800x32xf32>
    %cst_8 = arith.constant 0.000000e+00 : f32
    %10 = vector.broadcast %cst_8 : f32 to vector<800x32xf32>
    %11 = arith.maximumf %9, %10 : vector<800x32xf32>
    %12 = vector.extract_strided_slice %11 {offsets = [0, 0], sizes = [200, 32], strides = [1, 1]} : vector<800x32xf32> to vector<200x32xf32>
    %13 = vector.extract_strided_slice %11 {offsets = [200, 0], sizes = [200, 32], strides = [1, 1]} : vector<800x32xf32> to vector<200x32xf32>
    %14 = arith.maximumf %12, %13 : vector<200x32xf32>
    %15 = vector.extract_strided_slice %11 {offsets = [400, 0], sizes = [200, 32], strides = [1, 1]} : vector<800x32xf32> to vector<200x32xf32>
    %16 = vector.extract_strided_slice %11 {offsets = [600, 0], sizes = [200, 32], strides = [1, 1]} : vector<800x32xf32> to vector<200x32xf32>
    %17 = arith.maximumf %15, %16 : vector<200x32xf32>
    %18 = arith.maximumf %14, %17 : vector<200x32xf32>
    %19 = vector.extract_strided_slice %18 {offsets = [0, 0], sizes = [196, 32], strides = [1, 1]} : vector<200x32xf32> to vector<196x32xf32>
    %20 = arith.truncf %19 : vector<196x32xf32> to vector<196x32xbf16>
    %c0_9 = arith.constant 0 : index
    %c0_10 = arith.constant 0 : index
    %c0_11 = arith.constant 0 : index
    %21 = vector.load %arg5[%c0_9, %c0_10, %c0_11] : memref<1x196x32xbf16, #tpu.memory_space<vmem>>, vector<1x196x32xbf16>
    %22 = vector.shape_cast %21 : vector<1x196x32xbf16> to vector<196x32xbf16>
    %23 = vector.shape_cast %20 : vector<196x32xbf16> to vector<1x196x32xbf16>
    tpu.vector_store %arg5[%c0_9, %c0_10, %c0_11], %23 {strides = array<i32>} : memref<1x196x32xbf16, #tpu.memory_space<vmem>>, vector<1x196x32xbf16>,
    return
  }
  func.func @transform_0(%arg0: i32) -> (i32, i32, i32) {
    %c0_i32 = arith.constant 0 : i32
    %c0_i32_0 = arith.constant 0 : i32
    %c0_i32_1 = arith.constant 0 : i32
    return %arg0, %c0_i32, %c0_i32_0 : i32, i32, i32
  }
  func.func @transform_1(%arg0: i32) -> (i32, i32) {
    %c0_i32 = arith.constant 0 : i32
    %c0_i32_0 = arith.constant 0 : i32
    %c0_i32_1 = arith.constant 0 : i32
    return %c0_i32, %c0_i32_0 : i32, i32
  }
  func.func @transform_2(%arg0: i32) -> (i32, i32) {
    %c0_i32 = arith.constant 0 : i32
    %c0_i32_0 = arith.constant 0 : i32
    %c0_i32_1 = arith.constant 0 : i32
    return %c0_i32, %c0_i32_0 : i32, i32
  }
  func.func @transform_3(%arg0: i32) -> (i32, i32) {
    %c0_i32 = arith.constant 0 : i32
    %c0_i32_0 = arith.constant 0 : i32
    %c0_i32_1 = arith.constant 0 : i32
    return %c0_i32, %c0_i32_0 : i32, i32
  }
  func.func @transform_4(%arg0: i32) -> (i32, i32, i32) {
    %c0_i32 = arith.constant 0 : i32
    %c0_i32_0 = arith.constant 0 : i32
    %c0_i32_1 = arith.constant 0 : i32
    return %arg0, %c0_i32, %c0_i32_0 : i32, i32, i32
  }
}

module attributes {stable_mosaic.version = 11 : i64} {
  func.func @_mlp_kernel(%arg0: memref<2x6272xbf16, #tpu.memory_space<vmem>>, %arg1: memref<6272x128xbf16, #tpu.memory_space<vmem>>, %arg2: memref<1x128xf32, #tpu.memory_space<vmem>>, %arg3: memref<128x64xbf16, #tpu.memory_space<vmem>>, %arg4: memref<1x64xf32, #tpu.memory_space<vmem>>, %arg5: memref<64x10xbf16, #tpu.memory_space<vmem>>, %arg6: memref<1x10xf32, #tpu.memory_space<vmem>>, %arg7: memref<2x10xf32, #tpu.memory_space<vmem>>) attributes {dimension_semantics = [], scalar_prefetch = 0 : i64, scratch_operands = 0 : i64, tpu.core_type = #tpu.core_type<tc>} {
    %c0 = arith.constant 0 : index
    %c0_0 = arith.constant 0 : index
    %0 = vector.load %arg0[%c0, %c0_0] : memref<2x6272xbf16, #tpu.memory_space<vmem>>, vector<2x6272xbf16>
    %c0_1 = arith.constant 0 : index
    %c0_2 = arith.constant 0 : index
    %1 = vector.load %arg1[%c0_1, %c0_2] : memref<6272x128xbf16, #tpu.memory_space<vmem>>, vector<6272x128xbf16>
    %cst = arith.constant dense<0.000000e+00> : vector<2x128xf32>
    %2 = tpu.matmul %0, %1, %cst {dimension_numbers = #tpu.dot_dimension_numbers<[1], [0], [0], [1], [0, 0, 1, 1], [], []>} : vector<2x6272xbf16>, vector<6272x128xbf16>, vector<2x128xf32> -> vector<2x128xf32>
    %c0_3 = arith.constant 0 : index
    %c0_4 = arith.constant 0 : index
    %3 = vector.load %arg2[%c0_3, %c0_4] : memref<1x128xf32, #tpu.memory_space<vmem>>, vector<1x128xf32>
    %4 = vector.broadcast %3 : vector<1x128xf32> to vector<2x128xf32>
    %5 = arith.addf %2, %4 : vector<2x128xf32>
    %cst_5 = arith.constant 0.000000e+00 : f32
    %6 = vector.broadcast %cst_5 : f32 to vector<2x128xf32>
    %7 = arith.maximumf %5, %6 : vector<2x128xf32>
    %8 = arith.truncf %7 : vector<2x128xf32> to vector<2x128xbf16>
    %c0_6 = arith.constant 0 : index
    %c0_7 = arith.constant 0 : index
    %9 = vector.load %arg3[%c0_6, %c0_7] : memref<128x64xbf16, #tpu.memory_space<vmem>>, vector<128x64xbf16>
    %cst_8 = arith.constant dense<0.000000e+00> : vector<2x64xf32>
    %10 = tpu.matmul %8, %9, %cst_8 {dimension_numbers = #tpu.dot_dimension_numbers<[1], [0], [0], [1], [0, 0, 1, 1], [], []>} : vector<2x128xbf16>, vector<128x64xbf16>, vector<2x64xf32> -> vector<2x64xf32>
    %c0_9 = arith.constant 0 : index
    %c0_10 = arith.constant 0 : index
    %11 = vector.load %arg4[%c0_9, %c0_10] : memref<1x64xf32, #tpu.memory_space<vmem>>, vector<1x64xf32>
    %12 = vector.broadcast %11 : vector<1x64xf32> to vector<2x64xf32>
    %13 = arith.addf %10, %12 : vector<2x64xf32>
    %cst_11 = arith.constant 0.000000e+00 : f32
    %14 = vector.broadcast %cst_11 : f32 to vector<2x64xf32>
    %15 = arith.maximumf %13, %14 : vector<2x64xf32>
    %16 = arith.truncf %15 : vector<2x64xf32> to vector<2x64xbf16>
    %c0_12 = arith.constant 0 : index
    %c0_13 = arith.constant 0 : index
    %17 = vector.load %arg5[%c0_12, %c0_13] : memref<64x10xbf16, #tpu.memory_space<vmem>>, vector<64x10xbf16>
    %cst_14 = arith.constant dense<0.000000e+00> : vector<2x10xf32>
    %18 = tpu.matmul %16, %17, %cst_14 {dimension_numbers = #tpu.dot_dimension_numbers<[1], [0], [0], [1], [0, 0, 1, 1], [], []>} : vector<2x64xbf16>, vector<64x10xbf16>, vector<2x10xf32> -> vector<2x10xf32>
    %c0_15 = arith.constant 0 : index
    %c0_16 = arith.constant 0 : index
    %19 = vector.load %arg6[%c0_15, %c0_16] : memref<1x10xf32, #tpu.memory_space<vmem>>, vector<1x10xf32>
    %20 = vector.broadcast %19 : vector<1x10xf32> to vector<2x10xf32>
    %21 = arith.addf %18, %20 : vector<2x10xf32>
    %c0_17 = arith.constant 0 : index
    %c0_18 = arith.constant 0 : index
    %22 = vector.load %arg7[%c0_17, %c0_18] : memref<2x10xf32, #tpu.memory_space<vmem>>, vector<2x10xf32>
    tpu.vector_store %arg7[%c0_17, %c0_18], %21 {strides = array<i32>} : memref<2x10xf32, #tpu.memory_space<vmem>>, vector<2x10xf32>,
    return
  }
}

</mosaic_0001>

<llo_original>
// kernel: cnn_forward.3
$region0: #{cnn_forward.3}
  #allocation0 [shape = 'u32[]', space=smem, size = 0x4, offset = 0x4, fixed_abs, tag = 'smem constant byte address 0x4 - core index']
  #allocation1 [shape = 'u32[144,128]{1,0:T(1,128)}', space=vmem, size = 0x12000, scoped, tag = 'internal scratch']
  %s0 = inlined_call_operand.vmem [shape: bf16[2,3616,32], index: 0, kind: input, shape index: {}]
  %s1 = inlined_call_operand.vmem [shape: bf16[32,16], index: 1, kind: input, shape index: {}]
  %s2 = inlined_call_operand.vmem [shape: f32[1,16], index: 2, kind: input, shape index: {}]
  %s3 = inlined_call_operand.vmem [shape: f32[1,16], index: 3, kind: input, shape index: {}]
  %s4 = inlined_call_operand.vmem [shape: bf16[2,900,16], index: 4, kind: output, shape index: {}]
  %s5 = sld [smem:[#allocation0]]
  $region49: #{cnn_forward.3} parent=0
    _
  %s7 = ssub.s32 1, %s5
  %s8 = scalar_select 0, %s7, %s5
  loop: start=0, step=1, limit=4
  $region2: #{cnn_forward.3} parent=0 // loop_pre_header
    _
  $region3: #{cnn_forward.3} parent=0 // loop_header
    %s10 = sphi 0, %s14
    %p11 = scmp.ge.s32.totalorder %s10, 4
    %s20 = sphi 0, %s22
    %s23 = sphi 0, %s20
    %s24 = sphi 0, %s23
    %s40 = sphi 0, %s24
    %s44 = sphi 0, %s44
    %s46 = sphi 0, %s44
    %s47 = sphi 0, %s46
    %s61 = sphi 0, %s47
    %s65 = sphi 0, %s65
    %s67 = sphi 0, %s65
    %s68 = sphi 0, %s67
    %s82 = sphi 0, %s68
    %s86 = sphi 0, %s86
    %s88 = sphi 0, %s86
    %s89 = sphi 0, %s88
    %s103 = sphi 0, %s89
    %s109 = sphi 0, %s111
    %s112 = sphi 0, %s109
    %s113 = sphi 0, %s112
    %s129 = sphi 0, %s113
  $region4: #{cnn_forward.3} parent=0 // loop_header_branch
    %13 = sbr.rel (%p11) target = $region8
  $region5: #{cnn_forward.3} parent=0 // loop_body
    %s15 = ssub.s32 %s10, 1
    %s16 = ssub.s32 %s10, 2
    %s17 = sadd.s32 %s10, 1
    %s18 = ssub.s32 %s10, %s17
    %p19 = scmp.eq.s32.totalorder %s18, 0
    %s21 = sadd.s32 %s20, 1
    %s22 = scalar_select %p19, %s20, %s21
    %p25 = pneg %p19
    %p26 = scmp.eq.s32.totalorder %s10, 1
    %p27 = por %p25, %p26
    %p28 = scmp.ne.s32.totalorder %s20, %s23
    %p29 = scmp.eq.s32.totalorder %s10, 0
    %p30 = por %p28, %p29
    %p31 = scmp.ne.s32.totalorder %s20, %s23
    %p32 = scmp.eq.s32.totalorder %s15, 1
    %p33 = por %p31, %p32
    %p34 = scmp.ne.s32.totalorder %s23, %s24
    %p35 = scmp.eq.s32.totalorder %s15, 0
    %p36 = por %p34, %p35
    %p37 = scmp.ne.s32.totalorder %s23, %s24
    %p38 = scmp.eq.s32.totalorder %s16, 1
    %p39 = por %p37, %p38
    %p41 = scmp.ne.s32.totalorder %s24, %s40
    %p42 = scmp.eq.s32.totalorder %s16, 0
    %p43 = por %p41, %p42
    %s45 = sadd.s32 %s44, 1
    %p48 = scmp.eq.s32.totalorder %s10, 1
    %p49 = scmp.ne.s32.totalorder %s44, %s46
    %p50 = scmp.eq.s32.totalorder %s10, 0
    %p51 = por %p49, %p50
    %p52 = scmp.ne.s32.totalorder %s44, %s46
    %p53 = scmp.eq.s32.totalorder %s15, 1
    %p54 = por %p52, %p53
    %p55 = scmp.ne.s32.totalorder %s46, %s47
    %p56 = scmp.eq.s32.totalorder %s15, 0
    %p57 = por %p55, %p56
    %p58 = scmp.ne.s32.totalorder %s46, %s47
    %p59 = scmp.eq.s32.totalorder %s16, 1
    %p60 = por %p58, %p59
    %p62 = scmp.ne.s32.totalorder %s47, %s61
    %p63 = scmp.eq.s32.totalorder %s16, 0
    %p64 = por %p62, %p63
    %s66 = sadd.s32 %s65, 1
    %p69 = scmp.eq.s32.totalorder %s10, 1
    %p70 = scmp.ne.s32.totalorder %s65, %s67
    %p71 = scmp.eq.s32.totalorder %s10, 0
    %p72 = por %p70, %p71
    %p73 = scmp.ne.s32.totalorder %s65, %s67
    %p74 = scmp.eq.s32.totalorder %s15, 1
    %p75 = por %p73, %p74
    %p76 = scmp.ne.s32.totalorder %s67, %s68
    %p77 = scmp.eq.s32.totalorder %s15, 0
    %p78 = por %p76, %p77
    %p79 = scmp.ne.s32.totalorder %s67, %s68
    %p80 = scmp.eq.s32.totalorder %s16, 1
    %p81 = por %p79, %p80
    %p83 = scmp.ne.s32.totalorder %s68, %s82
    %p84 = scmp.eq.s32.totalorder %s16, 0
    %p85 = por %p83, %p84
    %s87 = sadd.s32 %s86, 1
    %p90 = scmp.eq.s32.totalorder %s10, 1
    %p91 = scmp.ne.s32.totalorder %s86, %s88
    %p92 = scmp.eq.s32.totalorder %s10, 0
    %p93 = por %p91, %p92
    %p94 = scmp.ne.s32.totalorder %s86, %s88
    %p95 = scmp.eq.s32.totalorder %s15, 1
    %p96 = por %p94, %p95
    %p97 = scmp.ne.s32.totalorder %s88, %s89
    %p98 = scmp.eq.s32.totalorder %s15, 0
    %p99 = por %p97, %p98
    %p100 = scmp.ne.s32.totalorder %s88, %s89
    %p101 = scmp.eq.s32.totalorder %s16, 1
    %p102 = por %p100, %p101
    %p104 = scmp.ne.s32.totalorder %s89, %s103
    %p105 = scmp.eq.s32.totalorder %s16, 0
    %p106 = por %p104, %p105
    %s107 = ssub.s32 %s10, %s17
    %p108 = scmp.eq.s32.totalorder %s107, 0
    %s110 = sadd.s32 %s109, 1
    %s111 = scalar_select %p108, %s109, %s110
    %p114 = pneg %p108
    %p115 = scmp.eq.s32.totalorder %s10, 1
    %p116 = por %p114, %p115
    %p117 = scmp.ne.s32.totalorder %s109, %s112
    %p118 = scmp.eq.s32.totalorder %s10, 0
    %p119 = por %p117, %p118
    %p120 = scmp.ne.s32.totalorder %s109, %s112
    %p121 = scmp.eq.s32.totalorder %s15, 1
    %p122 = por %p120, %p121
    %p123 = scmp.ne.s32.totalorder %s112, %s113
    %p124 = scmp.eq.s32.totalorder %s15, 0
    %p125 = por %p123, %p124
    %p126 = scmp.ne.s32.totalorder %s112, %s113
    %p127 = scmp.eq.s32.totalorder %s16, 1
    %p128 = por %p126, %p127
    %p130 = scmp.ne.s32.totalorder %s113, %s129
    %p131 = scmp.eq.s32.totalorder %s16, 0
    %p132 = por %p130, %p131
    %p133 = scmp.le.s32.totalorder 1, %s10
    %p134 = scmp.lt.s32.totalorder %s10, 3
    %p135 = pnand %p133, %p134
    %p136 = pneg %p135
    // Predicated region
    $region9: #{cnn_forward.3} parent=5 // pred_check
      _
    $region10: #{cnn_forward.3} parent=5 // pred_check_branch
      %138 = sbr.rel (%p135) target = $region12
    $region11: #{cnn_forward.3} parent=5 // pred_region
      %s139 = ssub.s32 %s10, 1
      // Predicated region
      $region13: #{cnn_forward.3} parent=11 // pred_check
        %p140 = pneg %p57
      $region14: #{cnn_forward.3} parent=11 // pred_check_branch
        %142 = sbr.rel (%p140) target = $region16
      $region15: #{cnn_forward.3} parent=11 // pred_region
        _
      $region16: #{cnn_forward.3} parent=11 // pred_fallthru
        _
      // Predicated region
      $region17: #{cnn_forward.3} parent=11 // pred_check
        %p143 = pneg %p78
      $region18: #{cnn_forward.3} parent=11 // pred_check_branch
        %145 = sbr.rel (%p143) target = $region20
      $region19: #{cnn_forward.3} parent=11 // pred_region
        _
      $region20: #{cnn_forward.3} parent=11 // pred_fallthru
        _
      // Predicated region
      $region21: #{cnn_forward.3} parent=11 // pred_check
        %p146 = pneg %p99
      $region22: #{cnn_forward.3} parent=11 // pred_check_branch
        %148 = sbr.rel (%p146) target = $region24
      $region23: #{cnn_forward.3} parent=11 // pred_region
        _
      $region24: #{cnn_forward.3} parent=11 // pred_fallthru
        _
    $region12: #{cnn_forward.3} parent=5 // pred_fallthru
      _
    %p149 = scmp.lt.s32.totalorder %s10, 2
    // Predicated region
    $region25: #{cnn_forward.3} parent=5 // pred_check
      %p150 = pneg %p149
    $region26: #{cnn_forward.3} parent=5 // pred_check_branch
      %152 = sbr.rel (%p150) target = $region28
    $region27: #{cnn_forward.3} parent=5 // pred_region
      // Predicated region
      $region29: #{cnn_forward.3} parent=27 // pred_check
        %p153 = pneg %p30
      $region30: #{cnn_forward.3} parent=27 // pred_check_branch
        %155 = sbr.rel (%p153) target = $region32
      $region31: #{cnn_forward.3} parent=27 // pred_region
        %p156 = scmp.lt.s32.totalorder %s10, 1
        %s157 = scalar_select %p156, %s10, 1
        %s158 = smul.addr %s157, 452
        %s159 = smul.addr %s158, 4
        %s160 = scalar_lea.vmem %s0, %s159
      $region32: #{cnn_forward.3} parent=27 // pred_fallthru
        _
    $region28: #{cnn_forward.3} parent=5 // pred_fallthru
      _
    %p161 = scmp.le.s32.totalorder 1, %s10
    %p162 = scmp.lt.s32.totalorder %s10, 3
    %p163 = pnand %p161, %p162
    %p164 = pneg %p163
    // Predicated region
    $region33: #{cnn_forward.3} parent=5 // pred_check
      _
    $region34: #{cnn_forward.3} parent=5 // pred_check_branch
      %166 = sbr.rel (%p163) target = $region36
    $region35: #{cnn_forward.3} parent=5 // pred_region
      %s167 = ssub.s32 %s10, 1
      %p168 = scmp.lt.s32.totalorder %s15, 1
      %s169 = scalar_select %p168, %s15, 1
      %s170 = smul.addr %s169, 452
      %s171 = smul.addr %s170, 4
      %s172 = scalar_lea.vmem %s0, %s171
      %p173 = pneg %p36
      %p174 = pneg %p33
      %p175 = pneg %p57
      %p176 = pneg %p54
      %p177 = pneg %p78
      %p178 = pneg %p75
      %p179 = pneg %p99
      %p180 = pneg %p96
      %p181 = pneg %p125
      %p182 = pneg %p122
      %p183 = scmp.lt.s32.totalorder %s15, 1
      %s184 = scalar_select %p183, %s15, 1
      %s185 = smul.addr %s184, 113
      %s186 = smul.addr %s185, 4
      %s187 = scalar_lea.vmem %s4, %s186
      %p188 = scmp.lt.s32.totalorder %s15, 1
      %s189 = scalar_select %p188, %s15, 1
      %s190 = smul.addr %s189, 452
      %s191 = smul.addr %s190, 4
      %s192 = scalar_lea.vmem %s0, %s191
      %p193 = scmp.lt.s32.totalorder %s15, 1
      %s194 = scalar_select %p193, %s15, 1
      %s195 = smul.addr %s194, 113
      %s196 = smul.addr %s195, 4
      %s197 = scalar_lea.vmem %s4, %s196
      %v199 = vld [vmem:[%s192] sm:$0xf]
      %v200 = vld [vmem:[%s192 + $0x4] sm:$0xf]
      %v201 = vld [vmem:[%s192 + $0x8] sm:$0xf]
      %v202 = vld [vmem:[%s192 + $0xc] sm:$0xf]
      %v203 = vld [vmem:[%s192 + $0x10] sm:$0xf]
      %v204 = vld [vmem:[%s192 + $0x14] sm:$0xf]
      %v205 = vld [vmem:[%s192 + $0x18] sm:$0xf]
      %v206 = vld [vmem:[%s192 + $0x1c] sm:$0xf]
      %v207 = vld [vmem:[%s192 + $0x20] sm:$0xf]
      %v208 = vld [vmem:[%s192 + $0x24] sm:$0xf]
      %v209 = vld [vmem:[%s192 + $0x28] sm:$0xf]
      %v210 = vld [vmem:[%s192 + $0x2c] sm:$0xf]
      %v211 = vld [vmem:[%s192 + $0x30] sm:$0xf]
      %v212 = vld [vmem:[%s192 + $0x34] sm:$0xf]
      %v213 = vld [vmem:[%s192 + $0x38] sm:$0xf]
      %v214 = vld [vmem:[%s192 + $0x3c] sm:$0xf]
      %v215 = vld [vmem:[%s192 + $0x40] sm:$0xf]
      %v216 = vld [vmem:[%s192 + $0x44] sm:$0xf]
      %v217 = vld [vmem:[%s192 + $0x48] sm:$0xf]
      %v218 = vld [vmem:[%s192 + $0x4c] sm:$0xf]
      %v219 = vld [vmem:[%s192 + $0x50] sm:$0xf]
      %v220 = vld [vmem:[%s192 + $0x54] sm:$0xf]
      %v221 = vld [vmem:[%s192 + $0x58] sm:$0xf]
      %v222 = vld [vmem:[%s192 + $0x5c] sm:$0xf]
      %v223 = vld [vmem:[%s192 + $0x60] sm:$0xf]
      %v224 = vld [vmem:[%s192 + $0x64] sm:$0xf]
      %v225 = vld [vmem:[%s192 + $0x68] sm:$0xf]
      %v226 = vld [vmem:[%s192 + $0x6c] sm:$0xf]
      %v227 = vld [vmem:[%s192 + $0x70] sm:$0xf]
      %v228 = vld [vmem:[%s192 + $0x74] sm:$0xf]
      %v229 = vld [vmem:[%s192 + $0x78] sm:$0xf]
      %v230 = vld [vmem:[%s192 + $0x7c] sm:$0xf]
      %v231 = vld [vmem:[%s192 + $0x80] sm:$0xf]
      %v232 = vld [vmem:[%s192 + $0x84] sm:$0xf]
      %v233 = vld [vmem:[%s192 + $0x88] sm:$0xf]
      %v234 = vld [vmem:[%s192 + $0x8c] sm:$0xf]
      %v235 = vld [vmem:[%s192 + $0x90] sm:$0xf]
      %v236 = vld [vmem:[%s192 + $0x94] sm:$0xf]
      %v237 = vld [vmem:[%s192 + $0x98] sm:$0xf]
      %v238 = vld [vmem:[%s192 + $0x9c] sm:$0xf]
      %v239 = vld [vmem:[%s192 + $0xa0] sm:$0xf]
      %v240 = vld [vmem:[%s192 + $0xa4] sm:$0xf]
      %v241 = vld [vmem:[%s192 + $0xa8] sm:$0xf]
      %v242 = vld [vmem:[%s192 + $0xac] sm:$0xf]
      %v243 = vld [vmem:[%s192 + $0xb0] sm:$0xf]
      %v244 = vld [vmem:[%s192 + $0xb4] sm:$0xf]
      %v245 = vld [vmem:[%s192 + $0xb8] sm:$0xf]
      %v246 = vld [vmem:[%s192 + $0xbc] sm:$0xf]
      %v247 = vld [vmem:[%s192 + $0xc0] sm:$0xf]
      %v248 = vld [vmem:[%s192 + $0xc4] sm:$0xf]
      %v249 = vld [vmem:[%s192 + $0xc8] sm:$0xf]
      %v250 = vld [vmem:[%s192 + $0xcc] sm:$0xf]
      %v251 = vld [vmem:[%s192 + $0xd0] sm:$0xf]
      %v252 = vld [vmem:[%s192 + $0xd4] sm:$0xf]
      %v253 = vld [vmem:[%s192 + $0xd8] sm:$0xf]
      %v254 = vld [vmem:[%s192 + $0xdc] sm:$0xf]
      %v255 = vld [vmem:[%s192 + $0xe0] sm:$0xf]
      %v256 = vld [vmem:[%s192 + $0xe4] sm:$0xf]
      %v257 = vld [vmem:[%s192 + $0xe8] sm:$0xf]
      %v258 = vld [vmem:[%s192 + $0xec] sm:$0xf]
      %v259 = vld [vmem:[%s192 + $0xf0] sm:$0xf]
      %v260 = vld [vmem:[%s192 + $0xf4] sm:$0xf]
      %v261 = vld [vmem:[%s192 + $0xf8] sm:$0xf]
      %v262 = vld [vmem:[%s192 + $0xfc] sm:$0xf]
      %v263 = vld [vmem:[%s192 + $0x100] sm:$0xf]
      %v264 = vld [vmem:[%s192 + $0x104] sm:$0xf]
      %v265 = vld [vmem:[%s192 + $0x108] sm:$0xf]
      %v266 = vld [vmem:[%s192 + $0x10c] sm:$0xf]
      %v267 = vld [vmem:[%s192 + $0x110] sm:$0xf]
      %v268 = vld [vmem:[%s192 + $0x114] sm:$0xf]
      %v269 = vld [vmem:[%s192 + $0x118] sm:$0xf]
      %v270 = vld [vmem:[%s192 + $0x11c] sm:$0xf]
      %v271 = vld [vmem:[%s192 + $0x120] sm:$0xf]
      %v272 = vld [vmem:[%s192 + $0x124] sm:$0xf]
      %v273 = vld [vmem:[%s192 + $0x128] sm:$0xf]
      %v274 = vld [vmem:[%s192 + $0x12c] sm:$0xf]
      %v275 = vld [vmem:[%s192 + $0x130] sm:$0xf]
      %v276 = vld [vmem:[%s192 + $0x134] sm:$0xf]
      %v277 = vld [vmem:[%s192 + $0x138] sm:$0xf]
      %v278 = vld [vmem:[%s192 + $0x13c] sm:$0xf]
      %v279 = vld [vmem:[%s192 + $0x140] sm:$0xf]
      %v280 = vld [vmem:[%s192 + $0x144] sm:$0xf]
      %v281 = vld [vmem:[%s192 + $0x148] sm:$0xf]
      %v282 = vld [vmem:[%s192 + $0x14c] sm:$0xf]
      %v283 = vld [vmem:[%s192 + $0x150] sm:$0xf]
      %v284 = vld [vmem:[%s192 + $0x154] sm:$0xf]
      %v285 = vld [vmem:[%s192 + $0x158] sm:$0xf]
      %v286 = vld [vmem:[%s192 + $0x15c] sm:$0xf]
      %v287 = vld [vmem:[%s192 + $0x160] sm:$0xf]
      %v288 = vld [vmem:[%s192 + $0x164] sm:$0xf]
      %v289 = vld [vmem:[%s192 + $0x168] sm:$0xf]
      %v290 = vld [vmem:[%s192 + $0x16c] sm:$0xf]
      %v291 = vld [vmem:[%s192 + $0x170] sm:$0xf]
      %v292 = vld [vmem:[%s192 + $0x174] sm:$0xf]
      %v293 = vld [vmem:[%s192 + $0x178] sm:$0xf]
      %v294 = vld [vmem:[%s192 + $0x17c] sm:$0xf]
      %v295 = vld [vmem:[%s192 + $0x180] sm:$0xf]
      %v296 = vld [vmem:[%s192 + $0x184] sm:$0xf]
      %v297 = vld [vmem:[%s192 + $0x188] sm:$0xf]
      %v298 = vld [vmem:[%s192 + $0x18c] sm:$0xf]
      %v299 = vld [vmem:[%s192 + $0x190] sm:$0xf]
      %v300 = vld [vmem:[%s192 + $0x194] sm:$0xf]
      %v301 = vld [vmem:[%s192 + $0x198] sm:$0xf]
      %v302 = vld [vmem:[%s192 + $0x19c] sm:$0xf]
      %v303 = vld [vmem:[%s192 + $0x1a0] sm:$0xf]
      %v304 = vld [vmem:[%s192 + $0x1a4] sm:$0xf]
      %v305 = vld [vmem:[%s192 + $0x1a8] sm:$0xf]
      %v306 = vld [vmem:[%s192 + $0x1ac] sm:$0xf]
      %v307 = vld [vmem:[%s192 + $0x1b0] sm:$0xf]
      %v308 = vld [vmem:[%s192 + $0x1b4] sm:$0xf]
      %v309 = vld [vmem:[%s192 + $0x1b8] sm:$0xf]
      %v310 = vld [vmem:[%s192 + $0x1bc] sm:$0xf]
      %v311 = vld [vmem:[%s192 + $0x1c0] sm:$0xf]
      %v312 = vld [vmem:[%s192 + $0x1c4] sm:$0xf]
      %v313 = vld [vmem:[%s192 + $0x1c8] sm:$0xf]
      %v314 = vld [vmem:[%s192 + $0x1cc] sm:$0xf]
      %v315 = vld [vmem:[%s192 + $0x1d0] sm:$0xf]
      %v316 = vld [vmem:[%s192 + $0x1d4] sm:$0xf]
      %v317 = vld [vmem:[%s192 + $0x1d8] sm:$0xf]
      %v318 = vld [vmem:[%s192 + $0x1dc] sm:$0xf]
      %v319 = vld [vmem:[%s192 + $0x1e0] sm:$0xf]
      %v320 = vld [vmem:[%s192 + $0x1e4] sm:$0xf]
      %v321 = vld [vmem:[%s192 + $0x1e8] sm:$0xf]
      %v322 = vld [vmem:[%s192 + $0x1ec] sm:$0xf]
      %v323 = vld [vmem:[%s192 + $0x1f0] sm:$0xf]
      %v324 = vld [vmem:[%s192 + $0x1f4] sm:$0xf]
      %v325 = vld [vmem:[%s192 + $0x1f8] sm:$0xf]
      %v326 = vld [vmem:[%s192 + $0x1fc] sm:$0xf]
      %v327 = vld [vmem:[%s192 + $0x200] sm:$0xf]
      %v328 = vld [vmem:[%s192 + $0x204] sm:$0xf]
      %v329 = vld [vmem:[%s192 + $0x208] sm:$0xf]
      %v330 = vld [vmem:[%s192 + $0x20c] sm:$0xf]
      %v331 = vld [vmem:[%s192 + $0x210] sm:$0xf]
      %v332 = vld [vmem:[%s192 + $0x214] sm:$0xf]
      %v333 = vld [vmem:[%s192 + $0x218] sm:$0xf]
      %v334 = vld [vmem:[%s192 + $0x21c] sm:$0xf]
      %v335 = vld [vmem:[%s192 + $0x220] sm:$0xf]
      %v336 = vld [vmem:[%s192 + $0x224] sm:$0xf]
      %v337 = vld [vmem:[%s192 + $0x228] sm:$0xf]
      %v338 = vld [vmem:[%s192 + $0x22c] sm:$0xf]
      %v339 = vld [vmem:[%s192 + $0x230] sm:$0xf]
      %v340 = vld [vmem:[%s192 + $0x234] sm:$0xf]
      %v341 = vld [vmem:[%s192 + $0x238] sm:$0xf]
      %v342 = vld [vmem:[%s192 + $0x23c] sm:$0xf]
      %v343 = vld [vmem:[%s192 + $0x240] sm:$0xf]
      %v344 = vld [vmem:[%s192 + $0x244] sm:$0xf]
      %v345 = vld [vmem:[%s192 + $0x248] sm:$0xf]
      %v346 = vld [vmem:[%s192 + $0x24c] sm:$0xf]
      %v347 = vld [vmem:[%s192 + $0x250] sm:$0xf]
      %v348 = vld [vmem:[%s192 + $0x254] sm:$0xf]
      %v349 = vld [vmem:[%s192 + $0x258] sm:$0xf]
      %v350 = vld [vmem:[%s192 + $0x25c] sm:$0xf]
      %v351 = vld [vmem:[%s192 + $0x260] sm:$0xf]
      %v352 = vld [vmem:[%s192 + $0x264] sm:$0xf]
      %v353 = vld [vmem:[%s192 + $0x268] sm:$0xf]
      %v354 = vld [vmem:[%s192 + $0x26c] sm:$0xf]
      %v355 = vld [vmem:[%s192 + $0x270] sm:$0xf]
      %v356 = vld [vmem:[%s192 + $0x274] sm:$0xf]
      %v357 = vld [vmem:[%s192 + $0x278] sm:$0xf]
      %v358 = vld [vmem:[%s192 + $0x27c] sm:$0xf]
      %v359 = vld [vmem:[%s192 + $0x280] sm:$0xf]
      %v360 = vld [vmem:[%s192 + $0x284] sm:$0xf]
      %v361 = vld [vmem:[%s192 + $0x288] sm:$0xf]
      %v362 = vld [vmem:[%s192 + $0x28c] sm:$0xf]
      %v363 = vld [vmem:[%s192 + $0x290] sm:$0xf]
      %v364 = vld [vmem:[%s192 + $0x294] sm:$0xf]
      %v365 = vld [vmem:[%s192 + $0x298] sm:$0xf]
      %v366 = vld [vmem:[%s192 + $0x29c] sm:$0xf]
      %v367 = vld [vmem:[%s192 + $0x2a0] sm:$0xf]
      %v368 = vld [vmem:[%s192 + $0x2a4] sm:$0xf]
      %v369 = vld [vmem:[%s192 + $0x2a8] sm:$0xf]
      %v370 = vld [vmem:[%s192 + $0x2ac] sm:$0xf]
      %v371 = vld [vmem:[%s192 + $0x2b0] sm:$0xf]
      %v372 = vld [vmem:[%s192 + $0x2b4] sm:$0xf]
      %v373 = vld [vmem:[%s192 + $0x2b8] sm:$0xf]
      %v374 = vld [vmem:[%s192 + $0x2bc] sm:$0xf]
      %v375 = vld [vmem:[%s192 + $0x2c0] sm:$0xf]
      %v376 = vld [vmem:[%s192 + $0x2c4] sm:$0xf]
      %v377 = vld [vmem:[%s192 + $0x2c8] sm:$0xf]
      %v378 = vld [vmem:[%s192 + $0x2cc] sm:$0xf]
      %v379 = vld [vmem:[%s192 + $0x2d0] sm:$0xf]
      %v380 = vld [vmem:[%s192 + $0x2d4] sm:$0xf]
      %v381 = vld [vmem:[%s192 + $0x2d8] sm:$0xf]
      %v382 = vld [vmem:[%s192 + $0x2dc] sm:$0xf]
      %v383 = vld [vmem:[%s192 + $0x2e0] sm:$0xf]
      %v384 = vld [vmem:[%s192 + $0x2e4] sm:$0xf]
      %v385 = vld [vmem:[%s192 + $0x2e8] sm:$0xf]
      %v386 = vld [vmem:[%s192 + $0x2ec] sm:$0xf]
      %v387 = vld [vmem:[%s192 + $0x2f0] sm:$0xf]
      %v388 = vld [vmem:[%s192 + $0x2f4] sm:$0xf]
      %v389 = vld [vmem:[%s192 + $0x2f8] sm:$0xf]
      %v390 = vld [vmem:[%s192 + $0x2fc] sm:$0xf]
      %v391 = vld [vmem:[%s192 + $0x300] sm:$0xf]
      %v392 = vld [vmem:[%s192 + $0x304] sm:$0xf]
      %v393 = vld [vmem:[%s192 + $0x308] sm:$0xf]
      %v394 = vld [vmem:[%s192 + $0x30c] sm:$0xf]
      %v395 = vld [vmem:[%s192 + $0x310] sm:$0xf]
      %v396 = vld [vmem:[%s192 + $0x314] sm:$0xf]
      %v397 = vld [vmem:[%s192 + $0x318] sm:$0xf]
      %v398 = vld [vmem:[%s192 + $0x31c] sm:$0xf]
      %v399 = vld [vmem:[%s192 + $0x320] sm:$0xf]
      %v400 = vld [vmem:[%s192 + $0x324] sm:$0xf]
      %v401 = vld [vmem:[%s192 + $0x328] sm:$0xf]
      %v402 = vld [vmem:[%s192 + $0x32c] sm:$0xf]
      %v403 = vld [vmem:[%s192 + $0x330] sm:$0xf]
      %v404 = vld [vmem:[%s192 + $0x334] sm:$0xf]
      %v405 = vld [vmem:[%s192 + $0x338] sm:$0xf]
      %v406 = vld [vmem:[%s192 + $0x33c] sm:$0xf]
      %v407 = vld [vmem:[%s192 + $0x340] sm:$0xf]
      %v408 = vld [vmem:[%s192 + $0x344] sm:$0xf]
      %v409 = vld [vmem:[%s192 + $0x348] sm:$0xf]
      %v410 = vld [vmem:[%s192 + $0x34c] sm:$0xf]
      %v411 = vld [vmem:[%s192 + $0x350] sm:$0xf]
      %v412 = vld [vmem:[%s192 + $0x354] sm:$0xf]
      %v413 = vld [vmem:[%s192 + $0x358] sm:$0xf]
      %v414 = vld [vmem:[%s192 + $0x35c] sm:$0xf]
      %v415 = vld [vmem:[%s192 + $0x360] sm:$0xf]
      %v416 = vld [vmem:[%s192 + $0x364] sm:$0xf]
      %v417 = vld [vmem:[%s192 + $0x368] sm:$0xf]
      %v418 = vld [vmem:[%s192 + $0x36c] sm:$0xf]
      %v419 = vld [vmem:[%s192 + $0x370] sm:$0xf]
      %v420 = vld [vmem:[%s192 + $0x374] sm:$0xf]
      %v421 = vld [vmem:[%s192 + $0x378] sm:$0xf]
      %v422 = vld [vmem:[%s192 + $0x37c] sm:$0xf]
      %v423 = vld [vmem:[%s192 + $0x380] sm:$0xf]
      %v424 = vld [vmem:[%s192 + $0x384] sm:$0xf]
      %v425 = vld [vmem:[%s192 + $0x388] sm:$0xf]
      %v426 = vld [vmem:[%s192 + $0x38c] sm:$0xf]
      %v427 = vld [vmem:[%s192 + $0x390] sm:$0xf]
      %v428 = vld [vmem:[%s192 + $0x394] sm:$0xf]
      %v429 = vld [vmem:[%s192 + $0x398] sm:$0xf]
      %v430 = vld [vmem:[%s192 + $0x39c] sm:$0xf]
      %v431 = vld [vmem:[%s192 + $0x3a0] sm:$0xf]
      %v432 = vld [vmem:[%s192 + $0x3a4] sm:$0xf]
      %v433 = vld [vmem:[%s192 + $0x3a8] sm:$0xf]
      %v434 = vld [vmem:[%s192 + $0x3ac] sm:$0xf]
      %v435 = vld [vmem:[%s192 + $0x3b0] sm:$0xf]
      %v436 = vld [vmem:[%s192 + $0x3b4] sm:$0xf]
      %v437 = vld [vmem:[%s192 + $0x3b8] sm:$0xf]
      %v438 = vld [vmem:[%s192 + $0x3bc] sm:$0xf]
      %v439 = vld [vmem:[%s192 + $0x3c0] sm:$0xf]
      %v440 = vld [vmem:[%s192 + $0x3c4] sm:$0xf]
      %v441 = vld [vmem:[%s192 + $0x3c8] sm:$0xf]
      %v442 = vld [vmem:[%s192 + $0x3cc] sm:$0xf]
      %v443 = vld [vmem:[%s192 + $0x3d0] sm:$0xf]
      %v444 = vld [vmem:[%s192 + $0x3d4] sm:$0xf]
      %v445 = vld [vmem:[%s192 + $0x3d8] sm:$0xf]
      %v446 = vld [vmem:[%s192 + $0x3dc] sm:$0xf]
      %v447 = vld [vmem:[%s192 + $0x3e0] sm:$0xf]
      %v448 = vld [vmem:[%s192 + $0x3e4] sm:$0xf]
      %v449 = vld [vmem:[%s192 + $0x3e8] sm:$0xf]
      %v450 = vld [vmem:[%s192 + $0x3ec] sm:$0xf]
      %v451 = vld [vmem:[%s192 + $0x3f0] sm:$0xf]
      %v452 = vld [vmem:[%s192 + $0x3f4] sm:$0xf]
      %v453 = vld [vmem:[%s192 + $0x3f8] sm:$0xf]
      %v454 = vld [vmem:[%s192 + $0x3fc] sm:$0xf]
      %v455 = vld [vmem:[%s192 + $0x400] sm:$0xf]
      %v456 = vld [vmem:[%s192 + $0x404] sm:$0xf]
      %v457 = vld [vmem:[%s192 + $0x408] sm:$0xf]
      %v458 = vld [vmem:[%s192 + $0x40c] sm:$0xf]
      %v459 = vld [vmem:[%s192 + $0x410] sm:$0xf]
      %v460 = vld [vmem:[%s192 + $0x414] sm:$0xf]
      %v461 = vld [vmem:[%s192 + $0x418] sm:$0xf]
      %v462 = vld [vmem:[%s192 + $0x41c] sm:$0xf]
      %v463 = vld [vmem:[%s192 + $0x420] sm:$0xf]
      %v464 = vld [vmem:[%s192 + $0x424] sm:$0xf]
      %v465 = vld [vmem:[%s192 + $0x428] sm:$0xf]
      %v466 = vld [vmem:[%s192 + $0x42c] sm:$0xf]
      %v467 = vld [vmem:[%s192 + $0x430] sm:$0xf]
      %v468 = vld [vmem:[%s192 + $0x434] sm:$0xf]
      %v469 = vld [vmem:[%s192 + $0x438] sm:$0xf]
      %v470 = vld [vmem:[%s192 + $0x43c] sm:$0xf]
      %v471 = vld [vmem:[%s192 + $0x440] sm:$0xf]
      %v472 = vld [vmem:[%s192 + $0x444] sm:$0xf]
      %v473 = vld [vmem:[%s192 + $0x448] sm:$0xf]
      %v474 = vld [vmem:[%s192 + $0x44c] sm:$0xf]
      %v475 = vld [vmem:[%s192 + $0x450] sm:$0xf]
      %v476 = vld [vmem:[%s192 + $0x454] sm:$0xf]
      %v477 = vld [vmem:[%s192 + $0x458] sm:$0xf]
      %v478 = vld [vmem:[%s192 + $0x45c] sm:$0xf]
      %v479 = vld [vmem:[%s192 + $0x460] sm:$0xf]
      %v480 = vld [vmem:[%s192 + $0x464] sm:$0xf]
      %v481 = vld [vmem:[%s192 + $0x468] sm:$0xf]
      %v482 = vld [vmem:[%s192 + $0x46c] sm:$0xf]
      %v483 = vld [vmem:[%s192 + $0x470] sm:$0xf]
      %v484 = vld [vmem:[%s192 + $0x474] sm:$0xf]
      %v485 = vld [vmem:[%s192 + $0x478] sm:$0xf]
      %v486 = vld [vmem:[%s192 + $0x47c] sm:$0xf]
      %v487 = vld [vmem:[%s192 + $0x480] sm:$0xf]
      %v488 = vld [vmem:[%s192 + $0x484] sm:$0xf]
      %v489 = vld [vmem:[%s192 + $0x488] sm:$0xf]
      %v490 = vld [vmem:[%s192 + $0x48c] sm:$0xf]
      %v491 = vld [vmem:[%s192 + $0x490] sm:$0xf]
      %v492 = vld [vmem:[%s192 + $0x494] sm:$0xf]
      %v493 = vld [vmem:[%s192 + $0x498] sm:$0xf]
      %v494 = vld [vmem:[%s192 + $0x49c] sm:$0xf]
      %v495 = vld [vmem:[%s192 + $0x4a0] sm:$0xf]
      %v496 = vld [vmem:[%s192 + $0x4a4] sm:$0xf]
      %v497 = vld [vmem:[%s192 + $0x4a8] sm:$0xf]
      %v498 = vld [vmem:[%s192 + $0x4ac] sm:$0xf]
      %v499 = vld [vmem:[%s192 + $0x4b0] sm:$0xf]
      %v500 = vld [vmem:[%s192 + $0x4b4] sm:$0xf]
      %v501 = vld [vmem:[%s192 + $0x4b8] sm:$0xf]
      %v502 = vld [vmem:[%s192 + $0x4bc] sm:$0xf]
      %v503 = vld [vmem:[%s192 + $0x4c0] sm:$0xf]
      %v504 = vld [vmem:[%s192 + $0x4c4] sm:$0xf]
      %v505 = vld [vmem:[%s192 + $0x4c8] sm:$0xf]
      %v506 = vld [vmem:[%s192 + $0x4cc] sm:$0xf]
      %v507 = vld [vmem:[%s192 + $0x4d0] sm:$0xf]
      %v508 = vld [vmem:[%s192 + $0x4d4] sm:$0xf]
      %v509 = vld [vmem:[%s192 + $0x4d8] sm:$0xf]
      %v510 = vld [vmem:[%s192 + $0x4dc] sm:$0xf]
      %v511 = vld [vmem:[%s192 + $0x4e0] sm:$0xf]
      %v512 = vld [vmem:[%s192 + $0x4e4] sm:$0xf]
      %v513 = vld [vmem:[%s192 + $0x4e8] sm:$0xf]
      %v514 = vld [vmem:[%s192 + $0x4ec] sm:$0xf]
      %v515 = vld [vmem:[%s192 + $0x4f0] sm:$0xf]
      %v516 = vld [vmem:[%s192 + $0x4f4] sm:$0xf]
      %v517 = vld [vmem:[%s192 + $0x4f8] sm:$0xf]
      %v518 = vld [vmem:[%s192 + $0x4fc] sm:$0xf]
      %v519 = vld [vmem:[%s192 + $0x500] sm:$0xf]
      %v520 = vld [vmem:[%s192 + $0x504] sm:$0xf]
      %v521 = vld [vmem:[%s192 + $0x508] sm:$0xf]
      %v522 = vld [vmem:[%s192 + $0x50c] sm:$0xf]
      %v523 = vld [vmem:[%s192 + $0x510] sm:$0xf]
      %v524 = vld [vmem:[%s192 + $0x514] sm:$0xf]
      %v525 = vld [vmem:[%s192 + $0x518] sm:$0xf]
      %v526 = vld [vmem:[%s192 + $0x51c] sm:$0xf]
      %v527 = vld [vmem:[%s192 + $0x520] sm:$0xf]
      %v528 = vld [vmem:[%s192 + $0x524] sm:$0xf]
      %v529 = vld [vmem:[%s192 + $0x528] sm:$0xf]
      %v530 = vld [vmem:[%s192 + $0x52c] sm:$0xf]
      %v531 = vld [vmem:[%s192 + $0x530] sm:$0xf]
      %v532 = vld [vmem:[%s192 + $0x534] sm:$0xf]
      %v533 = vld [vmem:[%s192 + $0x538] sm:$0xf]
      %v534 = vld [vmem:[%s192 + $0x53c] sm:$0xf]
      %v535 = vld [vmem:[%s192 + $0x540] sm:$0xf]
      %v536 = vld [vmem:[%s192 + $0x544] sm:$0xf]
      %v537 = vld [vmem:[%s192 + $0x548] sm:$0xf]
      %v538 = vld [vmem:[%s192 + $0x54c] sm:$0xf]
      %v539 = vld [vmem:[%s192 + $0x550] sm:$0xf]
      %v540 = vld [vmem:[%s192 + $0x554] sm:$0xf]
      %v541 = vld [vmem:[%s192 + $0x558] sm:$0xf]
      %v542 = vld [vmem:[%s192 + $0x55c] sm:$0xf]
      %v543 = vld [vmem:[%s192 + $0x560] sm:$0xf]
      %v544 = vld [vmem:[%s192 + $0x564] sm:$0xf]
      %v545 = vld [vmem:[%s192 + $0x568] sm:$0xf]
      %v546 = vld [vmem:[%s192 + $0x56c] sm:$0xf]
      %v547 = vld [vmem:[%s192 + $0x570] sm:$0xf]
      %v548 = vld [vmem:[%s192 + $0x574] sm:$0xf]
      %v549 = vld [vmem:[%s192 + $0x578] sm:$0xf]
      %v550 = vld [vmem:[%s192 + $0x57c] sm:$0xf]
      %v551 = vld [vmem:[%s192 + $0x580] sm:$0xf]
      %v552 = vld [vmem:[%s192 + $0x584] sm:$0xf]
      %v553 = vld [vmem:[%s192 + $0x588] sm:$0xf]
      %v554 = vld [vmem:[%s192 + $0x58c] sm:$0xf]
      %v555 = vld [vmem:[%s192 + $0x590] sm:$0xf]
      %v556 = vld [vmem:[%s192 + $0x594] sm:$0xf]
      %v557 = vld [vmem:[%s192 + $0x598] sm:$0xf]
      %v558 = vld [vmem:[%s192 + $0x59c] sm:$0xf]
      %v559 = vld [vmem:[%s192 + $0x5a0] sm:$0xf]
      %v560 = vld [vmem:[%s192 + $0x5a4] sm:$0xf]
      %v561 = vld [vmem:[%s192 + $0x5a8] sm:$0xf]
      %v562 = vld [vmem:[%s192 + $0x5ac] sm:$0xf]
      %v563 = vld [vmem:[%s192 + $0x5b0] sm:$0xf]
      %v564 = vld [vmem:[%s192 + $0x5b4] sm:$0xf]
      %v565 = vld [vmem:[%s192 + $0x5b8] sm:$0xf]
      %v566 = vld [vmem:[%s192 + $0x5bc] sm:$0xf]
      %v567 = vld [vmem:[%s192 + $0x5c0] sm:$0xf]
      %v568 = vld [vmem:[%s192 + $0x5c4] sm:$0xf]
      %v569 = vld [vmem:[%s192 + $0x5c8] sm:$0xf]
      %v570 = vld [vmem:[%s192 + $0x5cc] sm:$0xf]
      %v571 = vld [vmem:[%s192 + $0x5d0] sm:$0xf]
      %v572 = vld [vmem:[%s192 + $0x5d4] sm:$0xf]
      %v573 = vld [vmem:[%s192 + $0x5d8] sm:$0xf]
      %v574 = vld [vmem:[%s192 + $0x5dc] sm:$0xf]
      %v575 = vld [vmem:[%s192 + $0x5e0] sm:$0xf]
      %v576 = vld [vmem:[%s192 + $0x5e4] sm:$0xf]
      %v577 = vld [vmem:[%s192 + $0x5e8] sm:$0xf]
      %v578 = vld [vmem:[%s192 + $0x5ec] sm:$0xf]
      %v579 = vld [vmem:[%s192 + $0x5f0] sm:$0xf]
      %v580 = vld [vmem:[%s192 + $0x5f4] sm:$0xf]
      %v581 = vld [vmem:[%s192 + $0x5f8] sm:$0xf]
      %v582 = vld [vmem:[%s192 + $0x5fc] sm:$0xf]
      %v583 = vld [vmem:[%s192 + $0x600] sm:$0xf]
      %v584 = vld [vmem:[%s192 + $0x604] sm:$0xf]
      %v585 = vld [vmem:[%s192 + $0x608] sm:$0xf]
      %v586 = vld [vmem:[%s192 + $0x60c] sm:$0xf]
      %v587 = vld [vmem:[%s192 + $0x610] sm:$0xf]
      %v588 = vld [vmem:[%s192 + $0x614] sm:$0xf]
      %v589 = vld [vmem:[%s192 + $0x618] sm:$0xf]
      %v590 = vld [vmem:[%s192 + $0x61c] sm:$0xf]
      %v591 = vld [vmem:[%s192 + $0x620] sm:$0xf]
      %v592 = vld [vmem:[%s192 + $0x624] sm:$0xf]
      %v593 = vld [vmem:[%s192 + $0x628] sm:$0xf]
      %v594 = vld [vmem:[%s192 + $0x62c] sm:$0xf]
      %v595 = vld [vmem:[%s192 + $0x630] sm:$0xf]
      %v596 = vld [vmem:[%s192 + $0x634] sm:$0xf]
      %v597 = vld [vmem:[%s192 + $0x638] sm:$0xf]
      %v598 = vld [vmem:[%s192 + $0x63c] sm:$0xf]
      %v599 = vld [vmem:[%s192 + $0x640] sm:$0xf]
      %v600 = vld [vmem:[%s192 + $0x644] sm:$0xf]
      %v601 = vld [vmem:[%s192 + $0x648] sm:$0xf]
      %v602 = vld [vmem:[%s192 + $0x64c] sm:$0xf]
      %v603 = vld [vmem:[%s192 + $0x650] sm:$0xf]
      %v604 = vld [vmem:[%s192 + $0x654] sm:$0xf]
      %v605 = vld [vmem:[%s192 + $0x658] sm:$0xf]
      %v606 = vld [vmem:[%s192 + $0x65c] sm:$0xf]
      %v607 = vld [vmem:[%s192 + $0x660] sm:$0xf]
      %v608 = vld [vmem:[%s192 + $0x664] sm:$0xf]
      %v609 = vld [vmem:[%s192 + $0x668] sm:$0xf]
      %v610 = vld [vmem:[%s192 + $0x66c] sm:$0xf]
      %v611 = vld [vmem:[%s192 + $0x670] sm:$0xf]
      %v612 = vld [vmem:[%s192 + $0x674] sm:$0xf]
      %v613 = vld [vmem:[%s192 + $0x678] sm:$0xf]
      %v614 = vld [vmem:[%s192 + $0x67c] sm:$0xf]
      %v615 = vld [vmem:[%s192 + $0x680] sm:$0xf]
      %v616 = vld [vmem:[%s192 + $0x684] sm:$0xf]
      %v617 = vld [vmem:[%s192 + $0x688] sm:$0xf]
      %v618 = vld [vmem:[%s192 + $0x68c] sm:$0xf]
      %v619 = vld [vmem:[%s192 + $0x690] sm:$0xf]
      %v620 = vld [vmem:[%s192 + $0x694] sm:$0xf]
      %v621 = vld [vmem:[%s192 + $0x698] sm:$0xf]
      %v622 = vld [vmem:[%s192 + $0x69c] sm:$0xf]
      %v623 = vld [vmem:[%s192 + $0x6a0] sm:$0xf]
      %v624 = vld [vmem:[%s192 + $0x6a4] sm:$0xf]
      %v625 = vld [vmem:[%s192 + $0x6a8] sm:$0xf]
      %v626 = vld [vmem:[%s192 + $0x6ac] sm:$0xf]
      %v627 = vld [vmem:[%s192 + $0x6b0] sm:$0xf]
      %v628 = vld [vmem:[%s192 + $0x6b4] sm:$0xf]
      %v629 = vld [vmem:[%s192 + $0x6b8] sm:$0xf]
      %v630 = vld [vmem:[%s192 + $0x6bc] sm:$0xf]
      %v631 = vld [vmem:[%s192 + $0x6c0] sm:$0xf]
      %v632 = vld [vmem:[%s192 + $0x6c4] sm:$0xf]
      %v633 = vld [vmem:[%s192 + $0x6c8] sm:$0xf]
      %v634 = vld [vmem:[%s192 + $0x6cc] sm:$0xf]
      %v635 = vld [vmem:[%s192 + $0x6d0] sm:$0xf]
      %v636 = vld [vmem:[%s192 + $0x6d4] sm:$0xf]
      %v637 = vld [vmem:[%s192 + $0x6d8] sm:$0xf]
      %v638 = vld [vmem:[%s192 + $0x6dc] sm:$0xf]
      %v639 = vld [vmem:[%s192 + $0x6e0] sm:$0xf]
      %v640 = vld [vmem:[%s192 + $0x6e4] sm:$0xf]
      %v641 = vld [vmem:[%s192 + $0x6e8] sm:$0xf]
      %v642 = vld [vmem:[%s192 + $0x6ec] sm:$0xf]
      %v643 = vld [vmem:[%s192 + $0x6f0] sm:$0xf]
      %v644 = vld [vmem:[%s192 + $0x6f4] sm:$0xf]
      %v645 = vld [vmem:[%s192 + $0x6f8] sm:$0xf]
      %v646 = vld [vmem:[%s192 + $0x6fc] sm:$0xf]
      %v647 = vld [vmem:[%s192 + $0x700] sm:$0xf]
      %v648 = vld [vmem:[%s192 + $0x704] sm:$0xf]
      %v649 = vld [vmem:[%s192 + $0x708] sm:$0xf]
      %v650 = vld [vmem:[%s192 + $0x70c] sm:$0xf]
      %v651 = vld [vmem:[%s1] sm:$0xf]
      %v652 = vld [vmem:[%s1 + $0x4] sm:$0xf]
      %v653 = vld [vmem:[%s1 + $0x8] sm:$0xf]
      %v654 = vld [vmem:[%s1 + $0xc] sm:$0xf]
      %v1107 = vunpack.c.l.b16 %v199
      %v1108 = vunpack.c.l.b16 %v200
      %v1109 = vunpack.c.l.b16 %v201
      %v1110 = vunpack.c.l.b16 %v202
      %v1111 = vunpack.c.l.b16 %v203
      %v1112 = vunpack.c.l.b16 %v204
      %v1113 = vunpack.c.l.b16 %v205
      %v1114 = vunpack.c.l.b16 %v206
      %v1115 = vunpack.c.l.b16 %v207
      %v1116 = vunpack.c.l.b16 %v208
      %v1117 = vunpack.c.l.b16 %v209
      %v1118 = vunpack.c.l.b16 %v210
      %v1119 = vunpack.c.l.b16 %v211
      %v1120 = vunpack.c.l.b16 %v212
      %v1121 = vunpack.c.l.b16 %v213
      %v1122 = vunpack.c.l.b16 %v214
      %v1123 = vunpack.c.l.b16 %v215
      %v1124 = vunpack.c.l.b16 %v216
      %v1125 = vunpack.c.l.b16 %v217
      %v1126 = vunpack.c.l.b16 %v218
      %v1127 = vunpack.c.l.b16 %v219
      %v1128 = vunpack.c.l.b16 %v220
      %v1129 = vunpack.c.l.b16 %v221
      %v1130 = vunpack.c.l.b16 %v222
      %v1131 = vunpack.c.l.b16 %v223
      %v1132 = vunpack.c.l.b16 %v224
      %v1133 = vunpack.c.l.b16 %v225
      %v1134 = vunpack.c.l.b16 %v226
      %v1135 = vunpack.c.l.b16 %v227
      %v1136 = vunpack.c.l.b16 %v228
      %v1137 = vunpack.c.l.b16 %v229
      %v1138 = vunpack.c.l.b16 %v230
      %v1139 = vunpack.c.l.b16 %v231
      %v1140 = vunpack.c.l.b16 %v232
      %v1141 = vunpack.c.l.b16 %v233
      %v1142 = vunpack.c.l.b16 %v234
      %v1143 = vunpack.c.l.b16 %v235
      %v1144 = vunpack.c.l.b16 %v236
      %v1145 = vunpack.c.l.b16 %v237
      %v1146 = vunpack.c.l.b16 %v238
      %v1147 = vunpack.c.l.b16 %v239
      %v1148 = vunpack.c.l.b16 %v240
      %v1149 = vunpack.c.l.b16 %v241
      %v1150 = vunpack.c.l.b16 %v242
      %v1151 = vunpack.c.l.b16 %v243
      %v1152 = vunpack.c.l.b16 %v244
      %v1153 = vunpack.c.l.b16 %v245
      %v1154 = vunpack.c.l.b16 %v246
      %v1155 = vunpack.c.l.b16 %v247
      %v1156 = vunpack.c.l.b16 %v248
      %v1157 = vunpack.c.l.b16 %v249
      %v1158 = vunpack.c.l.b16 %v250
      %v1159 = vunpack.c.l.b16 %v251
      %v1160 = vunpack.c.l.b16 %v252
      %v1161 = vunpack.c.l.b16 %v253
      %v1162 = vunpack.c.l.b16 %v254
      %v1163 = vunpack.c.l.b16 %v255
      %v1164 = vunpack.c.l.b16 %v256
      %v1165 = vunpack.c.l.b16 %v257
      %v1166 = vunpack.c.l.b16 %v258
      %v1167 = vunpack.c.l.b16 %v259
      %v1168 = vunpack.c.l.b16 %v260
      %v1169 = vunpack.c.l.b16 %v261
      %v1170 = vunpack.c.l.b16 %v262
      %v1171 = vunpack.c.l.b16 %v263
      %v1172 = vunpack.c.l.b16 %v264
      %v1173 = vunpack.c.l.b16 %v265
      %v1174 = vunpack.c.l.b16 %v266
      %v1175 = vunpack.c.l.b16 %v267
      %v1176 = vunpack.c.l.b16 %v268
      %v1177 = vunpack.c.l.b16 %v269
      %v1178 = vunpack.c.l.b16 %v270
      %v1179 = vunpack.c.l.b16 %v271
      %v1180 = vunpack.c.l.b16 %v272
      %v1181 = vunpack.c.l.b16 %v273
      %v1182 = vunpack.c.l.b16 %v274
      %v1183 = vunpack.c.l.b16 %v275
      %v1184 = vunpack.c.l.b16 %v276
      %v1185 = vunpack.c.l.b16 %v277
      %v1186 = vunpack.c.l.b16 %v278
      %v1187 = vunpack.c.l.b16 %v279
      %v1188 = vunpack.c.l.b16 %v280
      %v1189 = vunpack.c.l.b16 %v281
      %v1190 = vunpack.c.l.b16 %v282
      %v1191 = vunpack.c.l.b16 %v283
      %v1192 = vunpack.c.l.b16 %v284
      %v1193 = vunpack.c.l.b16 %v285
      %v1194 = vunpack.c.l.b16 %v286
      %v1195 = vunpack.c.l.b16 %v287
      %v1196 = vunpack.c.l.b16 %v288
      %v1197 = vunpack.c.l.b16 %v289
      %v1198 = vunpack.c.l.b16 %v290
      %v1199 = vunpack.c.l.b16 %v291
      %v1200 = vunpack.c.l.b16 %v292
      %v1201 = vunpack.c.l.b16 %v293
      %v1202 = vunpack.c.l.b16 %v294
      %v1203 = vunpack.c.l.b16 %v295
      %v1204 = vunpack.c.l.b16 %v296
      %v1205 = vunpack.c.l.b16 %v297
      %v1206 = vunpack.c.l.b16 %v298
      %v1207 = vunpack.c.l.b16 %v299
      %v1208 = vunpack.c.l.b16 %v300
      %v1209 = vunpack.c.l.b16 %v301
      %v1210 = vunpack.c.l.b16 %v302
      %v1211 = vunpack.c.l.b16 %v303
      %v1212 = vunpack.c.l.b16 %v304
      %v1213 = vunpack.c.l.b16 %v305
      %v1214 = vunpack.c.l.b16 %v306
      %v1215 = vunpack.c.l.b16 %v307
      %v1216 = vunpack.c.l.b16 %v308
      %v1217 = vunpack.c.l.b16 %v309
      %v1218 = vunpack.c.l.b16 %v310
      %v1219 = vunpack.c.l.b16 %v311
      %v1220 = vunpack.c.l.b16 %v312
      %v1221 = vunpack.c.l.b16 %v313
      %v1222 = vunpack.c.l.b16 %v314
      %v1223 = vunpack.c.l.b16 %v315
      %v1224 = vunpack.c.l.b16 %v316
      %v1225 = vunpack.c.l.b16 %v317
      %v1226 = vunpack.c.l.b16 %v318
      %v1227 = vunpack.c.l.b16 %v319
      %v1228 = vunpack.c.l.b16 %v320
      %v1229 = vunpack.c.l.b16 %v321
      %v1230 = vunpack.c.l.b16 %v322
      %v1231 = vunpack.c.l.b16 %v323
      %v1232 = vunpack.c.l.b16 %v324
      %v1233 = vunpack.c.l.b16 %v325
      %v1234 = vunpack.c.l.b16 %v326
      %v1235 = vunpack.c.l.b16 %v327
      %v1236 = vunpack.c.l.b16 %v328
      %v1237 = vunpack.c.l.b16 %v329
      %v1238 = vunpack.c.l.b16 %v330
      %v1239 = vunpack.c.l.b16 %v331
      %v1240 = vunpack.c.l.b16 %v332
      %v1241 = vunpack.c.l.b16 %v333
      %v1242 = vunpack.c.l.b16 %v334
      %v1243 = vunpack.c.l.b16 %v335
      %v1244 = vunpack.c.l.b16 %v336
      %v1245 = vunpack.c.l.b16 %v337
      %v1246 = vunpack.c.l.b16 %v338
      %v1247 = vunpack.c.l.b16 %v339
      %v1248 = vunpack.c.l.b16 %v340
      %v1249 = vunpack.c.l.b16 %v341
      %v1250 = vunpack.c.l.b16 %v342
      %v1251 = vunpack.c.l.b16 %v343
      %v1252 = vunpack.c.l.b16 %v344
      %v1253 = vunpack.c.l.b16 %v345
      %v1254 = vunpack.c.l.b16 %v346
      %v1255 = vunpack.c.l.b16 %v347
      %v1256 = vunpack.c.l.b16 %v348
      %v1257 = vunpack.c.l.b16 %v349
      %v1258 = vunpack.c.l.b16 %v350
      %v1259 = vunpack.c.l.b16 %v351
      %v1260 = vunpack.c.l.b16 %v352
      %v1261 = vunpack.c.l.b16 %v353
      %v1262 = vunpack.c.l.b16 %v354
      %v1263 = vunpack.c.l.b16 %v355
      %v1264 = vunpack.c.l.b16 %v356
      %v1265 = vunpack.c.l.b16 %v357
      %v1266 = vunpack.c.l.b16 %v358
      %v1267 = vunpack.c.l.b16 %v359
      %v1268 = vunpack.c.l.b16 %v360
      %v1269 = vunpack.c.l.b16 %v361
      %v1270 = vunpack.c.l.b16 %v362
      %v1271 = vunpack.c.l.b16 %v363
      %v1272 = vunpack.c.l.b16 %v364
      %v1273 = vunpack.c.l.b16 %v365
      %v1274 = vunpack.c.l.b16 %v366
      %v1275 = vunpack.c.l.b16 %v367
      %v1276 = vunpack.c.l.b16 %v368
      %v1277 = vunpack.c.l.b16 %v369
      %v1278 = vunpack.c.l.b16 %v370
      %v1279 = vunpack.c.l.b16 %v371
      %v1280 = vunpack.c.l.b16 %v372
      %v1281 = vunpack.c.l.b16 %v373
      %v1282 = vunpack.c.l.b16 %v374
      %v1283 = vunpack.c.l.b16 %v375
      %v1284 = vunpack.c.l.b16 %v376
      %v1285 = vunpack.c.l.b16 %v377
      %v1286 = vunpack.c.l.b16 %v378
      %v1287 = vunpack.c.l.b16 %v379
      %v1288 = vunpack.c.l.b16 %v380
      %v1289 = vunpack.c.l.b16 %v381
      %v1290 = vunpack.c.l.b16 %v382
      %v1291 = vunpack.c.l.b16 %v383
      %v1292 = vunpack.c.l.b16 %v384
      %v1293 = vunpack.c.l.b16 %v385
      %v1294 = vunpack.c.l.b16 %v386
      %v1295 = vunpack.c.l.b16 %v387
      %v1296 = vunpack.c.l.b16 %v388
      %v1297 = vunpack.c.l.b16 %v389
      %v1298 = vunpack.c.l.b16 %v390
      %v1299 = vunpack.c.l.b16 %v391
      %v1300 = vunpack.c.l.b16 %v392
      %v1301 = vunpack.c.l.b16 %v393
      %v1302 = vunpack.c.l.b16 %v394
      %v1303 = vunpack.c.l.b16 %v395
      %v1304 = vunpack.c.l.b16 %v396
      %v1305 = vunpack.c.l.b16 %v397
      %v1306 = vunpack.c.l.b16 %v398
      %v1307 = vunpack.c.l.b16 %v399
      %v1308 = vunpack.c.l.b16 %v400
      %v1309 = vunpack.c.l.b16 %v401
      %v1310 = vunpack.c.l.b16 %v402
      %v1311 = vunpack.c.l.b16 %v403
      %v1312 = vunpack.c.l.b16 %v404
      %v1313 = vunpack.c.l.b16 %v405
      %v1314 = vunpack.c.l.b16 %v406
      %v1315 = vunpack.c.l.b16 %v407
      %v1316 = vunpack.c.l.b16 %v408
      %v1317 = vunpack.c.l.b16 %v409
      %v1318 = vunpack.c.l.b16 %v410
      %v1319 = vunpack.c.l.b16 %v411
      %v1320 = vunpack.c.l.b16 %v412
      %v1321 = vunpack.c.l.b16 %v413
      %v1322 = vunpack.c.l.b16 %v414
      %v1323 = vunpack.c.l.b16 %v415
      %v1324 = vunpack.c.l.b16 %v416
      %v1325 = vunpack.c.l.b16 %v417
      %v1326 = vunpack.c.l.b16 %v418
      %v1327 = vunpack.c.l.b16 %v419
      %v1328 = vunpack.c.l.b16 %v420
      %v1329 = vunpack.c.l.b16 %v421
      %v1330 = vunpack.c.l.b16 %v422
      %v1331 = vunpack.c.l.b16 %v423
      %v1332 = vunpack.c.l.b16 %v424
      %v1333 = vunpack.c.l.b16 %v425
      %v1334 = vunpack.c.l.b16 %v426
      %v1335 = vunpack.c.l.b16 %v427
      %v1336 = vunpack.c.l.b16 %v428
      %v1337 = vunpack.c.l.b16 %v429
      %v1338 = vunpack.c.l.b16 %v430
      %v1339 = vunpack.c.l.b16 %v431
      %v1340 = vunpack.c.l.b16 %v432
      %v1341 = vunpack.c.l.b16 %v433
      %v1342 = vunpack.c.l.b16 %v434
      %v1343 = vunpack.c.l.b16 %v435
      %v1344 = vunpack.c.l.b16 %v436
      %v1345 = vunpack.c.l.b16 %v437
      %v1346 = vunpack.c.l.b16 %v438
      %v1347 = vunpack.c.l.b16 %v439
      %v1348 = vunpack.c.l.b16 %v440
      %v1349 = vunpack.c.l.b16 %v441
      %v1350 = vunpack.c.l.b16 %v442
      %v1351 = vunpack.c.l.b16 %v443
      %v1352 = vunpack.c.l.b16 %v444
      %v1353 = vunpack.c.l.b16 %v445
      %v1354 = vunpack.c.l.b16 %v446
      %v1355 = vunpack.c.l.b16 %v447
      %v1356 = vunpack.c.l.b16 %v448
      %v1357 = vunpack.c.l.b16 %v449
      %v1358 = vunpack.c.l.b16 %v450
      %v1359 = vunpack.c.l.b16 %v451
      %v1360 = vunpack.c.l.b16 %v452
      %v1361 = vunpack.c.l.b16 %v453
      %v1362 = vunpack.c.l.b16 %v454
      %v1363 = vunpack.c.l.b16 %v455
      %v1364 = vunpack.c.l.b16 %v456
      %v1365 = vunpack.c.l.b16 %v457
      %v1366 = vunpack.c.l.b16 %v458
      %v1367 = vunpack.c.l.b16 %v459
      %v1368 = vunpack.c.l.b16 %v460
      %v1369 = vunpack.c.l.b16 %v461
      %v1370 = vunpack.c.l.b16 %v462
      %v1371 = vunpack.c.l.b16 %v463
      %v1372 = vunpack.c.l.b16 %v464
      %v1373 = vunpack.c.l.b16 %v465
      %v1374 = vunpack.c.l.b16 %v466
      %v1375 = vunpack.c.l.b16 %v467
      %v1376 = vunpack.c.l.b16 %v468
      %v1377 = vunpack.c.l.b16 %v469
      %v1378 = vunpack.c.l.b16 %v470
      %v1379 = vunpack.c.l.b16 %v471
      %v1380 = vunpack.c.l.b16 %v472
      %v1381 = vunpack.c.l.b16 %v473
      %v1382 = vunpack.c.l.b16 %v474
      %v1383 = vunpack.c.l.b16 %v475
      %v1384 = vunpack.c.l.b16 %v476
      %v1385 = vunpack.c.l.b16 %v477
      %v1386 = vunpack.c.l.b16 %v478
      %v1387 = vunpack.c.l.b16 %v479
      %v1388 = vunpack.c.l.b16 %v480
      %v1389 = vunpack.c.l.b16 %v481
      %v1390 = vunpack.c.l.b16 %v482
      %v1391 = vunpack.c.l.b16 %v483
      %v1392 = vunpack.c.l.b16 %v484
      %v1393 = vunpack.c.l.b16 %v485
      %v1394 = vunpack.c.l.b16 %v486
      %v1395 = vunpack.c.l.b16 %v487
      %v1396 = vunpack.c.l.b16 %v488
      %v1397 = vunpack.c.l.b16 %v489
      %v1398 = vunpack.c.l.b16 %v490
      %v1399 = vunpack.c.l.b16 %v491
      %v1400 = vunpack.c.l.b16 %v492
      %v1401 = vunpack.c.l.b16 %v493
      %v1402 = vunpack.c.l.b16 %v494
      %v1403 = vunpack.c.l.b16 %v495
      %v1404 = vunpack.c.l.b16 %v496
      %v1405 = vunpack.c.l.b16 %v497
      %v1406 = vunpack.c.l.b16 %v498
      %v1407 = vunpack.c.l.b16 %v499
      %v1408 = vunpack.c.l.b16 %v500
      %v1409 = vunpack.c.l.b16 %v501
      %v1410 = vunpack.c.l.b16 %v502
      %v1411 = vunpack.c.l.b16 %v503
      %v1412 = vunpack.c.l.b16 %v504
      %v1413 = vunpack.c.l.b16 %v505
      %v1414 = vunpack.c.l.b16 %v506
      %v1415 = vunpack.c.l.b16 %v507
      %v1416 = vunpack.c.l.b16 %v508
      %v1417 = vunpack.c.l.b16 %v509
      %v1418 = vunpack.c.l.b16 %v510
      %v1419 = vunpack.c.l.b16 %v511
      %v1420 = vunpack.c.l.b16 %v512
      %v1421 = vunpack.c.l.b16 %v513
      %v1422 = vunpack.c.l.b16 %v514
      %v1423 = vunpack.c.l.b16 %v515
      %v1424 = vunpack.c.l.b16 %v516
      %v1425 = vunpack.c.l.b16 %v517
      %v1426 = vunpack.c.l.b16 %v518
      %v1427 = vunpack.c.l.b16 %v519
      %v1428 = vunpack.c.l.b16 %v520
      %v1429 = vunpack.c.l.b16 %v521
      %v1430 = vunpack.c.l.b16 %v522
      %v1431 = vunpack.c.l.b16 %v523
      %v1432 = vunpack.c.l.b16 %v524
      %v1433 = vunpack.c.l.b16 %v525
      %v1434 = vunpack.c.l.b16 %v526
      %v1435 = vunpack.c.l.b16 %v527
      %v1436 = vunpack.c.l.b16 %v528
      %v1437 = vunpack.c.l.b16 %v529
      %v1438 = vunpack.c.l.b16 %v530
      %v1439 = vunpack.c.l.b16 %v531
      %v1440 = vunpack.c.l.b16 %v532
      %v1441 = vunpack.c.l.b16 %v533
      %v1442 = vunpack.c.l.b16 %v534
      %v1443 = vunpack.c.l.b16 %v535
      %v1444 = vunpack.c.l.b16 %v536
      %v1445 = vunpack.c.l.b16 %v537
      %v1446 = vunpack.c.l.b16 %v538
      %v1447 = vunpack.c.l.b16 %v539
      %v1448 = vunpack.c.l.b16 %v540
      %v1449 = vunpack.c.l.b16 %v541
      %v1450 = vunpack.c.l.b16 %v542
      %v1451 = vunpack.c.l.b16 %v543
      %v1452 = vunpack.c.l.b16 %v544
      %v1453 = vunpack.c.l.b16 %v545
      %v1454 = vunpack.c.l.b16 %v546
      %v1455 = vunpack.c.l.b16 %v547
      %v1456 = vunpack.c.l.b16 %v548
      %v1457 = vunpack.c.l.b16 %v549
      %v1458 = vunpack.c.l.b16 %v550
      %v1459 = vunpack.c.l.b16 %v551
      %v1460 = vunpack.c.l.b16 %v552
      %v1461 = vunpack.c.l.b16 %v553
      %v1462 = vunpack.c.l.b16 %v554
      %v1463 = vunpack.c.l.b16 %v555
      %v1464 = vunpack.c.l.b16 %v556
      %v1465 = vunpack.c.l.b16 %v557
      %v1466 = vunpack.c.l.b16 %v558
      %v1467 = vunpack.c.l.b16 %v559
      %v1468 = vunpack.c.l.b16 %v560
      %v1469 = vunpack.c.l.b16 %v561
      %v1470 = vunpack.c.l.b16 %v562
      %v1471 = vunpack.c.l.b16 %v563
      %v1472 = vunpack.c.l.b16 %v564
      %v1473 = vunpack.c.l.b16 %v565
      %v1474 = vunpack.c.l.b16 %v566
      %v1475 = vunpack.c.l.b16 %v567
      %v1476 = vunpack.c.l.b16 %v568
      %v1477 = vunpack.c.l.b16 %v569
      %v1478 = vunpack.c.l.b16 %v570
      %v1479 = vunpack.c.l.b16 %v571
      %v1480 = vunpack.c.l.b16 %v572
      %v1481 = vunpack.c.l.b16 %v573
      %v1482 = vunpack.c.l.b16 %v574
      %v1483 = vunpack.c.l.b16 %v575
      %v1484 = vunpack.c.l.b16 %v576
      %v1485 = vunpack.c.l.b16 %v577
      %v1486 = vunpack.c.l.b16 %v578
      %v1487 = vunpack.c.l.b16 %v579
      %v1488 = vunpack.c.l.b16 %v580
      %v1489 = vunpack.c.l.b16 %v581
      %v1490 = vunpack.c.l.b16 %v582
      %v1491 = vunpack.c.l.b16 %v583
      %v1492 = vunpack.c.l.b16 %v584
      %v1493 = vunpack.c.l.b16 %v585
      %v1494 = vunpack.c.l.b16 %v586
      %v1495 = vunpack.c.l.b16 %v587
      %v1496 = vunpack.c.l.b16 %v588
      %v1497 = vunpack.c.l.b16 %v589
      %v1498 = vunpack.c.l.b16 %v590
      %v1499 = vunpack.c.l.b16 %v591
      %v1500 = vunpack.c.l.b16 %v592
      %v1501 = vunpack.c.l.b16 %v593
      %v1502 = vunpack.c.l.b16 %v594
      %v1503 = vunpack.c.l.b16 %v595
      %v1504 = vunpack.c.l.b16 %v596
      %v1505 = vunpack.c.l.b16 %v597
      %v1506 = vunpack.c.l.b16 %v598
      %v1507 = vunpack.c.l.b16 %v599
      %v1508 = vunpack.c.l.b16 %v600
      %v1509 = vunpack.c.l.b16 %v601
      %v1510 = vunpack.c.l.b16 %v602
      %v1511 = vunpack.c.l.b16 %v603
      %v1512 = vunpack.c.l.b16 %v604
      %v1513 = vunpack.c.l.b16 %v605
      %v1514 = vunpack.c.l.b16 %v606
      %v1515 = vunpack.c.l.b16 %v607
      %v1516 = vunpack.c.l.b16 %v608
      %v1517 = vunpack.c.l.b16 %v609
      %v1518 = vunpack.c.l.b16 %v610
      %v1519 = vunpack.c.l.b16 %v611
      %v1520 = vunpack.c.l.b16 %v612
      %v1521 = vunpack.c.l.b16 %v613
      %v1522 = vunpack.c.l.b16 %v614
      %v1523 = vunpack.c.l.b16 %v615
      %v1524 = vunpack.c.l.b16 %v616
      %v1525 = vunpack.c.l.b16 %v617
      %v1526 = vunpack.c.l.b16 %v618
      %v1527 = vunpack.c.l.b16 %v619
      %v1528 = vunpack.c.l.b16 %v620
      %v1529 = vunpack.c.l.b16 %v621
      %v1530 = vunpack.c.l.b16 %v622
      %v1531 = vunpack.c.l.b16 %v623
      %v1532 = vunpack.c.l.b16 %v624
      %v1533 = vunpack.c.l.b16 %v625
      %v1534 = vunpack.c.l.b16 %v626
      %v1535 = vunpack.c.l.b16 %v627
      %v1536 = vunpack.c.l.b16 %v628
      %v1537 = vunpack.c.l.b16 %v629
      %v1538 = vunpack.c.l.b16 %v630
      %v1539 = vunpack.c.l.b16 %v631
      %v1540 = vunpack.c.l.b16 %v632
      %v1541 = vunpack.c.l.b16 %v633
      %v1542 = vunpack.c.l.b16 %v634
      %v1543 = vunpack.c.l.b16 %v635
      %v1544 = vunpack.c.l.b16 %v636
      %v1545 = vunpack.c.l.b16 %v637
      %v1546 = vunpack.c.l.b16 %v638
      %v1547 = vunpack.c.l.b16 %v639
      %v1548 = vunpack.c.l.b16 %v640
      %v1549 = vunpack.c.l.b16 %v641
      %v1550 = vunpack.c.l.b16 %v642
      %v1551 = vunpack.c.l.b16 %v643
      %v1552 = vunpack.c.l.b16 %v644
      %v1553 = vunpack.c.l.b16 %v645
      %v1554 = vunpack.c.l.b16 %v646
      %v1555 = vunpack.c.l.b16 %v647
      %v1556 = vunpack.c.l.b16 %v648
      %v1557 = vunpack.c.l.b16 %v649
      %v1558 = vunpack.c.l.b16 %v650
      %v1559 = vpack.c.b16 %v1108, %v1107
      %v1560 = vpack.c.b16 %v1110, %v1109
      %v1561 = vpack.c.b16 %v1112, %v1111
      %v1562 = vpack.c.b16 %v1114, %v1113
      %v1563 = vpack.c.b16 %v1116, %v1115
      %v1564 = vpack.c.b16 %v1118, %v1117
      %v1565 = vpack.c.b16 %v1120, %v1119
      %v1566 = vpack.c.b16 %v1122, %v1121
      %v1567 = vpack.c.b16 %v1124, %v1123
      %v1568 = vpack.c.b16 %v1126, %v1125
      %v1569 = vpack.c.b16 %v1128, %v1127
      %v1570 = vpack.c.b16 %v1130, %v1129
      %v1571 = vpack.c.b16 %v1132, %v1131
      %v1572 = vpack.c.b16 %v1134, %v1133
      %v1573 = vpack.c.b16 %v1136, %v1135
      %v1574 = vpack.c.b16 %v1138, %v1137
      %v1575 = vpack.c.b16 %v1140, %v1139
      %v1576 = vpack.c.b16 %v1142, %v1141
      %v1577 = vpack.c.b16 %v1144, %v1143
      %v1578 = vpack.c.b16 %v1146, %v1145
      %v1579 = vpack.c.b16 %v1148, %v1147
      %v1580 = vpack.c.b16 %v1150, %v1149
      %v1581 = vpack.c.b16 %v1152, %v1151
      %v1582 = vpack.c.b16 %v1154, %v1153
      %v1583 = vpack.c.b16 %v1156, %v1155
      %v1584 = vpack.c.b16 %v1158, %v1157
      %v1585 = vpack.c.b16 %v1160, %v1159
      %v1586 = vpack.c.b16 %v1162, %v1161
      %v1587 = vpack.c.b16 %v1164, %v1163
      %v1588 = vpack.c.b16 %v1166, %v1165
      %v1589 = vpack.c.b16 %v1168, %v1167
      %v1590 = vpack.c.b16 %v1170, %v1169
      %v1591 = vpack.c.b16 %v1172, %v1171
      %v1592 = vpack.c.b16 %v1174, %v1173
      %v1593 = vpack.c.b16 %v1176, %v1175
      %v1594 = vpack.c.b16 %v1178, %v1177
      %v1595 = vpack.c.b16 %v1180, %v1179
      %v1596 = vpack.c.b16 %v1182, %v1181
      %v1597 = vpack.c.b16 %v1184, %v1183
      %v1598 = vpack.c.b16 %v1186, %v1185
      %v1599 = vpack.c.b16 %v1188, %v1187
      %v1600 = vpack.c.b16 %v1190, %v1189
      %v1601 = vpack.c.b16 %v1192, %v1191
      %v1602 = vpack.c.b16 %v1194, %v1193
      %v1603 = vpack.c.b16 %v1196, %v1195
      %v1604 = vpack.c.b16 %v1198, %v1197
      %v1605 = vpack.c.b16 %v1200, %v1199
      %v1606 = vpack.c.b16 %v1202, %v1201
      %v1607 = vpack.c.b16 %v1204, %v1203
      %v1608 = vpack.c.b16 %v1206, %v1205
      %v1609 = vpack.c.b16 %v1208, %v1207
      %v1610 = vpack.c.b16 %v1210, %v1209
      %v1611 = vpack.c.b16 %v1212, %v1211
      %v1612 = vpack.c.b16 %v1214, %v1213
      %v1613 = vpack.c.b16 %v1216, %v1215
      %v1614 = vpack.c.b16 %v1218, %v1217
      %v1615 = vpack.c.b16 %v1220, %v1219
      %v1616 = vpack.c.b16 %v1222, %v1221
      %v1617 = vpack.c.b16 %v1224, %v1223
      %v1618 = vpack.c.b16 %v1226, %v1225
      %v1619 = vpack.c.b16 %v1228, %v1227
      %v1620 = vpack.c.b16 %v1230, %v1229
      %v1621 = vpack.c.b16 %v1232, %v1231
      %v1622 = vpack.c.b16 %v1234, %v1233
      %v1623 = vpack.c.b16 %v1236, %v1235
      %v1624 = vpack.c.b16 %v1238, %v1237
      %v1625 = vpack.c.b16 %v1240, %v1239
      %v1626 = vpack.c.b16 %v1242, %v1241
      %v1627 = vpack.c.b16 %v1244, %v1243
      %v1628 = vpack.c.b16 %v1246, %v1245
      %v1629 = vpack.c.b16 %v1248, %v1247
      %v1630 = vpack.c.b16 %v1250, %v1249
      %v1631 = vpack.c.b16 %v1252, %v1251
      %v1632 = vpack.c.b16 %v1254, %v1253
      %v1633 = vpack.c.b16 %v1256, %v1255
      %v1634 = vpack.c.b16 %v1258, %v1257
      %v1635 = vpack.c.b16 %v1260, %v1259
      %v1636 = vpack.c.b16 %v1262, %v1261
      %v1637 = vpack.c.b16 %v1264, %v1263
      %v1638 = vpack.c.b16 %v1266, %v1265
      %v1639 = vpack.c.b16 %v1268, %v1267
      %v1640 = vpack.c.b16 %v1270, %v1269
      %v1641 = vpack.c.b16 %v1272, %v1271
      %v1642 = vpack.c.b16 %v1274, %v1273
      %v1643 = vpack.c.b16 %v1276, %v1275
      %v1644 = vpack.c.b16 %v1278, %v1277
      %v1645 = vpack.c.b16 %v1280, %v1279
      %v1646 = vpack.c.b16 %v1282, %v1281
      %v1647 = vpack.c.b16 %v1284, %v1283
      %v1648 = vpack.c.b16 %v1286, %v1285
      %v1649 = vpack.c.b16 %v1288, %v1287
      %v1650 = vpack.c.b16 %v1290, %v1289
      %v1651 = vpack.c.b16 %v1292, %v1291
      %v1652 = vpack.c.b16 %v1294, %v1293
      %v1653 = vpack.c.b16 %v1296, %v1295
      %v1654 = vpack.c.b16 %v1298, %v1297
      %v1655 = vpack.c.b16 %v1300, %v1299
      %v1656 = vpack.c.b16 %v1302, %v1301
      %v1657 = vpack.c.b16 %v1304, %v1303
      %v1658 = vpack.c.b16 %v1306, %v1305
      %v1659 = vpack.c.b16 %v1308, %v1307
      %v1660 = vpack.c.b16 %v1310, %v1309
      %v1661 = vpack.c.b16 %v1312, %v1311
      %v1662 = vpack.c.b16 %v1314, %v1313
      %v1663 = vpack.c.b16 %v1316, %v1315
      %v1664 = vpack.c.b16 %v1318, %v1317
      %v1665 = vpack.c.b16 %v1320, %v1319
      %v1666 = vpack.c.b16 %v1322, %v1321
      %v1667 = vpack.c.b16 %v1324, %v1323
      %v1668 = vpack.c.b16 %v1326, %v1325
      %v1669 = vpack.c.b16 %v1328, %v1327
      %v1670 = vpack.c.b16 %v1330, %v1329
      %v1671 = vpack.c.b16 %v1332, %v1331
      %v1672 = vpack.c.b16 %v1334, %v1333
      %v1673 = vpack.c.b16 %v1336, %v1335
      %v1674 = vpack.c.b16 %v1338, %v1337
      %v1675 = vpack.c.b16 %v1340, %v1339
      %v1676 = vpack.c.b16 %v1342, %v1341
      %v1677 = vpack.c.b16 %v1344, %v1343
      %v1678 = vpack.c.b16 %v1346, %v1345
      %v1679 = vpack.c.b16 %v1348, %v1347
      %v1680 = vpack.c.b16 %v1350, %v1349
      %v1681 = vpack.c.b16 %v1352, %v1351
      %v1682 = vpack.c.b16 %v1354, %v1353
      %v1683 = vpack.c.b16 %v1356, %v1355
      %v1684 = vpack.c.b16 %v1358, %v1357
      %v1685 = vpack.c.b16 %v1360, %v1359
      %v1686 = vpack.c.b16 %v1362, %v1361
      %v1687 = vpack.c.b16 %v1364, %v1363
      %v1688 = vpack.c.b16 %v1366, %v1365
      %v1689 = vpack.c.b16 %v1368, %v1367
      %v1690 = vpack.c.b16 %v1370, %v1369
      %v1691 = vpack.c.b16 %v1372, %v1371
      %v1692 = vpack.c.b16 %v1374, %v1373
      %v1693 = vpack.c.b16 %v1376, %v1375
      %v1694 = vpack.c.b16 %v1378, %v1377
      %v1695 = vpack.c.b16 %v1380, %v1379
      %v1696 = vpack.c.b16 %v1382, %v1381
      %v1697 = vpack.c.b16 %v1384, %v1383
      %v1698 = vpack.c.b16 %v1386, %v1385
      %v1699 = vpack.c.b16 %v1388, %v1387
      %v1700 = vpack.c.b16 %v1390, %v1389
      %v1701 = vpack.c.b16 %v1392, %v1391
      %v1702 = vpack.c.b16 %v1394, %v1393
      %v1703 = vpack.c.b16 %v1396, %v1395
      %v1704 = vpack.c.b16 %v1398, %v1397
      %v1705 = vpack.c.b16 %v1400, %v1399
      %v1706 = vpack.c.b16 %v1402, %v1401
      %v1707 = vpack.c.b16 %v1404, %v1403
      %v1708 = vpack.c.b16 %v1406, %v1405
      %v1709 = vpack.c.b16 %v1408, %v1407
      %v1710 = vpack.c.b16 %v1410, %v1409
      %v1711 = vpack.c.b16 %v1412, %v1411
      %v1712 = vpack.c.b16 %v1414, %v1413
      %v1713 = vpack.c.b16 %v1416, %v1415
      %v1714 = vpack.c.b16 %v1418, %v1417
      %v1715 = vpack.c.b16 %v1420, %v1419
      %v1716 = vpack.c.b16 %v1422, %v1421
      %v1717 = vpack.c.b16 %v1424, %v1423
      %v1718 = vpack.c.b16 %v1426, %v1425
      %v1719 = vpack.c.b16 %v1428, %v1427
      %v1720 = vpack.c.b16 %v1430, %v1429
      %v1721 = vpack.c.b16 %v1432, %v1431
      %v1722 = vpack.c.b16 %v1434, %v1433
      %v1723 = vpack.c.b16 %v1436, %v1435
      %v1724 = vpack.c.b16 %v1438, %v1437
      %v1725 = vpack.c.b16 %v1440, %v1439
      %v1726 = vpack.c.b16 %v1442, %v1441
      %v1727 = vpack.c.b16 %v1444, %v1443
      %v1728 = vpack.c.b16 %v1446, %v1445
      %v1729 = vpack.c.b16 %v1448, %v1447
      %v1730 = vpack.c.b16 %v1450, %v1449
      %v1731 = vpack.c.b16 %v1452, %v1451
      %v1732 = vpack.c.b16 %v1454, %v1453
      %v1733 = vpack.c.b16 %v1456, %v1455
      %v1734 = vpack.c.b16 %v1458, %v1457
      %v1735 = vpack.c.b16 %v1460, %v1459
      %v1736 = vpack.c.b16 %v1462, %v1461
      %v1737 = vpack.c.b16 %v1464, %v1463
      %v1738 = vpack.c.b16 %v1466, %v1465
      %v1739 = vpack.c.b16 %v1468, %v1467
      %v1740 = vpack.c.b16 %v1470, %v1469
      %v1741 = vpack.c.b16 %v1472, %v1471
      %v1742 = vpack.c.b16 %v1474, %v1473
      %v1743 = vpack.c.b16 %v1476, %v1475
      %v1744 = vpack.c.b16 %v1478, %v1477
      %v1745 = vpack.c.b16 %v1480, %v1479
      %v1746 = vpack.c.b16 %v1482, %v1481
      %v1747 = vpack.c.b16 %v1484, %v1483
      %v1748 = vpack.c.b16 %v1486, %v1485
      %v1749 = vpack.c.b16 %v1488, %v1487
      %v1750 = vpack.c.b16 %v1490, %v1489
      %v1751 = vpack.c.b16 %v1492, %v1491
      %v1752 = vpack.c.b16 %v1494, %v1493
      %v1753 = vpack.c.b16 %v1496, %v1495
      %v1754 = vpack.c.b16 %v1498, %v1497
      %v1755 = vpack.c.b16 %v1500, %v1499
      %v1756 = vpack.c.b16 %v1502, %v1501
      %v1757 = vpack.c.b16 %v1504, %v1503
      %v1758 = vpack.c.b16 %v1506, %v1505
      %v1759 = vpack.c.b16 %v1508, %v1507
      %v1760 = vpack.c.b16 %v1510, %v1509
      %v1761 = vpack.c.b16 %v1512, %v1511
      %v1762 = vpack.c.b16 %v1514, %v1513
      %v1763 = vpack.c.b16 %v1516, %v1515
      %v1764 = vpack.c.b16 %v1518, %v1517
      %v1765 = vpack.c.b16 %v1520, %v1519
      %v1766 = vpack.c.b16 %v1522, %v1521
      %v1767 = vpack.c.b16 %v1524, %v1523
      %v1768 = vpack.c.b16 %v1526, %v1525
      %v1769 = vpack.c.b16 %v1528, %v1527
      %v1770 = vpack.c.b16 %v1530, %v1529
      %v1771 = vpack.c.b16 %v1532, %v1531
      %v1772 = vpack.c.b16 %v1534, %v1533
      %v1773 = vpack.c.b16 %v1536, %v1535
      %v1774 = vpack.c.b16 %v1538, %v1537
      %v1775 = vpack.c.b16 %v1540, %v1539
      %v1776 = vpack.c.b16 %v1542, %v1541
      %v1777 = vpack.c.b16 %v1544, %v1543
      %v1778 = vpack.c.b16 %v1546, %v1545
      %v1779 = vpack.c.b16 %v1548, %v1547
      %v1780 = vpack.c.b16 %v1550, %v1549
      %v1781 = vpack.c.b16 %v1552, %v1551
      %v1782 = vpack.c.b16 %v1554, %v1553
      %v1783 = vpack.c.b16 %v1556, %v1555
      %v1784 = vpack.c.b16 %v1558, %v1557
      %v1789 = vunpack.c.l.b16 %v651
      %v1790 = vunpack.c.l.b16 %v652
      %v1791 = vunpack.c.l.b16 %v653
      %v1792 = vunpack.c.l.b16 %v654
      %v1793 = vpack.c.b16 %v1790, %v1789
      %v1794 = vpack.c.b16 %v1792, %v1791
      %vm1797 = vcmask 261120
      %v1799 = vsel %vm1797, %v1559, 0
      %v1802 = vsel %vm1797, %v1560, 0
      %v1805 = vsel %vm1797, %v1561, 0
      %v1808 = vsel %vm1797, %v1562, 0
      %v1811 = vsel %vm1797, %v1563, 0
      %v1814 = vsel %vm1797, %v1564, 0
      %v1817 = vsel %vm1797, %v1565, 0
      %v1820 = vsel %vm1797, %v1566, 0
      %v1823 = vsel %vm1797, %v1567, 0
      %v1826 = vsel %vm1797, %v1568, 0
      %v1829 = vsel %vm1797, %v1569, 0
      %v1832 = vsel %vm1797, %v1570, 0
      %v1835 = vsel %vm1797, %v1571, 0
      %v1838 = vsel %vm1797, %v1572, 0
      %v1841 = vsel %vm1797, %v1573, 0
      %v1844 = vsel %vm1797, %v1574, 0
      %v1847 = vsel %vm1797, %v1575, 0
      %v1850 = vsel %vm1797, %v1576, 0
      %v1853 = vsel %vm1797, %v1577, 0
      %v1856 = vsel %vm1797, %v1578, 0
      %v1859 = vsel %vm1797, %v1579, 0
      %v1862 = vsel %vm1797, %v1580, 0
      %v1865 = vsel %vm1797, %v1581, 0
      %v1868 = vsel %vm1797, %v1582, 0
      %v1871 = vsel %vm1797, %v1583, 0
      %v1874 = vsel %vm1797, %v1584, 0
      %v1877 = vsel %vm1797, %v1585, 0
      %v1880 = vsel %vm1797, %v1586, 0
      %v1883 = vsel %vm1797, %v1587, 0
      %v1886 = vsel %vm1797, %v1588, 0
      %v1889 = vsel %vm1797, %v1589, 0
      %v1892 = vsel %vm1797, %v1590, 0
      %v1895 = vsel %vm1797, %v1591, 0
      %v1898 = vsel %vm1797, %v1592, 0
      %v1901 = vsel %vm1797, %v1593, 0
      %v1904 = vsel %vm1797, %v1594, 0
      %v1907 = vsel %vm1797, %v1595, 0
      %v1910 = vsel %vm1797, %v1596, 0
      %v1913 = vsel %vm1797, %v1597, 0
      %v1916 = vsel %vm1797, %v1598, 0
      %v1919 = vsel %vm1797, %v1599, 0
      %v1922 = vsel %vm1797, %v1600, 0
      %v1925 = vsel %vm1797, %v1601, 0
      %v1928 = vsel %vm1797, %v1602, 0
      %v1931 = vsel %vm1797, %v1603, 0
      %v1934 = vsel %vm1797, %v1604, 0
      %v1937 = vsel %vm1797, %v1605, 0
      %v1940 = vsel %vm1797, %v1606, 0
      %v1943 = vsel %vm1797, %v1607, 0
      %v1946 = vsel %vm1797, %v1608, 0
      %v1949 = vsel %vm1797, %v1609, 0
      %v1952 = vsel %vm1797, %v1610, 0
      %v1955 = vsel %vm1797, %v1611, 0
      %v1958 = vsel %vm1797, %v1612, 0
      %v1961 = vsel %vm1797, %v1613, 0
      %v1964 = vsel %vm1797, %v1614, 0
      %v1967 = vsel %vm1797, %v1615, 0
      %v1970 = vsel %vm1797, %v1616, 0
      %v1973 = vsel %vm1797, %v1617, 0
      %v1976 = vsel %vm1797, %v1618, 0
      %v1979 = vsel %vm1797, %v1619, 0
      %v1982 = vsel %vm1797, %v1620, 0
      %v1985 = vsel %vm1797, %v1621, 0
      %v1988 = vsel %vm1797, %v1622, 0
      %v1991 = vsel %vm1797, %v1623, 0
      %v1994 = vsel %vm1797, %v1624, 0
      %v1997 = vsel %vm1797, %v1625, 0
      %v2000 = vsel %vm1797, %v1626, 0
      %v2003 = vsel %vm1797, %v1627, 0
      %v2006 = vsel %vm1797, %v1628, 0
      %v2009 = vsel %vm1797, %v1629, 0
      %v2012 = vsel %vm1797, %v1630, 0
      %v2015 = vsel %vm1797, %v1631, 0
      %v2018 = vsel %vm1797, %v1632, 0
      %v2021 = vsel %vm1797, %v1633, 0
      %v2024 = vsel %vm1797, %v1634, 0
      %v2027 = vsel %vm1797, %v1635, 0
      %v2030 = vsel %vm1797, %v1636, 0
      %v2033 = vsel %vm1797, %v1637, 0
      %v2036 = vsel %vm1797, %v1638, 0
      %v2039 = vsel %vm1797, %v1639, 0
      %v2042 = vsel %vm1797, %v1640, 0
      %v2045 = vsel %vm1797, %v1641, 0
      %v2048 = vsel %vm1797, %v1642, 0
      %v2051 = vsel %vm1797, %v1643, 0
      %v2054 = vsel %vm1797, %v1644, 0
      %v2057 = vsel %vm1797, %v1645, 0
      %v2060 = vsel %vm1797, %v1646, 0
      %v2063 = vsel %vm1797, %v1647, 0
      %v2066 = vsel %vm1797, %v1648, 0
      %v2069 = vsel %vm1797, %v1649, 0
      %v2072 = vsel %vm1797, %v1650, 0
      %v2075 = vsel %vm1797, %v1651, 0
      %v2078 = vsel %vm1797, %v1652, 0
      %v2081 = vsel %vm1797, %v1653, 0
      %v2084 = vsel %vm1797, %v1654, 0
      %v2087 = vsel %vm1797, %v1655, 0
      %v2090 = vsel %vm1797, %v1656, 0
      %v2093 = vsel %vm1797, %v1657, 0
      %v2096 = vsel %vm1797, %v1658, 0
      %v2099 = vsel %vm1797, %v1659, 0
      %v2102 = vsel %vm1797, %v1660, 0
      %v2105 = vsel %vm1797, %v1661, 0
      %v2108 = vsel %vm1797, %v1662, 0
      %v2111 = vsel %vm1797, %v1663, 0
      %v2114 = vsel %vm1797, %v1664, 0
      %v2117 = vsel %vm1797, %v1665, 0
      %v2120 = vsel %vm1797, %v1666, 0
      %v2123 = vsel %vm1797, %v1667, 0
      %v2126 = vsel %vm1797, %v1668, 0
      %v2129 = vsel %vm1797, %v1669, 0
      %v2132 = vsel %vm1797, %v1670, 0
      %v2135 = vsel %vm1797, %v1671, 0
      %v2138 = vsel %vm1797, %v1672, 0
      %v2141 = vsel %vm1797, %v1673, 0
      %v2144 = vsel %vm1797, %v1674, 0
      %v2147 = vsel %vm1797, %v1675, 0
      %v2150 = vsel %vm1797, %v1676, 0
      %v2153 = vsel %vm1797, %v1677, 0
      %v2156 = vsel %vm1797, %v1678, 0
      %v2159 = vsel %vm1797, %v1679, 0
      %v2162 = vsel %vm1797, %v1680, 0
      %v2165 = vsel %vm1797, %v1681, 0
      %v2168 = vsel %vm1797, %v1682, 0
      %v2171 = vsel %vm1797, %v1683, 0
      %v2174 = vsel %vm1797, %v1684, 0
      %v2177 = vsel %vm1797, %v1685, 0
      %v2180 = vsel %vm1797, %v1686, 0
      %v2183 = vsel %vm1797, %v1687, 0
      %v2186 = vsel %vm1797, %v1688, 0
      %v2189 = vsel %vm1797, %v1689, 0
      %v2192 = vsel %vm1797, %v1690, 0
      %v2195 = vsel %vm1797, %v1691, 0
      %v2198 = vsel %vm1797, %v1692, 0
      %v2201 = vsel %vm1797, %v1693, 0
      %v2204 = vsel %vm1797, %v1694, 0
      %v2207 = vsel %vm1797, %v1695, 0
      %v2210 = vsel %vm1797, %v1696, 0
      %v2213 = vsel %vm1797, %v1697, 0
      %v2216 = vsel %vm1797, %v1698, 0
      %v2219 = vsel %vm1797, %v1699, 0
      %v2222 = vsel %vm1797, %v1700, 0
      %v2225 = vsel %vm1797, %v1701, 0
      %v2228 = vsel %vm1797, %v1702, 0
      %v2231 = vsel %vm1797, %v1703, 0
      %v2234 = vsel %vm1797, %v1704, 0
      %v2237 = vsel %vm1797, %v1705, 0
      %v2240 = vsel %vm1797, %v1706, 0
      %v2243 = vsel %vm1797, %v1707, 0
      %v2246 = vsel %vm1797, %v1708, 0
      %v2249 = vsel %vm1797, %v1709, 0
      %v2252 = vsel %vm1797, %v1710, 0
      %v2255 = vsel %vm1797, %v1711, 0
      %v2258 = vsel %vm1797, %v1712, 0
      %v2261 = vsel %vm1797, %v1713, 0
      %v2264 = vsel %vm1797, %v1714, 0
      %v2267 = vsel %vm1797, %v1715, 0
      %v2270 = vsel %vm1797, %v1716, 0
      %v2273 = vsel %vm1797, %v1717, 0
      %v2276 = vsel %vm1797, %v1718, 0
      %v2279 = vsel %vm1797, %v1719, 0
      %v2282 = vsel %vm1797, %v1720, 0
      %v2285 = vsel %vm1797, %v1721, 0
      %v2288 = vsel %vm1797, %v1722, 0
      %v2291 = vsel %vm1797, %v1723, 0
      %v2294 = vsel %vm1797, %v1724, 0
      %v2297 = vsel %vm1797, %v1725, 0
      %v2300 = vsel %vm1797, %v1726, 0
      %v2303 = vsel %vm1797, %v1727, 0
      %v2306 = vsel %vm1797, %v1728, 0
      %v2309 = vsel %vm1797, %v1729, 0
      %v2312 = vsel %vm1797, %v1730, 0
      %v2315 = vsel %vm1797, %v1731, 0
      %v2318 = vsel %vm1797, %v1732, 0
      %v2321 = vsel %vm1797, %v1733, 0
      %v2324 = vsel %vm1797, %v1734, 0
      %v2327 = vsel %vm1797, %v1735, 0
      %v2330 = vsel %vm1797, %v1736, 0
      %v2333 = vsel %vm1797, %v1737, 0
      %v2336 = vsel %vm1797, %v1738, 0
      %v2339 = vsel %vm1797, %v1739, 0
      %v2342 = vsel %vm1797, %v1740, 0
      %v2345 = vsel %vm1797, %v1741, 0
      %v2348 = vsel %vm1797, %v1742, 0
      %v2351 = vsel %vm1797, %v1743, 0
      %v2354 = vsel %vm1797, %v1744, 0
      %v2357 = vsel %vm1797, %v1745, 0
      %v2360 = vsel %vm1797, %v1746, 0
      %v2363 = vsel %vm1797, %v1747, 0
      %v2366 = vsel %vm1797, %v1748, 0
      %v2369 = vsel %vm1797, %v1749, 0
      %v2372 = vsel %vm1797, %v1750, 0
      %v2375 = vsel %vm1797, %v1751, 0
      %v2378 = vsel %vm1797, %v1752, 0
      %v2381 = vsel %vm1797, %v1753, 0
      %v2384 = vsel %vm1797, %v1754, 0
      %v2387 = vsel %vm1797, %v1755, 0
      %v2390 = vsel %vm1797, %v1756, 0
      %v2393 = vsel %vm1797, %v1757, 0
      %v2396 = vsel %vm1797, %v1758, 0
      %v2399 = vsel %vm1797, %v1759, 0
      %v2402 = vsel %vm1797, %v1760, 0
      %v2405 = vsel %vm1797, %v1761, 0
      %v2408 = vsel %vm1797, %v1762, 0
      %v2411 = vsel %vm1797, %v1763, 0
      %v2414 = vsel %vm1797, %v1764, 0
      %v2417 = vsel %vm1797, %v1765, 0
      %v2420 = vsel %vm1797, %v1766, 0
      %v2423 = vsel %vm1797, %v1767, 0
      %v2426 = vsel %vm1797, %v1768, 0
      %v2429 = vsel %vm1797, %v1769, 0
      %v2432 = vsel %vm1797, %v1770, 0
      %v2435 = vsel %vm1797, %v1771, 0
      %v2438 = vsel %vm1797, %v1772, 0
      %v2441 = vsel %vm1797, %v1773, 0
      %v2444 = vsel %vm1797, %v1774, 0
      %v2447 = vsel %vm1797, %v1775, 0
      %v2450 = vsel %vm1797, %v1776, 0
      %v2453 = vsel %vm1797, %v1777, 0
      %v2456 = vsel %vm1797, %v1778, 0
      %v2459 = vsel %vm1797, %v1779, 0
      %v2462 = vsel %vm1797, %v1780, 0
      %v2465 = vsel %vm1797, %v1781, 0
      %v2468 = vsel %vm1797, %v1782, 0
      %v2471 = vsel %vm1797, %v1783, 0
      %v2474 = vsel %vm1797, %v1784, 0
      %2476 = vmatprep.subr.bf16.mxu0 0
      %2477 = vmatpush1.bf16.msra.mxu0 %v1793
      %2478 = vmatprep.subr.bf16.mxu0 0
      %2479 = vmatpush1.bf16.msra.mxu0 %v1794
      %2480 = vmatprep.subr.bf16.mxu0 0
      %2481 = vmatpush1.bf16.msra.mxu0 0
      %2482 = vmatprep.subr.bf16.mxu0 0
      %2483 = vmatpush1.bf16.msra.mxu0 0
      %2484 = vmatprep.subr.bf16.mxu0 0
      %2485 = vmatpush1.bf16.msra.mxu0 0
      %2486 = vmatprep.subr.bf16.mxu0 0
      %2487 = vmatpush1.bf16.msra.mxu0 0
      %2488 = vmatprep.subr.bf16.mxu0 0
      %2489 = vmatpush1.bf16.msra.mxu0 0
      %2490 = vmatprep.subr.bf16.mxu0 0
      %2491 = vmatpush1.bf16.msra.mxu0 0
      %2492 = vmatprep.subr.bf16.mxu0 0
      %2493 = vmatpush1.bf16.msra.mxu0 0
      %2494 = vmatprep.subr.bf16.mxu0 0
      %2495 = vmatpush1.bf16.msra.mxu0 0
      %2496 = vmatprep.subr.bf16.mxu0 0
      %2497 = vmatpush1.bf16.msra.mxu0 0
      %2498 = vmatprep.subr.bf16.mxu0 0
      %2499 = vmatpush1.bf16.msra.mxu0 0
      %2500 = vmatprep.subr.bf16.mxu0 0
      %2501 = vmatpush1.bf16.msra.mxu0 0
      %2502 = vmatprep.subr.bf16.mxu0 0
      %2503 = vmatpush1.bf16.msra.mxu0 0
      %2504 = vmatprep.subr.bf16.mxu0 0
      %2505 = vmatpush1.bf16.msra.mxu0 0
      %2506 = vmatprep.subr.bf16.mxu0 0
      %2507 = vmatpush1.bf16.msra.mxu0 0
      %2508 = vmatprep.mubr.bf16.mxu0 0
      %2509 = vmatmul.mubr.bf16.gmra.mrb[0].mxu0 %v1799
      %v2510 = vpop.f32.mrb[0].mxu0
      %v2511 = vadd.f32 0.0, %v2510
      %v2512 = vpop.f32.mrb[0].mxu0
      %v2513 = vpop.f32.mrb[0].mxu0
      %v2514 = vadd.f32 0.0, %v2513
      %v2515 = vpop.f32.mrb[0].mxu0
      %2516 = vmatprep.mubr.bf16.mxu0 0
      %2517 = vmatmul.mubr.bf16.gmra.mrb[0].mxu0 %v1802
      %v2518 = vpop.f32.mrb[0].mxu0
      %v2519 = vadd.f32 0.0, %v2518
      %v2520 = vpop.f32.mrb[0].mxu0
      %v2521 = vpop.f32.mrb[0].mxu0
      %v2522 = vadd.f32 0.0, %v2521
      %v2523 = vpop.f32.mrb[0].mxu0
      %2524 = vmatprep.mubr.bf16.mxu0 0
      %2525 = vmatmul.mubr.bf16.gmra.mrb[0].mxu0 %v1805
      %v2526 = vpop.f32.mrb[0].mxu0
      %v2527 = vadd.f32 0.0, %v2526
      %v2528 = vpop.f32.mrb[0].mxu0
      %v2529 = vpop.f32.mrb[0].mxu0
      %v2530 = vadd.f32 0.0, %v2529
      %v2531 = vpop.f32.mrb[0].mxu0
      %2532 = vmatprep.mubr.bf16.mxu0 0
      %2533 = vmatmul.mubr.bf16.gmra.mrb[0].mxu0 %v1808
      %v2534 = vpop.f32.mrb[0].mxu0
      %v2535 = vadd.f32 0.0, %v2534
      %v2536 = vpop.f32.mrb[0].mxu0
      %v2537 = vpop.f32.mrb[0].mxu0
      %v2538 = vadd.f32 0.0, %v2537
      %v2539 = vpop.f32.mrb[0].mxu0
      %2540 = vmatprep.mubr.bf16.mxu0 0
      %2541 = vmatmul.mubr.bf16.gmra.mrb[0].mxu0 %v1811
      %v2542 = vpop.f32.mrb[0].mxu0
      %v2543 = vadd.f32 0.0, %v2542
      %v2544 = vpop.f32.mrb[0].mxu0
      %v2545 = vpop.f32.mrb[0].mxu0
      %v2546 = vadd.f32 0.0, %v2545
      %v2547 = vpop.f32.mrb[0].mxu0
      %2548 = vmatprep.mubr.bf16.mxu0 0
      %2549 = vmatmul.mubr.bf16.gmra.mrb[0].mxu0 %v1814
      %v2550 = vpop.f32.mrb[0].mxu0
      %v2551 = vadd.f32 0.0, %v2550
      %v2552 = vpop.f32.mrb[0].mxu0
      %v2553 = vpop.f32.mrb[0].mxu0
      %v2554 = vadd.f32 0.0, %v2553
      %v2555 = vpop.f32.mrb[0].mxu0
      %2556 = vmatprep.mubr.bf16.mxu0 0
      %2557 = vmatmul.mubr.bf16.gmra.mrb[0].mxu0 %v1817
      %v2558 = vpop.f32.mrb[0].mxu0
      %v2559 = vadd.f32 0.0, %v2558
      %v2560 = vpop.f32.mrb[0].mxu0
      %v2561 = vpop.f32.mrb[0].mxu0
      %v2562 = vadd.f32 0.0, %v2561
      %v2563 = vpop.f32.mrb[0].mxu0
      %2564 = vmatprep.mubr.bf16.mxu0 0
      %2565 = vmatmul.mubr.bf16.gmra.mrb[0].mxu0 %v1820
      %v2566 = vpop.f32.mrb[0].mxu0
      %v2567 = vadd.f32 0.0, %v2566
      %v2568 = vpop.f32.mrb[0].mxu0
      %v2569 = vpop.f32.mrb[0].mxu0
      %v2570 = vadd.f32 0.0, %v2569
      %v2571 = vpop.f32.mrb[0].mxu0
      %2572 = vmatprep.mubr.bf16.mxu0 0
      %2573 = vmatmul.mubr.bf16.gmra.mrb[0].mxu0 %v1823
      %v2574 = vpop.f32.mrb[0].mxu0
      %v2575 = vadd.f32 0.0, %v2574
      %v2576 = vpop.f32.mrb[0].mxu0
      %v2577 = vpop.f32.mrb[0].mxu0
      %v2578 = vadd.f32 0.0, %v2577
      %v2579 = vpop.f32.mrb[0].mxu0
      %2580 = vmatprep.mubr.bf16.mxu0 0
      %2581 = vmatmul.mubr.bf16.gmra.mrb[0].mxu0 %v1826
      %v2582 = vpop.f32.mrb[0].mxu0
      %v2583 = vadd.f32 0.0, %v2582
      %v2584 = vpop.f32.mrb[0].mxu0
      %v2585 = vpop.f32.mrb[0].mxu0
      %v2586 = vadd.f32 0.0, %v2585
      %v2587 = vpop.f32.mrb[0].mxu0
      %2588 = vmatprep.mubr.bf16.mxu0 0
      %2589 = vmatmul.mubr.bf16.gmra.mrb[0].mxu0 %v1829
      %v2590 = vpop.f32.mrb[0].mxu0
      %v2591 = vadd.f32 0.0, %v2590
      %v2592 = vpop.f32.mrb[0].mxu0
      %v2593 = vpop.f32.mrb[0].mxu0
      %v2594 = vadd.f32 0.0, %v2593
      %v2595 = vpop.f32.mrb[0].mxu0
      %2596 = vmatprep.mubr.bf16.mxu0 0
      %2597 = vmatmul.mubr.bf16.gmra.mrb[0].mxu0 %v1832
      %v2598 = vpop.f32.mrb[0].mxu0
      %v2599 = vadd.f32 0.0, %v2598
      %v2600 = vpop.f32.mrb[0].mxu0
      %v2601 = vpop.f32.mrb[0].mxu0
      %v2602 = vadd.f32 0.0, %v2601
      %v2603 = vpop.f32.mrb[0].mxu0
      %2604 = vmatprep.mubr.bf16.mxu0 0
      %2605 = vmatmul.mubr.bf16.gmra.mrb[0].mxu0 %v1835
      %v2606 = vpop.f32.mrb[0].mxu0
      %v2607 = vadd.f32 0.0, %v2606
      %v2608 = vpop.f32.mrb[0].mxu0
      %v2609 = vpop.f32.mrb[0].mxu0
      %v2610 = vadd.f32 0.0, %v2609
      %v2611 = vpop.f32.mrb[0].mxu0
      %2612 = vmatprep.mubr.bf16.mxu0 0
      %2613 = vmatmul.mubr.bf16.gmra.mrb[0].mxu0 %v1838
      %v2614 = vpop.f32.mrb[0].mxu0
      %v2615 = vadd.f32 0.0, %v2614
      %v2616 = vpop.f32.mrb[0].mxu0
      %v2617 = vpop.f32.mrb[0].mxu0
      %v2618 = vadd.f32 0.0, %v2617
      %v2619 = vpop.f32.mrb[0].mxu0
      %2620 = vmatprep.mubr.bf16.mxu0 0
      %2621 = vmatmul.mubr.bf16.gmra.mrb[0].mxu0 %v1841
      %v2622 = vpop.f32.mrb[0].mxu0
      %v2623 = vadd.f32 0.0, %v2622
      %v2624 = vpop.f32.mrb[0].mxu0
      %v2625 = vpop.f32.mrb[0].mxu0
      %v2626 = vadd.f32 0.0, %v2625
      %v2627 = vpop.f32.mrb[0].mxu0
      %2628 = vmatprep.mubr.bf16.mxu0 0
      %2629 = vmatmul.mubr.bf16.gmra.mrb[0].mxu0 %v1844
      %v2630 = vpop.f32.mrb[0].mxu0
      %v2631 = vadd.f32 0.0, %v2630
      %v2632 = vpop.f32.mrb[0].mxu0
      %v2633 = vpop.f32.mrb[0].mxu0
      %v2634 = vadd.f32 0.0, %v2633
      %v2635 = vpop.f32.mrb[0].mxu0
      %2636 = vmatprep.mubr.bf16.mxu0 0
      %2637 = vmatmul.mubr.bf16.gmra.mrb[0].mxu0 %v1847
      %v2638 = vpop.f32.mrb[0].mxu0
      %v2639 = vadd.f32 0.0, %v2638
      %v2640 = vpop.f32.mrb[0].mxu0
      %v2641 = vpop.f32.mrb[0].mxu0
      %v2642 = vadd.f32 0.0, %v2641
      %v2643 = vpop.f32.mrb[0].mxu0
      %2644 = vmatprep.mubr.bf16.mxu0 0
      %2645 = vmatmul.mubr.bf16.gmra.mrb[0].mxu0 %v1850
      %v2646 = vpop.f32.mrb[0].mxu0
      %v2647 = vadd.f32 0.0, %v2646
      %v2648 = vpop.f32.mrb[0].mxu0
      %v2649 = vpop.f32.mrb[0].mxu0
      %v2650 = vadd.f32 0.0, %v2649
      %v2651 = vpop.f32.mrb[0].mxu0
      %2652 = vmatprep.mubr.bf16.mxu0 0
      %2653 = vmatmul.mubr.bf16.gmra.mrb[0].mxu0 %v1853
      %v2654 = vpop.f32.mrb[0].mxu0
      %v2655 = vadd.f32 0.0, %v2654
      %v2656 = vpop.f32.mrb[0].mxu0
      %v2657 = vpop.f32.mrb[0].mxu0
      %v2658 = vadd.f32 0.0, %v2657
      %v2659 = vpop.f32.mrb[0].mxu0
      %2660 = vmatprep.mubr.bf16.mxu0 0
      %2661 = vmatmul.mubr.bf16.gmra.mrb[0].mxu0 %v1856
      %v2662 = vpop.f32.mrb[0].mxu0
      %v2663 = vadd.f32 0.0, %v2662
      %v2664 = vpop.f32.mrb[0].mxu0
      %v2665 = vpop.f32.mrb[0].mxu0
      %v2666 = vadd.f32 0.0, %v2665
      %v2667 = vpop.f32.mrb[0].mxu0
      %2668 = vmatprep.mubr.bf16.mxu0 0
      %2669 = vmatmul.mubr.bf16.gmra.mrb[0].mxu0 %v1859
      %v2670 = vpop.f32.mrb[0].mxu0
      %v2671 = vadd.f32 0.0, %v2670
      %v2672 = vpop.f32.mrb[0].mxu0
      %v2673 = vpop.f32.mrb[0].mxu0
      %v2674 = vadd.f32 0.0, %v2673
      %v2675 = vpop.f32.mrb[0].mxu0
      %2676 = vmatprep.mubr.bf16.mxu0 0
      %2677 = vmatmul.mubr.bf16.gmra.mrb[0].mxu0 %v1862
      %v2678 = vpop.f32.mrb[0].mxu0
      %v2679 = vadd.f32 0.0, %v2678
      %v2680 = vpop.f32.mrb[0].mxu0
      %v2681 = vpop.f32.mrb[0].mxu0
      %v2682 = vadd.f32 0.0, %v2681
      %v2683 = vpop.f32.mrb[0].mxu0
      %2684 = vmatprep.mubr.bf16.mxu0 0
      %2685 = vmatmul.mubr.bf16.gmra.mrb[0].mxu0 %v1865
      %v2686 = vpop.f32.mrb[0].mxu0
      %v2687 = vadd.f32 0.0, %v2686
      %v2688 = vpop.f32.mrb[0].mxu0
      %v2689 = vpop.f32.mrb[0].mxu0
      %v2690 = vadd.f32 0.0, %v2689
      %v2691 = vpop.f32.mrb[0].mxu0
      %2692 = vmatprep.mubr.bf16.mxu0 0
      %2693 = vmatmul.mubr.bf16.gmra.mrb[0].mxu0 %v1868
      %v2694 = vpop.f32.mrb[0].mxu0
      %v2695 = vadd.f32 0.0, %v2694
      %v2696 = vpop.f32.mrb[0].mxu0
      %v2697 = vpop.f32.mrb[0].mxu0
      %v2698 = vadd.f32 0.0, %v2697
      %v2699 = vpop.f32.mrb[0].mxu0
      %2700 = vmatprep.mubr.bf16.mxu0 0
      %2701 = vmatmul.mubr.bf16.gmra.mrb[0].mxu0 %v1871
      %v2702 = vpop.f32.mrb[0].mxu0
      %v2703 = vadd.f32 0.0, %v2702
      %v2704 = vpop.f32.mrb[0].mxu0
      %v2705 = vpop.f32.mrb[0].mxu0
      %v2706 = vadd.f32 0.0, %v2705
      %v2707 = vpop.f32.mrb[0].mxu0
      %2708 = vmatprep.mubr.bf16.mxu0 0
      %2709 = vmatmul.mubr.bf16.gmra.mrb[0].mxu0 %v1874
      %v2710 = vpop.f32.mrb[0].mxu0
      %v2711 = vadd.f32 0.0, %v2710
      %v2712 = vpop.f32.mrb[0].mxu0
      %v2713 = vpop.f32.mrb[0].mxu0
      %v2714 = vadd.f32 0.0, %v2713
      %v2715 = vpop.f32.mrb[0].mxu0
      %2716 = vmatprep.mubr.bf16.mxu0 0
      %2717 = vmatmul.mubr.bf16.gmra.mrb[0].mxu0 %v1877
      %v2718 = vpop.f32.mrb[0].mxu0
      %v2719 = vadd.f32 0.0, %v2718
      %v2720 = vpop.f32.mrb[0].mxu0
      %v2721 = vpop.f32.mrb[0].mxu0
      %v2722 = vadd.f32 0.0, %v2721
      %v2723 = vpop.f32.mrb[0].mxu0
      %2724 = vmatprep.mubr.bf16.mxu0 0
      %2725 = vmatmul.mubr.bf16.gmra.mrb[0].mxu0 %v1880
      %v2726 = vpop.f32.mrb[0].mxu0
      %v2727 = vadd.f32 0.0, %v2726
      %v2728 = vpop.f32.mrb[0].mxu0
      %v2729 = vpop.f32.mrb[0].mxu0
      %v2730 = vadd.f32 0.0, %v2729
      %v2731 = vpop.f32.mrb[0].mxu0
      %2732 = vmatprep.mubr.bf16.mxu0 0
      %2733 = vmatmul.mubr.bf16.gmra.mrb[0].mxu0 %v1883
      %v2734 = vpop.f32.mrb[0].mxu0
      %v2735 = vadd.f32 0.0, %v2734
      %v2736 = vpop.f32.mrb[0].mxu0
      %v2737 = vpop.f32.mrb[0].mxu0
      %v2738 = vadd.f32 0.0, %v2737
      %v2739 = vpop.f32.mrb[0].mxu0
      %2740 = vmatprep.mubr.bf16.mxu0 0
      %2741 = vmatmul.mubr.bf16.gmra.mrb[0].mxu0 %v1886
      %v2742 = vpop.f32.mrb[0].mxu0
      %v2743 = vadd.f32 0.0, %v2742
      %v2744 = vpop.f32.mrb[0].mxu0
      %v2745 = vpop.f32.mrb[0].mxu0
      %v2746 = vadd.f32 0.0, %v2745
      %v2747 = vpop.f32.mrb[0].mxu0
      %2748 = vmatprep.mubr.bf16.mxu0 0
      %2749 = vmatmul.mubr.bf16.gmra.mrb[0].mxu0 %v1889
      %v2750 = vpop.f32.mrb[0].mxu0
      %v2751 = vadd.f32 0.0, %v2750
      %v2752 = vpop.f32.mrb[0].mxu0
      %v2753 = vpop.f32.mrb[0].mxu0
      %v2754 = vadd.f32 0.0, %v2753
      %v2755 = vpop.f32.mrb[0].mxu0
      %2756 = vmatprep.mubr.bf16.mxu0 0
      %2757 = vmatmul.mubr.bf16.gmra.mrb[0].mxu0 %v1892
      %v2758 = vpop.f32.mrb[0].mxu0
      %v2759 = vadd.f32 0.0, %v2758
      %v2760 = vpop.f32.mrb[0].mxu0
      %v2761 = vpop.f32.mrb[0].mxu0
      %v2762 = vadd.f32 0.0, %v2761
      %v2763 = vpop.f32.mrb[0].mxu0
      %2764 = vmatprep.mubr.bf16.mxu0 0
      %2765 = vmatmul.mubr.bf16.gmra.mrb[0].mxu0 %v1895
      %v2766 = vpop.f32.mrb[0].mxu0
      %v2767 = vadd.f32 0.0, %v2766
      %v2768 = vpop.f32.mrb[0].mxu0
      %v2769 = vpop.f32.mrb[0].mxu0
      %v2770 = vadd.f32 0.0, %v2769
      %v2771 = vpop.f32.mrb[0].mxu0
      %2772 = vmatprep.mubr.bf16.mxu0 0
      %2773 = vmatmul.mubr.bf16.gmra.mrb[0].mxu0 %v1898
      %v2774 = vpop.f32.mrb[0].mxu0
      %v2775 = vadd.f32 0.0, %v2774
      %v2776 = vpop.f32.mrb[0].mxu0
      %v2777 = vpop.f32.mrb[0].mxu0
      %v2778 = vadd.f32 0.0, %v2777
      %v2779 = vpop.f32.mrb[0].mxu0
      %2780 = vmatprep.mubr.bf16.mxu0 0
      %2781 = vmatmul.mubr.bf16.gmra.mrb[0].mxu0 %v1901
      %v2782 = vpop.f32.mrb[0].mxu0
      %v2783 = vadd.f32 0.0, %v2782
      %v2784 = vpop.f32.mrb[0].mxu0
      %v2785 = vpop.f32.mrb[0].mxu0
      %v2786 = vadd.f32 0.0, %v2785
      %v2787 = vpop.f32.mrb[0].mxu0
      %2788 = vmatprep.mubr.bf16.mxu0 0
      %2789 = vmatmul.mubr.bf16.gmra.mrb[0].mxu0 %v1904
      %v2790 = vpop.f32.mrb[0].mxu0
      %v2791 = vadd.f32 0.0, %v2790
      %v2792 = vpop.f32.mrb[0].mxu0
      %v2793 = vpop.f32.mrb[0].mxu0
      %v2794 = vadd.f32 0.0, %v2793
      %v2795 = vpop.f32.mrb[0].mxu0
      %2796 = vmatprep.mubr.bf16.mxu0 0
      %2797 = vmatmul.mubr.bf16.gmra.mrb[0].mxu0 %v1907
      %v2798 = vpop.f32.mrb[0].mxu0
      %v2799 = vadd.f32 0.0, %v2798
      %v2800 = vpop.f32.mrb[0].mxu0
      %v2801 = vpop.f32.mrb[0].mxu0
      %v2802 = vadd.f32 0.0, %v2801
      %v2803 = vpop.f32.mrb[0].mxu0
      %2804 = vmatprep.mubr.bf16.mxu0 0
      %2805 = vmatmul.mubr.bf16.gmra.mrb[0].mxu0 %v1910
      %v2806 = vpop.f32.mrb[0].mxu0
      %v2807 = vadd.f32 0.0, %v2806
      %v2808 = vpop.f32.mrb[0].mxu0
      %v2809 = vpop.f32.mrb[0].mxu0
      %v2810 = vadd.f32 0.0, %v2809
      %v2811 = vpop.f32.mrb[0].mxu0
      %2812 = vmatprep.mubr.bf16.mxu0 0
      %2813 = vmatmul.mubr.bf16.gmra.mrb[0].mxu0 %v1913
      %v2814 = vpop.f32.mrb[0].mxu0
      %v2815 = vadd.f32 0.0, %v2814
      %v2816 = vpop.f32.mrb[0].mxu0
      %v2817 = vpop.f32.mrb[0].mxu0
      %v2818 = vadd.f32 0.0, %v2817
      %v2819 = vpop.f32.mrb[0].mxu0
      %2820 = vmatprep.mubr.bf16.mxu0 0
      %2821 = vmatmul.mubr.bf16.gmra.mrb[0].mxu0 %v1916
      %v2822 = vpop.f32.mrb[0].mxu0
      %v2823 = vadd.f32 0.0, %v2822
      %v2824 = vpop.f32.mrb[0].mxu0
      %v2825 = vpop.f32.mrb[0].mxu0
      %v2826 = vadd.f32 0.0, %v2825
      %v2827 = vpop.f32.mrb[0].mxu0
      %2828 = vmatprep.mubr.bf16.mxu0 0
      %2829 = vmatmul.mubr.bf16.gmra.mrb[0].mxu0 %v1919
      %v2830 = vpop.f32.mrb[0].mxu0
      %v2831 = vadd.f32 0.0, %v2830
      %v2832 = vpop.f32.mrb[0].mxu0
      %v2833 = vpop.f32.mrb[0].mxu0
      %v2834 = vadd.f32 0.0, %v2833
      %v2835 = vpop.f32.mrb[0].mxu0
      %2836 = vmatprep.mubr.bf16.mxu0 0
      %2837 = vmatmul.mubr.bf16.gmra.mrb[0].mxu0 %v1922
      %v2838 = vpop.f32.mrb[0].mxu0
      %v2839 = vadd.f32 0.0, %v2838
      %v2840 = vpop.f32.mrb[0].mxu0
      %v2841 = vpop.f32.mrb[0].mxu0
      %v2842 = vadd.f32 0.0, %v2841
      %v2843 = vpop.f32.mrb[0].mxu0
      %2844 = vmatprep.mubr.bf16.mxu0 0
      %2845 = vmatmul.mubr.bf16.gmra.mrb[0].mxu0 %v1925
      %v2846 = vpop.f32.mrb[0].mxu0
      %v2847 = vadd.f32 0.0, %v2846
      %v2848 = vpop.f32.mrb[0].mxu0
      %v2849 = vpop.f32.mrb[0].mxu0
      %v2850 = vadd.f32 0.0, %v2849
      %v2851 = vpop.f32.mrb[0].mxu0
      %2852 = vmatprep.mubr.bf16.mxu0 0
      %2853 = vmatmul.mubr.bf16.gmra.mrb[0].mxu0 %v1928
      %v2854 = vpop.f32.mrb[0].mxu0
      %v2855 = vadd.f32 0.0, %v2854
      %v2856 = vpop.f32.mrb[0].mxu0
      %v2857 = vpop.f32.mrb[0].mxu0
      %v2858 = vadd.f32 0.0, %v2857
      %v2859 = vpop.f32.mrb[0].mxu0
      %2860 = vmatprep.mubr.bf16.mxu0 0
      %2861 = vmatmul.mubr.bf16.gmra.mrb[0].mxu0 %v1931
      %v2862 = vpop.f32.mrb[0].mxu0
      %v2863 = vadd.f32 0.0, %v2862
      %v2864 = vpop.f32.mrb[0].mxu0
      %v2865 = vpop.f32.mrb[0].mxu0
      %v2866 = vadd.f32 0.0, %v2865
      %v2867 = vpop.f32.mrb[0].mxu0
      %2868 = vmatprep.mubr.bf16.mxu0 0
      %2869 = vmatmul.mubr.bf16.gmra.mrb[0].mxu0 %v1934
      %v2870 = vpop.f32.mrb[0].mxu0
      %v2871 = vadd.f32 0.0, %v2870
      %v2872 = vpop.f32.mrb[0].mxu0
      %v2873 = vpop.f32.mrb[0].mxu0
      %v2874 = vadd.f32 0.0, %v2873
      %v2875 = vpop.f32.mrb[0].mxu0
      %2876 = vmatprep.mubr.bf16.mxu0 0
      %2877 = vmatmul.mubr.bf16.gmra.mrb[0].mxu0 %v1937
      %v2878 = vpop.f32.mrb[0].mxu0
      %v2879 = vadd.f32 0.0, %v2878
      %v2880 = vpop.f32.mrb[0].mxu0
      %v2881 = vpop.f32.mrb[0].mxu0
      %v2882 = vadd.f32 0.0, %v2881
      %v2883 = vpop.f32.mrb[0].mxu0
      %2884 = vmatprep.mubr.bf16.mxu0 0
      %2885 = vmatmul.mubr.bf16.gmra.mrb[0].mxu0 %v1940
      %v2886 = vpop.f32.mrb[0].mxu0
      %v2887 = vadd.f32 0.0, %v2886
      %v2888 = vpop.f32.mrb[0].mxu0
      %v2889 = vpop.f32.mrb[0].mxu0
      %v2890 = vadd.f32 0.0, %v2889
      %v2891 = vpop.f32.mrb[0].mxu0
      %2892 = vmatprep.mubr.bf16.mxu0 0
      %2893 = vmatmul.mubr.bf16.gmra.mrb[0].mxu0 %v1943
      %v2894 = vpop.f32.mrb[0].mxu0
      %v2895 = vadd.f32 0.0, %v2894
      %v2896 = vpop.f32.mrb[0].mxu0
      %v2897 = vpop.f32.mrb[0].mxu0
      %v2898 = vadd.f32 0.0, %v2897
      %v2899 = vpop.f32.mrb[0].mxu0
      %2900 = vmatprep.mubr.bf16.mxu0 0
      %2901 = vmatmul.mubr.bf16.gmra.mrb[0].mxu0 %v1946
      %v2902 = vpop.f32.mrb[0].mxu0
      %v2903 = vadd.f32 0.0, %v2902
      %v2904 = vpop.f32.mrb[0].mxu0
      %v2905 = vpop.f32.mrb[0].mxu0
      %v2906 = vadd.f32 0.0, %v2905
      %v2907 = vpop.f32.mrb[0].mxu0
      %2908 = vmatprep.mubr.bf16.mxu0 0
      %2909 = vmatmul.mubr.bf16.gmra.mrb[0].mxu0 %v1949
      %v2910 = vpop.f32.mrb[0].mxu0
      %v2911 = vadd.f32 0.0, %v2910
      %v2912 = vpop.f32.mrb[0].mxu0
      %v2913 = vpop.f32.mrb[0].mxu0
      %v2914 = vadd.f32 0.0, %v2913
      %v2915 = vpop.f32.mrb[0].mxu0
      %2916 = vmatprep.mubr.bf16.mxu0 0
      %2917 = vmatmul.mubr.bf16.gmra.mrb[0].mxu0 %v1952
      %v2918 = vpop.f32.mrb[0].mxu0
      %v2919 = vadd.f32 0.0, %v2918
      %v2920 = vpop.f32.mrb[0].mxu0
      %v2921 = vpop.f32.mrb[0].mxu0
      %v2922 = vadd.f32 0.0, %v2921
      %v2923 = vpop.f32.mrb[0].mxu0
      %2924 = vmatprep.mubr.bf16.mxu0 0
      %2925 = vmatmul.mubr.bf16.gmra.mrb[0].mxu0 %v1955
      %v2926 = vpop.f32.mrb[0].mxu0
      %v2927 = vadd.f32 0.0, %v2926
      %v2928 = vpop.f32.mrb[0].mxu0
      %v2929 = vpop.f32.mrb[0].mxu0
      %v2930 = vadd.f32 0.0, %v2929
      %v2931 = vpop.f32.mrb[0].mxu0
      %2932 = vmatprep.mubr.bf16.mxu0 0
      %2933 = vmatmul.mubr.bf16.gmra.mrb[0].mxu0 %v1958
      %v2934 = vpop.f32.mrb[0].mxu0
      %v2935 = vadd.f32 0.0, %v2934
      %v2936 = vpop.f32.mrb[0].mxu0
      %v2937 = vpop.f32.mrb[0].mxu0
      %v2938 = vadd.f32 0.0, %v2937
      %v2939 = vpop.f32.mrb[0].mxu0
      %2940 = vmatprep.mubr.bf16.mxu0 0
      %2941 = vmatmul.mubr.bf16.gmra.mrb[0].mxu0 %v1961
      %v2942 = vpop.f32.mrb[0].mxu0
      %v2943 = vadd.f32 0.0, %v2942
      %v2944 = vpop.f32.mrb[0].mxu0
      %v2945 = vpop.f32.mrb[0].mxu0
      %v2946 = vadd.f32 0.0, %v2945
      %v2947 = vpop.f32.mrb[0].mxu0
      %2948 = vmatprep.mubr.bf16.mxu0 0
      %2949 = vmatmul.mubr.bf16.gmra.mrb[0].mxu0 %v1964
      %v2950 = vpop.f32.mrb[0].mxu0
      %v2951 = vadd.f32 0.0, %v2950
      %v2952 = vpop.f32.mrb[0].mxu0
      %v2953 = vpop.f32.mrb[0].mxu0
      %v2954 = vadd.f32 0.0, %v2953
      %v2955 = vpop.f32.mrb[0].mxu0
      %2956 = vmatprep.mubr.bf16.mxu0 0
      %2957 = vmatmul.mubr.bf16.gmra.mrb[0].mxu0 %v1967
      %v2958 = vpop.f32.mrb[0].mxu0
      %v2959 = vadd.f32 0.0, %v2958
      %v2960 = vpop.f32.mrb[0].mxu0
      %v2961 = vpop.f32.mrb[0].mxu0
      %v2962 = vadd.f32 0.0, %v2961
      %v2963 = vpop.f32.mrb[0].mxu0
      %2964 = vmatprep.mubr.bf16.mxu0 0
      %2965 = vmatmul.mubr.bf16.gmra.mrb[0].mxu0 %v1970
      %v2966 = vpop.f32.mrb[0].mxu0
      %v2967 = vadd.f32 0.0, %v2966
      %v2968 = vpop.f32.mrb[0].mxu0
      %v2969 = vpop.f32.mrb[0].mxu0
      %v2970 = vadd.f32 0.0, %v2969
      %v2971 = vpop.f32.mrb[0].mxu0
      %2972 = vmatprep.mubr.bf16.mxu0 0
      %2973 = vmatmul.mubr.bf16.gmra.mrb[0].mxu0 %v1973
      %v2974 = vpop.f32.mrb[0].mxu0
      %v2975 = vadd.f32 0.0, %v2974
      %v2976 = vpop.f32.mrb[0].mxu0
      %v2977 = vpop.f32.mrb[0].mxu0
      %v2978 = vadd.f32 0.0, %v2977
      %v2979 = vpop.f32.mrb[0].mxu0
      %2980 = vmatprep.mubr.bf16.mxu0 0
      %2981 = vmatmul.mubr.bf16.gmra.mrb[0].mxu0 %v1976
      %v2982 = vpop.f32.mrb[0].mxu0
      %v2983 = vadd.f32 0.0, %v2982
      %v2984 = vpop.f32.mrb[0].mxu0
      %v2985 = vpop.f32.mrb[0].mxu0
      %v2986 = vadd.f32 0.0, %v2985
      %v2987 = vpop.f32.mrb[0].mxu0
      %2988 = vmatprep.mubr.bf16.mxu0 0
      %2989 = vmatmul.mubr.bf16.gmra.mrb[0].mxu0 %v1979
      %v2990 = vpop.f32.mrb[0].mxu0
      %v2991 = vadd.f32 0.0, %v2990
      %v2992 = vpop.f32.mrb[0].mxu0
      %v2993 = vpop.f32.mrb[0].mxu0
      %v2994 = vadd.f32 0.0, %v2993
      %v2995 = vpop.f32.mrb[0].mxu0
      %2996 = vmatprep.mubr.bf16.mxu0 0
      %2997 = vmatmul.mubr.bf16.gmra.mrb[0].mxu0 %v1982
      %v2998 = vpop.f32.mrb[0].mxu0
      %v2999 = vadd.f32 0.0, %v2998
      %v3000 = vpop.f32.mrb[0].mxu0
      %v3001 = vpop.f32.mrb[0].mxu0
      %v3002 = vadd.f32 0.0, %v3001
      %v3003 = vpop.f32.mrb[0].mxu0
      %3004 = vmatprep.mubr.bf16.mxu0 0
      %3005 = vmatmul.mubr.bf16.gmra.mrb[0].mxu0 %v1985
      %v3006 = vpop.f32.mrb[0].mxu0
      %v3007 = vadd.f32 0.0, %v3006
      %v3008 = vpop.f32.mrb[0].mxu0
      %v3009 = vpop.f32.mrb[0].mxu0
      %v3010 = vadd.f32 0.0, %v3009
      %v3011 = vpop.f32.mrb[0].mxu0
      %3012 = vmatprep.mubr.bf16.mxu0 0
      %3013 = vmatmul.mubr.bf16.gmra.mrb[0].mxu0 %v1988
      %v3014 = vpop.f32.mrb[0].mxu0
      %v3015 = vadd.f32 0.0, %v3014
      %v3016 = vpop.f32.mrb[0].mxu0
      %v3017 = vpop.f32.mrb[0].mxu0
      %v3018 = vadd.f32 0.0, %v3017
      %v3019 = vpop.f32.mrb[0].mxu0
      %3020 = vmatprep.mubr.bf16.mxu0 0
      %3021 = vmatmul.mubr.bf16.gmra.mrb[0].mxu0 %v1991
      %v3022 = vpop.f32.mrb[0].mxu0
      %v3023 = vadd.f32 0.0, %v3022
      %v3024 = vpop.f32.mrb[0].mxu0
      %v3025 = vpop.f32.mrb[0].mxu0
      %v3026 = vadd.f32 0.0, %v3025
      %v3027 = vpop.f32.mrb[0].mxu0
      %3028 = vmatprep.mubr.bf16.mxu0 0
      %3029 = vmatmul.mubr.bf16.gmra.mrb[0].mxu0 %v1994
      %v3030 = vpop.f32.mrb[0].mxu0
      %v3031 = vadd.f32 0.0, %v3030
      %v3032 = vpop.f32.mrb[0].mxu0
      %v3033 = vpop.f32.mrb[0].mxu0
      %v3034 = vadd.f32 0.0, %v3033
      %v3035 = vpop.f32.mrb[0].mxu0
      %3036 = vmatprep.mubr.bf16.mxu0 0
      %3037 = vmatmul.mubr.bf16.gmra.mrb[0].mxu0 %v1997
      %v3038 = vpop.f32.mrb[0].mxu0
      %v3039 = vadd.f32 0.0, %v3038
      %v3040 = vpop.f32.mrb[0].mxu0
      %v3041 = vpop.f32.mrb[0].mxu0
      %v3042 = vadd.f32 0.0, %v3041
      %v3043 = vpop.f32.mrb[0].mxu0
      %3044 = vmatprep.mubr.bf16.mxu0 0
      %3045 = vmatmul.mubr.bf16.gmra.mrb[0].mxu0 %v2000
      %v3046 = vpop.f32.mrb[0].mxu0
      %v3047 = vadd.f32 0.0, %v3046
      %v3048 = vpop.f32.mrb[0].mxu0
      %v3049 = vpop.f32.mrb[0].mxu0
      %v3050 = vadd.f32 0.0, %v3049
      %v3051 = vpop.f32.mrb[0].mxu0
      %3052 = vmatprep.mubr.bf16.mxu0 0
      %3053 = vmatmul.mubr.bf16.gmra.mrb[0].mxu0 %v2003
      %v3054 = vpop.f32.mrb[0].mxu0
      %v3055 = vadd.f32 0.0, %v3054
      %v3056 = vpop.f32.mrb[0].mxu0
      %v3057 = vpop.f32.mrb[0].mxu0
      %v3058 = vadd.f32 0.0, %v3057
      %v3059 = vpop.f32.mrb[0].mxu0
      %3060 = vmatprep.mubr.bf16.mxu0 0
      %3061 = vmatmul.mubr.bf16.gmra.mrb[0].mxu0 %v2006
      %v3062 = vpop.f32.mrb[0].mxu0
      %v3063 = vadd.f32 0.0, %v3062
      %v3064 = vpop.f32.mrb[0].mxu0
      %v3065 = vpop.f32.mrb[0].mxu0
      %v3066 = vadd.f32 0.0, %v3065
      %v3067 = vpop.f32.mrb[0].mxu0
      %3068 = vmatprep.mubr.bf16.mxu0 0
      %3069 = vmatmul.mubr.bf16.gmra.mrb[0].mxu0 %v2009
      %v3070 = vpop.f32.mrb[0].mxu0
      %v3071 = vadd.f32 0.0, %v3070
      %v3072 = vpop.f32.mrb[0].mxu0
      %v3073 = vpop.f32.mrb[0].mxu0
      %v3074 = vadd.f32 0.0, %v3073
      %v3075 = vpop.f32.mrb[0].mxu0
      %3076 = vmatprep.mubr.bf16.mxu0 0
      %3077 = vmatmul.mubr.bf16.gmra.mrb[0].mxu0 %v2012
      %v3078 = vpop.f32.mrb[0].mxu0
      %v3079 = vadd.f32 0.0, %v3078
      %v3080 = vpop.f32.mrb[0].mxu0
      %v3081 = vpop.f32.mrb[0].mxu0
      %v3082 = vadd.f32 0.0, %v3081
      %v3083 = vpop.f32.mrb[0].mxu0
      %3084 = vmatprep.mubr.bf16.mxu0 0
      %3085 = vmatmul.mubr.bf16.gmra.mrb[0].mxu0 %v2015
      %v3086 = vpop.f32.mrb[0].mxu0
      %v3087 = vadd.f32 0.0, %v3086
      %v3088 = vpop.f32.mrb[0].mxu0
      %v3089 = vpop.f32.mrb[0].mxu0
      %v3090 = vadd.f32 0.0, %v3089
      %v3091 = vpop.f32.mrb[0].mxu0
      %3092 = vmatprep.mubr.bf16.mxu0 0
      %3093 = vmatmul.mubr.bf16.gmra.mrb[0].mxu0 %v2018
      %v3094 = vpop.f32.mrb[0].mxu0
      %v3095 = vadd.f32 0.0, %v3094
      %v3096 = vpop.f32.mrb[0].mxu0
      %v3097 = vpop.f32.mrb[0].mxu0
      %v3098 = vadd.f32 0.0, %v3097
      %v3099 = vpop.f32.mrb[0].mxu0
      %3100 = vmatprep.mubr.bf16.mxu0 0
      %3101 = vmatmul.mubr.bf16.gmra.mrb[0].mxu0 %v2021
      %v3102 = vpop.f32.mrb[0].mxu0
      %v3103 = vadd.f32 0.0, %v3102
      %v3104 = vpop.f32.mrb[0].mxu0
      %v3105 = vpop.f32.mrb[0].mxu0
      %v3106 = vadd.f32 0.0, %v3105
      %v3107 = vpop.f32.mrb[0].mxu0
      %3108 = vmatprep.mubr.bf16.mxu0 0
      %3109 = vmatmul.mubr.bf16.gmra.mrb[0].mxu0 %v2024
      %v3110 = vpop.f32.mrb[0].mxu0
      %v3111 = vadd.f32 0.0, %v3110
      %v3112 = vpop.f32.mrb[0].mxu0
      %v3113 = vpop.f32.mrb[0].mxu0
      %v3114 = vadd.f32 0.0, %v3113
      %v3115 = vpop.f32.mrb[0].mxu0
      %3116 = vmatprep.mubr.bf16.mxu0 0
      %3117 = vmatmul.mubr.bf16.gmra.mrb[0].mxu0 %v2027
      %v3118 = vpop.f32.mrb[0].mxu0
      %v3119 = vadd.f32 0.0, %v3118
      %v3120 = vpop.f32.mrb[0].mxu0
      %v3121 = vpop.f32.mrb[0].mxu0
      %v3122 = vadd.f32 0.0, %v3121
      %v3123 = vpop.f32.mrb[0].mxu0
      %3124 = vmatprep.mubr.bf16.mxu0 0
      %3125 = vmatmul.mubr.bf16.gmra.mrb[0].mxu0 %v2030
      %v3126 = vpop.f32.mrb[0].mxu0
      %v3127 = vadd.f32 0.0, %v3126
      %v3128 = vpop.f32.mrb[0].mxu0
      %v3129 = vpop.f32.mrb[0].mxu0
      %v3130 = vadd.f32 0.0, %v3129
      %v3131 = vpop.f32.mrb[0].mxu0
      %3132 = vmatprep.mubr.bf16.mxu0 0
      %3133 = vmatmul.mubr.bf16.gmra.mrb[0].mxu0 %v2033
      %v3134 = vpop.f32.mrb[0].mxu0
      %v3135 = vadd.f32 0.0, %v3134
      %v3136 = vpop.f32.mrb[0].mxu0
      %v3137 = vpop.f32.mrb[0].mxu0
      %v3138 = vadd.f32 0.0, %v3137
      %v3139 = vpop.f32.mrb[0].mxu0
      %3140 = vmatprep.mubr.bf16.mxu0 0
      %3141 = vmatmul.mubr.bf16.gmra.mrb[0].mxu0 %v2036
      %v3142 = vpop.f32.mrb[0].mxu0
      %v3143 = vadd.f32 0.0, %v3142
      %v3144 = vpop.f32.mrb[0].mxu0
      %v3145 = vpop.f32.mrb[0].mxu0
      %v3146 = vadd.f32 0.0, %v3145
      %v3147 = vpop.f32.mrb[0].mxu0
      %3148 = vmatprep.mubr.bf16.mxu0 0
      %3149 = vmatmul.mubr.bf16.gmra.mrb[0].mxu0 %v2039
      %v3150 = vpop.f32.mrb[0].mxu0
      %v3151 = vadd.f32 0.0, %v3150
      %v3152 = vpop.f32.mrb[0].mxu0
      %v3153 = vpop.f32.mrb[0].mxu0
      %v3154 = vadd.f32 0.0, %v3153
      %v3155 = vpop.f32.mrb[0].mxu0
      %3156 = vmatprep.mubr.bf16.mxu0 0
      %3157 = vmatmul.mubr.bf16.gmra.mrb[0].mxu0 %v2042
      %v3158 = vpop.f32.mrb[0].mxu0
      %v3159 = vadd.f32 0.0, %v3158
      %v3160 = vpop.f32.mrb[0].mxu0
      %v3161 = vpop.f32.mrb[0].mxu0
      %v3162 = vadd.f32 0.0, %v3161
      %v3163 = vpop.f32.mrb[0].mxu0
      %3164 = vmatprep.mubr.bf16.mxu0 0
      %3165 = vmatmul.mubr.bf16.gmra.mrb[0].mxu0 %v2045
      %v3166 = vpop.f32.mrb[0].mxu0
      %v3167 = vadd.f32 0.0, %v3166
      %v3168 = vpop.f32.mrb[0].mxu0
      %v3169 = vpop.f32.mrb[0].mxu0
      %v3170 = vadd.f32 0.0, %v3169
      %v3171 = vpop.f32.mrb[0].mxu0
      %3172 = vmatprep.mubr.bf16.mxu0 0
      %3173 = vmatmul.mubr.bf16.gmra.mrb[0].mxu0 %v2048
      %v3174 = vpop.f32.mrb[0].mxu0
      %v3175 = vadd.f32 0.0, %v3174
      %v3176 = vpop.f32.mrb[0].mxu0
      %v3177 = vpop.f32.mrb[0].mxu0
      %v3178 = vadd.f32 0.0, %v3177
      %v3179 = vpop.f32.mrb[0].mxu0
      %3180 = vmatprep.mubr.bf16.mxu0 0
      %3181 = vmatmul.mubr.bf16.gmra.mrb[0].mxu0 %v2051
      %v3182 = vpop.f32.mrb[0].mxu0
      %v3183 = vadd.f32 0.0, %v3182
      %v3184 = vpop.f32.mrb[0].mxu0
      %v3185 = vpop.f32.mrb[0].mxu0
      %v3186 = vadd.f32 0.0, %v3185
      %v3187 = vpop.f32.mrb[0].mxu0
      %3188 = vmatprep.mubr.bf16.mxu0 0
      %3189 = vmatmul.mubr.bf16.gmra.mrb[0].mxu0 %v2054
      %v3190 = vpop.f32.mrb[0].mxu0
      %v3191 = vadd.f32 0.0, %v3190
      %v3192 = vpop.f32.mrb[0].mxu0
      %v3193 = vpop.f32.mrb[0].mxu0
      %v3194 = vadd.f32 0.0, %v3193
      %v3195 = vpop.f32.mrb[0].mxu0
      %3196 = vmatprep.mubr.bf16.mxu0 0
      %3197 = vmatmul.mubr.bf16.gmra.mrb[0].mxu0 %v2057
      %v3198 = vpop.f32.mrb[0].mxu0
      %v3199 = vadd.f32 0.0, %v3198
      %v3200 = vpop.f32.mrb[0].mxu0
      %v3201 = vpop.f32.mrb[0].mxu0
      %v3202 = vadd.f32 0.0, %v3201
      %v3203 = vpop.f32.mrb[0].mxu0
      %3204 = vmatprep.mubr.bf16.mxu0 0
      %3205 = vmatmul.mubr.bf16.gmra.mrb[0].mxu0 %v2060
      %v3206 = vpop.f32.mrb[0].mxu0
      %v3207 = vadd.f32 0.0, %v3206
      %v3208 = vpop.f32.mrb[0].mxu0
      %v3209 = vpop.f32.mrb[0].mxu0
      %v3210 = vadd.f32 0.0, %v3209
      %v3211 = vpop.f32.mrb[0].mxu0
      %3212 = vmatprep.mubr.bf16.mxu0 0
      %3213 = vmatmul.mubr.bf16.gmra.mrb[0].mxu0 %v2063
      %v3214 = vpop.f32.mrb[0].mxu0
      %v3215 = vadd.f32 0.0, %v3214
      %v3216 = vpop.f32.mrb[0].mxu0
      %v3217 = vpop.f32.mrb[0].mxu0
      %v3218 = vadd.f32 0.0, %v3217
      %v3219 = vpop.f32.mrb[0].mxu0
      %3220 = vmatprep.mubr.bf16.mxu0 0
      %3221 = vmatmul.mubr.bf16.gmra.mrb[0].mxu0 %v2066
      %v3222 = vpop.f32.mrb[0].mxu0
      %v3223 = vadd.f32 0.0, %v3222
      %v3224 = vpop.f32.mrb[0].mxu0
      %v3225 = vpop.f32.mrb[0].mxu0
      %v3226 = vadd.f32 0.0, %v3225
      %v3227 = vpop.f32.mrb[0].mxu0
      %3228 = vmatprep.mubr.bf16.mxu0 0
      %3229 = vmatmul.mubr.bf16.gmra.mrb[0].mxu0 %v2069
      %v3230 = vpop.f32.mrb[0].mxu0
      %v3231 = vadd.f32 0.0, %v3230
      %v3232 = vpop.f32.mrb[0].mxu0
      %v3233 = vpop.f32.mrb[0].mxu0
      %v3234 = vadd.f32 0.0, %v3233
      %v3235 = vpop.f32.mrb[0].mxu0
      %3236 = vmatprep.mubr.bf16.mxu0 0
      %3237 = vmatmul.mubr.bf16.gmra.mrb[0].mxu0 %v2072
      %v3238 = vpop.f32.mrb[0].mxu0
      %v3239 = vadd.f32 0.0, %v3238
      %v3240 = vpop.f32.mrb[0].mxu0
      %v3241 = vpop.f32.mrb[0].mxu0
      %v3242 = vadd.f32 0.0, %v3241
      %v3243 = vpop.f32.mrb[0].mxu0
      %3244 = vmatprep.mubr.bf16.mxu0 0
      %3245 = vmatmul.mubr.bf16.gmra.mrb[0].mxu0 %v2075
      %v3246 = vpop.f32.mrb[0].mxu0
      %v3247 = vadd.f32 0.0, %v3246
      %v3248 = vpop.f32.mrb[0].mxu0
      %v3249 = vpop.f32.mrb[0].mxu0
      %v3250 = vadd.f32 0.0, %v3249
      %v3251 = vpop.f32.mrb[0].mxu0
      %3252 = vmatprep.mubr.bf16.mxu0 0
      %3253 = vmatmul.mubr.bf16.gmra.mrb[0].mxu0 %v2078
      %v3254 = vpop.f32.mrb[0].mxu0
      %v3255 = vadd.f32 0.0, %v3254
      %v3256 = vpop.f32.mrb[0].mxu0
      %v3257 = vpop.f32.mrb[0].mxu0
      %v3258 = vadd.f32 0.0, %v3257
      %v3259 = vpop.f32.mrb[0].mxu0
      %3260 = vmatprep.mubr.bf16.mxu0 0
      %3261 = vmatmul.mubr.bf16.gmra.mrb[0].mxu0 %v2081
      %v3262 = vpop.f32.mrb[0].mxu0
      %v3263 = vadd.f32 0.0, %v3262
      %v3264 = vpop.f32.mrb[0].mxu0
      %v3265 = vpop.f32.mrb[0].mxu0
      %v3266 = vadd.f32 0.0, %v3265
      %v3267 = vpop.f32.mrb[0].mxu0
      %3268 = vmatprep.mubr.bf16.mxu0 0
      %3269 = vmatmul.mubr.bf16.gmra.mrb[0].mxu0 %v2084
      %v3270 = vpop.f32.mrb[0].mxu0
      %v3271 = vadd.f32 0.0, %v3270
      %v3272 = vpop.f32.mrb[0].mxu0
      %v3273 = vpop.f32.mrb[0].mxu0
      %v3274 = vadd.f32 0.0, %v3273
      %v3275 = vpop.f32.mrb[0].mxu0
      %3276 = vmatprep.mubr.bf16.mxu0 0
      %3277 = vmatmul.mubr.bf16.gmra.mrb[0].mxu0 %v2087
      %v3278 = vpop.f32.mrb[0].mxu0
      %v3279 = vadd.f32 0.0, %v3278
      %v3280 = vpop.f32.mrb[0].mxu0
      %v3281 = vpop.f32.mrb[0].mxu0
      %v3282 = vadd.f32 0.0, %v3281
      %v3283 = vpop.f32.mrb[0].mxu0
      %3284 = vmatprep.mubr.bf16.mxu0 0
      %3285 = vmatmul.mubr.bf16.gmra.mrb[0].mxu0 %v2090
      %v3286 = vpop.f32.mrb[0].mxu0
      %v3287 = vadd.f32 0.0, %v3286
      %v3288 = vpop.f32.mrb[0].mxu0
      %v3289 = vpop.f32.mrb[0].mxu0
      %v3290 = vadd.f32 0.0, %v3289
      %v3291 = vpop.f32.mrb[0].mxu0
      %3292 = vmatprep.mubr.bf16.mxu0 0
      %3293 = vmatmul.mubr.bf16.gmra.mrb[0].mxu0 %v2093
      %v3294 = vpop.f32.mrb[0].mxu0
      %v3295 = vadd.f32 0.0, %v3294
      %v3296 = vpop.f32.mrb[0].mxu0
      %v3297 = vpop.f32.mrb[0].mxu0
      %v3298 = vadd.f32 0.0, %v3297
      %v3299 = vpop.f32.mrb[0].mxu0
      %3300 = vmatprep.mubr.bf16.mxu0 0
      %3301 = vmatmul.mubr.bf16.gmra.mrb[0].mxu0 %v2096
      %v3302 = vpop.f32.mrb[0].mxu0
      %v3303 = vadd.f32 0.0, %v3302
      %v3304 = vpop.f32.mrb[0].mxu0
      %v3305 = vpop.f32.mrb[0].mxu0
      %v3306 = vadd.f32 0.0, %v3305
      %v3307 = vpop.f32.mrb[0].mxu0
      %3308 = vmatprep.mubr.bf16.mxu0 0
      %3309 = vmatmul.mubr.bf16.gmra.mrb[0].mxu0 %v2099
      %v3310 = vpop.f32.mrb[0].mxu0
      %v3311 = vadd.f32 0.0, %v3310
      %v3312 = vpop.f32.mrb[0].mxu0
      %v3313 = vpop.f32.mrb[0].mxu0
      %v3314 = vadd.f32 0.0, %v3313
      %v3315 = vpop.f32.mrb[0].mxu0
      %3316 = vmatprep.mubr.bf16.mxu0 0
      %3317 = vmatmul.mubr.bf16.gmra.mrb[0].mxu0 %v2102
      %v3318 = vpop.f32.mrb[0].mxu0
      %v3319 = vadd.f32 0.0, %v3318
      %v3320 = vpop.f32.mrb[0].mxu0
      %v3321 = vpop.f32.mrb[0].mxu0
      %v3322 = vadd.f32 0.0, %v3321
      %v3323 = vpop.f32.mrb[0].mxu0
      %3324 = vmatprep.mubr.bf16.mxu0 0
      %3325 = vmatmul.mubr.bf16.gmra.mrb[0].mxu0 %v2105
      %v3326 = vpop.f32.mrb[0].mxu0
      %v3327 = vadd.f32 0.0, %v3326
      %v3328 = vpop.f32.mrb[0].mxu0
      %v3329 = vpop.f32.mrb[0].mxu0
      %v3330 = vadd.f32 0.0, %v3329
      %v3331 = vpop.f32.mrb[0].mxu0
      %3332 = vmatprep.mubr.bf16.mxu0 0
      %3333 = vmatmul.mubr.bf16.gmra.mrb[0].mxu0 %v2108
      %v3334 = vpop.f32.mrb[0].mxu0
      %v3335 = vadd.f32 0.0, %v3334
      %v3336 = vpop.f32.mrb[0].mxu0
      %v3337 = vpop.f32.mrb[0].mxu0
      %v3338 = vadd.f32 0.0, %v3337
      %v3339 = vpop.f32.mrb[0].mxu0
      %3340 = vmatprep.mubr.bf16.mxu0 0
      %3341 = vmatmul.mubr.bf16.gmra.mrb[0].mxu0 %v2111
      %v3342 = vpop.f32.mrb[0].mxu0
      %v3343 = vadd.f32 0.0, %v3342
      %v3344 = vpop.f32.mrb[0].mxu0
      %v3345 = vpop.f32.mrb[0].mxu0
      %v3346 = vadd.f32 0.0, %v3345
      %v3347 = vpop.f32.mrb[0].mxu0
      %3348 = vmatprep.mubr.bf16.mxu0 0
      %3349 = vmatmul.mubr.bf16.gmra.mrb[0].mxu0 %v2114
      %v3350 = vpop.f32.mrb[0].mxu0
      %v3351 = vadd.f32 0.0, %v3350
      %v3352 = vpop.f32.mrb[0].mxu0
      %v3353 = vpop.f32.mrb[0].mxu0
      %v3354 = vadd.f32 0.0, %v3353
      %v3355 = vpop.f32.mrb[0].mxu0
      %3356 = vmatprep.mubr.bf16.mxu0 0
      %3357 = vmatmul.mubr.bf16.gmra.mrb[0].mxu0 %v2117
      %v3358 = vpop.f32.mrb[0].mxu0
      %v3359 = vadd.f32 0.0, %v3358
      %v3360 = vpop.f32.mrb[0].mxu0
      %v3361 = vpop.f32.mrb[0].mxu0
      %v3362 = vadd.f32 0.0, %v3361
      %v3363 = vpop.f32.mrb[0].mxu0
      %3364 = vmatprep.mubr.bf16.mxu0 0
      %3365 = vmatmul.mubr.bf16.gmra.mrb[0].mxu0 %v2120
      %v3366 = vpop.f32.mrb[0].mxu0
      %v3367 = vadd.f32 0.0, %v3366
      %v3368 = vpop.f32.mrb[0].mxu0
      %v3369 = vpop.f32.mrb[0].mxu0
      %v3370 = vadd.f32 0.0, %v3369
      %v3371 = vpop.f32.mrb[0].mxu0
      %3372 = vmatprep.mubr.bf16.mxu0 0
      %3373 = vmatmul.mubr.bf16.gmra.mrb[0].mxu0 %v2123
      %v3374 = vpop.f32.mrb[0].mxu0
      %v3375 = vadd.f32 0.0, %v3374
      %v3376 = vpop.f32.mrb[0].mxu0
      %v3377 = vpop.f32.mrb[0].mxu0
      %v3378 = vadd.f32 0.0, %v3377
      %v3379 = vpop.f32.mrb[0].mxu0
      %3380 = vmatprep.mubr.bf16.mxu0 0
      %3381 = vmatmul.mubr.bf16.gmra.mrb[0].mxu0 %v2126
      %v3382 = vpop.f32.mrb[0].mxu0
      %v3383 = vadd.f32 0.0, %v3382
      %v3384 = vpop.f32.mrb[0].mxu0
      %v3385 = vpop.f32.mrb[0].mxu0
      %v3386 = vadd.f32 0.0, %v3385
      %v3387 = vpop.f32.mrb[0].mxu0
      %3388 = vmatprep.mubr.bf16.mxu0 0
      %3389 = vmatmul.mubr.bf16.gmra.mrb[0].mxu0 %v2129
      %v3390 = vpop.f32.mrb[0].mxu0
      %v3391 = vadd.f32 0.0, %v3390
      %v3392 = vpop.f32.mrb[0].mxu0
      %v3393 = vpop.f32.mrb[0].mxu0
      %v3394 = vadd.f32 0.0, %v3393
      %v3395 = vpop.f32.mrb[0].mxu0
      %3396 = vmatprep.mubr.bf16.mxu0 0
      %3397 = vmatmul.mubr.bf16.gmra.mrb[0].mxu0 %v2132
      %v3398 = vpop.f32.mrb[0].mxu0
      %v3399 = vadd.f32 0.0, %v3398
      %v3400 = vpop.f32.mrb[0].mxu0
      %v3401 = vpop.f32.mrb[0].mxu0
      %v3402 = vadd.f32 0.0, %v3401
      %v3403 = vpop.f32.mrb[0].mxu0
      %3404 = vmatprep.mubr.bf16.mxu0 0
      %3405 = vmatmul.mubr.bf16.gmra.mrb[0].mxu0 %v2135
      %v3406 = vpop.f32.mrb[0].mxu0
      %v3407 = vadd.f32 0.0, %v3406
      %v3408 = vpop.f32.mrb[0].mxu0
      %v3409 = vpop.f32.mrb[0].mxu0
      %v3410 = vadd.f32 0.0, %v3409
      %v3411 = vpop.f32.mrb[0].mxu0
      %3412 = vmatprep.mubr.bf16.mxu0 0
      %3413 = vmatmul.mubr.bf16.gmra.mrb[0].mxu0 %v2138
      %v3414 = vpop.f32.mrb[0].mxu0
      %v3415 = vadd.f32 0.0, %v3414
      %v3416 = vpop.f32.mrb[0].mxu0
      %v3417 = vpop.f32.mrb[0].mxu0
      %v3418 = vadd.f32 0.0, %v3417
      %v3419 = vpop.f32.mrb[0].mxu0
      %3420 = vmatprep.mubr.bf16.mxu0 0
      %3421 = vmatmul.mubr.bf16.gmra.mrb[0].mxu0 %v2141
      %v3422 = vpop.f32.mrb[0].mxu0
      %v3423 = vadd.f32 0.0, %v3422
      %v3424 = vpop.f32.mrb[0].mxu0
      %v3425 = vpop.f32.mrb[0].mxu0
      %v3426 = vadd.f32 0.0, %v3425
      %v3427 = vpop.f32.mrb[0].mxu0
      %3428 = vmatprep.mubr.bf16.mxu0 0
      %3429 = vmatmul.mubr.bf16.gmra.mrb[0].mxu0 %v2144
      %v3430 = vpop.f32.mrb[0].mxu0
      %v3431 = vadd.f32 0.0, %v3430
      %v3432 = vpop.f32.mrb[0].mxu0
      %v3433 = vpop.f32.mrb[0].mxu0
      %v3434 = vadd.f32 0.0, %v3433
      %v3435 = vpop.f32.mrb[0].mxu0
      %3436 = vmatprep.mubr.bf16.mxu0 0
      %3437 = vmatmul.mubr.bf16.gmra.mrb[0].mxu0 %v2147
      %v3438 = vpop.f32.mrb[0].mxu0
      %v3439 = vadd.f32 0.0, %v3438
      %v3440 = vpop.f32.mrb[0].mxu0
      %v3441 = vpop.f32.mrb[0].mxu0
      %v3442 = vadd.f32 0.0, %v3441
      %v3443 = vpop.f32.mrb[0].mxu0
      %3444 = vmatprep.mubr.bf16.mxu0 0
      %3445 = vmatmul.mubr.bf16.gmra.mrb[0].mxu0 %v2150
      %v3446 = vpop.f32.mrb[0].mxu0
      %v3447 = vadd.f32 0.0, %v3446
      %v3448 = vpop.f32.mrb[0].mxu0
      %v3449 = vpop.f32.mrb[0].mxu0
      %v3450 = vadd.f32 0.0, %v3449
      %v3451 = vpop.f32.mrb[0].mxu0
      %3452 = vmatprep.mubr.bf16.mxu0 0
      %3453 = vmatmul.mubr.bf16.gmra.mrb[0].mxu0 %v2153
      %v3454 = vpop.f32.mrb[0].mxu0
      %v3455 = vadd.f32 0.0, %v3454
      %v3456 = vpop.f32.mrb[0].mxu0
      %v3457 = vpop.f32.mrb[0].mxu0
      %v3458 = vadd.f32 0.0, %v3457
      %v3459 = vpop.f32.mrb[0].mxu0
      %3460 = vmatprep.mubr.bf16.mxu0 0
      %3461 = vmatmul.mubr.bf16.gmra.mrb[0].mxu0 %v2156
      %v3462 = vpop.f32.mrb[0].mxu0
      %v3463 = vadd.f32 0.0, %v3462
      %v3464 = vpop.f32.mrb[0].mxu0
      %v3465 = vpop.f32.mrb[0].mxu0
      %v3466 = vadd.f32 0.0, %v3465
      %v3467 = vpop.f32.mrb[0].mxu0
      %3468 = vmatprep.mubr.bf16.mxu0 0
      %3469 = vmatmul.mubr.bf16.gmra.mrb[0].mxu0 %v2159
      %v3470 = vpop.f32.mrb[0].mxu0
      %v3471 = vadd.f32 0.0, %v3470
      %v3472 = vpop.f32.mrb[0].mxu0
      %v3473 = vpop.f32.mrb[0].mxu0
      %v3474 = vadd.f32 0.0, %v3473
      %v3475 = vpop.f32.mrb[0].mxu0
      %3476 = vmatprep.mubr.bf16.mxu0 0
      %3477 = vmatmul.mubr.bf16.gmra.mrb[0].mxu0 %v2162
      %v3478 = vpop.f32.mrb[0].mxu0
      %v3479 = vadd.f32 0.0, %v3478
      %v3480 = vpop.f32.mrb[0].mxu0
      %v3481 = vpop.f32.mrb[0].mxu0
      %v3482 = vadd.f32 0.0, %v3481
      %v3483 = vpop.f32.mrb[0].mxu0
      %3484 = vmatprep.mubr.bf16.mxu0 0
      %3485 = vmatmul.mubr.bf16.gmra.mrb[0].mxu0 %v2165
      %v3486 = vpop.f32.mrb[0].mxu0
      %v3487 = vadd.f32 0.0, %v3486
      %v3488 = vpop.f32.mrb[0].mxu0
      %v3489 = vpop.f32.mrb[0].mxu0
      %v3490 = vadd.f32 0.0, %v3489
      %v3491 = vpop.f32.mrb[0].mxu0
      %3492 = vmatprep.mubr.bf16.mxu0 0
      %3493 = vmatmul.mubr.bf16.gmra.mrb[0].mxu0 %v2168
      %v3494 = vpop.f32.mrb[0].mxu0
      %v3495 = vadd.f32 0.0, %v3494
      %v3496 = vpop.f32.mrb[0].mxu0
      %v3497 = vpop.f32.mrb[0].mxu0
      %v3498 = vadd.f32 0.0, %v3497
      %v3499 = vpop.f32.mrb[0].mxu0
      %3500 = vmatprep.mubr.bf16.mxu0 0
      %3501 = vmatmul.mubr.bf16.gmra.mrb[0].mxu0 %v2171
      %v3502 = vpop.f32.mrb[0].mxu0
      %v3503 = vadd.f32 0.0, %v3502
      %v3504 = vpop.f32.mrb[0].mxu0
      %v3505 = vpop.f32.mrb[0].mxu0
      %v3506 = vadd.f32 0.0, %v3505
      %v3507 = vpop.f32.mrb[0].mxu0
      %3508 = vmatprep.mubr.bf16.mxu0 0
      %3509 = vmatmul.mubr.bf16.gmra.mrb[0].mxu0 %v2174
      %v3510 = vpop.f32.mrb[0].mxu0
      %v3511 = vadd.f32 0.0, %v3510
      %v3512 = vpop.f32.mrb[0].mxu0
      %v3513 = vpop.f32.mrb[0].mxu0
      %v3514 = vadd.f32 0.0, %v3513
      %v3515 = vpop.f32.mrb[0].mxu0
      %3516 = vmatprep.mubr.bf16.mxu0 0
      %3517 = vmatmul.mubr.bf16.gmra.mrb[0].mxu0 %v2177
      %v3518 = vpop.f32.mrb[0].mxu0
      %v3519 = vadd.f32 0.0, %v3518
      %v3520 = vpop.f32.mrb[0].mxu0
      %v3521 = vpop.f32.mrb[0].mxu0
      %v3522 = vadd.f32 0.0, %v3521
      %v3523 = vpop.f32.mrb[0].mxu0
      %3524 = vmatprep.mubr.bf16.mxu0 0
      %3525 = vmatmul.mubr.bf16.gmra.mrb[0].mxu0 %v2180
      %v3526 = vpop.f32.mrb[0].mxu0
      %v3527 = vadd.f32 0.0, %v3526
      %v3528 = vpop.f32.mrb[0].mxu0
      %v3529 = vpop.f32.mrb[0].mxu0
      %v3530 = vadd.f32 0.0, %v3529
      %v3531 = vpop.f32.mrb[0].mxu0
      %3532 = vmatprep.mubr.bf16.mxu0 0
      %3533 = vmatmul.mubr.bf16.gmra.mrb[0].mxu0 %v2183
      %v3534 = vpop.f32.mrb[0].mxu0
      %v3535 = vadd.f32 0.0, %v3534
      %v3536 = vpop.f32.mrb[0].mxu0
      %v3537 = vpop.f32.mrb[0].mxu0
      %v3538 = vadd.f32 0.0, %v3537
      %v3539 = vpop.f32.mrb[0].mxu0
      %3540 = vmatprep.mubr.bf16.mxu0 0
      %3541 = vmatmul.mubr.bf16.gmra.mrb[0].mxu0 %v2186
      %v3542 = vpop.f32.mrb[0].mxu0
      %v3543 = vadd.f32 0.0, %v3542
      %v3544 = vpop.f32.mrb[0].mxu0
      %v3545 = vpop.f32.mrb[0].mxu0
      %v3546 = vadd.f32 0.0, %v3545
      %v3547 = vpop.f32.mrb[0].mxu0
      %3548 = vmatprep.mubr.bf16.mxu0 0
      %3549 = vmatmul.mubr.bf16.gmra.mrb[0].mxu0 %v2189
      %v3550 = vpop.f32.mrb[0].mxu0
      %v3551 = vadd.f32 0.0, %v3550
      %v3552 = vpop.f32.mrb[0].mxu0
      %v3553 = vpop.f32.mrb[0].mxu0
      %v3554 = vadd.f32 0.0, %v3553
      %v3555 = vpop.f32.mrb[0].mxu0
      %3556 = vmatprep.mubr.bf16.mxu0 0
      %3557 = vmatmul.mubr.bf16.gmra.mrb[0].mxu0 %v2192
      %v3558 = vpop.f32.mrb[0].mxu0
      %v3559 = vadd.f32 0.0, %v3558
      %v3560 = vpop.f32.mrb[0].mxu0
      %v3561 = vpop.f32.mrb[0].mxu0
      %v3562 = vadd.f32 0.0, %v3561
      %v3563 = vpop.f32.mrb[0].mxu0
      %3564 = vmatprep.mubr.bf16.mxu0 0
      %3565 = vmatmul.mubr.bf16.gmra.mrb[0].mxu0 %v2195
      %v3566 = vpop.f32.mrb[0].mxu0
      %v3567 = vadd.f32 0.0, %v3566
      %v3568 = vpop.f32.mrb[0].mxu0
      %v3569 = vpop.f32.mrb[0].mxu0
      %v3570 = vadd.f32 0.0, %v3569
      %v3571 = vpop.f32.mrb[0].mxu0
      %3572 = vmatprep.mubr.bf16.mxu0 0
      %3573 = vmatmul.mubr.bf16.gmra.mrb[0].mxu0 %v2198
      %v3574 = vpop.f32.mrb[0].mxu0
      %v3575 = vadd.f32 0.0, %v3574
      %v3576 = vpop.f32.mrb[0].mxu0
      %v3577 = vpop.f32.mrb[0].mxu0
      %v3578 = vadd.f32 0.0, %v3577
      %v3579 = vpop.f32.mrb[0].mxu0
      %3580 = vmatprep.mubr.bf16.mxu0 0
      %3581 = vmatmul.mubr.bf16.gmra.mrb[0].mxu0 %v2201
      %v3582 = vpop.f32.mrb[0].mxu0
      %v3583 = vadd.f32 0.0, %v3582
      %v3584 = vpop.f32.mrb[0].mxu0
      %v3585 = vpop.f32.mrb[0].mxu0
      %v3586 = vadd.f32 0.0, %v3585
      %v3587 = vpop.f32.mrb[0].mxu0
      %3588 = vmatprep.mubr.bf16.mxu0 0
      %3589 = vmatmul.mubr.bf16.gmra.mrb[0].mxu0 %v2204
      %v3590 = vpop.f32.mrb[0].mxu0
      %v3591 = vadd.f32 0.0, %v3590
      %v3592 = vpop.f32.mrb[0].mxu0
      %v3593 = vpop.f32.mrb[0].mxu0
      %v3594 = vadd.f32 0.0, %v3593
      %v3595 = vpop.f32.mrb[0].mxu0
      %3596 = vmatprep.mubr.bf16.mxu0 0
      %3597 = vmatmul.mubr.bf16.gmra.mrb[0].mxu0 %v2207
      %v3598 = vpop.f32.mrb[0].mxu0
      %v3599 = vadd.f32 0.0, %v3598
      %v3600 = vpop.f32.mrb[0].mxu0
      %v3601 = vpop.f32.mrb[0].mxu0
      %v3602 = vadd.f32 0.0, %v3601
      %v3603 = vpop.f32.mrb[0].mxu0
      %3604 = vmatprep.mubr.bf16.mxu0 0
      %3605 = vmatmul.mubr.bf16.gmra.mrb[0].mxu0 %v2210
      %v3606 = vpop.f32.mrb[0].mxu0
      %v3607 = vadd.f32 0.0, %v3606
      %v3608 = vpop.f32.mrb[0].mxu0
      %v3609 = vpop.f32.mrb[0].mxu0
      %v3610 = vadd.f32 0.0, %v3609
      %v3611 = vpop.f32.mrb[0].mxu0
      %3612 = vmatprep.mubr.bf16.mxu0 0
      %3613 = vmatmul.mubr.bf16.gmra.mrb[0].mxu0 %v2213
      %v3614 = vpop.f32.mrb[0].mxu0
      %v3615 = vadd.f32 0.0, %v3614
      %v3616 = vpop.f32.mrb[0].mxu0
      %v3617 = vpop.f32.mrb[0].mxu0
      %v3618 = vadd.f32 0.0, %v3617
      %v3619 = vpop.f32.mrb[0].mxu0
      %3620 = vmatprep.mubr.bf16.mxu0 0
      %3621 = vmatmul.mubr.bf16.gmra.mrb[0].mxu0 %v2216
      %v3622 = vpop.f32.mrb[0].mxu0
      %v3623 = vadd.f32 0.0, %v3622
      %v3624 = vpop.f32.mrb[0].mxu0
      %v3625 = vpop.f32.mrb[0].mxu0
      %v3626 = vadd.f32 0.0, %v3625
      %v3627 = vpop.f32.mrb[0].mxu0
      %3628 = vmatprep.mubr.bf16.mxu0 0
      %3629 = vmatmul.mubr.bf16.gmra.mrb[0].mxu0 %v2219
      %v3630 = vpop.f32.mrb[0].mxu0
      %v3631 = vadd.f32 0.0, %v3630
      %v3632 = vpop.f32.mrb[0].mxu0
      %v3633 = vpop.f32.mrb[0].mxu0
      %v3634 = vadd.f32 0.0, %v3633
      %v3635 = vpop.f32.mrb[0].mxu0
      %3636 = vmatprep.mubr.bf16.mxu0 0
      %3637 = vmatmul.mubr.bf16.gmra.mrb[0].mxu0 %v2222
      %v3638 = vpop.f32.mrb[0].mxu0
      %v3639 = vadd.f32 0.0, %v3638
      %v3640 = vpop.f32.mrb[0].mxu0
      %v3641 = vpop.f32.mrb[0].mxu0
      %v3642 = vadd.f32 0.0, %v3641
      %v3643 = vpop.f32.mrb[0].mxu0
      %3644 = vmatprep.mubr.bf16.mxu0 0
      %3645 = vmatmul.mubr.bf16.gmra.mrb[0].mxu0 %v2225
      %v3646 = vpop.f32.mrb[0].mxu0
      %v3647 = vadd.f32 0.0, %v3646
      %v3648 = vpop.f32.mrb[0].mxu0
      %v3649 = vpop.f32.mrb[0].mxu0
      %v3650 = vadd.f32 0.0, %v3649
      %v3651 = vpop.f32.mrb[0].mxu0
      %3652 = vmatprep.mubr.bf16.mxu0 0
      %3653 = vmatmul.mubr.bf16.gmra.mrb[0].mxu0 %v2228
      %v3654 = vpop.f32.mrb[0].mxu0
      %v3655 = vadd.f32 0.0, %v3654
      %v3656 = vpop.f32.mrb[0].mxu0
      %v3657 = vpop.f32.mrb[0].mxu0
      %v3658 = vadd.f32 0.0, %v3657
      %v3659 = vpop.f32.mrb[0].mxu0
      %3660 = vmatprep.mubr.bf16.mxu0 0
      %3661 = vmatmul.mubr.bf16.gmra.mrb[0].mxu0 %v2231
      %v3662 = vpop.f32.mrb[0].mxu0
      %v3663 = vadd.f32 0.0, %v3662
      %v3664 = vpop.f32.mrb[0].mxu0
      %v3665 = vpop.f32.mrb[0].mxu0
      %v3666 = vadd.f32 0.0, %v3665
      %v3667 = vpop.f32.mrb[0].mxu0
      %3668 = vmatprep.mubr.bf16.mxu0 0
      %3669 = vmatmul.mubr.bf16.gmra.mrb[0].mxu0 %v2234
      %v3670 = vpop.f32.mrb[0].mxu0
      %v3671 = vadd.f32 0.0, %v3670
      %v3672 = vpop.f32.mrb[0].mxu0
      %v3673 = vpop.f32.mrb[0].mxu0
      %v3674 = vadd.f32 0.0, %v3673
      %v3675 = vpop.f32.mrb[0].mxu0
      %3676 = vmatprep.mubr.bf16.mxu0 0
      %3677 = vmatmul.mubr.bf16.gmra.mrb[0].mxu0 %v2237
      %v3678 = vpop.f32.mrb[0].mxu0
      %v3679 = vadd.f32 0.0, %v3678
      %v3680 = vpop.f32.mrb[0].mxu0
      %v3681 = vpop.f32.mrb[0].mxu0
      %v3682 = vadd.f32 0.0, %v3681
      %v3683 = vpop.f32.mrb[0].mxu0
      %3684 = vmatprep.mubr.bf16.mxu0 0
      %3685 = vmatmul.mubr.bf16.gmra.mrb[0].mxu0 %v2240
      %v3686 = vpop.f32.mrb[0].mxu0
      %v3687 = vadd.f32 0.0, %v3686
      %v3688 = vpop.f32.mrb[0].mxu0
      %v3689 = vpop.f32.mrb[0].mxu0
      %v3690 = vadd.f32 0.0, %v3689
      %v3691 = vpop.f32.mrb[0].mxu0
      %3692 = vmatprep.mubr.bf16.mxu0 0
      %3693 = vmatmul.mubr.bf16.gmra.mrb[0].mxu0 %v2243
      %v3694 = vpop.f32.mrb[0].mxu0
      %v3695 = vadd.f32 0.0, %v3694
      %v3696 = vpop.f32.mrb[0].mxu0
      %v3697 = vpop.f32.mrb[0].mxu0
      %v3698 = vadd.f32 0.0, %v3697
      %v3699 = vpop.f32.mrb[0].mxu0
      %3700 = vmatprep.mubr.bf16.mxu0 0
      %3701 = vmatmul.mubr.bf16.gmra.mrb[0].mxu0 %v2246
      %v3702 = vpop.f32.mrb[0].mxu0
      %v3703 = vadd.f32 0.0, %v3702
      %v3704 = vpop.f32.mrb[0].mxu0
      %v3705 = vpop.f32.mrb[0].mxu0
      %v3706 = vadd.f32 0.0, %v3705
      %v3707 = vpop.f32.mrb[0].mxu0
      %3708 = vmatprep.mubr.bf16.mxu0 0
      %3709 = vmatmul.mubr.bf16.gmra.mrb[0].mxu0 %v2249
      %v3710 = vpop.f32.mrb[0].mxu0
      %v3711 = vadd.f32 0.0, %v3710
      %v3712 = vpop.f32.mrb[0].mxu0
      %v3713 = vpop.f32.mrb[0].mxu0
      %v3714 = vadd.f32 0.0, %v3713
      %v3715 = vpop.f32.mrb[0].mxu0
      %3716 = vmatprep.mubr.bf16.mxu0 0
      %3717 = vmatmul.mubr.bf16.gmra.mrb[0].mxu0 %v2252
      %v3718 = vpop.f32.mrb[0].mxu0
      %v3719 = vadd.f32 0.0, %v3718
      %v3720 = vpop.f32.mrb[0].mxu0
      %v3721 = vpop.f32.mrb[0].mxu0
      %v3722 = vadd.f32 0.0, %v3721
      %v3723 = vpop.f32.mrb[0].mxu0
      %3724 = vmatprep.mubr.bf16.mxu0 0
      %3725 = vmatmul.mubr.bf16.gmra.mrb[0].mxu0 %v2255
      %v3726 = vpop.f32.mrb[0].mxu0
      %v3727 = vadd.f32 0.0, %v3726
      %v3728 = vpop.f32.mrb[0].mxu0
      %v3729 = vpop.f32.mrb[0].mxu0
      %v3730 = vadd.f32 0.0, %v3729
      %v3731 = vpop.f32.mrb[0].mxu0
      %3732 = vmatprep.mubr.bf16.mxu0 0
      %3733 = vmatmul.mubr.bf16.gmra.mrb[0].mxu0 %v2258
      %v3734 = vpop.f32.mrb[0].mxu0
      %v3735 = vadd.f32 0.0, %v3734
      %v3736 = vpop.f32.mrb[0].mxu0
      %v3737 = vpop.f32.mrb[0].mxu0
      %v3738 = vadd.f32 0.0, %v3737
      %v3739 = vpop.f32.mrb[0].mxu0
      %3740 = vmatprep.mubr.bf16.mxu0 0
      %3741 = vmatmul.mubr.bf16.gmra.mrb[0].mxu0 %v2261
      %v3742 = vpop.f32.mrb[0].mxu0
      %v3743 = vadd.f32 0.0, %v3742
      %v3744 = vpop.f32.mrb[0].mxu0
      %v3745 = vpop.f32.mrb[0].mxu0
      %v3746 = vadd.f32 0.0, %v3745
      %v3747 = vpop.f32.mrb[0].mxu0
      %3748 = vmatprep.mubr.bf16.mxu0 0
      %3749 = vmatmul.mubr.bf16.gmra.mrb[0].mxu0 %v2264
      %v3750 = vpop.f32.mrb[0].mxu0
      %v3751 = vadd.f32 0.0, %v3750
      %v3752 = vpop.f32.mrb[0].mxu0
      %v3753 = vpop.f32.mrb[0].mxu0
      %v3754 = vadd.f32 0.0, %v3753
      %v3755 = vpop.f32.mrb[0].mxu0
      %3756 = vmatprep.mubr.bf16.mxu0 0
      %3757 = vmatmul.mubr.bf16.gmra.mrb[0].mxu0 %v2267
      %v3758 = vpop.f32.mrb[0].mxu0
      %v3759 = vadd.f32 0.0, %v3758
      %v3760 = vpop.f32.mrb[0].mxu0
      %v3761 = vpop.f32.mrb[0].mxu0
      %v3762 = vadd.f32 0.0, %v3761
      %v3763 = vpop.f32.mrb[0].mxu0
      %3764 = vmatprep.mubr.bf16.mxu0 0
      %3765 = vmatmul.mubr.bf16.gmra.mrb[0].mxu0 %v2270
      %v3766 = vpop.f32.mrb[0].mxu0
      %v3767 = vadd.f32 0.0, %v3766
      %v3768 = vpop.f32.mrb[0].mxu0
      %v3769 = vpop.f32.mrb[0].mxu0
      %v3770 = vadd.f32 0.0, %v3769
      %v3771 = vpop.f32.mrb[0].mxu0
      %3772 = vmatprep.mubr.bf16.mxu0 0
      %3773 = vmatmul.mubr.bf16.gmra.mrb[0].mxu0 %v2273
      %v3774 = vpop.f32.mrb[0].mxu0
      %v3775 = vadd.f32 0.0, %v3774
      %v3776 = vpop.f32.mrb[0].mxu0
      %v3777 = vpop.f32.mrb[0].mxu0
      %v3778 = vadd.f32 0.0, %v3777
      %v3779 = vpop.f32.mrb[0].mxu0
      %3780 = vmatprep.mubr.bf16.mxu0 0
      %3781 = vmatmul.mubr.bf16.gmra.mrb[0].mxu0 %v2276
      %v3782 = vpop.f32.mrb[0].mxu0
      %v3783 = vadd.f32 0.0, %v3782
      %v3784 = vpop.f32.mrb[0].mxu0
      %v3785 = vpop.f32.mrb[0].mxu0
      %v3786 = vadd.f32 0.0, %v3785
      %v3787 = vpop.f32.mrb[0].mxu0
      %3788 = vmatprep.mubr.bf16.mxu0 0
      %3789 = vmatmul.mubr.bf16.gmra.mrb[0].mxu0 %v2279
      %v3790 = vpop.f32.mrb[0].mxu0
      %v3791 = vadd.f32 0.0, %v3790
      %v3792 = vpop.f32.mrb[0].mxu0
      %v3793 = vpop.f32.mrb[0].mxu0
      %v3794 = vadd.f32 0.0, %v3793
      %v3795 = vpop.f32.mrb[0].mxu0
      %3796 = vmatprep.mubr.bf16.mxu0 0
      %3797 = vmatmul.mubr.bf16.gmra.mrb[0].mxu0 %v2282
      %v3798 = vpop.f32.mrb[0].mxu0
      %v3799 = vadd.f32 0.0, %v3798
      %v3800 = vpop.f32.mrb[0].mxu0
      %v3801 = vpop.f32.mrb[0].mxu0
      %v3802 = vadd.f32 0.0, %v3801
      %v3803 = vpop.f32.mrb[0].mxu0
      %3804 = vmatprep.mubr.bf16.mxu0 0
      %3805 = vmatmul.mubr.bf16.gmra.mrb[0].mxu0 %v2285
      %v3806 = vpop.f32.mrb[0].mxu0
      %v3807 = vadd.f32 0.0, %v3806
      %v3808 = vpop.f32.mrb[0].mxu0
      %v3809 = vpop.f32.mrb[0].mxu0
      %v3810 = vadd.f32 0.0, %v3809
      %v3811 = vpop.f32.mrb[0].mxu0
      %3812 = vmatprep.mubr.bf16.mxu0 0
      %3813 = vmatmul.mubr.bf16.gmra.mrb[0].mxu0 %v2288
      %v3814 = vpop.f32.mrb[0].mxu0
      %v3815 = vadd.f32 0.0, %v3814
      %v3816 = vpop.f32.mrb[0].mxu0
      %v3817 = vpop.f32.mrb[0].mxu0
      %v3818 = vadd.f32 0.0, %v3817
      %v3819 = vpop.f32.mrb[0].mxu0
      %3820 = vmatprep.mubr.bf16.mxu0 0
      %3821 = vmatmul.mubr.bf16.gmra.mrb[0].mxu0 %v2291
      %v3822 = vpop.f32.mrb[0].mxu0
      %v3823 = vadd.f32 0.0, %v3822
      %v3824 = vpop.f32.mrb[0].mxu0
      %v3825 = vpop.f32.mrb[0].mxu0
      %v3826 = vadd.f32 0.0, %v3825
      %v3827 = vpop.f32.mrb[0].mxu0
      %3828 = vmatprep.mubr.bf16.mxu0 0
      %3829 = vmatmul.mubr.bf16.gmra.mrb[0].mxu0 %v2294
      %v3830 = vpop.f32.mrb[0].mxu0
      %v3831 = vadd.f32 0.0, %v3830
      %v3832 = vpop.f32.mrb[0].mxu0
      %v3833 = vpop.f32.mrb[0].mxu0
      %v3834 = vadd.f32 0.0, %v3833
      %v3835 = vpop.f32.mrb[0].mxu0
      %3836 = vmatprep.mubr.bf16.mxu0 0
      %3837 = vmatmul.mubr.bf16.gmra.mrb[0].mxu0 %v2297
      %v3838 = vpop.f32.mrb[0].mxu0
      %v3839 = vadd.f32 0.0, %v3838
      %v3840 = vpop.f32.mrb[0].mxu0
      %v3841 = vpop.f32.mrb[0].mxu0
      %v3842 = vadd.f32 0.0, %v3841
      %v3843 = vpop.f32.mrb[0].mxu0
      %3844 = vmatprep.mubr.bf16.mxu0 0
      %3845 = vmatmul.mubr.bf16.gmra.mrb[0].mxu0 %v2300
      %v3846 = vpop.f32.mrb[0].mxu0
      %v3847 = vadd.f32 0.0, %v3846
      %v3848 = vpop.f32.mrb[0].mxu0
      %v3849 = vpop.f32.mrb[0].mxu0
      %v3850 = vadd.f32 0.0, %v3849
      %v3851 = vpop.f32.mrb[0].mxu0
      %3852 = vmatprep.mubr.bf16.mxu0 0
      %3853 = vmatmul.mubr.bf16.gmra.mrb[0].mxu0 %v2303
      %v3854 = vpop.f32.mrb[0].mxu0
      %v3855 = vadd.f32 0.0, %v3854
      %v3856 = vpop.f32.mrb[0].mxu0
      %v3857 = vpop.f32.mrb[0].mxu0
      %v3858 = vadd.f32 0.0, %v3857
      %v3859 = vpop.f32.mrb[0].mxu0
      %3860 = vmatprep.mubr.bf16.mxu0 0
      %3861 = vmatmul.mubr.bf16.gmra.mrb[0].mxu0 %v2306
      %v3862 = vpop.f32.mrb[0].mxu0
      %v3863 = vadd.f32 0.0, %v3862
      %v3864 = vpop.f32.mrb[0].mxu0
      %v3865 = vpop.f32.mrb[0].mxu0
      %v3866 = vadd.f32 0.0, %v3865
      %v3867 = vpop.f32.mrb[0].mxu0
      %3868 = vmatprep.mubr.bf16.mxu0 0
      %3869 = vmatmul.mubr.bf16.gmra.mrb[0].mxu0 %v2309
      %v3870 = vpop.f32.mrb[0].mxu0
      %v3871 = vadd.f32 0.0, %v3870
      %v3872 = vpop.f32.mrb[0].mxu0
      %v3873 = vpop.f32.mrb[0].mxu0
      %v3874 = vadd.f32 0.0, %v3873
      %v3875 = vpop.f32.mrb[0].mxu0
      %3876 = vmatprep.mubr.bf16.mxu0 0
      %3877 = vmatmul.mubr.bf16.gmra.mrb[0].mxu0 %v2312
      %v3878 = vpop.f32.mrb[0].mxu0
      %v3879 = vadd.f32 0.0, %v3878
      %v3880 = vpop.f32.mrb[0].mxu0
      %v3881 = vpop.f32.mrb[0].mxu0
      %v3882 = vadd.f32 0.0, %v3881
      %v3883 = vpop.f32.mrb[0].mxu0
      %3884 = vmatprep.mubr.bf16.mxu0 0
      %3885 = vmatmul.mubr.bf16.gmra.mrb[0].mxu0 %v2315
      %v3886 = vpop.f32.mrb[0].mxu0
      %v3887 = vadd.f32 0.0, %v3886
      %v3888 = vpop.f32.mrb[0].mxu0
      %v3889 = vpop.f32.mrb[0].mxu0
      %v3890 = vadd.f32 0.0, %v3889
      %v3891 = vpop.f32.mrb[0].mxu0
      %3892 = vmatprep.mubr.bf16.mxu0 0
      %3893 = vmatmul.mubr.bf16.gmra.mrb[0].mxu0 %v2318
      %v3894 = vpop.f32.mrb[0].mxu0
      %v3895 = vadd.f32 0.0, %v3894
      %v3896 = vpop.f32.mrb[0].mxu0
      %v3897 = vpop.f32.mrb[0].mxu0
      %v3898 = vadd.f32 0.0, %v3897
      %v3899 = vpop.f32.mrb[0].mxu0
      %3900 = vmatprep.mubr.bf16.mxu0 0
      %3901 = vmatmul.mubr.bf16.gmra.mrb[0].mxu0 %v2321
      %v3902 = vpop.f32.mrb[0].mxu0
      %v3903 = vadd.f32 0.0, %v3902
      %v3904 = vpop.f32.mrb[0].mxu0
      %v3905 = vpop.f32.mrb[0].mxu0
      %v3906 = vadd.f32 0.0, %v3905
      %v3907 = vpop.f32.mrb[0].mxu0
      %3908 = vmatprep.mubr.bf16.mxu0 0
      %3909 = vmatmul.mubr.bf16.gmra.mrb[0].mxu0 %v2324
      %v3910 = vpop.f32.mrb[0].mxu0
      %v3911 = vadd.f32 0.0, %v3910
      %v3912 = vpop.f32.mrb[0].mxu0
      %v3913 = vpop.f32.mrb[0].mxu0
      %v3914 = vadd.f32 0.0, %v3913
      %v3915 = vpop.f32.mrb[0].mxu0
      %3916 = vmatprep.mubr.bf16.mxu0 0
      %3917 = vmatmul.mubr.bf16.gmra.mrb[0].mxu0 %v2327
      %v3918 = vpop.f32.mrb[0].mxu0
      %v3919 = vadd.f32 0.0, %v3918
      %v3920 = vpop.f32.mrb[0].mxu0
      %v3921 = vpop.f32.mrb[0].mxu0
      %v3922 = vadd.f32 0.0, %v3921
      %v3923 = vpop.f32.mrb[0].mxu0
      %3924 = vmatprep.mubr.bf16.mxu0 0
      %3925 = vmatmul.mubr.bf16.gmra.mrb[0].mxu0 %v2330
      %v3926 = vpop.f32.mrb[0].mxu0
      %v3927 = vadd.f32 0.0, %v3926
      %v3928 = vpop.f32.mrb[0].mxu0
      %v3929 = vpop.f32.mrb[0].mxu0
      %v3930 = vadd.f32 0.0, %v3929
      %v3931 = vpop.f32.mrb[0].mxu0
      %3932 = vmatprep.mubr.bf16.mxu0 0
      %3933 = vmatmul.mubr.bf16.gmra.mrb[0].mxu0 %v2333
      %v3934 = vpop.f32.mrb[0].mxu0
      %v3935 = vadd.f32 0.0, %v3934
      %v3936 = vpop.f32.mrb[0].mxu0
      %v3937 = vpop.f32.mrb[0].mxu0
      %v3938 = vadd.f32 0.0, %v3937
      %v3939 = vpop.f32.mrb[0].mxu0
      %3940 = vmatprep.mubr.bf16.mxu0 0
      %3941 = vmatmul.mubr.bf16.gmra.mrb[0].mxu0 %v2336
      %v3942 = vpop.f32.mrb[0].mxu0
      %v3943 = vadd.f32 0.0, %v3942
      %v3944 = vpop.f32.mrb[0].mxu0
      %v3945 = vpop.f32.mrb[0].mxu0
      %v3946 = vadd.f32 0.0, %v3945
      %v3947 = vpop.f32.mrb[0].mxu0
      %3948 = vmatprep.mubr.bf16.mxu0 0
      %3949 = vmatmul.mubr.bf16.gmra.mrb[0].mxu0 %v2339
      %v3950 = vpop.f32.mrb[0].mxu0
      %v3951 = vadd.f32 0.0, %v3950
      %v3952 = vpop.f32.mrb[0].mxu0
      %v3953 = vpop.f32.mrb[0].mxu0
      %v3954 = vadd.f32 0.0, %v3953
      %v3955 = vpop.f32.mrb[0].mxu0
      %3956 = vmatprep.mubr.bf16.mxu0 0
      %3957 = vmatmul.mubr.bf16.gmra.mrb[0].mxu0 %v2342
      %v3958 = vpop.f32.mrb[0].mxu0
      %v3959 = vadd.f32 0.0, %v3958
      %v3960 = vpop.f32.mrb[0].mxu0
      %v3961 = vpop.f32.mrb[0].mxu0
      %v3962 = vadd.f32 0.0, %v3961
      %v3963 = vpop.f32.mrb[0].mxu0
      %3964 = vmatprep.mubr.bf16.mxu0 0
      %3965 = vmatmul.mubr.bf16.gmra.mrb[0].mxu0 %v2345
      %v3966 = vpop.f32.mrb[0].mxu0
      %v3967 = vadd.f32 0.0, %v3966
      %v3968 = vpop.f32.mrb[0].mxu0
      %v3969 = vpop.f32.mrb[0].mxu0
      %v3970 = vadd.f32 0.0, %v3969
      %v3971 = vpop.f32.mrb[0].mxu0
      %3972 = vmatprep.mubr.bf16.mxu0 0
      %3973 = vmatmul.mubr.bf16.gmra.mrb[0].mxu0 %v2348
      %v3974 = vpop.f32.mrb[0].mxu0
      %v3975 = vadd.f32 0.0, %v3974
      %v3976 = vpop.f32.mrb[0].mxu0
      %v3977 = vpop.f32.mrb[0].mxu0
      %v3978 = vadd.f32 0.0, %v3977
      %v3979 = vpop.f32.mrb[0].mxu0
      %3980 = vmatprep.mubr.bf16.mxu0 0
      %3981 = vmatmul.mubr.bf16.gmra.mrb[0].mxu0 %v2351
      %v3982 = vpop.f32.mrb[0].mxu0
      %v3983 = vadd.f32 0.0, %v3982
      %v3984 = vpop.f32.mrb[0].mxu0
      %v3985 = vpop.f32.mrb[0].mxu0
      %v3986 = vadd.f32 0.0, %v3985
      %v3987 = vpop.f32.mrb[0].mxu0
      %3988 = vmatprep.mubr.bf16.mxu0 0
      %3989 = vmatmul.mubr.bf16.gmra.mrb[0].mxu0 %v2354
      %v3990 = vpop.f32.mrb[0].mxu0
      %v3991 = vadd.f32 0.0, %v3990
      %v3992 = vpop.f32.mrb[0].mxu0
      %v3993 = vpop.f32.mrb[0].mxu0
      %v3994 = vadd.f32 0.0, %v3993
      %v3995 = vpop.f32.mrb[0].mxu0
      %3996 = vmatprep.mubr.bf16.mxu0 0
      %3997 = vmatmul.mubr.bf16.gmra.mrb[0].mxu0 %v2357
      %v3998 = vpop.f32.mrb[0].mxu0
      %v3999 = vadd.f32 0.0, %v3998
      %v4000 = vpop.f32.mrb[0].mxu0
      %v4001 = vpop.f32.mrb[0].mxu0
      %v4002 = vadd.f32 0.0, %v4001
      %v4003 = vpop.f32.mrb[0].mxu0
      %4004 = vmatprep.mubr.bf16.mxu0 0
      %4005 = vmatmul.mubr.bf16.gmra.mrb[0].mxu0 %v2360
      %v4006 = vpop.f32.mrb[0].mxu0
      %v4007 = vadd.f32 0.0, %v4006
      %v4008 = vpop.f32.mrb[0].mxu0
      %v4009 = vpop.f32.mrb[0].mxu0
      %v4010 = vadd.f32 0.0, %v4009
      %v4011 = vpop.f32.mrb[0].mxu0
      %4012 = vmatprep.mubr.bf16.mxu0 0
      %4013 = vmatmul.mubr.bf16.gmra.mrb[0].mxu0 %v2363
      %v4014 = vpop.f32.mrb[0].mxu0
      %v4015 = vadd.f32 0.0, %v4014
      %v4016 = vpop.f32.mrb[0].mxu0
      %v4017 = vpop.f32.mrb[0].mxu0
      %v4018 = vadd.f32 0.0, %v4017
      %v4019 = vpop.f32.mrb[0].mxu0
      %4020 = vmatprep.mubr.bf16.mxu0 0
      %4021 = vmatmul.mubr.bf16.gmra.mrb[0].mxu0 %v2366
      %v4022 = vpop.f32.mrb[0].mxu0
      %v4023 = vadd.f32 0.0, %v4022
      %v4024 = vpop.f32.mrb[0].mxu0
      %v4025 = vpop.f32.mrb[0].mxu0
      %v4026 = vadd.f32 0.0, %v4025
      %v4027 = vpop.f32.mrb[0].mxu0
      %4028 = vmatprep.mubr.bf16.mxu0 0
      %4029 = vmatmul.mubr.bf16.gmra.mrb[0].mxu0 %v2369
      %v4030 = vpop.f32.mrb[0].mxu0
      %v4031 = vadd.f32 0.0, %v4030
      %v4032 = vpop.f32.mrb[0].mxu0
      %v4033 = vpop.f32.mrb[0].mxu0
      %v4034 = vadd.f32 0.0, %v4033
      %v4035 = vpop.f32.mrb[0].mxu0
      %4036 = vmatprep.mubr.bf16.mxu0 0
      %4037 = vmatmul.mubr.bf16.gmra.mrb[0].mxu0 %v2372
      %v4038 = vpop.f32.mrb[0].mxu0
      %v4039 = vadd.f32 0.0, %v4038
      %v4040 = vpop.f32.mrb[0].mxu0
      %v4041 = vpop.f32.mrb[0].mxu0
      %v4042 = vadd.f32 0.0, %v4041
      %v4043 = vpop.f32.mrb[0].mxu0
      %4044 = vmatprep.mubr.bf16.mxu0 0
      %4045 = vmatmul.mubr.bf16.gmra.mrb[0].mxu0 %v2375
      %v4046 = vpop.f32.mrb[0].mxu0
      %v4047 = vadd.f32 0.0, %v4046
      %v4048 = vpop.f32.mrb[0].mxu0
      %v4049 = vpop.f32.mrb[0].mxu0
      %v4050 = vadd.f32 0.0, %v4049
      %v4051 = vpop.f32.mrb[0].mxu0
      %4052 = vmatprep.mubr.bf16.mxu0 0
      %4053 = vmatmul.mubr.bf16.gmra.mrb[0].mxu0 %v2378
      %v4054 = vpop.f32.mrb[0].mxu0
      %v4055 = vadd.f32 0.0, %v4054
      %v4056 = vpop.f32.mrb[0].mxu0
      %v4057 = vpop.f32.mrb[0].mxu0
      %v4058 = vadd.f32 0.0, %v4057
      %v4059 = vpop.f32.mrb[0].mxu0
      %4060 = vmatprep.mubr.bf16.mxu0 0
      %4061 = vmatmul.mubr.bf16.gmra.mrb[0].mxu0 %v2381
      %v4062 = vpop.f32.mrb[0].mxu0
      %v4063 = vadd.f32 0.0, %v4062
      %v4064 = vpop.f32.mrb[0].mxu0
      %v4065 = vpop.f32.mrb[0].mxu0
      %v4066 = vadd.f32 0.0, %v4065
      %v4067 = vpop.f32.mrb[0].mxu0
      %4068 = vmatprep.mubr.bf16.mxu0 0
      %4069 = vmatmul.mubr.bf16.gmra.mrb[0].mxu0 %v2384
      %v4070 = vpop.f32.mrb[0].mxu0
      %v4071 = vadd.f32 0.0, %v4070
      %v4072 = vpop.f32.mrb[0].mxu0
      %v4073 = vpop.f32.mrb[0].mxu0
      %v4074 = vadd.f32 0.0, %v4073
      %v4075 = vpop.f32.mrb[0].mxu0
      %4076 = vmatprep.mubr.bf16.mxu0 0
      %4077 = vmatmul.mubr.bf16.gmra.mrb[0].mxu0 %v2387
      %v4078 = vpop.f32.mrb[0].mxu0
      %v4079 = vadd.f32 0.0, %v4078
      %v4080 = vpop.f32.mrb[0].mxu0
      %v4081 = vpop.f32.mrb[0].mxu0
      %v4082 = vadd.f32 0.0, %v4081
      %v4083 = vpop.f32.mrb[0].mxu0
      %4084 = vmatprep.mubr.bf16.mxu0 0
      %4085 = vmatmul.mubr.bf16.gmra.mrb[0].mxu0 %v2390
      %v4086 = vpop.f32.mrb[0].mxu0
      %v4087 = vadd.f32 0.0, %v4086
      %v4088 = vpop.f32.mrb[0].mxu0
      %v4089 = vpop.f32.mrb[0].mxu0
      %v4090 = vadd.f32 0.0, %v4089
      %v4091 = vpop.f32.mrb[0].mxu0
      %4092 = vmatprep.mubr.bf16.mxu0 0
      %4093 = vmatmul.mubr.bf16.gmra.mrb[0].mxu0 %v2393
      %v4094 = vpop.f32.mrb[0].mxu0
      %v4095 = vadd.f32 0.0, %v4094
      %v4096 = vpop.f32.mrb[0].mxu0
      %v4097 = vpop.f32.mrb[0].mxu0
      %v4098 = vadd.f32 0.0, %v4097
      %v4099 = vpop.f32.mrb[0].mxu0
      %4100 = vmatprep.mubr.bf16.mxu0 0
      %4101 = vmatmul.mubr.bf16.gmra.mrb[0].mxu0 %v2396
      %v4102 = vpop.f32.mrb[0].mxu0
      %v4103 = vadd.f32 0.0, %v4102
      %v4104 = vpop.f32.mrb[0].mxu0
      %v4105 = vpop.f32.mrb[0].mxu0
      %v4106 = vadd.f32 0.0, %v4105
      %v4107 = vpop.f32.mrb[0].mxu0
      %4108 = vmatprep.mubr.bf16.mxu0 0
      %4109 = vmatmul.mubr.bf16.gmra.mrb[0].mxu0 %v2399
      %v4110 = vpop.f32.mrb[0].mxu0
      %v4111 = vadd.f32 0.0, %v4110
      %v4112 = vpop.f32.mrb[0].mxu0
      %v4113 = vpop.f32.mrb[0].mxu0
      %v4114 = vadd.f32 0.0, %v4113
      %v4115 = vpop.f32.mrb[0].mxu0
      %4116 = vmatprep.mubr.bf16.mxu0 0
      %4117 = vmatmul.mubr.bf16.gmra.mrb[0].mxu0 %v2402
      %v4118 = vpop.f32.mrb[0].mxu0
      %v4119 = vadd.f32 0.0, %v4118
      %v4120 = vpop.f32.mrb[0].mxu0
      %v4121 = vpop.f32.mrb[0].mxu0
      %v4122 = vadd.f32 0.0, %v4121
      %v4123 = vpop.f32.mrb[0].mxu0
      %4124 = vmatprep.mubr.bf16.mxu0 0
      %4125 = vmatmul.mubr.bf16.gmra.mrb[0].mxu0 %v2405
      %v4126 = vpop.f32.mrb[0].mxu0
      %v4127 = vadd.f32 0.0, %v4126
      %v4128 = vpop.f32.mrb[0].mxu0
      %v4129 = vpop.f32.mrb[0].mxu0
      %v4130 = vadd.f32 0.0, %v4129
      %v4131 = vpop.f32.mrb[0].mxu0
      %4132 = vmatprep.mubr.bf16.mxu0 0
      %4133 = vmatmul.mubr.bf16.gmra.mrb[0].mxu0 %v2408
      %v4134 = vpop.f32.mrb[0].mxu0
      %v4135 = vadd.f32 0.0, %v4134
      %v4136 = vpop.f32.mrb[0].mxu0
      %v4137 = vpop.f32.mrb[0].mxu0
      %v4138 = vadd.f32 0.0, %v4137
      %v4139 = vpop.f32.mrb[0].mxu0
      %4140 = vmatprep.mubr.bf16.mxu0 0
      %4141 = vmatmul.mubr.bf16.gmra.mrb[0].mxu0 %v2411
      %v4142 = vpop.f32.mrb[0].mxu0
      %v4143 = vadd.f32 0.0, %v4142
      %v4144 = vpop.f32.mrb[0].mxu0
      %v4145 = vpop.f32.mrb[0].mxu0
      %v4146 = vadd.f32 0.0, %v4145
      %v4147 = vpop.f32.mrb[0].mxu0
      %4148 = vmatprep.mubr.bf16.mxu0 0
      %4149 = vmatmul.mubr.bf16.gmra.mrb[0].mxu0 %v2414
      %v4150 = vpop.f32.mrb[0].mxu0
      %v4151 = vadd.f32 0.0, %v4150
      %v4152 = vpop.f32.mrb[0].mxu0
      %v4153 = vpop.f32.mrb[0].mxu0
      %v4154 = vadd.f32 0.0, %v4153
      %v4155 = vpop.f32.mrb[0].mxu0
      %4156 = vmatprep.mubr.bf16.mxu0 0
      %4157 = vmatmul.mubr.bf16.gmra.mrb[0].mxu0 %v2417
      %v4158 = vpop.f32.mrb[0].mxu0
      %v4159 = vadd.f32 0.0, %v4158
      %v4160 = vpop.f32.mrb[0].mxu0
      %v4161 = vpop.f32.mrb[0].mxu0
      %v4162 = vadd.f32 0.0, %v4161
      %v4163 = vpop.f32.mrb[0].mxu0
      %4164 = vmatprep.mubr.bf16.mxu0 0
      %4165 = vmatmul.mubr.bf16.gmra.mrb[0].mxu0 %v2420
      %v4166 = vpop.f32.mrb[0].mxu0
      %v4167 = vadd.f32 0.0, %v4166
      %v4168 = vpop.f32.mrb[0].mxu0
      %v4169 = vpop.f32.mrb[0].mxu0
      %v4170 = vadd.f32 0.0, %v4169
      %v4171 = vpop.f32.mrb[0].mxu0
      %4172 = vmatprep.mubr.bf16.mxu0 0
      %4173 = vmatmul.mubr.bf16.gmra.mrb[0].mxu0 %v2423
      %v4174 = vpop.f32.mrb[0].mxu0
      %v4175 = vadd.f32 0.0, %v4174
      %v4176 = vpop.f32.mrb[0].mxu0
      %v4177 = vpop.f32.mrb[0].mxu0
      %v4178 = vadd.f32 0.0, %v4177
      %v4179 = vpop.f32.mrb[0].mxu0
      %4180 = vmatprep.mubr.bf16.mxu0 0
      %4181 = vmatmul.mubr.bf16.gmra.mrb[0].mxu0 %v2426
      %v4182 = vpop.f32.mrb[0].mxu0
      %v4183 = vadd.f32 0.0, %v4182
      %v4184 = vpop.f32.mrb[0].mxu0
      %v4185 = vpop.f32.mrb[0].mxu0
      %v4186 = vadd.f32 0.0, %v4185
      %v4187 = vpop.f32.mrb[0].mxu0
      %4188 = vmatprep.mubr.bf16.mxu0 0
      %4189 = vmatmul.mubr.bf16.gmra.mrb[0].mxu0 %v2429
      %v4190 = vpop.f32.mrb[0].mxu0
      %v4191 = vadd.f32 0.0, %v4190
      %v4192 = vpop.f32.mrb[0].mxu0
      %v4193 = vpop.f32.mrb[0].mxu0
      %v4194 = vadd.f32 0.0, %v4193
      %v4195 = vpop.f32.mrb[0].mxu0
      %4196 = vmatprep.mubr.bf16.mxu0 0
      %4197 = vmatmul.mubr.bf16.gmra.mrb[0].mxu0 %v2432
      %v4198 = vpop.f32.mrb[0].mxu0
      %v4199 = vadd.f32 0.0, %v4198
      %v4200 = vpop.f32.mrb[0].mxu0
      %v4201 = vpop.f32.mrb[0].mxu0
      %v4202 = vadd.f32 0.0, %v4201
      %v4203 = vpop.f32.mrb[0].mxu0
      %4204 = vmatprep.mubr.bf16.mxu0 0
      %4205 = vmatmul.mubr.bf16.gmra.mrb[0].mxu0 %v2435
      %v4206 = vpop.f32.mrb[0].mxu0
      %v4207 = vadd.f32 0.0, %v4206
      %v4208 = vpop.f32.mrb[0].mxu0
      %v4209 = vpop.f32.mrb[0].mxu0
      %v4210 = vadd.f32 0.0, %v4209
      %v4211 = vpop.f32.mrb[0].mxu0
      %4212 = vmatprep.mubr.bf16.mxu0 0
      %4213 = vmatmul.mubr.bf16.gmra.mrb[0].mxu0 %v2438
      %v4214 = vpop.f32.mrb[0].mxu0
      %v4215 = vadd.f32 0.0, %v4214
      %v4216 = vpop.f32.mrb[0].mxu0
      %v4217 = vpop.f32.mrb[0].mxu0
      %v4218 = vadd.f32 0.0, %v4217
      %v4219 = vpop.f32.mrb[0].mxu0
      %4220 = vmatprep.mubr.bf16.mxu0 0
      %4221 = vmatmul.mubr.bf16.gmra.mrb[0].mxu0 %v2441
      %v4222 = vpop.f32.mrb[0].mxu0
      %v4223 = vadd.f32 0.0, %v4222
      %v4224 = vpop.f32.mrb[0].mxu0
      %v4225 = vpop.f32.mrb[0].mxu0
      %v4226 = vadd.f32 0.0, %v4225
      %v4227 = vpop.f32.mrb[0].mxu0
      %4228 = vmatprep.mubr.bf16.mxu0 0
      %4229 = vmatmul.mubr.bf16.gmra.mrb[0].mxu0 %v2444
      %v4230 = vpop.f32.mrb[0].mxu0
      %v4231 = vadd.f32 0.0, %v4230
      %v4232 = vpop.f32.mrb[0].mxu0
      %v4233 = vpop.f32.mrb[0].mxu0
      %v4234 = vadd.f32 0.0, %v4233
      %v4235 = vpop.f32.mrb[0].mxu0
      %4236 = vmatprep.mubr.bf16.mxu0 0
      %4237 = vmatmul.mubr.bf16.gmra.mrb[0].mxu0 %v2447
      %v4238 = vpop.f32.mrb[0].mxu0
      %v4239 = vadd.f32 0.0, %v4238
      %v4240 = vpop.f32.mrb[0].mxu0
      %v4241 = vpop.f32.mrb[0].mxu0
      %v4242 = vadd.f32 0.0, %v4241
      %v4243 = vpop.f32.mrb[0].mxu0
      %4244 = vmatprep.mubr.bf16.mxu0 0
      %4245 = vmatmul.mubr.bf16.gmra.mrb[0].mxu0 %v2450
      %v4246 = vpop.f32.mrb[0].mxu0
      %v4247 = vadd.f32 0.0, %v4246
      %v4248 = vpop.f32.mrb[0].mxu0
      %v4249 = vpop.f32.mrb[0].mxu0
      %v4250 = vadd.f32 0.0, %v4249
      %v4251 = vpop.f32.mrb[0].mxu0
      %4252 = vmatprep.mubr.bf16.mxu0 0
      %4253 = vmatmul.mubr.bf16.gmra.mrb[0].mxu0 %v2453
      %v4254 = vpop.f32.mrb[0].mxu0
      %v4255 = vadd.f32 0.0, %v4254
      %v4256 = vpop.f32.mrb[0].mxu0
      %v4257 = vpop.f32.mrb[0].mxu0
      %v4258 = vadd.f32 0.0, %v4257
      %v4259 = vpop.f32.mrb[0].mxu0
      %4260 = vmatprep.mubr.bf16.mxu0 0
      %4261 = vmatmul.mubr.bf16.gmra.mrb[0].mxu0 %v2456
      %v4262 = vpop.f32.mrb[0].mxu0
      %v4263 = vadd.f32 0.0, %v4262
      %v4264 = vpop.f32.mrb[0].mxu0
      %v4265 = vpop.f32.mrb[0].mxu0
      %v4266 = vadd.f32 0.0, %v4265
      %v4267 = vpop.f32.mrb[0].mxu0
      %4268 = vmatprep.mubr.bf16.mxu0 0
      %4269 = vmatmul.mubr.bf16.gmra.mrb[0].mxu0 %v2459
      %v4270 = vpop.f32.mrb[0].mxu0
      %v4271 = vadd.f32 0.0, %v4270
      %v4272 = vpop.f32.mrb[0].mxu0
      %v4273 = vpop.f32.mrb[0].mxu0
      %v4274 = vadd.f32 0.0, %v4273
      %v4275 = vpop.f32.mrb[0].mxu0
      %4276 = vmatprep.mubr.bf16.mxu0 0
      %4277 = vmatmul.mubr.bf16.gmra.mrb[0].mxu0 %v2462
      %v4278 = vpop.f32.mrb[0].mxu0
      %v4279 = vadd.f32 0.0, %v4278
      %v4280 = vpop.f32.mrb[0].mxu0
      %v4281 = vpop.f32.mrb[0].mxu0
      %v4282 = vadd.f32 0.0, %v4281
      %v4283 = vpop.f32.mrb[0].mxu0
      %4284 = vmatprep.mubr.bf16.mxu0 0
      %4285 = vmatmul.mubr.bf16.gmra.mrb[0].mxu0 %v2465
      %v4286 = vpop.f32.mrb[0].mxu0
      %v4287 = vadd.f32 0.0, %v4286
      %v4288 = vpop.f32.mrb[0].mxu0
      %v4289 = vpop.f32.mrb[0].mxu0
      %v4290 = vadd.f32 0.0, %v4289
      %v4291 = vpop.f32.mrb[0].mxu0
      %4292 = vmatprep.mubr.bf16.mxu0 0
      %4293 = vmatmul.mubr.bf16.gmra.mrb[0].mxu0 %v2468
      %v4294 = vpop.f32.mrb[0].mxu0
      %v4295 = vadd.f32 0.0, %v4294
      %v4296 = vpop.f32.mrb[0].mxu0
      %v4297 = vpop.f32.mrb[0].mxu0
      %v4298 = vadd.f32 0.0, %v4297
      %v4299 = vpop.f32.mrb[0].mxu0
      %4300 = vmatprep.mubr.bf16.mxu0 0
      %4301 = vmatmul.mubr.bf16.gmra.mrb[0].mxu0 %v2471
      %v4302 = vpop.f32.mrb[0].mxu0
      %v4303 = vadd.f32 0.0, %v4302
      %v4304 = vpop.f32.mrb[0].mxu0
      %v4305 = vpop.f32.mrb[0].mxu0
      %v4306 = vadd.f32 0.0, %v4305
      %v4307 = vpop.f32.mrb[0].mxu0
      %4308 = vmatprep.mubr.bf16.mxu0 0
      %4309 = vmatmul.mubr.bf16.gmra.mrb[0].mxu0 %v2474
      %v4310 = vpop.f32.mrb[0].mxu0
      %v4311 = vadd.f32 0.0, %v4310
      %v4312 = vpop.f32.mrb[0].mxu0
      %v4313 = vpop.f32.mrb[0].mxu0
      %v4314 = vadd.f32 0.0, %v4313
      %v4315 = vpop.f32.mrb[0].mxu0
      %4316 = vdwg.mxu0
      %v4317 = vld [vmem:[%s2] sm:$0x1]
      %v4319 = vlaneseq
      %v4320 = vshrl.u32 %v4319, 7
      %v4321 = vsub.s32 0, %v4320
      %v4322 = vrot.slane %v4317, %v4321
      %v4324 = vmul.f32 %v2511, %v4322
      %v4325 = vmul.f32 %v2514, %v4322
      %v4326 = vmul.f32 %v2519, %v4322
      %v4327 = vmul.f32 %v2522, %v4322
      %v4328 = vmul.f32 %v2527, %v4322
      %v4329 = vmul.f32 %v2530, %v4322
      %v4330 = vmul.f32 %v2535, %v4322
      %v4331 = vmul.f32 %v2538, %v4322
      %v4332 = vmul.f32 %v2543, %v4322
      %v4333 = vmul.f32 %v2546, %v4322
      %v4334 = vmul.f32 %v2551, %v4322
      %v4335 = vmul.f32 %v2554, %v4322
      %v4336 = vmul.f32 %v2559, %v4322
      %v4337 = vmul.f32 %v2562, %v4322
      %v4338 = vmul.f32 %v2567, %v4322
      %v4339 = vmul.f32 %v2570, %v4322
      %v4340 = vmul.f32 %v2575, %v4322
      %v4341 = vmul.f32 %v2578, %v4322
      %v4342 = vmul.f32 %v2583, %v4322
      %v4343 = vmul.f32 %v2586, %v4322
      %v4344 = vmul.f32 %v2591, %v4322
      %v4345 = vmul.f32 %v2594, %v4322
      %v4346 = vmul.f32 %v2599, %v4322
      %v4347 = vmul.f32 %v2602, %v4322
      %v4348 = vmul.f32 %v2607, %v4322
      %v4349 = vmul.f32 %v2610, %v4322
      %v4350 = vmul.f32 %v2615, %v4322
      %v4351 = vmul.f32 %v2618, %v4322
      %v4352 = vmul.f32 %v2623, %v4322
      %v4353 = vmul.f32 %v2626, %v4322
      %v4354 = vmul.f32 %v2631, %v4322
      %v4355 = vmul.f32 %v2634, %v4322
      %v4356 = vmul.f32 %v2639, %v4322
      %v4357 = vmul.f32 %v2642, %v4322
      %v4358 = vmul.f32 %v2647, %v4322
      %v4359 = vmul.f32 %v2650, %v4322
      %v4360 = vmul.f32 %v2655, %v4322
      %v4361 = vmul.f32 %v2658, %v4322
      %v4362 = vmul.f32 %v2663, %v4322
      %v4363 = vmul.f32 %v2666, %v4322
      %v4364 = vmul.f32 %v2671, %v4322
      %v4365 = vmul.f32 %v2674, %v4322
      %v4366 = vmul.f32 %v2679, %v4322
      %v4367 = vmul.f32 %v2682, %v4322
      %v4368 = vmul.f32 %v2687, %v4322
      %v4369 = vmul.f32 %v2690, %v4322
      %v4370 = vmul.f32 %v2695, %v4322
      %v4371 = vmul.f32 %v2698, %v4322
      %v4372 = vmul.f32 %v2703, %v4322
      %v4373 = vmul.f32 %v2706, %v4322
      %v4374 = vmul.f32 %v2711, %v4322
      %v4375 = vmul.f32 %v2714, %v4322
      %v4376 = vmul.f32 %v2719, %v4322
      %v4377 = vmul.f32 %v2722, %v4322
      %v4378 = vmul.f32 %v2727, %v4322
      %v4379 = vmul.f32 %v2730, %v4322
      %v4380 = vmul.f32 %v2735, %v4322
      %v4381 = vmul.f32 %v2738, %v4322
      %v4382 = vmul.f32 %v2743, %v4322
      %v4383 = vmul.f32 %v2746, %v4322
      %v4384 = vmul.f32 %v2751, %v4322
      %v4385 = vmul.f32 %v2754, %v4322
      %v4386 = vmul.f32 %v2759, %v4322
      %v4387 = vmul.f32 %v2762, %v4322
      %v4388 = vmul.f32 %v2767, %v4322
      %v4389 = vmul.f32 %v2770, %v4322
      %v4390 = vmul.f32 %v2775, %v4322
      %v4391 = vmul.f32 %v2778, %v4322
      %v4392 = vmul.f32 %v2783, %v4322
      %v4393 = vmul.f32 %v2786, %v4322
      %v4394 = vmul.f32 %v2791, %v4322
      %v4395 = vmul.f32 %v2794, %v4322
      %v4396 = vmul.f32 %v2799, %v4322
      %v4397 = vmul.f32 %v2802, %v4322
      %v4398 = vmul.f32 %v2807, %v4322
      %v4399 = vmul.f32 %v2810, %v4322
      %v4400 = vmul.f32 %v2815, %v4322
      %v4401 = vmul.f32 %v2818, %v4322
      %v4402 = vmul.f32 %v2823, %v4322
      %v4403 = vmul.f32 %v2826, %v4322
      %v4404 = vmul.f32 %v2831, %v4322
      %v4405 = vmul.f32 %v2834, %v4322
      %v4406 = vmul.f32 %v2839, %v4322
      %v4407 = vmul.f32 %v2842, %v4322
      %v4408 = vmul.f32 %v2847, %v4322
      %v4409 = vmul.f32 %v2850, %v4322
      %v4410 = vmul.f32 %v2855, %v4322
      %v4411 = vmul.f32 %v2858, %v4322
      %v4412 = vmul.f32 %v2863, %v4322
      %v4413 = vmul.f32 %v2866, %v4322
      %v4414 = vmul.f32 %v2871, %v4322
      %v4415 = vmul.f32 %v2874, %v4322
      %v4416 = vmul.f32 %v2879, %v4322
      %v4417 = vmul.f32 %v2882, %v4322
      %v4418 = vmul.f32 %v2887, %v4322
      %v4419 = vmul.f32 %v2890, %v4322
      %v4420 = vmul.f32 %v2895, %v4322
      %v4421 = vmul.f32 %v2898, %v4322
      %v4422 = vmul.f32 %v2903, %v4322
      %v4423 = vmul.f32 %v2906, %v4322
      %v4424 = vmul.f32 %v2911, %v4322
      %v4425 = vmul.f32 %v2914, %v4322
      %v4426 = vmul.f32 %v2919, %v4322
      %v4427 = vmul.f32 %v2922, %v4322
      %v4428 = vmul.f32 %v2927, %v4322
      %v4429 = vmul.f32 %v2930, %v4322
      %v4430 = vmul.f32 %v2935, %v4322
      %v4431 = vmul.f32 %v2938, %v4322
      %v4432 = vmul.f32 %v2943, %v4322
      %v4433 = vmul.f32 %v2946, %v4322
      %v4434 = vmul.f32 %v2951, %v4322
      %v4435 = vmul.f32 %v2954, %v4322
      %v4436 = vmul.f32 %v2959, %v4322
      %v4437 = vmul.f32 %v2962, %v4322
      %v4438 = vmul.f32 %v2967, %v4322
      %v4439 = vmul.f32 %v2970, %v4322
      %v4440 = vmul.f32 %v2975, %v4322
      %v4441 = vmul.f32 %v2978, %v4322
      %v4442 = vmul.f32 %v2983, %v4322
      %v4443 = vmul.f32 %v2986, %v4322
      %v4444 = vmul.f32 %v2991, %v4322
      %v4445 = vmul.f32 %v2994, %v4322
      %v4446 = vmul.f32 %v2999, %v4322
      %v4447 = vmul.f32 %v3002, %v4322
      %v4448 = vmul.f32 %v3007, %v4322
      %v4449 = vmul.f32 %v3010, %v4322
      %v4450 = vmul.f32 %v3015, %v4322
      %v4451 = vmul.f32 %v3018, %v4322
      %v4452 = vmul.f32 %v3023, %v4322
      %v4453 = vmul.f32 %v3026, %v4322
      %v4454 = vmul.f32 %v3031, %v4322
      %v4455 = vmul.f32 %v3034, %v4322
      %v4456 = vmul.f32 %v3039, %v4322
      %v4457 = vmul.f32 %v3042, %v4322
      %v4458 = vmul.f32 %v3047, %v4322
      %v4459 = vmul.f32 %v3050, %v4322
      %v4460 = vmul.f32 %v3055, %v4322
      %v4461 = vmul.f32 %v3058, %v4322
      %v4462 = vmul.f32 %v3063, %v4322
      %v4463 = vmul.f32 %v3066, %v4322
      %v4464 = vmul.f32 %v3071, %v4322
      %v4465 = vmul.f32 %v3074, %v4322
      %v4466 = vmul.f32 %v3079, %v4322
      %v4467 = vmul.f32 %v3082, %v4322
      %v4468 = vmul.f32 %v3087, %v4322
      %v4469 = vmul.f32 %v3090, %v4322
      %v4470 = vmul.f32 %v3095, %v4322
      %v4471 = vmul.f32 %v3098, %v4322
      %v4472 = vmul.f32 %v3103, %v4322
      %v4473 = vmul.f32 %v3106, %v4322
      %v4474 = vmul.f32 %v3111, %v4322
      %v4475 = vmul.f32 %v3114, %v4322
      %v4476 = vmul.f32 %v3119, %v4322
      %v4477 = vmul.f32 %v3122, %v4322
      %v4478 = vmul.f32 %v3127, %v4322
      %v4479 = vmul.f32 %v3130, %v4322
      %v4480 = vmul.f32 %v3135, %v4322
      %v4481 = vmul.f32 %v3138, %v4322
      %v4482 = vmul.f32 %v3143, %v4322
      %v4483 = vmul.f32 %v3146, %v4322
      %v4484 = vmul.f32 %v3151, %v4322
      %v4485 = vmul.f32 %v3154, %v4322
      %v4486 = vmul.f32 %v3159, %v4322
      %v4487 = vmul.f32 %v3162, %v4322
      %v4488 = vmul.f32 %v3167, %v4322
      %v4489 = vmul.f32 %v3170, %v4322
      %v4490 = vmul.f32 %v3175, %v4322
      %v4491 = vmul.f32 %v3178, %v4322
      %v4492 = vmul.f32 %v3183, %v4322
      %v4493 = vmul.f32 %v3186, %v4322
      %v4494 = vmul.f32 %v3191, %v4322
      %v4495 = vmul.f32 %v3194, %v4322
      %v4496 = vmul.f32 %v3199, %v4322
      %v4497 = vmul.f32 %v3202, %v4322
      %v4498 = vmul.f32 %v3207, %v4322
      %v4499 = vmul.f32 %v3210, %v4322
      %v4500 = vmul.f32 %v3215, %v4322
      %v4501 = vmul.f32 %v3218, %v4322
      %v4502 = vmul.f32 %v3223, %v4322
      %v4503 = vmul.f32 %v3226, %v4322
      %v4504 = vmul.f32 %v3231, %v4322
      %v4505 = vmul.f32 %v3234, %v4322
      %v4506 = vmul.f32 %v3239, %v4322
      %v4507 = vmul.f32 %v3242, %v4322
      %v4508 = vmul.f32 %v3247, %v4322
      %v4509 = vmul.f32 %v3250, %v4322
      %v4510 = vmul.f32 %v3255, %v4322
      %v4511 = vmul.f32 %v3258, %v4322
      %v4512 = vmul.f32 %v3263, %v4322
      %v4513 = vmul.f32 %v3266, %v4322
      %v4514 = vmul.f32 %v3271, %v4322
      %v4515 = vmul.f32 %v3274, %v4322
      %v4516 = vmul.f32 %v3279, %v4322
      %v4517 = vmul.f32 %v3282, %v4322
      %v4518 = vmul.f32 %v3287, %v4322
      %v4519 = vmul.f32 %v3290, %v4322
      %v4520 = vmul.f32 %v3295, %v4322
      %v4521 = vmul.f32 %v3298, %v4322
      %v4522 = vmul.f32 %v3303, %v4322
      %v4523 = vmul.f32 %v3306, %v4322
      %v4524 = vmul.f32 %v3311, %v4322
      %v4525 = vmul.f32 %v3314, %v4322
      %v4526 = vmul.f32 %v3319, %v4322
      %v4527 = vmul.f32 %v3322, %v4322
      %v4528 = vmul.f32 %v3327, %v4322
      %v4529 = vmul.f32 %v3330, %v4322
      %v4530 = vmul.f32 %v3335, %v4322
      %v4531 = vmul.f32 %v3338, %v4322
      %v4532 = vmul.f32 %v3343, %v4322
      %v4533 = vmul.f32 %v3346, %v4322
      %v4534 = vmul.f32 %v3351, %v4322
      %v4535 = vmul.f32 %v3354, %v4322
      %v4536 = vmul.f32 %v3359, %v4322
      %v4537 = vmul.f32 %v3362, %v4322
      %v4538 = vmul.f32 %v3367, %v4322
      %v4539 = vmul.f32 %v3370, %v4322
      %v4540 = vmul.f32 %v3375, %v4322
      %v4541 = vmul.f32 %v3378, %v4322
      %v4542 = vmul.f32 %v3383, %v4322
      %v4543 = vmul.f32 %v3386, %v4322
      %v4544 = vmul.f32 %v3391, %v4322
      %v4545 = vmul.f32 %v3394, %v4322
      %v4546 = vmul.f32 %v3399, %v4322
      %v4547 = vmul.f32 %v3402, %v4322
      %v4548 = vmul.f32 %v3407, %v4322
      %v4549 = vmul.f32 %v3410, %v4322
      %v4550 = vmul.f32 %v3415, %v4322
      %v4551 = vmul.f32 %v3418, %v4322
      %v4552 = vmul.f32 %v3423, %v4322
      %v4553 = vmul.f32 %v3426, %v4322
      %v4554 = vmul.f32 %v3431, %v4322
      %v4555 = vmul.f32 %v3434, %v4322
      %v4556 = vmul.f32 %v3439, %v4322
      %v4557 = vmul.f32 %v3442, %v4322
      %v4558 = vmul.f32 %v3447, %v4322
      %v4559 = vmul.f32 %v3450, %v4322
      %v4560 = vmul.f32 %v3455, %v4322
      %v4561 = vmul.f32 %v3458, %v4322
      %v4562 = vmul.f32 %v3463, %v4322
      %v4563 = vmul.f32 %v3466, %v4322
      %v4564 = vmul.f32 %v3471, %v4322
      %v4565 = vmul.f32 %v3474, %v4322
      %v4566 = vmul.f32 %v3479, %v4322
      %v4567 = vmul.f32 %v3482, %v4322
      %v4568 = vmul.f32 %v3487, %v4322
      %v4569 = vmul.f32 %v3490, %v4322
      %v4570 = vmul.f32 %v3495, %v4322
      %v4571 = vmul.f32 %v3498, %v4322
      %v4572 = vmul.f32 %v3503, %v4322
      %v4573 = vmul.f32 %v3506, %v4322
      %v4574 = vmul.f32 %v3511, %v4322
      %v4575 = vmul.f32 %v3514, %v4322
      %v4576 = vmul.f32 %v3519, %v4322
      %v4577 = vmul.f32 %v3522, %v4322
      %v4578 = vmul.f32 %v3527, %v4322
      %v4579 = vmul.f32 %v3530, %v4322
      %v4580 = vmul.f32 %v3535, %v4322
      %v4581 = vmul.f32 %v3538, %v4322
      %v4582 = vmul.f32 %v3543, %v4322
      %v4583 = vmul.f32 %v3546, %v4322
      %v4584 = vmul.f32 %v3551, %v4322
      %v4585 = vmul.f32 %v3554, %v4322
      %v4586 = vmul.f32 %v3559, %v4322
      %v4587 = vmul.f32 %v3562, %v4322
      %v4588 = vmul.f32 %v3567, %v4322
      %v4589 = vmul.f32 %v3570, %v4322
      %v4590 = vmul.f32 %v3575, %v4322
      %v4591 = vmul.f32 %v3578, %v4322
      %v4592 = vmul.f32 %v3583, %v4322
      %v4593 = vmul.f32 %v3586, %v4322
      %v4594 = vmul.f32 %v3591, %v4322
      %v4595 = vmul.f32 %v3594, %v4322
      %v4596 = vmul.f32 %v3599, %v4322
      %v4597 = vmul.f32 %v3602, %v4322
      %v4598 = vmul.f32 %v3607, %v4322
      %v4599 = vmul.f32 %v3610, %v4322
      %v4600 = vmul.f32 %v3615, %v4322
      %v4601 = vmul.f32 %v3618, %v4322
      %v4602 = vmul.f32 %v3623, %v4322
      %v4603 = vmul.f32 %v3626, %v4322
      %v4604 = vmul.f32 %v3631, %v4322
      %v4605 = vmul.f32 %v3634, %v4322
      %v4606 = vmul.f32 %v3639, %v4322
      %v4607 = vmul.f32 %v3642, %v4322
      %v4608 = vmul.f32 %v3647, %v4322
      %v4609 = vmul.f32 %v3650, %v4322
      %v4610 = vmul.f32 %v3655, %v4322
      %v4611 = vmul.f32 %v3658, %v4322
      %v4612 = vmul.f32 %v3663, %v4322
      %v4613 = vmul.f32 %v3666, %v4322
      %v4614 = vmul.f32 %v3671, %v4322
      %v4615 = vmul.f32 %v3674, %v4322
      %v4616 = vmul.f32 %v3679, %v4322
      %v4617 = vmul.f32 %v3682, %v4322
      %v4618 = vmul.f32 %v3687, %v4322
      %v4619 = vmul.f32 %v3690, %v4322
      %v4620 = vmul.f32 %v3695, %v4322
      %v4621 = vmul.f32 %v3698, %v4322
      %v4622 = vmul.f32 %v3703, %v4322
      %v4623 = vmul.f32 %v3706, %v4322
      %v4624 = vmul.f32 %v3711, %v4322
      %v4625 = vmul.f32 %v3714, %v4322
      %v4626 = vmul.f32 %v3719, %v4322
      %v4627 = vmul.f32 %v3722, %v4322
      %v4628 = vmul.f32 %v3727, %v4322
      %v4629 = vmul.f32 %v3730, %v4322
      %v4630 = vmul.f32 %v3735, %v4322
      %v4631 = vmul.f32 %v3738, %v4322
      %v4632 = vmul.f32 %v3743, %v4322
      %v4633 = vmul.f32 %v3746, %v4322
      %v4634 = vmul.f32 %v3751, %v4322
      %v4635 = vmul.f32 %v3754, %v4322
      %v4636 = vmul.f32 %v3759, %v4322
      %v4637 = vmul.f32 %v3762, %v4322
      %v4638 = vmul.f32 %v3767, %v4322
      %v4639 = vmul.f32 %v3770, %v4322
      %v4640 = vmul.f32 %v3775, %v4322
      %v4641 = vmul.f32 %v3778, %v4322
      %v4642 = vmul.f32 %v3783, %v4322
      %v4643 = vmul.f32 %v3786, %v4322
      %v4644 = vmul.f32 %v3791, %v4322
      %v4645 = vmul.f32 %v3794, %v4322
      %v4646 = vmul.f32 %v3799, %v4322
      %v4647 = vmul.f32 %v3802, %v4322
      %v4648 = vmul.f32 %v3807, %v4322
      %v4649 = vmul.f32 %v3810, %v4322
      %v4650 = vmul.f32 %v3815, %v4322
      %v4651 = vmul.f32 %v3818, %v4322
      %v4652 = vmul.f32 %v3823, %v4322
      %v4653 = vmul.f32 %v3826, %v4322
      %v4654 = vmul.f32 %v3831, %v4322
      %v4655 = vmul.f32 %v3834, %v4322
      %v4656 = vmul.f32 %v3839, %v4322
      %v4657 = vmul.f32 %v3842, %v4322
      %v4658 = vmul.f32 %v3847, %v4322
      %v4659 = vmul.f32 %v3850, %v4322
      %v4660 = vmul.f32 %v3855, %v4322
      %v4661 = vmul.f32 %v3858, %v4322
      %v4662 = vmul.f32 %v3863, %v4322
      %v4663 = vmul.f32 %v3866, %v4322
      %v4664 = vmul.f32 %v3871, %v4322
      %v4665 = vmul.f32 %v3874, %v4322
      %v4666 = vmul.f32 %v3879, %v4322
      %v4667 = vmul.f32 %v3882, %v4322
      %v4668 = vmul.f32 %v3887, %v4322
      %v4669 = vmul.f32 %v3890, %v4322
      %v4670 = vmul.f32 %v3895, %v4322
      %v4671 = vmul.f32 %v3898, %v4322
      %v4672 = vmul.f32 %v3903, %v4322
      %v4673 = vmul.f32 %v3906, %v4322
      %v4674 = vmul.f32 %v3911, %v4322
      %v4675 = vmul.f32 %v3914, %v4322
      %v4676 = vmul.f32 %v3919, %v4322
      %v4677 = vmul.f32 %v3922, %v4322
      %v4678 = vmul.f32 %v3927, %v4322
      %v4679 = vmul.f32 %v3930, %v4322
      %v4680 = vmul.f32 %v3935, %v4322
      %v4681 = vmul.f32 %v3938, %v4322
      %v4682 = vmul.f32 %v3943, %v4322
      %v4683 = vmul.f32 %v3946, %v4322
      %v4684 = vmul.f32 %v3951, %v4322
      %v4685 = vmul.f32 %v3954, %v4322
      %v4686 = vmul.f32 %v3959, %v4322
      %v4687 = vmul.f32 %v3962, %v4322
      %v4688 = vmul.f32 %v3967, %v4322
      %v4689 = vmul.f32 %v3970, %v4322
      %v4690 = vmul.f32 %v3975, %v4322
      %v4691 = vmul.f32 %v3978, %v4322
      %v4692 = vmul.f32 %v3983, %v4322
      %v4693 = vmul.f32 %v3986, %v4322
      %v4694 = vmul.f32 %v3991, %v4322
      %v4695 = vmul.f32 %v3994, %v4322
      %v4696 = vmul.f32 %v3999, %v4322
      %v4697 = vmul.f32 %v4002, %v4322
      %v4698 = vmul.f32 %v4007, %v4322
      %v4699 = vmul.f32 %v4010, %v4322
      %v4700 = vmul.f32 %v4015, %v4322
      %v4701 = vmul.f32 %v4018, %v4322
      %v4702 = vmul.f32 %v4023, %v4322
      %v4703 = vmul.f32 %v4026, %v4322
      %v4704 = vmul.f32 %v4031, %v4322
      %v4705 = vmul.f32 %v4034, %v4322
      %v4706 = vmul.f32 %v4039, %v4322
      %v4707 = vmul.f32 %v4042, %v4322
      %v4708 = vmul.f32 %v4047, %v4322
      %v4709 = vmul.f32 %v4050, %v4322
      %v4710 = vmul.f32 %v4055, %v4322
      %v4711 = vmul.f32 %v4058, %v4322
      %v4712 = vmul.f32 %v4063, %v4322
      %v4713 = vmul.f32 %v4066, %v4322
      %v4714 = vmul.f32 %v4071, %v4322
      %v4715 = vmul.f32 %v4074, %v4322
      %v4716 = vmul.f32 %v4079, %v4322
      %v4717 = vmul.f32 %v4082, %v4322
      %v4718 = vmul.f32 %v4087, %v4322
      %v4719 = vmul.f32 %v4090, %v4322
      %v4720 = vmul.f32 %v4095, %v4322
      %v4721 = vmul.f32 %v4098, %v4322
      %v4722 = vmul.f32 %v4103, %v4322
      %v4723 = vmul.f32 %v4106, %v4322
      %v4724 = vmul.f32 %v4111, %v4322
      %v4725 = vmul.f32 %v4114, %v4322
      %v4726 = vmul.f32 %v4119, %v4322
      %v4727 = vmul.f32 %v4122, %v4322
      %v4728 = vmul.f32 %v4127, %v4322
      %v4729 = vmul.f32 %v4130, %v4322
      %v4730 = vmul.f32 %v4135, %v4322
      %v4731 = vmul.f32 %v4138, %v4322
      %v4732 = vmul.f32 %v4143, %v4322
      %v4733 = vmul.f32 %v4146, %v4322
      %v4734 = vmul.f32 %v4151, %v4322
      %v4735 = vmul.f32 %v4154, %v4322
      %v4736 = vmul.f32 %v4159, %v4322
      %v4737 = vmul.f32 %v4162, %v4322
      %v4738 = vmul.f32 %v4167, %v4322
      %v4739 = vmul.f32 %v4170, %v4322
      %v4740 = vmul.f32 %v4175, %v4322
      %v4741 = vmul.f32 %v4178, %v4322
      %v4742 = vmul.f32 %v4183, %v4322
      %v4743 = vmul.f32 %v4186, %v4322
      %v4744 = vmul.f32 %v4191, %v4322
      %v4745 = vmul.f32 %v4194, %v4322
      %v4746 = vmul.f32 %v4199, %v4322
      %v4747 = vmul.f32 %v4202, %v4322
      %v4748 = vmul.f32 %v4207, %v4322
      %v4749 = vmul.f32 %v4210, %v4322
      %v4750 = vmul.f32 %v4215, %v4322
      %v4751 = vmul.f32 %v4218, %v4322
      %v4752 = vmul.f32 %v4223, %v4322
      %v4753 = vmul.f32 %v4226, %v4322
      %v4754 = vmul.f32 %v4231, %v4322
      %v4755 = vmul.f32 %v4234, %v4322
      %v4756 = vmul.f32 %v4239, %v4322
      %v4757 = vmul.f32 %v4242, %v4322
      %v4758 = vmul.f32 %v4247, %v4322
      %v4759 = vmul.f32 %v4250, %v4322
      %v4760 = vmul.f32 %v4255, %v4322
      %v4761 = vmul.f32 %v4258, %v4322
      %v4762 = vmul.f32 %v4263, %v4322
      %v4763 = vmul.f32 %v4266, %v4322
      %v4764 = vmul.f32 %v4271, %v4322
      %v4765 = vmul.f32 %v4274, %v4322
      %v4766 = vmul.f32 %v4279, %v4322
      %v4767 = vmul.f32 %v4282, %v4322
      %v4768 = vmul.f32 %v4287, %v4322
      %v4769 = vmul.f32 %v4290, %v4322
      %v4770 = vmul.f32 %v4295, %v4322
      %v4771 = vmul.f32 %v4298, %v4322
      %v4772 = vmul.f32 %v4303, %v4322
      %v4773 = vmul.f32 %v4306, %v4322
      %v4774 = vmul.f32 %v4311, %v4322
      %v4775 = vmul.f32 %v4314, %v4322
      %v4776 = vld [vmem:[%s3] sm:$0x1]
      %v4778 = vlaneseq
      %v4779 = vshrl.u32 %v4778, 7
      %v4780 = vsub.s32 0, %v4779
      %v4781 = vrot.slane %v4776, %v4780
      %v4783 = vadd.f32 %v4324, %v4781
      %v4784 = vadd.f32 %v4325, %v4781
      %v4785 = vadd.f32 %v4326, %v4781
      %v4786 = vadd.f32 %v4327, %v4781
      %v4787 = vadd.f32 %v4328, %v4781
      %v4788 = vadd.f32 %v4329, %v4781
      %v4789 = vadd.f32 %v4330, %v4781
      %v4790 = vadd.f32 %v4331, %v4781
      %v4791 = vadd.f32 %v4332, %v4781
      %v4792 = vadd.f32 %v4333, %v4781
      %v4793 = vadd.f32 %v4334, %v4781
      %v4794 = vadd.f32 %v4335, %v4781
      %v4795 = vadd.f32 %v4336, %v4781
      %v4796 = vadd.f32 %v4337, %v4781
      %v4797 = vadd.f32 %v4338, %v4781
      %v4798 = vadd.f32 %v4339, %v4781
      %v4799 = vadd.f32 %v4340, %v4781
      %v4800 = vadd.f32 %v4341, %v4781
      %v4801 = vadd.f32 %v4342, %v4781
      %v4802 = vadd.f32 %v4343, %v4781
      %v4803 = vadd.f32 %v4344, %v4781
      %v4804 = vadd.f32 %v4345, %v4781
      %v4805 = vadd.f32 %v4346, %v4781
      %v4806 = vadd.f32 %v4347, %v4781
      %v4807 = vadd.f32 %v4348, %v4781
      %v4808 = vadd.f32 %v4349, %v4781
      %v4809 = vadd.f32 %v4350, %v4781
      %v4810 = vadd.f32 %v4351, %v4781
      %v4811 = vadd.f32 %v4352, %v4781
      %v4812 = vadd.f32 %v4353, %v4781
      %v4813 = vadd.f32 %v4354, %v4781
      %v4814 = vadd.f32 %v4355, %v4781
      %v4815 = vadd.f32 %v4356, %v4781
      %v4816 = vadd.f32 %v4357, %v4781
      %v4817 = vadd.f32 %v4358, %v4781
      %v4818 = vadd.f32 %v4359, %v4781
      %v4819 = vadd.f32 %v4360, %v4781
      %v4820 = vadd.f32 %v4361, %v4781
      %v4821 = vadd.f32 %v4362, %v4781
      %v4822 = vadd.f32 %v4363, %v4781
      %v4823 = vadd.f32 %v4364, %v4781
      %v4824 = vadd.f32 %v4365, %v4781
      %v4825 = vadd.f32 %v4366, %v4781
      %v4826 = vadd.f32 %v4367, %v4781
      %v4827 = vadd.f32 %v4368, %v4781
      %v4828 = vadd.f32 %v4369, %v4781
      %v4829 = vadd.f32 %v4370, %v4781
      %v4830 = vadd.f32 %v4371, %v4781
      %v4831 = vadd.f32 %v4372, %v4781
      %v4832 = vadd.f32 %v4373, %v4781
      %v4833 = vadd.f32 %v4374, %v4781
      %v4834 = vadd.f32 %v4375, %v4781
      %v4835 = vadd.f32 %v4376, %v4781
      %v4836 = vadd.f32 %v4377, %v4781
      %v4837 = vadd.f32 %v4378, %v4781
      %v4838 = vadd.f32 %v4379, %v4781
      %v4839 = vadd.f32 %v4380, %v4781
      %v4840 = vadd.f32 %v4381, %v4781
      %v4841 = vadd.f32 %v4382, %v4781
      %v4842 = vadd.f32 %v4383, %v4781
      %v4843 = vadd.f32 %v4384, %v4781
      %v4844 = vadd.f32 %v4385, %v4781
      %v4845 = vadd.f32 %v4386, %v4781
      %v4846 = vadd.f32 %v4387, %v4781
      %v4847 = vadd.f32 %v4388, %v4781
      %v4848 = vadd.f32 %v4389, %v4781
      %v4849 = vadd.f32 %v4390, %v4781
      %v4850 = vadd.f32 %v4391, %v4781
      %v4851 = vadd.f32 %v4392, %v4781
      %v4852 = vadd.f32 %v4393, %v4781
      %v4853 = vadd.f32 %v4394, %v4781
      %v4854 = vadd.f32 %v4395, %v4781
      %v4855 = vadd.f32 %v4396, %v4781
      %v4856 = vadd.f32 %v4397, %v4781
      %v4857 = vadd.f32 %v4398, %v4781
      %v4858 = vadd.f32 %v4399, %v4781
      %v4859 = vadd.f32 %v4400, %v4781
      %v4860 = vadd.f32 %v4401, %v4781
      %v4861 = vadd.f32 %v4402, %v4781
      %v4862 = vadd.f32 %v4403, %v4781
      %v4863 = vadd.f32 %v4404, %v4781
      %v4864 = vadd.f32 %v4405, %v4781
      %v4865 = vadd.f32 %v4406, %v4781
      %v4866 = vadd.f32 %v4407, %v4781
      %v4867 = vadd.f32 %v4408, %v4781
      %v4868 = vadd.f32 %v4409, %v4781
      %v4869 = vadd.f32 %v4410, %v4781
      %v4870 = vadd.f32 %v4411, %v4781
      %v4871 = vadd.f32 %v4412, %v4781
      %v4872 = vadd.f32 %v4413, %v4781
      %v4873 = vadd.f32 %v4414, %v4781
      %v4874 = vadd.f32 %v4415, %v4781
      %v4875 = vadd.f32 %v4416, %v4781
      %v4876 = vadd.f32 %v4417, %v4781
      %v4877 = vadd.f32 %v4418, %v4781
      %v4878 = vadd.f32 %v4419, %v4781
      %v4879 = vadd.f32 %v4420, %v4781
      %v4880 = vadd.f32 %v4421, %v4781
      %v4881 = vadd.f32 %v4422, %v4781
      %v4882 = vadd.f32 %v4423, %v4781
      %v4883 = vadd.f32 %v4424, %v4781
      %v4884 = vadd.f32 %v4425, %v4781
      %v4885 = vadd.f32 %v4426, %v4781
      %v4886 = vadd.f32 %v4427, %v4781
      %v4887 = vadd.f32 %v4428, %v4781
      %v4888 = vadd.f32 %v4429, %v4781
      %v4889 = vadd.f32 %v4430, %v4781
      %v4890 = vadd.f32 %v4431, %v4781
      %v4891 = vadd.f32 %v4432, %v4781
      %v4892 = vadd.f32 %v4433, %v4781
      %v4893 = vadd.f32 %v4434, %v4781
      %v4894 = vadd.f32 %v4435, %v4781
      %v4895 = vadd.f32 %v4436, %v4781
      %v4896 = vadd.f32 %v4437, %v4781
      %v4897 = vadd.f32 %v4438, %v4781
      %v4898 = vadd.f32 %v4439, %v4781
      %v4899 = vadd.f32 %v4440, %v4781
      %v4900 = vadd.f32 %v4441, %v4781
      %v4901 = vadd.f32 %v4442, %v4781
      %v4902 = vadd.f32 %v4443, %v4781
      %v4903 = vadd.f32 %v4444, %v4781
      %v4904 = vadd.f32 %v4445, %v4781
      %v4905 = vadd.f32 %v4446, %v4781
      %v4906 = vadd.f32 %v4447, %v4781
      %v4907 = vadd.f32 %v4448, %v4781
      %v4908 = vadd.f32 %v4449, %v4781
      %v4909 = vadd.f32 %v4450, %v4781
      %v4910 = vadd.f32 %v4451, %v4781
      %v4911 = vadd.f32 %v4452, %v4781
      %v4912 = vadd.f32 %v4453, %v4781
      %v4913 = vadd.f32 %v4454, %v4781
      %v4914 = vadd.f32 %v4455, %v4781
      %v4915 = vadd.f32 %v4456, %v4781
      %v4916 = vadd.f32 %v4457, %v4781
      %v4917 = vadd.f32 %v4458, %v4781
      %v4918 = vadd.f32 %v4459, %v4781
      %v4919 = vadd.f32 %v4460, %v4781
      %v4920 = vadd.f32 %v4461, %v4781
      %v4921 = vadd.f32 %v4462, %v4781
      %v4922 = vadd.f32 %v4463, %v4781
      %v4923 = vadd.f32 %v4464, %v4781
      %v4924 = vadd.f32 %v4465, %v4781
      %v4925 = vadd.f32 %v4466, %v4781
      %v4926 = vadd.f32 %v4467, %v4781
      %v4927 = vadd.f32 %v4468, %v4781
      %v4928 = vadd.f32 %v4469, %v4781
      %v4929 = vadd.f32 %v4470, %v4781
      %v4930 = vadd.f32 %v4471, %v4781
      %v4931 = vadd.f32 %v4472, %v4781
      %v4932 = vadd.f32 %v4473, %v4781
      %v4933 = vadd.f32 %v4474, %v4781
      %v4934 = vadd.f32 %v4475, %v4781
      %v4935 = vadd.f32 %v4476, %v4781
      %v4936 = vadd.f32 %v4477, %v4781
      %v4937 = vadd.f32 %v4478, %v4781
      %v4938 = vadd.f32 %v4479, %v4781
      %v4939 = vadd.f32 %v4480, %v4781
      %v4940 = vadd.f32 %v4481, %v4781
      %v4941 = vadd.f32 %v4482, %v4781
      %v4942 = vadd.f32 %v4483, %v4781
      %v4943 = vadd.f32 %v4484, %v4781
      %v4944 = vadd.f32 %v4485, %v4781
      %v4945 = vadd.f32 %v4486, %v4781
      %v4946 = vadd.f32 %v4487, %v4781
      %v4947 = vadd.f32 %v4488, %v4781
      %v4948 = vadd.f32 %v4489, %v4781
      %v4949 = vadd.f32 %v4490, %v4781
      %v4950 = vadd.f32 %v4491, %v4781
      %v4951 = vadd.f32 %v4492, %v4781
      %v4952 = vadd.f32 %v4493, %v4781
      %v4953 = vadd.f32 %v4494, %v4781
      %v4954 = vadd.f32 %v4495, %v4781
      %v4955 = vadd.f32 %v4496, %v4781
      %v4956 = vadd.f32 %v4497, %v4781
      %v4957 = vadd.f32 %v4498, %v4781
      %v4958 = vadd.f32 %v4499, %v4781
      %v4959 = vadd.f32 %v4500, %v4781
      %v4960 = vadd.f32 %v4501, %v4781
      %v4961 = vadd.f32 %v4502, %v4781
      %v4962 = vadd.f32 %v4503, %v4781
      %v4963 = vadd.f32 %v4504, %v4781
      %v4964 = vadd.f32 %v4505, %v4781
      %v4965 = vadd.f32 %v4506, %v4781
      %v4966 = vadd.f32 %v4507, %v4781
      %v4967 = vadd.f32 %v4508, %v4781
      %v4968 = vadd.f32 %v4509, %v4781
      %v4969 = vadd.f32 %v4510, %v4781
      %v4970 = vadd.f32 %v4511, %v4781
      %v4971 = vadd.f32 %v4512, %v4781
      %v4972 = vadd.f32 %v4513, %v4781
      %v4973 = vadd.f32 %v4514, %v4781
      %v4974 = vadd.f32 %v4515, %v4781
      %v4975 = vadd.f32 %v4516, %v4781
      %v4976 = vadd.f32 %v4517, %v4781
      %v4977 = vadd.f32 %v4518, %v4781
      %v4978 = vadd.f32 %v4519, %v4781
      %v4979 = vadd.f32 %v4520, %v4781
      %v4980 = vadd.f32 %v4521, %v4781
      %v4981 = vadd.f32 %v4522, %v4781
      %v4982 = vadd.f32 %v4523, %v4781
      %v4983 = vadd.f32 %v4524, %v4781
      %v4984 = vadd.f32 %v4525, %v4781
      %v4985 = vadd.f32 %v4526, %v4781
      %v4986 = vadd.f32 %v4527, %v4781
      %v4987 = vadd.f32 %v4528, %v4781
      %v4988 = vadd.f32 %v4529, %v4781
      %v4989 = vadd.f32 %v4530, %v4781
      %v4990 = vadd.f32 %v4531, %v4781
      %v4991 = vadd.f32 %v4532, %v4781
      %v4992 = vadd.f32 %v4533, %v4781
      %v4993 = vadd.f32 %v4534, %v4781
      %v4994 = vadd.f32 %v4535, %v4781
      %v4995 = vadd.f32 %v4536, %v4781
      %v4996 = vadd.f32 %v4537, %v4781
      %v4997 = vadd.f32 %v4538, %v4781
      %v4998 = vadd.f32 %v4539, %v4781
      %v4999 = vadd.f32 %v4540, %v4781
      %v5000 = vadd.f32 %v4541, %v4781
      %v5001 = vadd.f32 %v4542, %v4781
      %v5002 = vadd.f32 %v4543, %v4781
      %v5003 = vadd.f32 %v4544, %v4781
      %v5004 = vadd.f32 %v4545, %v4781
      %v5005 = vadd.f32 %v4546, %v4781
      %v5006 = vadd.f32 %v4547, %v4781
      %v5007 = vadd.f32 %v4548, %v4781
      %v5008 = vadd.f32 %v4549, %v4781
      %v5009 = vadd.f32 %v4550, %v4781
      %v5010 = vadd.f32 %v4551, %v4781
      %v5011 = vadd.f32 %v4552, %v4781
      %v5012 = vadd.f32 %v4553, %v4781
      %v5013 = vadd.f32 %v4554, %v4781
      %v5014 = vadd.f32 %v4555, %v4781
      %v5015 = vadd.f32 %v4556, %v4781
      %v5016 = vadd.f32 %v4557, %v4781
      %v5017 = vadd.f32 %v4558, %v4781
      %v5018 = vadd.f32 %v4559, %v4781
      %v5019 = vadd.f32 %v4560, %v4781
      %v5020 = vadd.f32 %v4561, %v4781
      %v5021 = vadd.f32 %v4562, %v4781
      %v5022 = vadd.f32 %v4563, %v4781
      %v5023 = vadd.f32 %v4564, %v4781
      %v5024 = vadd.f32 %v4565, %v4781
      %v5025 = vadd.f32 %v4566, %v4781
      %v5026 = vadd.f32 %v4567, %v4781
      %v5027 = vadd.f32 %v4568, %v4781
      %v5028 = vadd.f32 %v4569, %v4781
      %v5029 = vadd.f32 %v4570, %v4781
      %v5030 = vadd.f32 %v4571, %v4781
      %v5031 = vadd.f32 %v4572, %v4781
      %v5032 = vadd.f32 %v4573, %v4781
      %v5033 = vadd.f32 %v4574, %v4781
      %v5034 = vadd.f32 %v4575, %v4781
      %v5035 = vadd.f32 %v4576, %v4781
      %v5036 = vadd.f32 %v4577, %v4781
      %v5037 = vadd.f32 %v4578, %v4781
      %v5038 = vadd.f32 %v4579, %v4781
      %v5039 = vadd.f32 %v4580, %v4781
      %v5040 = vadd.f32 %v4581, %v4781
      %v5041 = vadd.f32 %v4582, %v4781
      %v5042 = vadd.f32 %v4583, %v4781
      %v5043 = vadd.f32 %v4584, %v4781
      %v5044 = vadd.f32 %v4585, %v4781
      %v5045 = vadd.f32 %v4586, %v4781
      %v5046 = vadd.f32 %v4587, %v4781
      %v5047 = vadd.f32 %v4588, %v4781
      %v5048 = vadd.f32 %v4589, %v4781
      %v5049 = vadd.f32 %v4590, %v4781
      %v5050 = vadd.f32 %v4591, %v4781
      %v5051 = vadd.f32 %v4592, %v4781
      %v5052 = vadd.f32 %v4593, %v4781
      %v5053 = vadd.f32 %v4594, %v4781
      %v5054 = vadd.f32 %v4595, %v4781
      %v5055 = vadd.f32 %v4596, %v4781
      %v5056 = vadd.f32 %v4597, %v4781
      %v5057 = vadd.f32 %v4598, %v4781
      %v5058 = vadd.f32 %v4599, %v4781
      %v5059 = vadd.f32 %v4600, %v4781
      %v5060 = vadd.f32 %v4601, %v4781
      %v5061 = vadd.f32 %v4602, %v4781
      %v5062 = vadd.f32 %v4603, %v4781
      %v5063 = vadd.f32 %v4604, %v4781
      %v5064 = vadd.f32 %v4605, %v4781
      %v5065 = vadd.f32 %v4606, %v4781
      %v5066 = vadd.f32 %v4607, %v4781
      %v5067 = vadd.f32 %v4608, %v4781
      %v5068 = vadd.f32 %v4609, %v4781
      %v5069 = vadd.f32 %v4610, %v4781
      %v5070 = vadd.f32 %v4611, %v4781
      %v5071 = vadd.f32 %v4612, %v4781
      %v5072 = vadd.f32 %v4613, %v4781
      %v5073 = vadd.f32 %v4614, %v4781
      %v5074 = vadd.f32 %v4615, %v4781
      %v5075 = vadd.f32 %v4616, %v4781
      %v5076 = vadd.f32 %v4617, %v4781
      %v5077 = vadd.f32 %v4618, %v4781
      %v5078 = vadd.f32 %v4619, %v4781
      %v5079 = vadd.f32 %v4620, %v4781
      %v5080 = vadd.f32 %v4621, %v4781
      %v5081 = vadd.f32 %v4622, %v4781
      %v5082 = vadd.f32 %v4623, %v4781
      %v5083 = vadd.f32 %v4624, %v4781
      %v5084 = vadd.f32 %v4625, %v4781
      %v5085 = vadd.f32 %v4626, %v4781
      %v5086 = vadd.f32 %v4627, %v4781
      %v5087 = vadd.f32 %v4628, %v4781
      %v5088 = vadd.f32 %v4629, %v4781
      %v5089 = vadd.f32 %v4630, %v4781
      %v5090 = vadd.f32 %v4631, %v4781
      %v5091 = vadd.f32 %v4632, %v4781
      %v5092 = vadd.f32 %v4633, %v4781
      %v5093 = vadd.f32 %v4634, %v4781
      %v5094 = vadd.f32 %v4635, %v4781
      %v5095 = vadd.f32 %v4636, %v4781
      %v5096 = vadd.f32 %v4637, %v4781
      %v5097 = vadd.f32 %v4638, %v4781
      %v5098 = vadd.f32 %v4639, %v4781
      %v5099 = vadd.f32 %v4640, %v4781
      %v5100 = vadd.f32 %v4641, %v4781
      %v5101 = vadd.f32 %v4642, %v4781
      %v5102 = vadd.f32 %v4643, %v4781
      %v5103 = vadd.f32 %v4644, %v4781
      %v5104 = vadd.f32 %v4645, %v4781
      %v5105 = vadd.f32 %v4646, %v4781
      %v5106 = vadd.f32 %v4647, %v4781
      %v5107 = vadd.f32 %v4648, %v4781
      %v5108 = vadd.f32 %v4649, %v4781
      %v5109 = vadd.f32 %v4650, %v4781
      %v5110 = vadd.f32 %v4651, %v4781
      %v5111 = vadd.f32 %v4652, %v4781
      %v5112 = vadd.f32 %v4653, %v4781
      %v5113 = vadd.f32 %v4654, %v4781
      %v5114 = vadd.f32 %v4655, %v4781
      %v5115 = vadd.f32 %v4656, %v4781
      %v5116 = vadd.f32 %v4657, %v4781
      %v5117 = vadd.f32 %v4658, %v4781
      %v5118 = vadd.f32 %v4659, %v4781
      %v5119 = vadd.f32 %v4660, %v4781
      %v5120 = vadd.f32 %v4661, %v4781
      %v5121 = vadd.f32 %v4662, %v4781
      %v5122 = vadd.f32 %v4663, %v4781
      %v5123 = vadd.f32 %v4664, %v4781
      %v5124 = vadd.f32 %v4665, %v4781
      %v5125 = vadd.f32 %v4666, %v4781
      %v5126 = vadd.f32 %v4667, %v4781
      %v5127 = vadd.f32 %v4668, %v4781
      %v5128 = vadd.f32 %v4669, %v4781
      %v5129 = vadd.f32 %v4670, %v4781
      %v5130 = vadd.f32 %v4671, %v4781
      %v5131 = vadd.f32 %v4672, %v4781
      %v5132 = vadd.f32 %v4673, %v4781
      %v5133 = vadd.f32 %v4674, %v4781
      %v5134 = vadd.f32 %v4675, %v4781
      %v5135 = vadd.f32 %v4676, %v4781
      %v5136 = vadd.f32 %v4677, %v4781
      %v5137 = vadd.f32 %v4678, %v4781
      %v5138 = vadd.f32 %v4679, %v4781
      %v5139 = vadd.f32 %v4680, %v4781
      %v5140 = vadd.f32 %v4681, %v4781
      %v5141 = vadd.f32 %v4682, %v4781
      %v5142 = vadd.f32 %v4683, %v4781
      %v5143 = vadd.f32 %v4684, %v4781
      %v5144 = vadd.f32 %v4685, %v4781
      %v5145 = vadd.f32 %v4686, %v4781
      %v5146 = vadd.f32 %v4687, %v4781
      %v5147 = vadd.f32 %v4688, %v4781
      %v5148 = vadd.f32 %v4689, %v4781
      %v5149 = vadd.f32 %v4690, %v4781
      %v5150 = vadd.f32 %v4691, %v4781
      %v5151 = vadd.f32 %v4692, %v4781
      %v5152 = vadd.f32 %v4693, %v4781
      %v5153 = vadd.f32 %v4694, %v4781
      %v5154 = vadd.f32 %v4695, %v4781
      %v5155 = vadd.f32 %v4696, %v4781
      %v5156 = vadd.f32 %v4697, %v4781
      %v5157 = vadd.f32 %v4698, %v4781
      %v5158 = vadd.f32 %v4699, %v4781
      %v5159 = vadd.f32 %v4700, %v4781
      %v5160 = vadd.f32 %v4701, %v4781
      %v5161 = vadd.f32 %v4702, %v4781
      %v5162 = vadd.f32 %v4703, %v4781
      %v5163 = vadd.f32 %v4704, %v4781
      %v5164 = vadd.f32 %v4705, %v4781
      %v5165 = vadd.f32 %v4706, %v4781
      %v5166 = vadd.f32 %v4707, %v4781
      %v5167 = vadd.f32 %v4708, %v4781
      %v5168 = vadd.f32 %v4709, %v4781
      %v5169 = vadd.f32 %v4710, %v4781
      %v5170 = vadd.f32 %v4711, %v4781
      %v5171 = vadd.f32 %v4712, %v4781
      %v5172 = vadd.f32 %v4713, %v4781
      %v5173 = vadd.f32 %v4714, %v4781
      %v5174 = vadd.f32 %v4715, %v4781
      %v5175 = vadd.f32 %v4716, %v4781
      %v5176 = vadd.f32 %v4717, %v4781
      %v5177 = vadd.f32 %v4718, %v4781
      %v5178 = vadd.f32 %v4719, %v4781
      %v5179 = vadd.f32 %v4720, %v4781
      %v5180 = vadd.f32 %v4721, %v4781
      %v5181 = vadd.f32 %v4722, %v4781
      %v5182 = vadd.f32 %v4723, %v4781
      %v5183 = vadd.f32 %v4724, %v4781
      %v5184 = vadd.f32 %v4725, %v4781
      %v5185 = vadd.f32 %v4726, %v4781
      %v5186 = vadd.f32 %v4727, %v4781
      %v5187 = vadd.f32 %v4728, %v4781
      %v5188 = vadd.f32 %v4729, %v4781
      %v5189 = vadd.f32 %v4730, %v4781
      %v5190 = vadd.f32 %v4731, %v4781
      %v5191 = vadd.f32 %v4732, %v4781
      %v5192 = vadd.f32 %v4733, %v4781
      %v5193 = vadd.f32 %v4734, %v4781
      %v5194 = vadd.f32 %v4735, %v4781
      %v5195 = vadd.f32 %v4736, %v4781
      %v5196 = vadd.f32 %v4737, %v4781
      %v5197 = vadd.f32 %v4738, %v4781
      %v5198 = vadd.f32 %v4739, %v4781
      %v5199 = vadd.f32 %v4740, %v4781
      %v5200 = vadd.f32 %v4741, %v4781
      %v5201 = vadd.f32 %v4742, %v4781
      %v5202 = vadd.f32 %v4743, %v4781
      %v5203 = vadd.f32 %v4744, %v4781
      %v5204 = vadd.f32 %v4745, %v4781
      %v5205 = vadd.f32 %v4746, %v4781
      %v5206 = vadd.f32 %v4747, %v4781
      %v5207 = vadd.f32 %v4748, %v4781
      %v5208 = vadd.f32 %v4749, %v4781
      %v5209 = vadd.f32 %v4750, %v4781
      %v5210 = vadd.f32 %v4751, %v4781
      %v5211 = vadd.f32 %v4752, %v4781
      %v5212 = vadd.f32 %v4753, %v4781
      %v5213 = vadd.f32 %v4754, %v4781
      %v5214 = vadd.f32 %v4755, %v4781
      %v5215 = vadd.f32 %v4756, %v4781
      %v5216 = vadd.f32 %v4757, %v4781
      %v5217 = vadd.f32 %v4758, %v4781
      %v5218 = vadd.f32 %v4759, %v4781
      %v5219 = vadd.f32 %v4760, %v4781
      %v5220 = vadd.f32 %v4761, %v4781
      %v5221 = vadd.f32 %v4762, %v4781
      %v5222 = vadd.f32 %v4763, %v4781
      %v5223 = vadd.f32 %v4764, %v4781
      %v5224 = vadd.f32 %v4765, %v4781
      %v5225 = vadd.f32 %v4766, %v4781
      %v5226 = vadd.f32 %v4767, %v4781
      %v5227 = vadd.f32 %v4768, %v4781
      %v5228 = vadd.f32 %v4769, %v4781
      %v5229 = vadd.f32 %v4770, %v4781
      %v5230 = vadd.f32 %v4771, %v4781
      %v5231 = vadd.f32 %v4772, %v4781
      %v5232 = vadd.f32 %v4773, %v4781
      %v5233 = vadd.f32 %v4774, %v4781
      %v5234 = vadd.f32 %v4775, %v4781
      %v5235 = vmax.f32 %v4783, 0.0
      %v5236 = vmax.f32 %v4784, 0.0
      %v5237 = vmax.f32 %v4785, 0.0
      %v5238 = vmax.f32 %v4786, 0.0
      %v5239 = vmax.f32 %v4787, 0.0
      %v5240 = vmax.f32 %v4788, 0.0
      %v5241 = vmax.f32 %v4789, 0.0
      %v5242 = vmax.f32 %v4790, 0.0
      %v5243 = vmax.f32 %v4791, 0.0
      %v5244 = vmax.f32 %v4792, 0.0
      %v5245 = vmax.f32 %v4793, 0.0
      %v5246 = vmax.f32 %v4794, 0.0
      %v5247 = vmax.f32 %v4795, 0.0
      %v5248 = vmax.f32 %v4796, 0.0
      %v5249 = vmax.f32 %v4797, 0.0
      %v5250 = vmax.f32 %v4798, 0.0
      %v5251 = vmax.f32 %v4799, 0.0
      %v5252 = vmax.f32 %v4800, 0.0
      %v5253 = vmax.f32 %v4801, 0.0
      %v5254 = vmax.f32 %v4802, 0.0
      %v5255 = vmax.f32 %v4803, 0.0
      %v5256 = vmax.f32 %v4804, 0.0
      %v5257 = vmax.f32 %v4805, 0.0
      %v5258 = vmax.f32 %v4806, 0.0
      %v5259 = vmax.f32 %v4807, 0.0
      %v5260 = vmax.f32 %v4808, 0.0
      %v5261 = vmax.f32 %v4809, 0.0
      %v5262 = vmax.f32 %v4810, 0.0
      %v5263 = vmax.f32 %v4811, 0.0
      %v5264 = vmax.f32 %v4812, 0.0
      %v5265 = vmax.f32 %v4813, 0.0
      %v5266 = vmax.f32 %v4814, 0.0
      %v5267 = vmax.f32 %v4815, 0.0
      %v5268 = vmax.f32 %v4816, 0.0
      %v5269 = vmax.f32 %v4817, 0.0
      %v5270 = vmax.f32 %v4818, 0.0
      %v5271 = vmax.f32 %v4819, 0.0
      %v5272 = vmax.f32 %v4820, 0.0
      %v5273 = vmax.f32 %v4821, 0.0
      %v5274 = vmax.f32 %v4822, 0.0
      %v5275 = vmax.f32 %v4823, 0.0
      %v5276 = vmax.f32 %v4824, 0.0
      %v5277 = vmax.f32 %v4825, 0.0
      %v5278 = vmax.f32 %v4826, 0.0
      %v5279 = vmax.f32 %v4827, 0.0
      %v5280 = vmax.f32 %v4828, 0.0
      %v5281 = vmax.f32 %v4829, 0.0
      %v5282 = vmax.f32 %v4830, 0.0
      %v5283 = vmax.f32 %v4831, 0.0
      %v5284 = vmax.f32 %v4832, 0.0
      %v5285 = vmax.f32 %v4833, 0.0
      %v5286 = vmax.f32 %v4834, 0.0
      %v5287 = vmax.f32 %v4835, 0.0
      %v5288 = vmax.f32 %v4836, 0.0
      %v5289 = vmax.f32 %v4837, 0.0
      %v5290 = vmax.f32 %v4838, 0.0
      %v5291 = vmax.f32 %v4839, 0.0
      %v5292 = vmax.f32 %v4840, 0.0
      %v5293 = vmax.f32 %v4841, 0.0
      %v5294 = vmax.f32 %v4842, 0.0
      %v5295 = vmax.f32 %v4843, 0.0
      %v5296 = vmax.f32 %v4844, 0.0
      %v5297 = vmax.f32 %v4845, 0.0
      %v5298 = vmax.f32 %v4846, 0.0
      %v5299 = vmax.f32 %v4847, 0.0
      %v5300 = vmax.f32 %v4848, 0.0
      %v5301 = vmax.f32 %v4849, 0.0
      %v5302 = vmax.f32 %v4850, 0.0
      %v5303 = vmax.f32 %v4851, 0.0
      %v5304 = vmax.f32 %v4852, 0.0
      %v5305 = vmax.f32 %v4853, 0.0
      %v5306 = vmax.f32 %v4854, 0.0
      %v5307 = vmax.f32 %v4855, 0.0
      %v5308 = vmax.f32 %v4856, 0.0
      %v5309 = vmax.f32 %v4857, 0.0
      %v5310 = vmax.f32 %v4858, 0.0
      %v5311 = vmax.f32 %v4859, 0.0
      %v5312 = vmax.f32 %v4860, 0.0
      %v5313 = vmax.f32 %v4861, 0.0
      %v5314 = vmax.f32 %v4862, 0.0
      %v5315 = vmax.f32 %v4863, 0.0
      %v5316 = vmax.f32 %v4864, 0.0
      %v5317 = vmax.f32 %v4865, 0.0
      %v5318 = vmax.f32 %v4866, 0.0
      %v5319 = vmax.f32 %v4867, 0.0
      %v5320 = vmax.f32 %v4868, 0.0
      %v5321 = vmax.f32 %v4869, 0.0
      %v5322 = vmax.f32 %v4870, 0.0
      %v5323 = vmax.f32 %v4871, 0.0
      %v5324 = vmax.f32 %v4872, 0.0
      %v5325 = vmax.f32 %v4873, 0.0
      %v5326 = vmax.f32 %v4874, 0.0
      %v5327 = vmax.f32 %v4875, 0.0
      %v5328 = vmax.f32 %v4876, 0.0
      %v5329 = vmax.f32 %v4877, 0.0
      %v5330 = vmax.f32 %v4878, 0.0
      %v5331 = vmax.f32 %v4879, 0.0
      %v5332 = vmax.f32 %v4880, 0.0
      %v5333 = vmax.f32 %v4881, 0.0
      %v5334 = vmax.f32 %v4882, 0.0
      %v5335 = vmax.f32 %v4883, 0.0
      %v5336 = vmax.f32 %v4884, 0.0
      %v5337 = vmax.f32 %v4885, 0.0
      %v5338 = vmax.f32 %v4886, 0.0
      %v5339 = vmax.f32 %v4887, 0.0
      %v5340 = vmax.f32 %v4888, 0.0
      %v5341 = vmax.f32 %v4889, 0.0
      %v5342 = vmax.f32 %v4890, 0.0
      %v5343 = vmax.f32 %v4891, 0.0
      %v5344 = vmax.f32 %v4892, 0.0
      %v5345 = vmax.f32 %v4893, 0.0
      %v5346 = vmax.f32 %v4894, 0.0
      %v5347 = vmax.f32 %v4895, 0.0
      %v5348 = vmax.f32 %v4896, 0.0
      %v5349 = vmax.f32 %v4897, 0.0
      %v5350 = vmax.f32 %v4898, 0.0
      %v5351 = vmax.f32 %v4899, 0.0
      %v5352 = vmax.f32 %v4900, 0.0
      %v5353 = vmax.f32 %v4901, 0.0
      %v5354 = vmax.f32 %v4902, 0.0
      %v5355 = vmax.f32 %v4903, 0.0
      %v5356 = vmax.f32 %v4904, 0.0
      %v5357 = vmax.f32 %v4905, 0.0
      %v5358 = vmax.f32 %v4906, 0.0
      %v5359 = vmax.f32 %v4907, 0.0
      %v5360 = vmax.f32 %v4908, 0.0
      %v5361 = vmax.f32 %v4909, 0.0
      %v5362 = vmax.f32 %v4910, 0.0
      %v5363 = vmax.f32 %v4911, 0.0
      %v5364 = vmax.f32 %v4912, 0.0
      %v5365 = vmax.f32 %v4913, 0.0
      %v5366 = vmax.f32 %v4914, 0.0
      %v5367 = vmax.f32 %v4915, 0.0
      %v5368 = vmax.f32 %v4916, 0.0
      %v5369 = vmax.f32 %v4917, 0.0
      %v5370 = vmax.f32 %v4918, 0.0
      %v5371 = vmax.f32 %v4919, 0.0
      %v5372 = vmax.f32 %v4920, 0.0
      %v5373 = vmax.f32 %v4921, 0.0
      %v5374 = vmax.f32 %v4922, 0.0
      %v5375 = vmax.f32 %v4923, 0.0
      %v5376 = vmax.f32 %v4924, 0.0
      %v5377 = vmax.f32 %v4925, 0.0
      %v5378 = vmax.f32 %v4926, 0.0
      %v5379 = vmax.f32 %v4927, 0.0
      %v5380 = vmax.f32 %v4928, 0.0
      %v5381 = vmax.f32 %v4929, 0.0
      %v5382 = vmax.f32 %v4930, 0.0
      %v5383 = vmax.f32 %v4931, 0.0
      %v5384 = vmax.f32 %v4932, 0.0
      %v5385 = vmax.f32 %v4933, 0.0
      %v5386 = vmax.f32 %v4934, 0.0
      %v5387 = vmax.f32 %v4935, 0.0
      %v5388 = vmax.f32 %v4936, 0.0
      %v5389 = vmax.f32 %v4937, 0.0
      %v5390 = vmax.f32 %v4938, 0.0
      %v5391 = vmax.f32 %v4939, 0.0
      %v5392 = vmax.f32 %v4940, 0.0
      %v5393 = vmax.f32 %v4941, 0.0
      %v5394 = vmax.f32 %v4942, 0.0
      %v5395 = vmax.f32 %v4943, 0.0
      %v5396 = vmax.f32 %v4944, 0.0
      %v5397 = vmax.f32 %v4945, 0.0
      %v5398 = vmax.f32 %v4946, 0.0
      %v5399 = vmax.f32 %v4947, 0.0
      %v5400 = vmax.f32 %v4948, 0.0
      %v5401 = vmax.f32 %v4949, 0.0
      %v5402 = vmax.f32 %v4950, 0.0
      %v5403 = vmax.f32 %v4951, 0.0
      %v5404 = vmax.f32 %v4952, 0.0
      %v5405 = vmax.f32 %v4953, 0.0
      %v5406 = vmax.f32 %v4954, 0.0
      %v5407 = vmax.f32 %v4955, 0.0
      %v5408 = vmax.f32 %v4956, 0.0
      %v5409 = vmax.f32 %v4957, 0.0
      %v5410 = vmax.f32 %v4958, 0.0
      %v5411 = vmax.f32 %v4959, 0.0
      %v5412 = vmax.f32 %v4960, 0.0
      %v5413 = vmax.f32 %v4961, 0.0
      %v5414 = vmax.f32 %v4962, 0.0
      %v5415 = vmax.f32 %v4963, 0.0
      %v5416 = vmax.f32 %v4964, 0.0
      %v5417 = vmax.f32 %v4965, 0.0
      %v5418 = vmax.f32 %v4966, 0.0
      %v5419 = vmax.f32 %v4967, 0.0
      %v5420 = vmax.f32 %v4968, 0.0
      %v5421 = vmax.f32 %v4969, 0.0
      %v5422 = vmax.f32 %v4970, 0.0
      %v5423 = vmax.f32 %v4971, 0.0
      %v5424 = vmax.f32 %v4972, 0.0
      %v5425 = vmax.f32 %v4973, 0.0
      %v5426 = vmax.f32 %v4974, 0.0
      %v5427 = vmax.f32 %v4975, 0.0
      %v5428 = vmax.f32 %v4976, 0.0
      %v5429 = vmax.f32 %v4977, 0.0
      %v5430 = vmax.f32 %v4978, 0.0
      %v5431 = vmax.f32 %v4979, 0.0
      %v5432 = vmax.f32 %v4980, 0.0
      %v5433 = vmax.f32 %v4981, 0.0
      %v5434 = vmax.f32 %v4982, 0.0
      %v5435 = vmax.f32 %v4983, 0.0
      %v5436 = vmax.f32 %v4984, 0.0
      %v5437 = vmax.f32 %v4985, 0.0
      %v5438 = vmax.f32 %v4986, 0.0
      %v5439 = vmax.f32 %v4987, 0.0
      %v5440 = vmax.f32 %v4988, 0.0
      %v5441 = vmax.f32 %v4989, 0.0
      %v5442 = vmax.f32 %v4990, 0.0
      %v5443 = vmax.f32 %v4991, 0.0
      %v5444 = vmax.f32 %v4992, 0.0
      %v5445 = vmax.f32 %v4993, 0.0
      %v5446 = vmax.f32 %v4994, 0.0
      %v5447 = vmax.f32 %v4995, 0.0
      %v5448 = vmax.f32 %v4996, 0.0
      %v5449 = vmax.f32 %v4997, 0.0
      %v5450 = vmax.f32 %v4998, 0.0
      %v5451 = vmax.f32 %v4999, 0.0
      %v5452 = vmax.f32 %v5000, 0.0
      %v5453 = vmax.f32 %v5001, 0.0
      %v5454 = vmax.f32 %v5002, 0.0
      %v5455 = vmax.f32 %v5003, 0.0
      %v5456 = vmax.f32 %v5004, 0.0
      %v5457 = vmax.f32 %v5005, 0.0
      %v5458 = vmax.f32 %v5006, 0.0
      %v5459 = vmax.f32 %v5007, 0.0
      %v5460 = vmax.f32 %v5008, 0.0
      %v5461 = vmax.f32 %v5009, 0.0
      %v5462 = vmax.f32 %v5010, 0.0
      %v5463 = vmax.f32 %v5011, 0.0
      %v5464 = vmax.f32 %v5012, 0.0
      %v5465 = vmax.f32 %v5013, 0.0
      %v5466 = vmax.f32 %v5014, 0.0
      %v5467 = vmax.f32 %v5015, 0.0
      %v5468 = vmax.f32 %v5016, 0.0
      %v5469 = vmax.f32 %v5017, 0.0
      %v5470 = vmax.f32 %v5018, 0.0
      %v5471 = vmax.f32 %v5019, 0.0
      %v5472 = vmax.f32 %v5020, 0.0
      %v5473 = vmax.f32 %v5021, 0.0
      %v5474 = vmax.f32 %v5022, 0.0
      %v5475 = vmax.f32 %v5023, 0.0
      %v5476 = vmax.f32 %v5024, 0.0
      %v5477 = vmax.f32 %v5025, 0.0
      %v5478 = vmax.f32 %v5026, 0.0
      %v5479 = vmax.f32 %v5027, 0.0
      %v5480 = vmax.f32 %v5028, 0.0
      %v5481 = vmax.f32 %v5029, 0.0
      %v5482 = vmax.f32 %v5030, 0.0
      %v5483 = vmax.f32 %v5031, 0.0
      %v5484 = vmax.f32 %v5032, 0.0
      %v5485 = vmax.f32 %v5033, 0.0
      %v5486 = vmax.f32 %v5034, 0.0
      %v5487 = vmax.f32 %v5035, 0.0
      %v5488 = vmax.f32 %v5036, 0.0
      %v5489 = vmax.f32 %v5037, 0.0
      %v5490 = vmax.f32 %v5038, 0.0
      %v5491 = vmax.f32 %v5039, 0.0
      %v5492 = vmax.f32 %v5040, 0.0
      %v5493 = vmax.f32 %v5041, 0.0
      %v5494 = vmax.f32 %v5042, 0.0
      %v5495 = vmax.f32 %v5043, 0.0
      %v5496 = vmax.f32 %v5044, 0.0
      %v5497 = vmax.f32 %v5045, 0.0
      %v5498 = vmax.f32 %v5046, 0.0
      %v5499 = vmax.f32 %v5047, 0.0
      %v5500 = vmax.f32 %v5048, 0.0
      %v5501 = vmax.f32 %v5049, 0.0
      %v5502 = vmax.f32 %v5050, 0.0
      %v5503 = vmax.f32 %v5051, 0.0
      %v5504 = vmax.f32 %v5052, 0.0
      %v5505 = vmax.f32 %v5053, 0.0
      %v5506 = vmax.f32 %v5054, 0.0
      %v5507 = vmax.f32 %v5055, 0.0
      %v5508 = vmax.f32 %v5056, 0.0
      %v5509 = vmax.f32 %v5057, 0.0
      %v5510 = vmax.f32 %v5058, 0.0
      %v5511 = vmax.f32 %v5059, 0.0
      %v5512 = vmax.f32 %v5060, 0.0
      %v5513 = vmax.f32 %v5061, 0.0
      %v5514 = vmax.f32 %v5062, 0.0
      %v5515 = vmax.f32 %v5063, 0.0
      %v5516 = vmax.f32 %v5064, 0.0
      %v5517 = vmax.f32 %v5065, 0.0
      %v5518 = vmax.f32 %v5066, 0.0
      %v5519 = vmax.f32 %v5067, 0.0
      %v5520 = vmax.f32 %v5068, 0.0
      %v5521 = vmax.f32 %v5069, 0.0
      %v5522 = vmax.f32 %v5070, 0.0
      %v5523 = vmax.f32 %v5071, 0.0
      %v5524 = vmax.f32 %v5072, 0.0
      %v5525 = vmax.f32 %v5073, 0.0
      %v5526 = vmax.f32 %v5074, 0.0
      %v5527 = vmax.f32 %v5075, 0.0
      %v5528 = vmax.f32 %v5076, 0.0
      %v5529 = vmax.f32 %v5077, 0.0
      %v5530 = vmax.f32 %v5078, 0.0
      %v5531 = vmax.f32 %v5079, 0.0
      %v5532 = vmax.f32 %v5080, 0.0
      %v5533 = vmax.f32 %v5081, 0.0
      %v5534 = vmax.f32 %v5082, 0.0
      %v5535 = vmax.f32 %v5083, 0.0
      %v5536 = vmax.f32 %v5084, 0.0
      %v5537 = vmax.f32 %v5085, 0.0
      %v5538 = vmax.f32 %v5086, 0.0
      %v5539 = vmax.f32 %v5087, 0.0
      %v5540 = vmax.f32 %v5088, 0.0
      %v5541 = vmax.f32 %v5089, 0.0
      %v5542 = vmax.f32 %v5090, 0.0
      %v5543 = vmax.f32 %v5091, 0.0
      %v5544 = vmax.f32 %v5092, 0.0
      %v5545 = vmax.f32 %v5093, 0.0
      %v5546 = vmax.f32 %v5094, 0.0
      %v5547 = vmax.f32 %v5095, 0.0
      %v5548 = vmax.f32 %v5096, 0.0
      %v5549 = vmax.f32 %v5097, 0.0
      %v5550 = vmax.f32 %v5098, 0.0
      %v5551 = vmax.f32 %v5099, 0.0
      %v5552 = vmax.f32 %v5100, 0.0
      %v5553 = vmax.f32 %v5101, 0.0
      %v5554 = vmax.f32 %v5102, 0.0
      %v5555 = vmax.f32 %v5103, 0.0
      %v5556 = vmax.f32 %v5104, 0.0
      %v5557 = vmax.f32 %v5105, 0.0
      %v5558 = vmax.f32 %v5106, 0.0
      %v5559 = vmax.f32 %v5107, 0.0
      %v5560 = vmax.f32 %v5108, 0.0
      %v5561 = vmax.f32 %v5109, 0.0
      %v5562 = vmax.f32 %v5110, 0.0
      %v5563 = vmax.f32 %v5111, 0.0
      %v5564 = vmax.f32 %v5112, 0.0
      %v5565 = vmax.f32 %v5113, 0.0
      %v5566 = vmax.f32 %v5114, 0.0
      %v5567 = vmax.f32 %v5115, 0.0
      %v5568 = vmax.f32 %v5116, 0.0
      %v5569 = vmax.f32 %v5117, 0.0
      %v5570 = vmax.f32 %v5118, 0.0
      %v5571 = vmax.f32 %v5119, 0.0
      %v5572 = vmax.f32 %v5120, 0.0
      %v5573 = vmax.f32 %v5121, 0.0
      %v5574 = vmax.f32 %v5122, 0.0
      %v5575 = vmax.f32 %v5123, 0.0
      %v5576 = vmax.f32 %v5124, 0.0
      %v5577 = vmax.f32 %v5125, 0.0
      %v5578 = vmax.f32 %v5126, 0.0
      %v5579 = vmax.f32 %v5127, 0.0
      %v5580 = vmax.f32 %v5128, 0.0
      %v5581 = vmax.f32 %v5129, 0.0
      %v5582 = vmax.f32 %v5130, 0.0
      %v5583 = vmax.f32 %v5131, 0.0
      %v5584 = vmax.f32 %v5132, 0.0
      %v5585 = vmax.f32 %v5133, 0.0
      %v5586 = vmax.f32 %v5134, 0.0
      %v5587 = vmax.f32 %v5135, 0.0
      %v5588 = vmax.f32 %v5136, 0.0
      %v5589 = vmax.f32 %v5137, 0.0
      %v5590 = vmax.f32 %v5138, 0.0
      %v5591 = vmax.f32 %v5139, 0.0
      %v5592 = vmax.f32 %v5140, 0.0
      %v5593 = vmax.f32 %v5141, 0.0
      %v5594 = vmax.f32 %v5142, 0.0
      %v5595 = vmax.f32 %v5143, 0.0
      %v5596 = vmax.f32 %v5144, 0.0
      %v5597 = vmax.f32 %v5145, 0.0
      %v5598 = vmax.f32 %v5146, 0.0
      %v5599 = vmax.f32 %v5147, 0.0
      %v5600 = vmax.f32 %v5148, 0.0
      %v5601 = vmax.f32 %v5149, 0.0
      %v5602 = vmax.f32 %v5150, 0.0
      %v5603 = vmax.f32 %v5151, 0.0
      %v5604 = vmax.f32 %v5152, 0.0
      %v5605 = vmax.f32 %v5153, 0.0
      %v5606 = vmax.f32 %v5154, 0.0
      %v5607 = vmax.f32 %v5155, 0.0
      %v5608 = vmax.f32 %v5156, 0.0
      %v5609 = vmax.f32 %v5157, 0.0
      %v5610 = vmax.f32 %v5158, 0.0
      %v5611 = vmax.f32 %v5159, 0.0
      %v5612 = vmax.f32 %v5160, 0.0
      %v5613 = vmax.f32 %v5161, 0.0
      %v5614 = vmax.f32 %v5162, 0.0
      %v5615 = vmax.f32 %v5163, 0.0
      %v5616 = vmax.f32 %v5164, 0.0
      %v5617 = vmax.f32 %v5165, 0.0
      %v5618 = vmax.f32 %v5166, 0.0
      %v5619 = vmax.f32 %v5167, 0.0
      %v5620 = vmax.f32 %v5168, 0.0
      %v5621 = vmax.f32 %v5169, 0.0
      %v5622 = vmax.f32 %v5170, 0.0
      %v5623 = vmax.f32 %v5171, 0.0
      %v5624 = vmax.f32 %v5172, 0.0
      %v5625 = vmax.f32 %v5173, 0.0
      %v5626 = vmax.f32 %v5174, 0.0
      %v5627 = vmax.f32 %v5175, 0.0
      %v5628 = vmax.f32 %v5176, 0.0
      %v5629 = vmax.f32 %v5177, 0.0
      %v5630 = vmax.f32 %v5178, 0.0
      %v5631 = vmax.f32 %v5179, 0.0
      %v5632 = vmax.f32 %v5180, 0.0
      %v5633 = vmax.f32 %v5181, 0.0
      %v5634 = vmax.f32 %v5182, 0.0
      %v5635 = vmax.f32 %v5183, 0.0
      %v5636 = vmax.f32 %v5184, 0.0
      %v5637 = vmax.f32 %v5185, 0.0
      %v5638 = vmax.f32 %v5186, 0.0
      %v5639 = vmax.f32 %v5187, 0.0
      %v5640 = vmax.f32 %v5188, 0.0
      %v5641 = vmax.f32 %v5189, 0.0
      %v5642 = vmax.f32 %v5190, 0.0
      %v5643 = vmax.f32 %v5191, 0.0
      %v5644 = vmax.f32 %v5192, 0.0
      %v5645 = vmax.f32 %v5193, 0.0
      %v5646 = vmax.f32 %v5194, 0.0
      %v5647 = vmax.f32 %v5195, 0.0
      %v5648 = vmax.f32 %v5196, 0.0
      %v5649 = vmax.f32 %v5197, 0.0
      %v5650 = vmax.f32 %v5198, 0.0
      %v5651 = vmax.f32 %v5199, 0.0
      %v5652 = vmax.f32 %v5200, 0.0
      %v5653 = vmax.f32 %v5201, 0.0
      %v5654 = vmax.f32 %v5202, 0.0
      %v5655 = vmax.f32 %v5203, 0.0
      %v5656 = vmax.f32 %v5204, 0.0
      %v5657 = vmax.f32 %v5205, 0.0
      %v5658 = vmax.f32 %v5206, 0.0
      %v5659 = vmax.f32 %v5207, 0.0
      %v5660 = vmax.f32 %v5208, 0.0
      %v5661 = vmax.f32 %v5209, 0.0
      %v5662 = vmax.f32 %v5210, 0.0
      %v5663 = vmax.f32 %v5211, 0.0
      %v5664 = vmax.f32 %v5212, 0.0
      %v5665 = vmax.f32 %v5213, 0.0
      %v5666 = vmax.f32 %v5214, 0.0
      %v5667 = vmax.f32 %v5215, 0.0
      %v5668 = vmax.f32 %v5216, 0.0
      %v5669 = vmax.f32 %v5217, 0.0
      %v5670 = vmax.f32 %v5218, 0.0
      %v5671 = vmax.f32 %v5219, 0.0
      %v5672 = vmax.f32 %v5220, 0.0
      %v5673 = vmax.f32 %v5221, 0.0
      %v5674 = vmax.f32 %v5222, 0.0
      %v5675 = vmax.f32 %v5223, 0.0
      %v5676 = vmax.f32 %v5224, 0.0
      %v5677 = vmax.f32 %v5225, 0.0
      %v5678 = vmax.f32 %v5226, 0.0
      %v5679 = vmax.f32 %v5227, 0.0
      %v5680 = vmax.f32 %v5228, 0.0
      %v5681 = vmax.f32 %v5229, 0.0
      %v5682 = vmax.f32 %v5230, 0.0
      %v5683 = vmax.f32 %v5231, 0.0
      %v5684 = vmax.f32 %v5232, 0.0
      %v5685 = vmax.f32 %v5233, 0.0
      %v5686 = vmax.f32 %v5234, 0.0
      %v5687 = vmax.f32 %v5235, %v5348
      %v5688 = vmax.f32 %v5236, %v5349
      %v5689 = vmax.f32 %v5237, %v5350
      %v5690 = vmax.f32 %v5238, %v5351
      %v5691 = vmax.f32 %v5239, %v5352
      %v5692 = vmax.f32 %v5240, %v5353
      %v5693 = vmax.f32 %v5241, %v5354
      %v5694 = vmax.f32 %v5242, %v5355
      %v5695 = vmax.f32 %v5243, %v5356
      %v5696 = vmax.f32 %v5244, %v5357
      %v5697 = vmax.f32 %v5245, %v5358
      %v5698 = vmax.f32 %v5246, %v5359
      %v5699 = vmax.f32 %v5247, %v5360
      %v5700 = vmax.f32 %v5248, %v5361
      %v5701 = vmax.f32 %v5249, %v5362
      %v5702 = vmax.f32 %v5250, %v5363
      %v5703 = vmax.f32 %v5251, %v5364
      %v5704 = vmax.f32 %v5252, %v5365
      %v5705 = vmax.f32 %v5253, %v5366
      %v5706 = vmax.f32 %v5254, %v5367
      %v5707 = vmax.f32 %v5255, %v5368
      %v5708 = vmax.f32 %v5256, %v5369
      %v5709 = vmax.f32 %v5257, %v5370
      %v5710 = vmax.f32 %v5258, %v5371
      %v5711 = vmax.f32 %v5259, %v5372
      %v5712 = vmax.f32 %v5260, %v5373
      %v5713 = vmax.f32 %v5261, %v5374
      %v5714 = vmax.f32 %v5262, %v5375
      %v5715 = vmax.f32 %v5263, %v5376
      %v5716 = vmax.f32 %v5264, %v5377
      %v5717 = vmax.f32 %v5265, %v5378
      %v5718 = vmax.f32 %v5266, %v5379
      %v5719 = vmax.f32 %v5267, %v5380
      %v5720 = vmax.f32 %v5268, %v5381
      %v5721 = vmax.f32 %v5269, %v5382
      %v5722 = vmax.f32 %v5270, %v5383
      %v5723 = vmax.f32 %v5271, %v5384
      %v5724 = vmax.f32 %v5272, %v5385
      %v5725 = vmax.f32 %v5273, %v5386
      %v5726 = vmax.f32 %v5274, %v5387
      %v5727 = vmax.f32 %v5275, %v5388
      %v5728 = vmax.f32 %v5276, %v5389
      %v5729 = vmax.f32 %v5277, %v5390
      %v5730 = vmax.f32 %v5278, %v5391
      %v5731 = vmax.f32 %v5279, %v5392
      %v5732 = vmax.f32 %v5280, %v5393
      %v5733 = vmax.f32 %v5281, %v5394
      %v5734 = vmax.f32 %v5282, %v5395
      %v5735 = vmax.f32 %v5283, %v5396
      %v5736 = vmax.f32 %v5284, %v5397
      %v5737 = vmax.f32 %v5285, %v5398
      %v5738 = vmax.f32 %v5286, %v5399
      %v5739 = vmax.f32 %v5287, %v5400
      %v5740 = vmax.f32 %v5288, %v5401
      %v5741 = vmax.f32 %v5289, %v5402
      %v5742 = vmax.f32 %v5290, %v5403
      %v5743 = vmax.f32 %v5291, %v5404
      %v5744 = vmax.f32 %v5292, %v5405
      %v5745 = vmax.f32 %v5293, %v5406
      %v5746 = vmax.f32 %v5294, %v5407
      %v5747 = vmax.f32 %v5295, %v5408
      %v5748 = vmax.f32 %v5296, %v5409
      %v5749 = vmax.f32 %v5297, %v5410
      %v5750 = vmax.f32 %v5298, %v5411
      %v5751 = vmax.f32 %v5299, %v5412
      %v5752 = vmax.f32 %v5300, %v5413
      %v5753 = vmax.f32 %v5301, %v5414
      %v5754 = vmax.f32 %v5302, %v5415
      %v5755 = vmax.f32 %v5303, %v5416
      %v5756 = vmax.f32 %v5304, %v5417
      %v5757 = vmax.f32 %v5305, %v5418
      %v5758 = vmax.f32 %v5306, %v5419
      %v5759 = vmax.f32 %v5307, %v5420
      %v5760 = vmax.f32 %v5308, %v5421
      %v5761 = vmax.f32 %v5309, %v5422
      %v5762 = vmax.f32 %v5310, %v5423
      %v5763 = vmax.f32 %v5311, %v5424
      %v5764 = vmax.f32 %v5312, %v5425
      %v5765 = vmax.f32 %v5313, %v5426
      %v5766 = vmax.f32 %v5314, %v5427
      %v5767 = vmax.f32 %v5315, %v5428
      %v5768 = vmax.f32 %v5316, %v5429
      %v5769 = vmax.f32 %v5317, %v5430
      %v5770 = vmax.f32 %v5318, %v5431
      %v5771 = vmax.f32 %v5319, %v5432
      %v5772 = vmax.f32 %v5320, %v5433
      %v5773 = vmax.f32 %v5321, %v5434
      %v5774 = vmax.f32 %v5322, %v5435
      %v5775 = vmax.f32 %v5323, %v5436
      %v5776 = vmax.f32 %v5324, %v5437
      %v5777 = vmax.f32 %v5325, %v5438
      %v5778 = vmax.f32 %v5326, %v5439
      %v5779 = vmax.f32 %v5327, %v5440
      %v5780 = vmax.f32 %v5328, %v5441
      %v5781 = vmax.f32 %v5329, %v5442
      %v5782 = vmax.f32 %v5330, %v5443
      %v5783 = vmax.f32 %v5331, %v5444
      %v5784 = vmax.f32 %v5332, %v5445
      %v5785 = vmax.f32 %v5333, %v5446
      %v5786 = vmax.f32 %v5334, %v5447
      %v5787 = vmax.f32 %v5335, %v5448
      %v5788 = vmax.f32 %v5336, %v5449
      %v5789 = vmax.f32 %v5337, %v5450
      %v5790 = vmax.f32 %v5338, %v5451
      %v5791 = vmax.f32 %v5339, %v5452
      %v5792 = vmax.f32 %v5340, %v5453
      %v5793 = vmax.f32 %v5341, %v5454
      %v5794 = vmax.f32 %v5342, %v5455
      %v5795 = vmax.f32 %v5343, %v5456
      %v5796 = vmax.f32 %v5344, %v5457
      %v5797 = vmax.f32 %v5345, %v5458
      %v5798 = vmax.f32 %v5346, %v5459
      %v5799 = vmax.f32 %v5347, %v5460
      %v5800 = vmax.f32 %v5461, %v5574
      %v5801 = vmax.f32 %v5462, %v5575
      %v5802 = vmax.f32 %v5463, %v5576
      %v5803 = vmax.f32 %v5464, %v5577
      %v5804 = vmax.f32 %v5465, %v5578
      %v5805 = vmax.f32 %v5466, %v5579
      %v5806 = vmax.f32 %v5467, %v5580
      %v5807 = vmax.f32 %v5468, %v5581
      %v5808 = vmax.f32 %v5469, %v5582
      %v5809 = vmax.f32 %v5470, %v5583
      %v5810 = vmax.f32 %v5471, %v5584
      %v5811 = vmax.f32 %v5472, %v5585
      %v5812 = vmax.f32 %v5473, %v5586
      %v5813 = vmax.f32 %v5474, %v5587
      %v5814 = vmax.f32 %v5475, %v5588
      %v5815 = vmax.f32 %v5476, %v5589
      %v5816 = vmax.f32 %v5477, %v5590
      %v5817 = vmax.f32 %v5478, %v5591
      %v5818 = vmax.f32 %v5479, %v5592
      %v5819 = vmax.f32 %v5480, %v5593
      %v5820 = vmax.f32 %v5481, %v5594
      %v5821 = vmax.f32 %v5482, %v5595
      %v5822 = vmax.f32 %v5483, %v5596
      %v5823 = vmax.f32 %v5484, %v5597
      %v5824 = vmax.f32 %v5485, %v5598
      %v5825 = vmax.f32 %v5486, %v5599
      %v5826 = vmax.f32 %v5487, %v5600
      %v5827 = vmax.f32 %v5488, %v5601
      %v5828 = vmax.f32 %v5489, %v5602
      %v5829 = vmax.f32 %v5490, %v5603
      %v5830 = vmax.f32 %v5491, %v5604
      %v5831 = vmax.f32 %v5492, %v5605
      %v5832 = vmax.f32 %v5493, %v5606
      %v5833 = vmax.f32 %v5494, %v5607
      %v5834 = vmax.f32 %v5495, %v5608
      %v5835 = vmax.f32 %v5496, %v5609
      %v5836 = vmax.f32 %v5497, %v5610
      %v5837 = vmax.f32 %v5498, %v5611
      %v5838 = vmax.f32 %v5499, %v5612
      %v5839 = vmax.f32 %v5500, %v5613
      %v5840 = vmax.f32 %v5501, %v5614
      %v5841 = vmax.f32 %v5502, %v5615
      %v5842 = vmax.f32 %v5503, %v5616
      %v5843 = vmax.f32 %v5504, %v5617
      %v5844 = vmax.f32 %v5505, %v5618
      %v5845 = vmax.f32 %v5506, %v5619
      %v5846 = vmax.f32 %v5507, %v5620
      %v5847 = vmax.f32 %v5508, %v5621
      %v5848 = vmax.f32 %v5509, %v5622
      %v5849 = vmax.f32 %v5510, %v5623
      %v5850 = vmax.f32 %v5511, %v5624
      %v5851 = vmax.f32 %v5512, %v5625
      %v5852 = vmax.f32 %v5513, %v5626
      %v5853 = vmax.f32 %v5514, %v5627
      %v5854 = vmax.f32 %v5515, %v5628
      %v5855 = vmax.f32 %v5516, %v5629
      %v5856 = vmax.f32 %v5517, %v5630
      %v5857 = vmax.f32 %v5518, %v5631
      %v5858 = vmax.f32 %v5519, %v5632
      %v5859 = vmax.f32 %v5520, %v5633
      %v5860 = vmax.f32 %v5521, %v5634
      %v5861 = vmax.f32 %v5522, %v5635
      %v5862 = vmax.f32 %v5523, %v5636
      %v5863 = vmax.f32 %v5524, %v5637
      %v5864 = vmax.f32 %v5525, %v5638
      %v5865 = vmax.f32 %v5526, %v5639
      %v5866 = vmax.f32 %v5527, %v5640
      %v5867 = vmax.f32 %v5528, %v5641
      %v5868 = vmax.f32 %v5529, %v5642
      %v5869 = vmax.f32 %v5530, %v5643
      %v5870 = vmax.f32 %v5531, %v5644
      %v5871 = vmax.f32 %v5532, %v5645
      %v5872 = vmax.f32 %v5533, %v5646
      %v5873 = vmax.f32 %v5534, %v5647
      %v5874 = vmax.f32 %v5535, %v5648
      %v5875 = vmax.f32 %v5536, %v5649
      %v5876 = vmax.f32 %v5537, %v5650
      %v5877 = vmax.f32 %v5538, %v5651
      %v5878 = vmax.f32 %v5539, %v5652
      %v5879 = vmax.f32 %v5540, %v5653
      %v5880 = vmax.f32 %v5541, %v5654
      %v5881 = vmax.f32 %v5542, %v5655
      %v5882 = vmax.f32 %v5543, %v5656
      %v5883 = vmax.f32 %v5544, %v5657
      %v5884 = vmax.f32 %v5545, %v5658
      %v5885 = vmax.f32 %v5546, %v5659
      %v5886 = vmax.f32 %v5547, %v5660
      %v5887 = vmax.f32 %v5548, %v5661
      %v5888 = vmax.f32 %v5549, %v5662
      %v5889 = vmax.f32 %v5550, %v5663
      %v5890 = vmax.f32 %v5551, %v5664
      %v5891 = vmax.f32 %v5552, %v5665
      %v5892 = vmax.f32 %v5553, %v5666
      %v5893 = vmax.f32 %v5554, %v5667
      %v5894 = vmax.f32 %v5555, %v5668
      %v5895 = vmax.f32 %v5556, %v5669
      %v5896 = vmax.f32 %v5557, %v5670
      %v5897 = vmax.f32 %v5558, %v5671
      %v5898 = vmax.f32 %v5559, %v5672
      %v5899 = vmax.f32 %v5560, %v5673
      %v5900 = vmax.f32 %v5561, %v5674
      %v5901 = vmax.f32 %v5562, %v5675
      %v5902 = vmax.f32 %v5563, %v5676
      %v5903 = vmax.f32 %v5564, %v5677
      %v5904 = vmax.f32 %v5565, %v5678
      %v5905 = vmax.f32 %v5566, %v5679
      %v5906 = vmax.f32 %v5567, %v5680
      %v5907 = vmax.f32 %v5568, %v5681
      %v5908 = vmax.f32 %v5569, %v5682
      %v5909 = vmax.f32 %v5570, %v5683
      %v5910 = vmax.f32 %v5571, %v5684
      %v5911 = vmax.f32 %v5572, %v5685
      %v5912 = vmax.f32 %v5573, %v5686
      %v5913 = vmax.f32 %v5687, %v5800
      %v5914 = vmax.f32 %v5688, %v5801
      %v5915 = vmax.f32 %v5689, %v5802
      %v5916 = vmax.f32 %v5690, %v5803
      %v5917 = vmax.f32 %v5691, %v5804
      %v5918 = vmax.f32 %v5692, %v5805
      %v5919 = vmax.f32 %v5693, %v5806
      %v5920 = vmax.f32 %v5694, %v5807
      %v5921 = vmax.f32 %v5695, %v5808
      %v5922 = vmax.f32 %v5696, %v5809
      %v5923 = vmax.f32 %v5697, %v5810
      %v5924 = vmax.f32 %v5698, %v5811
      %v5925 = vmax.f32 %v5699, %v5812
      %v5926 = vmax.f32 %v5700, %v5813
      %v5927 = vmax.f32 %v5701, %v5814
      %v5928 = vmax.f32 %v5702, %v5815
      %v5929 = vmax.f32 %v5703, %v5816
      %v5930 = vmax.f32 %v5704, %v5817
      %v5931 = vmax.f32 %v5705, %v5818
      %v5932 = vmax.f32 %v5706, %v5819
      %v5933 = vmax.f32 %v5707, %v5820
      %v5934 = vmax.f32 %v5708, %v5821
      %v5935 = vmax.f32 %v5709, %v5822
      %v5936 = vmax.f32 %v5710, %v5823
      %v5937 = vmax.f32 %v5711, %v5824
      %v5938 = vmax.f32 %v5712, %v5825
      %v5939 = vmax.f32 %v5713, %v5826
      %v5940 = vmax.f32 %v5714, %v5827
      %v5941 = vmax.f32 %v5715, %v5828
      %v5942 = vmax.f32 %v5716, %v5829
      %v5943 = vmax.f32 %v5717, %v5830
      %v5944 = vmax.f32 %v5718, %v5831
      %v5945 = vmax.f32 %v5719, %v5832
      %v5946 = vmax.f32 %v5720, %v5833
      %v5947 = vmax.f32 %v5721, %v5834
      %v5948 = vmax.f32 %v5722, %v5835
      %v5949 = vmax.f32 %v5723, %v5836
      %v5950 = vmax.f32 %v5724, %v5837
      %v5951 = vmax.f32 %v5725, %v5838
      %v5952 = vmax.f32 %v5726, %v5839
      %v5953 = vmax.f32 %v5727, %v5840
      %v5954 = vmax.f32 %v5728, %v5841
      %v5955 = vmax.f32 %v5729, %v5842
      %v5956 = vmax.f32 %v5730, %v5843
      %v5957 = vmax.f32 %v5731, %v5844
      %v5958 = vmax.f32 %v5732, %v5845
      %v5959 = vmax.f32 %v5733, %v5846
      %v5960 = vmax.f32 %v5734, %v5847
      %v5961 = vmax.f32 %v5735, %v5848
      %v5962 = vmax.f32 %v5736, %v5849
      %v5963 = vmax.f32 %v5737, %v5850
      %v5964 = vmax.f32 %v5738, %v5851
      %v5965 = vmax.f32 %v5739, %v5852
      %v5966 = vmax.f32 %v5740, %v5853
      %v5967 = vmax.f32 %v5741, %v5854
      %v5968 = vmax.f32 %v5742, %v5855
      %v5969 = vmax.f32 %v5743, %v5856
      %v5970 = vmax.f32 %v5744, %v5857
      %v5971 = vmax.f32 %v5745, %v5858
      %v5972 = vmax.f32 %v5746, %v5859
      %v5973 = vmax.f32 %v5747, %v5860
      %v5974 = vmax.f32 %v5748, %v5861
      %v5975 = vmax.f32 %v5749, %v5862
      %v5976 = vmax.f32 %v5750, %v5863
      %v5977 = vmax.f32 %v5751, %v5864
      %v5978 = vmax.f32 %v5752, %v5865
      %v5979 = vmax.f32 %v5753, %v5866
      %v5980 = vmax.f32 %v5754, %v5867
      %v5981 = vmax.f32 %v5755, %v5868
      %v5982 = vmax.f32 %v5756, %v5869
      %v5983 = vmax.f32 %v5757, %v5870
      %v5984 = vmax.f32 %v5758, %v5871
      %v5985 = vmax.f32 %v5759, %v5872
      %v5986 = vmax.f32 %v5760, %v5873
      %v5987 = vmax.f32 %v5761, %v5874
      %v5988 = vmax.f32 %v5762, %v5875
      %v5989 = vmax.f32 %v5763, %v5876
      %v5990 = vmax.f32 %v5764, %v5877
      %v5991 = vmax.f32 %v5765, %v5878
      %v5992 = vmax.f32 %v5766, %v5879
      %v5993 = vmax.f32 %v5767, %v5880
      %v5994 = vmax.f32 %v5768, %v5881
      %v5995 = vmax.f32 %v5769, %v5882
      %v5996 = vmax.f32 %v5770, %v5883
      %v5997 = vmax.f32 %v5771, %v5884
      %v5998 = vmax.f32 %v5772, %v5885
      %v5999 = vmax.f32 %v5773, %v5886
      %v6000 = vmax.f32 %v5774, %v5887
      %v6001 = vmax.f32 %v5775, %v5888
      %v6002 = vmax.f32 %v5776, %v5889
      %v6003 = vmax.f32 %v5777, %v5890
      %v6004 = vmax.f32 %v5778, %v5891
      %v6005 = vmax.f32 %v5779, %v5892
      %v6006 = vmax.f32 %v5780, %v5893
      %v6007 = vmax.f32 %v5781, %v5894
      %v6008 = vmax.f32 %v5782, %v5895
      %v6009 = vmax.f32 %v5783, %v5896
      %v6010 = vmax.f32 %v5784, %v5897
      %v6011 = vmax.f32 %v5785, %v5898
      %v6012 = vmax.f32 %v5786, %v5899
      %v6013 = vmax.f32 %v5787, %v5900
      %v6014 = vmax.f32 %v5788, %v5901
      %v6015 = vmax.f32 %v5789, %v5902
      %v6016 = vmax.f32 %v5790, %v5903
      %v6017 = vmax.f32 %v5791, %v5904
      %v6018 = vmax.f32 %v5792, %v5905
      %v6019 = vmax.f32 %v5793, %v5906
      %v6020 = vmax.f32 %v5794, %v5907
      %v6021 = vmax.f32 %v5795, %v5908
      %v6022 = vmax.f32 %v5796, %v5909
      %v6023 = vmax.f32 %v5797, %v5910
      %v6024 = vmax.f32 %v5798, %v5911
      %v6025 = vmax.f32 %v5799, %v5912
      %v6026 = vpack.c.bf16 %v5914, %v5913
      %v6027 = vpack.c.bf16 %v5916, %v5915
      %v6028 = vpack.c.bf16 %v5918, %v5917
      %v6029 = vpack.c.bf16 %v5920, %v5919
      %v6030 = vpack.c.bf16 %v5922, %v5921
      %v6031 = vpack.c.bf16 %v5924, %v5923
      %v6032 = vpack.c.bf16 %v5926, %v5925
      %v6033 = vpack.c.bf16 %v5928, %v5927
      %v6034 = vpack.c.bf16 %v5930, %v5929
      %v6035 = vpack.c.bf16 %v5932, %v5931
      %v6036 = vpack.c.bf16 %v5934, %v5933
      %v6037 = vpack.c.bf16 %v5936, %v5935
      %v6038 = vpack.c.bf16 %v5938, %v5937
      %v6039 = vpack.c.bf16 %v5940, %v5939
      %v6040 = vpack.c.bf16 %v5942, %v5941
      %v6041 = vpack.c.bf16 %v5944, %v5943
      %v6042 = vpack.c.bf16 %v5946, %v5945
      %v6043 = vpack.c.bf16 %v5948, %v5947
      %v6044 = vpack.c.bf16 %v5950, %v5949
      %v6045 = vpack.c.bf16 %v5952, %v5951
      %v6046 = vpack.c.bf16 %v5954, %v5953
      %v6047 = vpack.c.bf16 %v5956, %v5955
      %v6048 = vpack.c.bf16 %v5958, %v5957
      %v6049 = vpack.c.bf16 %v5960, %v5959
      %v6050 = vpack.c.bf16 %v5962, %v5961
      %v6051 = vpack.c.bf16 %v5964, %v5963
      %v6052 = vpack.c.bf16 %v5966, %v5965
      %v6053 = vpack.c.bf16 %v5968, %v5967
      %v6054 = vpack.c.bf16 %v5970, %v5969
      %v6055 = vpack.c.bf16 %v5972, %v5971
      %v6056 = vpack.c.bf16 %v5974, %v5973
      %v6057 = vpack.c.bf16 %v5976, %v5975
      %v6058 = vpack.c.bf16 %v5978, %v5977
      %v6059 = vpack.c.bf16 %v5980, %v5979
      %v6060 = vpack.c.bf16 %v5982, %v5981
      %v6061 = vpack.c.bf16 %v5984, %v5983
      %v6062 = vpack.c.bf16 %v5986, %v5985
      %v6063 = vpack.c.bf16 %v5988, %v5987
      %v6064 = vpack.c.bf16 %v5990, %v5989
      %v6065 = vpack.c.bf16 %v5992, %v5991
      %v6066 = vpack.c.bf16 %v5994, %v5993
      %v6067 = vpack.c.bf16 %v5996, %v5995
      %v6068 = vpack.c.bf16 %v5998, %v5997
      %v6069 = vpack.c.bf16 %v6000, %v5999
      %v6070 = vpack.c.bf16 %v6002, %v6001
      %v6071 = vpack.c.bf16 %v6004, %v6003
      %v6072 = vpack.c.bf16 %v6006, %v6005
      %v6073 = vpack.c.bf16 %v6008, %v6007
      %v6074 = vpack.c.bf16 %v6010, %v6009
      %v6075 = vpack.c.bf16 %v6012, %v6011
      %v6076 = vpack.c.bf16 %v6014, %v6013
      %v6077 = vpack.c.bf16 %v6016, %v6015
      %v6078 = vpack.c.bf16 %v6018, %v6017
      %v6079 = vpack.c.bf16 %v6020, %v6019
      %v6080 = vpack.c.bf16 %v6022, %v6021
      %v6081 = vpack.c.bf16 %v6024, %v6023
      %v6082 = vpack.c.bf16 %v6025, %v6025
      %v6140 = vunpack.c.l.b16 %v6026
      %v6141 = vunpack.c.h.b16 %v6026
      %v6142 = vunpack.c.l.b16 %v6027
      %v6143 = vunpack.c.h.b16 %v6027
      %v6144 = vunpack.c.l.b16 %v6028
      %v6145 = vunpack.c.h.b16 %v6028
      %v6146 = vunpack.c.l.b16 %v6029
      %v6147 = vunpack.c.h.b16 %v6029
      %v6148 = vunpack.c.l.b16 %v6030
      %v6149 = vunpack.c.h.b16 %v6030
      %v6150 = vunpack.c.l.b16 %v6031
      %v6151 = vunpack.c.h.b16 %v6031
      %v6152 = vunpack.c.l.b16 %v6032
      %v6153 = vunpack.c.h.b16 %v6032
      %v6154 = vunpack.c.l.b16 %v6033
      %v6155 = vunpack.c.h.b16 %v6033
      %v6156 = vunpack.c.l.b16 %v6034
      %v6157 = vunpack.c.h.b16 %v6034
      %v6158 = vunpack.c.l.b16 %v6035
      %v6159 = vunpack.c.h.b16 %v6035
      %v6160 = vunpack.c.l.b16 %v6036
      %v6161 = vunpack.c.h.b16 %v6036
      %v6162 = vunpack.c.l.b16 %v6037
      %v6163 = vunpack.c.h.b16 %v6037
      %v6164 = vunpack.c.l.b16 %v6038
      %v6165 = vunpack.c.h.b16 %v6038
      %v6166 = vunpack.c.l.b16 %v6039
      %v6167 = vunpack.c.h.b16 %v6039
      %v6168 = vunpack.c.l.b16 %v6040
      %v6169 = vunpack.c.h.b16 %v6040
      %v6170 = vunpack.c.l.b16 %v6041
      %v6171 = vunpack.c.h.b16 %v6041
      %v6172 = vunpack.c.l.b16 %v6042
      %v6173 = vunpack.c.h.b16 %v6042
      %v6174 = vunpack.c.l.b16 %v6043
      %v6175 = vunpack.c.h.b16 %v6043
      %v6176 = vunpack.c.l.b16 %v6044
      %v6177 = vunpack.c.h.b16 %v6044
      %v6178 = vunpack.c.l.b16 %v6045
      %v6179 = vunpack.c.h.b16 %v6045
      %v6180 = vunpack.c.l.b16 %v6046
      %v6181 = vunpack.c.h.b16 %v6046
      %v6182 = vunpack.c.l.b16 %v6047
      %v6183 = vunpack.c.h.b16 %v6047
      %v6184 = vunpack.c.l.b16 %v6048
      %v6185 = vunpack.c.h.b16 %v6048
      %v6186 = vunpack.c.l.b16 %v6049
      %v6187 = vunpack.c.h.b16 %v6049
      %v6188 = vunpack.c.l.b16 %v6050
      %v6189 = vunpack.c.h.b16 %v6050
      %v6190 = vunpack.c.l.b16 %v6051
      %v6191 = vunpack.c.h.b16 %v6051
      %v6192 = vunpack.c.l.b16 %v6052
      %v6193 = vunpack.c.h.b16 %v6052
      %v6194 = vunpack.c.l.b16 %v6053
      %v6195 = vunpack.c.h.b16 %v6053
      %v6196 = vunpack.c.l.b16 %v6054
      %v6197 = vunpack.c.h.b16 %v6054
      %v6198 = vunpack.c.l.b16 %v6055
      %v6199 = vunpack.c.h.b16 %v6055
      %v6200 = vunpack.c.l.b16 %v6056
      %v6201 = vunpack.c.h.b16 %v6056
      %v6202 = vunpack.c.l.b16 %v6057
      %v6203 = vunpack.c.h.b16 %v6057
      %v6204 = vunpack.c.l.b16 %v6058
      %v6205 = vunpack.c.h.b16 %v6058
      %v6206 = vunpack.c.l.b16 %v6059
      %v6207 = vunpack.c.h.b16 %v6059
      %v6208 = vunpack.c.l.b16 %v6060
      %v6209 = vunpack.c.h.b16 %v6060
      %v6210 = vunpack.c.l.b16 %v6061
      %v6211 = vunpack.c.h.b16 %v6061
      %v6212 = vunpack.c.l.b16 %v6062
      %v6213 = vunpack.c.h.b16 %v6062
      %v6214 = vunpack.c.l.b16 %v6063
      %v6215 = vunpack.c.h.b16 %v6063
      %v6216 = vunpack.c.l.b16 %v6064
      %v6217 = vunpack.c.h.b16 %v6064
      %v6218 = vunpack.c.l.b16 %v6065
      %v6219 = vunpack.c.h.b16 %v6065
      %v6220 = vunpack.c.l.b16 %v6066
      %v6221 = vunpack.c.h.b16 %v6066
      %v6222 = vunpack.c.l.b16 %v6067
      %v6223 = vunpack.c.h.b16 %v6067
      %v6224 = vunpack.c.l.b16 %v6068
      %v6225 = vunpack.c.h.b16 %v6068
      %v6226 = vunpack.c.l.b16 %v6069
      %v6227 = vunpack.c.h.b16 %v6069
      %v6228 = vunpack.c.l.b16 %v6070
      %v6229 = vunpack.c.h.b16 %v6070
      %v6230 = vunpack.c.l.b16 %v6071
      %v6231 = vunpack.c.h.b16 %v6071
      %v6232 = vunpack.c.l.b16 %v6072
      %v6233 = vunpack.c.h.b16 %v6072
      %v6234 = vunpack.c.l.b16 %v6073
      %v6235 = vunpack.c.h.b16 %v6073
      %v6236 = vunpack.c.l.b16 %v6074
      %v6237 = vunpack.c.h.b16 %v6074
      %v6238 = vunpack.c.l.b16 %v6075
      %v6239 = vunpack.c.h.b16 %v6075
      %v6240 = vunpack.c.l.b16 %v6076
      %v6241 = vunpack.c.h.b16 %v6076
      %v6242 = vunpack.c.l.b16 %v6077
      %v6243 = vunpack.c.h.b16 %v6077
      %v6244 = vunpack.c.l.b16 %v6078
      %v6245 = vunpack.c.h.b16 %v6078
      %v6246 = vunpack.c.l.b16 %v6079
      %v6247 = vunpack.c.h.b16 %v6079
      %v6248 = vunpack.c.l.b16 %v6080
      %v6249 = vunpack.c.h.b16 %v6080
      %v6250 = vunpack.c.l.b16 %v6081
      %v6251 = vunpack.c.h.b16 %v6081
      %v6252 = vunpack.c.l.b16 %v6082
      %v6253 = vpack.c.b16 %v6140, %v6140
      %v6254 = vpack.c.b16 %v6141, %v6141
      %v6255 = vpack.c.b16 %v6142, %v6142
      %v6256 = vpack.c.b16 %v6143, %v6143
      %v6257 = vpack.c.b16 %v6144, %v6144
      %v6258 = vpack.c.b16 %v6145, %v6145
      %v6259 = vpack.c.b16 %v6146, %v6146
      %v6260 = vpack.c.b16 %v6147, %v6147
      %v6261 = vpack.c.b16 %v6148, %v6148
      %v6262 = vpack.c.b16 %v6149, %v6149
      %v6263 = vpack.c.b16 %v6150, %v6150
      %v6264 = vpack.c.b16 %v6151, %v6151
      %v6265 = vpack.c.b16 %v6152, %v6152
      %v6266 = vpack.c.b16 %v6153, %v6153
      %v6267 = vpack.c.b16 %v6154, %v6154
      %v6268 = vpack.c.b16 %v6155, %v6155
      %v6269 = vpack.c.b16 %v6156, %v6156
      %v6270 = vpack.c.b16 %v6157, %v6157
      %v6271 = vpack.c.b16 %v6158, %v6158
      %v6272 = vpack.c.b16 %v6159, %v6159
      %v6273 = vpack.c.b16 %v6160, %v6160
      %v6274 = vpack.c.b16 %v6161, %v6161
      %v6275 = vpack.c.b16 %v6162, %v6162
      %v6276 = vpack.c.b16 %v6163, %v6163
      %v6277 = vpack.c.b16 %v6164, %v6164
      %v6278 = vpack.c.b16 %v6165, %v6165
      %v6279 = vpack.c.b16 %v6166, %v6166
      %v6280 = vpack.c.b16 %v6167, %v6167
      %v6281 = vpack.c.b16 %v6168, %v6168
      %v6282 = vpack.c.b16 %v6169, %v6169
      %v6283 = vpack.c.b16 %v6170, %v6170
      %v6284 = vpack.c.b16 %v6171, %v6171
      %v6285 = vpack.c.b16 %v6172, %v6172
      %v6286 = vpack.c.b16 %v6173, %v6173
      %v6287 = vpack.c.b16 %v6174, %v6174
      %v6288 = vpack.c.b16 %v6175, %v6175
      %v6289 = vpack.c.b16 %v6176, %v6176
      %v6290 = vpack.c.b16 %v6177, %v6177
      %v6291 = vpack.c.b16 %v6178, %v6178
      %v6292 = vpack.c.b16 %v6179, %v6179
      %v6293 = vpack.c.b16 %v6180, %v6180
      %v6294 = vpack.c.b16 %v6181, %v6181
      %v6295 = vpack.c.b16 %v6182, %v6182
      %v6296 = vpack.c.b16 %v6183, %v6183
      %v6297 = vpack.c.b16 %v6184, %v6184
      %v6298 = vpack.c.b16 %v6185, %v6185
      %v6299 = vpack.c.b16 %v6186, %v6186
      %v6300 = vpack.c.b16 %v6187, %v6187
      %v6301 = vpack.c.b16 %v6188, %v6188
      %v6302 = vpack.c.b16 %v6189, %v6189
      %v6303 = vpack.c.b16 %v6190, %v6190
      %v6304 = vpack.c.b16 %v6191, %v6191
      %v6305 = vpack.c.b16 %v6192, %v6192
      %v6306 = vpack.c.b16 %v6193, %v6193
      %v6307 = vpack.c.b16 %v6194, %v6194
      %v6308 = vpack.c.b16 %v6195, %v6195
      %v6309 = vpack.c.b16 %v6196, %v6196
      %v6310 = vpack.c.b16 %v6197, %v6197
      %v6311 = vpack.c.b16 %v6198, %v6198
      %v6312 = vpack.c.b16 %v6199, %v6199
      %v6313 = vpack.c.b16 %v6200, %v6200
      %v6314 = vpack.c.b16 %v6201, %v6201
      %v6315 = vpack.c.b16 %v6202, %v6202
      %v6316 = vpack.c.b16 %v6203, %v6203
      %v6317 = vpack.c.b16 %v6204, %v6204
      %v6318 = vpack.c.b16 %v6205, %v6205
      %v6319 = vpack.c.b16 %v6206, %v6206
      %v6320 = vpack.c.b16 %v6207, %v6207
      %v6321 = vpack.c.b16 %v6208, %v6208
      %v6322 = vpack.c.b16 %v6209, %v6209
      %v6323 = vpack.c.b16 %v6210, %v6210
      %v6324 = vpack.c.b16 %v6211, %v6211
      %v6325 = vpack.c.b16 %v6212, %v6212
      %v6326 = vpack.c.b16 %v6213, %v6213
      %v6327 = vpack.c.b16 %v6214, %v6214
      %v6328 = vpack.c.b16 %v6215, %v6215
      %v6329 = vpack.c.b16 %v6216, %v6216
      %v6330 = vpack.c.b16 %v6217, %v6217
      %v6331 = vpack.c.b16 %v6218, %v6218
      %v6332 = vpack.c.b16 %v6219, %v6219
      %v6333 = vpack.c.b16 %v6220, %v6220
      %v6334 = vpack.c.b16 %v6221, %v6221
      %v6335 = vpack.c.b16 %v6222, %v6222
      %v6336 = vpack.c.b16 %v6223, %v6223
      %v6337 = vpack.c.b16 %v6224, %v6224
      %v6338 = vpack.c.b16 %v6225, %v6225
      %v6339 = vpack.c.b16 %v6226, %v6226
      %v6340 = vpack.c.b16 %v6227, %v6227
      %v6341 = vpack.c.b16 %v6228, %v6228
      %v6342 = vpack.c.b16 %v6229, %v6229
      %v6343 = vpack.c.b16 %v6230, %v6230
      %v6344 = vpack.c.b16 %v6231, %v6231
      %v6345 = vpack.c.b16 %v6232, %v6232
      %v6346 = vpack.c.b16 %v6233, %v6233
      %v6347 = vpack.c.b16 %v6234, %v6234
      %v6348 = vpack.c.b16 %v6235, %v6235
      %v6349 = vpack.c.b16 %v6236, %v6236
      %v6350 = vpack.c.b16 %v6237, %v6237
      %v6351 = vpack.c.b16 %v6238, %v6238
      %v6352 = vpack.c.b16 %v6239, %v6239
      %v6353 = vpack.c.b16 %v6240, %v6240
      %v6354 = vpack.c.b16 %v6241, %v6241
      %v6355 = vpack.c.b16 %v6242, %v6242
      %v6356 = vpack.c.b16 %v6243, %v6243
      %v6357 = vpack.c.b16 %v6244, %v6244
      %v6358 = vpack.c.b16 %v6245, %v6245
      %v6359 = vpack.c.b16 %v6246, %v6246
      %v6360 = vpack.c.b16 %v6247, %v6247
      %v6361 = vpack.c.b16 %v6248, %v6248
      %v6362 = vpack.c.b16 %v6249, %v6249
      %v6363 = vpack.c.b16 %v6250, %v6250
      %v6364 = vpack.c.b16 %v6251, %v6251
      %v6365 = vpack.c.b16 %v6252, %v6252
      %vm6479 = vcmask 125952
      %6480 = vst.msk [vmem:[%s197] sm:$0xf] %vm6479, %v6253
      %6481 = vst.msk [vmem:[%s197 + $0x4] sm:$0xf] %vm6479, %v6254
      %6482 = vst.msk [vmem:[%s197 + $0x8] sm:$0xf] %vm6479, %v6255
      %6483 = vst.msk [vmem:[%s197 + $0xc] sm:$0xf] %vm6479, %v6256
      %6484 = vst.msk [vmem:[%s197 + $0x10] sm:$0xf] %vm6479, %v6257
      %6485 = vst.msk [vmem:[%s197 + $0x14] sm:$0xf] %vm6479, %v6258
      %6486 = vst.msk [vmem:[%s197 + $0x18] sm:$0xf] %vm6479, %v6259
      %6487 = vst.msk [vmem:[%s197 + $0x1c] sm:$0xf] %vm6479, %v6260
      %6488 = vst.msk [vmem:[%s197 + $0x20] sm:$0xf] %vm6479, %v6261
      %6489 = vst.msk [vmem:[%s197 + $0x24] sm:$0xf] %vm6479, %v6262
      %6490 = vst.msk [vmem:[%s197 + $0x28] sm:$0xf] %vm6479, %v6263
      %6491 = vst.msk [vmem:[%s197 + $0x2c] sm:$0xf] %vm6479, %v6264
      %6492 = vst.msk [vmem:[%s197 + $0x30] sm:$0xf] %vm6479, %v6265
      %6493 = vst.msk [vmem:[%s197 + $0x34] sm:$0xf] %vm6479, %v6266
      %6494 = vst.msk [vmem:[%s197 + $0x38] sm:$0xf] %vm6479, %v6267
      %6495 = vst.msk [vmem:[%s197 + $0x3c] sm:$0xf] %vm6479, %v6268
      %6496 = vst.msk [vmem:[%s197 + $0x40] sm:$0xf] %vm6479, %v6269
      %6497 = vst.msk [vmem:[%s197 + $0x44] sm:$0xf] %vm6479, %v6270
      %6498 = vst.msk [vmem:[%s197 + $0x48] sm:$0xf] %vm6479, %v6271
      %6499 = vst.msk [vmem:[%s197 + $0x4c] sm:$0xf] %vm6479, %v6272
      %6500 = vst.msk [vmem:[%s197 + $0x50] sm:$0xf] %vm6479, %v6273
      %6501 = vst.msk [vmem:[%s197 + $0x54] sm:$0xf] %vm6479, %v6274
      %6502 = vst.msk [vmem:[%s197 + $0x58] sm:$0xf] %vm6479, %v6275
      %6503 = vst.msk [vmem:[%s197 + $0x5c] sm:$0xf] %vm6479, %v6276
      %6504 = vst.msk [vmem:[%s197 + $0x60] sm:$0xf] %vm6479, %v6277
      %6505 = vst.msk [vmem:[%s197 + $0x64] sm:$0xf] %vm6479, %v6278
      %6506 = vst.msk [vmem:[%s197 + $0x68] sm:$0xf] %vm6479, %v6279
      %6507 = vst.msk [vmem:[%s197 + $0x6c] sm:$0xf] %vm6479, %v6280
      %6508 = vst.msk [vmem:[%s197 + $0x70] sm:$0xf] %vm6479, %v6281
      %6509 = vst.msk [vmem:[%s197 + $0x74] sm:$0xf] %vm6479, %v6282
      %6510 = vst.msk [vmem:[%s197 + $0x78] sm:$0xf] %vm6479, %v6283
      %6511 = vst.msk [vmem:[%s197 + $0x7c] sm:$0xf] %vm6479, %v6284
      %6512 = vst.msk [vmem:[%s197 + $0x80] sm:$0xf] %vm6479, %v6285
      %6513 = vst.msk [vmem:[%s197 + $0x84] sm:$0xf] %vm6479, %v6286
      %6514 = vst.msk [vmem:[%s197 + $0x88] sm:$0xf] %vm6479, %v6287
      %6515 = vst.msk [vmem:[%s197 + $0x8c] sm:$0xf] %vm6479, %v6288
      %6516 = vst.msk [vmem:[%s197 + $0x90] sm:$0xf] %vm6479, %v6289
      %6517 = vst.msk [vmem:[%s197 + $0x94] sm:$0xf] %vm6479, %v6290
      %6518 = vst.msk [vmem:[%s197 + $0x98] sm:$0xf] %vm6479, %v6291
      %6519 = vst.msk [vmem:[%s197 + $0x9c] sm:$0xf] %vm6479, %v6292
      %6520 = vst.msk [vmem:[%s197 + $0xa0] sm:$0xf] %vm6479, %v6293
      %6521 = vst.msk [vmem:[%s197 + $0xa4] sm:$0xf] %vm6479, %v6294
      %6522 = vst.msk [vmem:[%s197 + $0xa8] sm:$0xf] %vm6479, %v6295
      %6523 = vst.msk [vmem:[%s197 + $0xac] sm:$0xf] %vm6479, %v6296
      %6524 = vst.msk [vmem:[%s197 + $0xb0] sm:$0xf] %vm6479, %v6297
      %6525 = vst.msk [vmem:[%s197 + $0xb4] sm:$0xf] %vm6479, %v6298
      %6526 = vst.msk [vmem:[%s197 + $0xb8] sm:$0xf] %vm6479, %v6299
      %6527 = vst.msk [vmem:[%s197 + $0xbc] sm:$0xf] %vm6479, %v6300
      %6528 = vst.msk [vmem:[%s197 + $0xc0] sm:$0xf] %vm6479, %v6301
      %6529 = vst.msk [vmem:[%s197 + $0xc4] sm:$0xf] %vm6479, %v6302
      %6530 = vst.msk [vmem:[%s197 + $0xc8] sm:$0xf] %vm6479, %v6303
      %6531 = vst.msk [vmem:[%s197 + $0xcc] sm:$0xf] %vm6479, %v6304
      %6532 = vst.msk [vmem:[%s197 + $0xd0] sm:$0xf] %vm6479, %v6305
      %6533 = vst.msk [vmem:[%s197 + $0xd4] sm:$0xf] %vm6479, %v6306
      %6534 = vst.msk [vmem:[%s197 + $0xd8] sm:$0xf] %vm6479, %v6307
      %6535 = vst.msk [vmem:[%s197 + $0xdc] sm:$0xf] %vm6479, %v6308
      %6536 = vst.msk [vmem:[%s197 + $0xe0] sm:$0xf] %vm6479, %v6309
      %6537 = vst.msk [vmem:[%s197 + $0xe4] sm:$0xf] %vm6479, %v6310
      %6538 = vst.msk [vmem:[%s197 + $0xe8] sm:$0xf] %vm6479, %v6311
      %6539 = vst.msk [vmem:[%s197 + $0xec] sm:$0xf] %vm6479, %v6312
      %6540 = vst.msk [vmem:[%s197 + $0xf0] sm:$0xf] %vm6479, %v6313
      %6541 = vst.msk [vmem:[%s197 + $0xf4] sm:$0xf] %vm6479, %v6314
      %6542 = vst.msk [vmem:[%s197 + $0xf8] sm:$0xf] %vm6479, %v6315
      %6543 = vst.msk [vmem:[%s197 + $0xfc] sm:$0xf] %vm6479, %v6316
      %6544 = vst.msk [vmem:[%s197 + $0x100] sm:$0xf] %vm6479, %v6317
      %6545 = vst.msk [vmem:[%s197 + $0x104] sm:$0xf] %vm6479, %v6318
      %6546 = vst.msk [vmem:[%s197 + $0x108] sm:$0xf] %vm6479, %v6319
      %6547 = vst.msk [vmem:[%s197 + $0x10c] sm:$0xf] %vm6479, %v6320
      %6548 = vst.msk [vmem:[%s197 + $0x110] sm:$0xf] %vm6479, %v6321
      %6549 = vst.msk [vmem:[%s197 + $0x114] sm:$0xf] %vm6479, %v6322
      %6550 = vst.msk [vmem:[%s197 + $0x118] sm:$0xf] %vm6479, %v6323
      %6551 = vst.msk [vmem:[%s197 + $0x11c] sm:$0xf] %vm6479, %v6324
      %6552 = vst.msk [vmem:[%s197 + $0x120] sm:$0xf] %vm6479, %v6325
      %6553 = vst.msk [vmem:[%s197 + $0x124] sm:$0xf] %vm6479, %v6326
      %6554 = vst.msk [vmem:[%s197 + $0x128] sm:$0xf] %vm6479, %v6327
      %6555 = vst.msk [vmem:[%s197 + $0x12c] sm:$0xf] %vm6479, %v6328
      %6556 = vst.msk [vmem:[%s197 + $0x130] sm:$0xf] %vm6479, %v6329
      %6557 = vst.msk [vmem:[%s197 + $0x134] sm:$0xf] %vm6479, %v6330
      %6558 = vst.msk [vmem:[%s197 + $0x138] sm:$0xf] %vm6479, %v6331
      %6559 = vst.msk [vmem:[%s197 + $0x13c] sm:$0xf] %vm6479, %v6332
      %6560 = vst.msk [vmem:[%s197 + $0x140] sm:$0xf] %vm6479, %v6333
      %6561 = vst.msk [vmem:[%s197 + $0x144] sm:$0xf] %vm6479, %v6334
      %6562 = vst.msk [vmem:[%s197 + $0x148] sm:$0xf] %vm6479, %v6335
      %6563 = vst.msk [vmem:[%s197 + $0x14c] sm:$0xf] %vm6479, %v6336
      %6564 = vst.msk [vmem:[%s197 + $0x150] sm:$0xf] %vm6479, %v6337
      %6565 = vst.msk [vmem:[%s197 + $0x154] sm:$0xf] %vm6479, %v6338
      %6566 = vst.msk [vmem:[%s197 + $0x158] sm:$0xf] %vm6479, %v6339
      %6567 = vst.msk [vmem:[%s197 + $0x15c] sm:$0xf] %vm6479, %v6340
      %6568 = vst.msk [vmem:[%s197 + $0x160] sm:$0xf] %vm6479, %v6341
      %6569 = vst.msk [vmem:[%s197 + $0x164] sm:$0xf] %vm6479, %v6342
      %6570 = vst.msk [vmem:[%s197 + $0x168] sm:$0xf] %vm6479, %v6343
      %6571 = vst.msk [vmem:[%s197 + $0x16c] sm:$0xf] %vm6479, %v6344
      %6572 = vst.msk [vmem:[%s197 + $0x170] sm:$0xf] %vm6479, %v6345
      %6573 = vst.msk [vmem:[%s197 + $0x174] sm:$0xf] %vm6479, %v6346
      %6574 = vst.msk [vmem:[%s197 + $0x178] sm:$0xf] %vm6479, %v6347
      %6575 = vst.msk [vmem:[%s197 + $0x17c] sm:$0xf] %vm6479, %v6348
      %6576 = vst.msk [vmem:[%s197 + $0x180] sm:$0xf] %vm6479, %v6349
      %6577 = vst.msk [vmem:[%s197 + $0x184] sm:$0xf] %vm6479, %v6350
      %6578 = vst.msk [vmem:[%s197 + $0x188] sm:$0xf] %vm6479, %v6351
      %6579 = vst.msk [vmem:[%s197 + $0x18c] sm:$0xf] %vm6479, %v6352
      %6580 = vst.msk [vmem:[%s197 + $0x190] sm:$0xf] %vm6479, %v6353
      %6581 = vst.msk [vmem:[%s197 + $0x194] sm:$0xf] %vm6479, %v6354
      %6582 = vst.msk [vmem:[%s197 + $0x198] sm:$0xf] %vm6479, %v6355
      %6583 = vst.msk [vmem:[%s197 + $0x19c] sm:$0xf] %vm6479, %v6356
      %6584 = vst.msk [vmem:[%s197 + $0x1a0] sm:$0xf] %vm6479, %v6357
      %6585 = vst.msk [vmem:[%s197 + $0x1a4] sm:$0xf] %vm6479, %v6358
      %6586 = vst.msk [vmem:[%s197 + $0x1a8] sm:$0xf] %vm6479, %v6359
      %6587 = vst.msk [vmem:[%s197 + $0x1ac] sm:$0xf] %vm6479, %v6360
      %6588 = vst.msk [vmem:[%s197 + $0x1b0] sm:$0xf] %vm6479, %v6361
      %6589 = vst.msk [vmem:[%s197 + $0x1b4] sm:$0xf] %vm6479, %v6362
      %6590 = vst.msk [vmem:[%s197 + $0x1b8] sm:$0xf] %vm6479, %v6363
      %6591 = vst.msk [vmem:[%s197 + $0x1bc] sm:$0xf] %vm6479, %v6364
      %vm6592 = vcmask 123904
      %6593 = vst.msk [vmem:[%s197 + $0x1c0] sm:$0x3] %vm6592, %v6365
      %p6594 = scmp.lt.s32.totalorder %s15, 1
      %s6595 = scalar_select %p6594, %s15, 1
      %s6596 = smul.addr %s6595, 113
      %s6597 = smul.addr %s6596, 4
      %s6598 = scalar_lea.vmem %s4, %s6597
      // Predicated region
      $region37: #{cnn_forward.3} parent=35 // pred_check
        %p6599 = pneg %p122
      $region38: #{cnn_forward.3} parent=35 // pred_check_branch
        %6601 = sbr.rel (%p6599) target = $region40
      $region39: #{cnn_forward.3} parent=35 // pred_region
        _
      $region40: #{cnn_forward.3} parent=35 // pred_fallthru
        _
    $region36: #{cnn_forward.3} parent=5 // pred_fallthru
      _
    %p6602 = scmp.le.s32.totalorder 2, %s10
    // Predicated region
    $region41: #{cnn_forward.3} parent=5 // pred_check
      %p6603 = pneg %p6602
    $region42: #{cnn_forward.3} parent=5 // pred_check_branch
      %6605 = sbr.rel (%p6603) target = $region44
    $region43: #{cnn_forward.3} parent=5 // pred_region
      %s6606 = ssub.s32 %s10, 2
      // Predicated region
      $region45: #{cnn_forward.3} parent=43 // pred_check
        %p6607 = pneg %p128
      $region46: #{cnn_forward.3} parent=43 // pred_check_branch
        %6609 = sbr.rel (%p6607) target = $region48
      $region47: #{cnn_forward.3} parent=43 // pred_region
        %p6610 = scmp.lt.s32.totalorder %s16, 1
        %s6611 = scalar_select %p6610, %s16, 1
        %s6612 = smul.addr %s6611, 113
        %s6613 = smul.addr %s6612, 4
        %s6614 = scalar_lea.vmem %s4, %s6613
      $region48: #{cnn_forward.3} parent=43 // pred_fallthru
        _
    $region44: #{cnn_forward.3} parent=5 // pred_fallthru
      _
  $region6: #{cnn_forward.3} parent=0 // loop_footer
    %s14 = sadd.s32 1, %s10
  $region7: #{cnn_forward.3} parent=0 // loop_footer_branch
    %9 = sbr.rel target = $region3
  $region8: #{cnn_forward.3} parent=0 // loop_exit
    _

// kernel: cnn_forward.4
$region0: #{cnn_forward.4}
  #allocation0 [shape = 'u32[]', space=smem, size = 0x4, offset = 0x4, fixed_abs, tag = 'smem constant byte address 0x4 - core index']
  #allocation1 [shape = 'u32[144,128]{1,0:T(1,128)}', space=vmem, size = 0x12000, scoped, tag = 'internal scratch']
  %s0 = inlined_call_operand.vmem [shape: bf16[2,800,144], index: 0, kind: input, shape index: {}]
  %s1 = inlined_call_operand.vmem [shape: bf16[144,32], index: 1, kind: input, shape index: {}]
  %s2 = inlined_call_operand.vmem [shape: f32[1,32], index: 2, kind: input, shape index: {}]
  %s3 = inlined_call_operand.vmem [shape: f32[1,32], index: 3, kind: input, shape index: {}]
  %s4 = inlined_call_operand.vmem [shape: bf16[2,196,32], index: 4, kind: output, shape index: {}]
  %s5 = sld [smem:[#allocation0]]
  $region49: #{cnn_forward.4} parent=0
    _
  %s7 = ssub.s32 1, %s5
  %s8 = scalar_select 0, %s7, %s5
  loop: start=0, step=1, limit=4
  $region2: #{cnn_forward.4} parent=0 // loop_pre_header
    _
  $region3: #{cnn_forward.4} parent=0 // loop_header
    %s10 = sphi 0, %s14
    %p11 = scmp.ge.s32.totalorder %s10, 4
    %s20 = sphi 0, %s22
    %s23 = sphi 0, %s20
    %s24 = sphi 0, %s23
    %s40 = sphi 0, %s24
    %s44 = sphi 0, %s44
    %s46 = sphi 0, %s44
    %s47 = sphi 0, %s46
    %s61 = sphi 0, %s47
    %s65 = sphi 0, %s65
    %s67 = sphi 0, %s65
    %s68 = sphi 0, %s67
    %s82 = sphi 0, %s68
    %s86 = sphi 0, %s86
    %s88 = sphi 0, %s86
    %s89 = sphi 0, %s88
    %s103 = sphi 0, %s89
    %s109 = sphi 0, %s111
    %s112 = sphi 0, %s109
    %s113 = sphi 0, %s112
    %s129 = sphi 0, %s113
  $region4: #{cnn_forward.4} parent=0 // loop_header_branch
    %13 = sbr.rel (%p11) target = $region8
  $region5: #{cnn_forward.4} parent=0 // loop_body
    %s15 = ssub.s32 %s10, 1
    %s16 = ssub.s32 %s10, 2
    %s17 = sadd.s32 %s10, 1
    %s18 = ssub.s32 %s10, %s17
    %p19 = scmp.eq.s32.totalorder %s18, 0
    %s21 = sadd.s32 %s20, 1
    %s22 = scalar_select %p19, %s20, %s21
    %p25 = pneg %p19
    %p26 = scmp.eq.s32.totalorder %s10, 1
    %p27 = por %p25, %p26
    %p28 = scmp.ne.s32.totalorder %s20, %s23
    %p29 = scmp.eq.s32.totalorder %s10, 0
    %p30 = por %p28, %p29
    %p31 = scmp.ne.s32.totalorder %s20, %s23
    %p32 = scmp.eq.s32.totalorder %s15, 1
    %p33 = por %p31, %p32
    %p34 = scmp.ne.s32.totalorder %s23, %s24
    %p35 = scmp.eq.s32.totalorder %s15, 0
    %p36 = por %p34, %p35
    %p37 = scmp.ne.s32.totalorder %s23, %s24
    %p38 = scmp.eq.s32.totalorder %s16, 1
    %p39 = por %p37, %p38
    %p41 = scmp.ne.s32.totalorder %s24, %s40
    %p42 = scmp.eq.s32.totalorder %s16, 0
    %p43 = por %p41, %p42
    %s45 = sadd.s32 %s44, 1
    %p48 = scmp.eq.s32.totalorder %s10, 1
    %p49 = scmp.ne.s32.totalorder %s44, %s46
    %p50 = scmp.eq.s32.totalorder %s10, 0
    %p51 = por %p49, %p50
    %p52 = scmp.ne.s32.totalorder %s44, %s46
    %p53 = scmp.eq.s32.totalorder %s15, 1
    %p54 = por %p52, %p53
    %p55 = scmp.ne.s32.totalorder %s46, %s47
    %p56 = scmp.eq.s32.totalorder %s15, 0
    %p57 = por %p55, %p56
    %p58 = scmp.ne.s32.totalorder %s46, %s47
    %p59 = scmp.eq.s32.totalorder %s16, 1
    %p60 = por %p58, %p59
    %p62 = scmp.ne.s32.totalorder %s47, %s61
    %p63 = scmp.eq.s32.totalorder %s16, 0
    %p64 = por %p62, %p63
    %s66 = sadd.s32 %s65, 1
    %p69 = scmp.eq.s32.totalorder %s10, 1
    %p70 = scmp.ne.s32.totalorder %s65, %s67
    %p71 = scmp.eq.s32.totalorder %s10, 0
    %p72 = por %p70, %p71
    %p73 = scmp.ne.s32.totalorder %s65, %s67
    %p74 = scmp.eq.s32.totalorder %s15, 1
    %p75 = por %p73, %p74
    %p76 = scmp.ne.s32.totalorder %s67, %s68
    %p77 = scmp.eq.s32.totalorder %s15, 0
    %p78 = por %p76, %p77
    %p79 = scmp.ne.s32.totalorder %s67, %s68
    %p80 = scmp.eq.s32.totalorder %s16, 1
    %p81 = por %p79, %p80
    %p83 = scmp.ne.s32.totalorder %s68, %s82
    %p84 = scmp.eq.s32.totalorder %s16, 0
    %p85 = por %p83, %p84
    %s87 = sadd.s32 %s86, 1
    %p90 = scmp.eq.s32.totalorder %s10, 1
    %p91 = scmp.ne.s32.totalorder %s86, %s88
    %p92 = scmp.eq.s32.totalorder %s10, 0
    %p93 = por %p91, %p92
    %p94 = scmp.ne.s32.totalorder %s86, %s88
    %p95 = scmp.eq.s32.totalorder %s15, 1
    %p96 = por %p94, %p95
    %p97 = scmp.ne.s32.totalorder %s88, %s89
    %p98 = scmp.eq.s32.totalorder %s15, 0
    %p99 = por %p97, %p98
    %p100 = scmp.ne.s32.totalorder %s88, %s89
    %p101 = scmp.eq.s32.totalorder %s16, 1
    %p102 = por %p100, %p101
    %p104 = scmp.ne.s32.totalorder %s89, %s103
    %p105 = scmp.eq.s32.totalorder %s16, 0
    %p106 = por %p104, %p105
    %s107 = ssub.s32 %s10, %s17
    %p108 = scmp.eq.s32.totalorder %s107, 0
    %s110 = sadd.s32 %s109, 1
    %s111 = scalar_select %p108, %s109, %s110
    %p114 = pneg %p108
    %p115 = scmp.eq.s32.totalorder %s10, 1
    %p116 = por %p114, %p115
    %p117 = scmp.ne.s32.totalorder %s109, %s112
    %p118 = scmp.eq.s32.totalorder %s10, 0
    %p119 = por %p117, %p118
    %p120 = scmp.ne.s32.totalorder %s109, %s112
    %p121 = scmp.eq.s32.totalorder %s15, 1
    %p122 = por %p120, %p121
    %p123 = scmp.ne.s32.totalorder %s112, %s113
    %p124 = scmp.eq.s32.totalorder %s15, 0
    %p125 = por %p123, %p124
    %p126 = scmp.ne.s32.totalorder %s112, %s113
    %p127 = scmp.eq.s32.totalorder %s16, 1
    %p128 = por %p126, %p127
    %p130 = scmp.ne.s32.totalorder %s113, %s129
    %p131 = scmp.eq.s32.totalorder %s16, 0
    %p132 = por %p130, %p131
    %p133 = scmp.le.s32.totalorder 1, %s10
    %p134 = scmp.lt.s32.totalorder %s10, 3
    %p135 = pnand %p133, %p134
    %p136 = pneg %p135
    // Predicated region
    $region9: #{cnn_forward.4} parent=5 // pred_check
      _
    $region10: #{cnn_forward.4} parent=5 // pred_check_branch
      %138 = sbr.rel (%p135) target = $region12
    $region11: #{cnn_forward.4} parent=5 // pred_region
      %s139 = ssub.s32 %s10, 1
      // Predicated region
      $region13: #{cnn_forward.4} parent=11 // pred_check
        %p140 = pneg %p57
      $region14: #{cnn_forward.4} parent=11 // pred_check_branch
        %142 = sbr.rel (%p140) target = $region16
      $region15: #{cnn_forward.4} parent=11 // pred_region
        _
      $region16: #{cnn_forward.4} parent=11 // pred_fallthru
        _
      // Predicated region
      $region17: #{cnn_forward.4} parent=11 // pred_check
        %p143 = pneg %p78
      $region18: #{cnn_forward.4} parent=11 // pred_check_branch
        %145 = sbr.rel (%p143) target = $region20
      $region19: #{cnn_forward.4} parent=11 // pred_region
        _
      $region20: #{cnn_forward.4} parent=11 // pred_fallthru
        _
      // Predicated region
      $region21: #{cnn_forward.4} parent=11 // pred_check
        %p146 = pneg %p99
      $region22: #{cnn_forward.4} parent=11 // pred_check_branch
        %148 = sbr.rel (%p146) target = $region24
      $region23: #{cnn_forward.4} parent=11 // pred_region
        _
      $region24: #{cnn_forward.4} parent=11 // pred_fallthru
        _
    $region12: #{cnn_forward.4} parent=5 // pred_fallthru
      _
    %p149 = scmp.lt.s32.totalorder %s10, 2
    // Predicated region
    $region25: #{cnn_forward.4} parent=5 // pred_check
      %p150 = pneg %p149
    $region26: #{cnn_forward.4} parent=5 // pred_check_branch
      %152 = sbr.rel (%p150) target = $region28
    $region27: #{cnn_forward.4} parent=5 // pred_region
      // Predicated region
      $region29: #{cnn_forward.4} parent=27 // pred_check
        %p153 = pneg %p30
      $region30: #{cnn_forward.4} parent=27 // pred_check_branch
        %155 = sbr.rel (%p153) target = $region32
      $region31: #{cnn_forward.4} parent=27 // pred_region
        %p156 = scmp.lt.s32.totalorder %s10, 1
        %s157 = scalar_select %p156, %s10, 1
        %s158 = smul.addr %s157, 200
        %s159 = smul.addr %s158, 4
        %s160 = scalar_lea.vmem %s0, %s159
      $region32: #{cnn_forward.4} parent=27 // pred_fallthru
        _
    $region28: #{cnn_forward.4} parent=5 // pred_fallthru
      _
    %p161 = scmp.le.s32.totalorder 1, %s10
    %p162 = scmp.lt.s32.totalorder %s10, 3
    %p163 = pnand %p161, %p162
    %p164 = pneg %p163
    // Predicated region
    $region33: #{cnn_forward.4} parent=5 // pred_check
      _
    $region34: #{cnn_forward.4} parent=5 // pred_check_branch
      %166 = sbr.rel (%p163) target = $region36
    $region35: #{cnn_forward.4} parent=5 // pred_region
      %s167 = ssub.s32 %s10, 1
      %p168 = scmp.lt.s32.totalorder %s15, 1
      %s169 = scalar_select %p168, %s15, 1
      %s170 = smul.addr %s169, 200
      %s171 = smul.addr %s170, 4
      %s172 = scalar_lea.vmem %s0, %s171
      %p173 = pneg %p36
      %p174 = pneg %p33
      %p175 = pneg %p57
      %p176 = pneg %p54
      %p177 = pneg %p78
      %p178 = pneg %p75
      %p179 = pneg %p99
      %p180 = pneg %p96
      %p181 = pneg %p125
      %p182 = pneg %p122
      %p183 = scmp.lt.s32.totalorder %s15, 1
      %s184 = scalar_select %p183, %s15, 1
      %s185 = smul.addr %s184, 25
      %s186 = smul.addr %s185, 4
      %s187 = scalar_lea.vmem %s4, %s186
      %p188 = scmp.lt.s32.totalorder %s15, 1
      %s189 = scalar_select %p188, %s15, 1
      %s190 = smul.addr %s189, 200
      %s191 = smul.addr %s190, 4
      %s192 = scalar_lea.vmem %s0, %s191
      %p193 = scmp.lt.s32.totalorder %s15, 1
      %s194 = scalar_select %p193, %s15, 1
      %s195 = smul.addr %s194, 25
      %s196 = smul.addr %s195, 4
      %s197 = scalar_lea.vmem %s4, %s196
      %v199 = vld [vmem:[%s192] sm:$0xff]
      %v200 = vld [vmem:[%s192 + $0x8] sm:$0xff]
      %v201 = vld [vmem:[%s192 + $0x10] sm:$0xff]
      %v202 = vld [vmem:[%s192 + $0x18] sm:$0xff]
      %v203 = vld [vmem:[%s192 + $0x20] sm:$0xff]
      %v204 = vld [vmem:[%s192 + $0x28] sm:$0xff]
      %v205 = vld [vmem:[%s192 + $0x30] sm:$0xff]
      %v206 = vld [vmem:[%s192 + $0x38] sm:$0xff]
      %v207 = vld [vmem:[%s192 + $0x40] sm:$0xff]
      %v208 = vld [vmem:[%s192 + $0x48] sm:$0xff]
      %v209 = vld [vmem:[%s192 + $0x50] sm:$0xff]
      %v210 = vld [vmem:[%s192 + $0x58] sm:$0xff]
      %v211 = vld [vmem:[%s192 + $0x60] sm:$0xff]
      %v212 = vld [vmem:[%s192 + $0x68] sm:$0xff]
      %v213 = vld [vmem:[%s192 + $0x70] sm:$0xff]
      %v214 = vld [vmem:[%s192 + $0x78] sm:$0xff]
      %v215 = vld [vmem:[%s192 + $0x80] sm:$0xff]
      %v216 = vld [vmem:[%s192 + $0x88] sm:$0xff]
      %v217 = vld [vmem:[%s192 + $0x90] sm:$0xff]
      %v218 = vld [vmem:[%s192 + $0x98] sm:$0xff]
      %v219 = vld [vmem:[%s192 + $0xa0] sm:$0xff]
      %v220 = vld [vmem:[%s192 + $0xa8] sm:$0xff]
      %v221 = vld [vmem:[%s192 + $0xb0] sm:$0xff]
      %v222 = vld [vmem:[%s192 + $0xb8] sm:$0xff]
      %v223 = vld [vmem:[%s192 + $0xc0] sm:$0xff]
      %v224 = vld [vmem:[%s192 + $0xc8] sm:$0xff]
      %v225 = vld [vmem:[%s192 + $0xd0] sm:$0xff]
      %v226 = vld [vmem:[%s192 + $0xd8] sm:$0xff]
      %v227 = vld [vmem:[%s192 + $0xe0] sm:$0xff]
      %v228 = vld [vmem:[%s192 + $0xe8] sm:$0xff]
      %v229 = vld [vmem:[%s192 + $0xf0] sm:$0xff]
      %v230 = vld [vmem:[%s192 + $0xf8] sm:$0xff]
      %v231 = vld [vmem:[%s192 + $0x100] sm:$0xff]
      %v232 = vld [vmem:[%s192 + $0x108] sm:$0xff]
      %v233 = vld [vmem:[%s192 + $0x110] sm:$0xff]
      %v234 = vld [vmem:[%s192 + $0x118] sm:$0xff]
      %v235 = vld [vmem:[%s192 + $0x120] sm:$0xff]
      %v236 = vld [vmem:[%s192 + $0x128] sm:$0xff]
      %v237 = vld [vmem:[%s192 + $0x130] sm:$0xff]
      %v238 = vld [vmem:[%s192 + $0x138] sm:$0xff]
      %v239 = vld [vmem:[%s192 + $0x140] sm:$0xff]
      %v240 = vld [vmem:[%s192 + $0x148] sm:$0xff]
      %v241 = vld [vmem:[%s192 + $0x150] sm:$0xff]
      %v242 = vld [vmem:[%s192 + $0x158] sm:$0xff]
      %v243 = vld [vmem:[%s192 + $0x160] sm:$0xff]
      %v244 = vld [vmem:[%s192 + $0x168] sm:$0xff]
      %v245 = vld [vmem:[%s192 + $0x170] sm:$0xff]
      %v246 = vld [vmem:[%s192 + $0x178] sm:$0xff]
      %v247 = vld [vmem:[%s192 + $0x180] sm:$0xff]
      %v248 = vld [vmem:[%s192 + $0x188] sm:$0xff]
      %v249 = vld [vmem:[%s192 + $0x190] sm:$0xff]
      %v250 = vld [vmem:[%s192 + $0x198] sm:$0xff]
      %v251 = vld [vmem:[%s192 + $0x1a0] sm:$0xff]
      %v252 = vld [vmem:[%s192 + $0x1a8] sm:$0xff]
      %v253 = vld [vmem:[%s192 + $0x1b0] sm:$0xff]
      %v254 = vld [vmem:[%s192 + $0x1b8] sm:$0xff]
      %v255 = vld [vmem:[%s192 + $0x1c0] sm:$0xff]
      %v256 = vld [vmem:[%s192 + $0x1c8] sm:$0xff]
      %v257 = vld [vmem:[%s192 + $0x1d0] sm:$0xff]
      %v258 = vld [vmem:[%s192 + $0x1d8] sm:$0xff]
      %v259 = vld [vmem:[%s192 + $0x1e0] sm:$0xff]
      %v260 = vld [vmem:[%s192 + $0x1e8] sm:$0xff]
      %v261 = vld [vmem:[%s192 + $0x1f0] sm:$0xff]
      %v262 = vld [vmem:[%s192 + $0x1f8] sm:$0xff]
      %v263 = vld [vmem:[%s192 + $0x200] sm:$0xff]
      %v264 = vld [vmem:[%s192 + $0x208] sm:$0xff]
      %v265 = vld [vmem:[%s192 + $0x210] sm:$0xff]
      %v266 = vld [vmem:[%s192 + $0x218] sm:$0xff]
      %v267 = vld [vmem:[%s192 + $0x220] sm:$0xff]
      %v268 = vld [vmem:[%s192 + $0x228] sm:$0xff]
      %v269 = vld [vmem:[%s192 + $0x230] sm:$0xff]
      %v270 = vld [vmem:[%s192 + $0x238] sm:$0xff]
      %v271 = vld [vmem:[%s192 + $0x240] sm:$0xff]
      %v272 = vld [vmem:[%s192 + $0x248] sm:$0xff]
      %v273 = vld [vmem:[%s192 + $0x250] sm:$0xff]
      %v274 = vld [vmem:[%s192 + $0x258] sm:$0xff]
      %v275 = vld [vmem:[%s192 + $0x260] sm:$0xff]
      %v276 = vld [vmem:[%s192 + $0x268] sm:$0xff]
      %v277 = vld [vmem:[%s192 + $0x270] sm:$0xff]
      %v278 = vld [vmem:[%s192 + $0x278] sm:$0xff]
      %v279 = vld [vmem:[%s192 + $0x280] sm:$0xff]
      %v280 = vld [vmem:[%s192 + $0x288] sm:$0xff]
      %v281 = vld [vmem:[%s192 + $0x290] sm:$0xff]
      %v282 = vld [vmem:[%s192 + $0x298] sm:$0xff]
      %v283 = vld [vmem:[%s192 + $0x2a0] sm:$0xff]
      %v284 = vld [vmem:[%s192 + $0x2a8] sm:$0xff]
      %v285 = vld [vmem:[%s192 + $0x2b0] sm:$0xff]
      %v286 = vld [vmem:[%s192 + $0x2b8] sm:$0xff]
      %v287 = vld [vmem:[%s192 + $0x2c0] sm:$0xff]
      %v288 = vld [vmem:[%s192 + $0x2c8] sm:$0xff]
      %v289 = vld [vmem:[%s192 + $0x2d0] sm:$0xff]
      %v290 = vld [vmem:[%s192 + $0x2d8] sm:$0xff]
      %v291 = vld [vmem:[%s192 + $0x2e0] sm:$0xff]
      %v292 = vld [vmem:[%s192 + $0x2e8] sm:$0xff]
      %v293 = vld [vmem:[%s192 + $0x2f0] sm:$0xff]
      %v294 = vld [vmem:[%s192 + $0x2f8] sm:$0xff]
      %v295 = vld [vmem:[%s192 + $0x300] sm:$0xff]
      %v296 = vld [vmem:[%s192 + $0x308] sm:$0xff]
      %v297 = vld [vmem:[%s192 + $0x310] sm:$0xff]
      %v298 = vld [vmem:[%s192 + $0x318] sm:$0xff]
      %v299 = vld [vmem:[%s1] sm:$0xf]
      %v300 = vld [vmem:[%s1 + $0x4] sm:$0xf]
      %v301 = vld [vmem:[%s1 + $0x8] sm:$0xf]
      %v302 = vld [vmem:[%s1 + $0xc] sm:$0xf]
      %v303 = vld [vmem:[%s1 + $0x10] sm:$0xf]
      %v304 = vld [vmem:[%s1 + $0x14] sm:$0xf]
      %v305 = vld [vmem:[%s1 + $0x18] sm:$0xf]
      %v306 = vld [vmem:[%s1 + $0x1c] sm:$0xf]
      %v307 = vld [vmem:[%s1 + $0x20] sm:$0xf]
      %v308 = vld [vmem:[%s1 + $0x24] sm:$0xf]
      %v309 = vld [vmem:[%s1 + $0x28] sm:$0xf]
      %v310 = vld [vmem:[%s1 + $0x2c] sm:$0xf]
      %v311 = vld [vmem:[%s1 + $0x30] sm:$0xf]
      %v312 = vld [vmem:[%s1 + $0x34] sm:$0xf]
      %v313 = vld [vmem:[%s1 + $0x38] sm:$0xf]
      %v314 = vld [vmem:[%s1 + $0x3c] sm:$0xf]
      %v315 = vld [vmem:[%s1 + $0x40] sm:$0xf]
      %v316 = vld [vmem:[%s1 + $0x44] sm:$0xf]
      %v417 = vunpack.c.l.b16 %v199
      %v418 = vunpack.c.h.b16 %v199
      %v419 = vunpack.c.l.b16 %v200
      %v420 = vunpack.c.h.b16 %v200
      %v421 = vunpack.c.l.b16 %v201
      %v422 = vunpack.c.h.b16 %v201
      %v423 = vunpack.c.l.b16 %v202
      %v424 = vunpack.c.h.b16 %v202
      %v425 = vunpack.c.l.b16 %v203
      %v426 = vunpack.c.h.b16 %v203
      %v427 = vunpack.c.l.b16 %v204
      %v428 = vunpack.c.h.b16 %v204
      %v429 = vunpack.c.l.b16 %v205
      %v430 = vunpack.c.h.b16 %v205
      %v431 = vunpack.c.l.b16 %v206
      %v432 = vunpack.c.h.b16 %v206
      %v433 = vunpack.c.l.b16 %v207
      %v434 = vunpack.c.h.b16 %v207
      %v435 = vunpack.c.l.b16 %v208
      %v436 = vunpack.c.h.b16 %v208
      %v437 = vunpack.c.l.b16 %v209
      %v438 = vunpack.c.h.b16 %v209
      %v439 = vunpack.c.l.b16 %v210
      %v440 = vunpack.c.h.b16 %v210
      %v441 = vunpack.c.l.b16 %v211
      %v442 = vunpack.c.h.b16 %v211
      %v443 = vunpack.c.l.b16 %v212
      %v444 = vunpack.c.h.b16 %v212
      %v445 = vunpack.c.l.b16 %v213
      %v446 = vunpack.c.h.b16 %v213
      %v447 = vunpack.c.l.b16 %v214
      %v448 = vunpack.c.h.b16 %v214
      %v449 = vunpack.c.l.b16 %v215
      %v450 = vunpack.c.h.b16 %v215
      %v451 = vunpack.c.l.b16 %v216
      %v452 = vunpack.c.h.b16 %v216
      %v453 = vunpack.c.l.b16 %v217
      %v454 = vunpack.c.h.b16 %v217
      %v455 = vunpack.c.l.b16 %v218
      %v456 = vunpack.c.h.b16 %v218
      %v457 = vunpack.c.l.b16 %v219
      %v458 = vunpack.c.h.b16 %v219
      %v459 = vunpack.c.l.b16 %v220
      %v460 = vunpack.c.h.b16 %v220
      %v461 = vunpack.c.l.b16 %v221
      %v462 = vunpack.c.h.b16 %v221
      %v463 = vunpack.c.l.b16 %v222
      %v464 = vunpack.c.h.b16 %v222
      %v465 = vunpack.c.l.b16 %v223
      %v466 = vunpack.c.h.b16 %v223
      %v467 = vunpack.c.l.b16 %v224
      %v468 = vunpack.c.h.b16 %v224
      %v469 = vunpack.c.l.b16 %v225
      %v470 = vunpack.c.h.b16 %v225
      %v471 = vunpack.c.l.b16 %v226
      %v472 = vunpack.c.h.b16 %v226
      %v473 = vunpack.c.l.b16 %v227
      %v474 = vunpack.c.h.b16 %v227
      %v475 = vunpack.c.l.b16 %v228
      %v476 = vunpack.c.h.b16 %v228
      %v477 = vunpack.c.l.b16 %v229
      %v478 = vunpack.c.h.b16 %v229
      %v479 = vunpack.c.l.b16 %v230
      %v480 = vunpack.c.h.b16 %v230
      %v481 = vunpack.c.l.b16 %v231
      %v482 = vunpack.c.h.b16 %v231
      %v483 = vunpack.c.l.b16 %v232
      %v484 = vunpack.c.h.b16 %v232
      %v485 = vunpack.c.l.b16 %v233
      %v486 = vunpack.c.h.b16 %v233
      %v487 = vunpack.c.l.b16 %v234
      %v488 = vunpack.c.h.b16 %v234
      %v489 = vunpack.c.l.b16 %v235
      %v490 = vunpack.c.h.b16 %v235
      %v491 = vunpack.c.l.b16 %v236
      %v492 = vunpack.c.h.b16 %v236
      %v493 = vunpack.c.l.b16 %v237
      %v494 = vunpack.c.h.b16 %v237
      %v495 = vunpack.c.l.b16 %v238
      %v496 = vunpack.c.h.b16 %v238
      %v497 = vunpack.c.l.b16 %v239
      %v498 = vunpack.c.h.b16 %v239
      %v499 = vunpack.c.l.b16 %v240
      %v500 = vunpack.c.h.b16 %v240
      %v501 = vunpack.c.l.b16 %v241
      %v502 = vunpack.c.h.b16 %v241
      %v503 = vunpack.c.l.b16 %v242
      %v504 = vunpack.c.h.b16 %v242
      %v505 = vunpack.c.l.b16 %v243
      %v506 = vunpack.c.h.b16 %v243
      %v507 = vunpack.c.l.b16 %v244
      %v508 = vunpack.c.h.b16 %v244
      %v509 = vunpack.c.l.b16 %v245
      %v510 = vunpack.c.h.b16 %v245
      %v511 = vunpack.c.l.b16 %v246
      %v512 = vunpack.c.h.b16 %v246
      %v513 = vunpack.c.l.b16 %v247
      %v514 = vunpack.c.h.b16 %v247
      %v515 = vunpack.c.l.b16 %v248
      %v516 = vunpack.c.h.b16 %v248
      %v517 = vunpack.c.l.b16 %v249
      %v518 = vunpack.c.h.b16 %v249
      %v519 = vunpack.c.l.b16 %v250
      %v520 = vunpack.c.h.b16 %v250
      %v521 = vunpack.c.l.b16 %v251
      %v522 = vunpack.c.h.b16 %v251
      %v523 = vunpack.c.l.b16 %v252
      %v524 = vunpack.c.h.b16 %v252
      %v525 = vunpack.c.l.b16 %v253
      %v526 = vunpack.c.h.b16 %v253
      %v527 = vunpack.c.l.b16 %v254
      %v528 = vunpack.c.h.b16 %v254
      %v529 = vunpack.c.l.b16 %v255
      %v530 = vunpack.c.h.b16 %v255
      %v531 = vunpack.c.l.b16 %v256
      %v532 = vunpack.c.h.b16 %v256
      %v533 = vunpack.c.l.b16 %v257
      %v534 = vunpack.c.h.b16 %v257
      %v535 = vunpack.c.l.b16 %v258
      %v536 = vunpack.c.h.b16 %v258
      %v537 = vunpack.c.l.b16 %v259
      %v538 = vunpack.c.h.b16 %v259
      %v539 = vunpack.c.l.b16 %v260
      %v540 = vunpack.c.h.b16 %v260
      %v541 = vunpack.c.l.b16 %v261
      %v542 = vunpack.c.h.b16 %v261
      %v543 = vunpack.c.l.b16 %v262
      %v544 = vunpack.c.h.b16 %v262
      %v545 = vunpack.c.l.b16 %v263
      %v546 = vunpack.c.h.b16 %v263
      %v547 = vunpack.c.l.b16 %v264
      %v548 = vunpack.c.h.b16 %v264
      %v549 = vunpack.c.l.b16 %v265
      %v550 = vunpack.c.h.b16 %v265
      %v551 = vunpack.c.l.b16 %v266
      %v552 = vunpack.c.h.b16 %v266
      %v553 = vunpack.c.l.b16 %v267
      %v554 = vunpack.c.h.b16 %v267
      %v555 = vunpack.c.l.b16 %v268
      %v556 = vunpack.c.h.b16 %v268
      %v557 = vunpack.c.l.b16 %v269
      %v558 = vunpack.c.h.b16 %v269
      %v559 = vunpack.c.l.b16 %v270
      %v560 = vunpack.c.h.b16 %v270
      %v561 = vunpack.c.l.b16 %v271
      %v562 = vunpack.c.h.b16 %v271
      %v563 = vunpack.c.l.b16 %v272
      %v564 = vunpack.c.h.b16 %v272
      %v565 = vunpack.c.l.b16 %v273
      %v566 = vunpack.c.h.b16 %v273
      %v567 = vunpack.c.l.b16 %v274
      %v568 = vunpack.c.h.b16 %v274
      %v569 = vunpack.c.l.b16 %v275
      %v570 = vunpack.c.h.b16 %v275
      %v571 = vunpack.c.l.b16 %v276
      %v572 = vunpack.c.h.b16 %v276
      %v573 = vunpack.c.l.b16 %v277
      %v574 = vunpack.c.h.b16 %v277
      %v575 = vunpack.c.l.b16 %v278
      %v576 = vunpack.c.h.b16 %v278
      %v577 = vunpack.c.l.b16 %v279
      %v578 = vunpack.c.h.b16 %v279
      %v579 = vunpack.c.l.b16 %v280
      %v580 = vunpack.c.h.b16 %v280
      %v581 = vunpack.c.l.b16 %v281
      %v582 = vunpack.c.h.b16 %v281
      %v583 = vunpack.c.l.b16 %v282
      %v584 = vunpack.c.h.b16 %v282
      %v585 = vunpack.c.l.b16 %v283
      %v586 = vunpack.c.h.b16 %v283
      %v587 = vunpack.c.l.b16 %v284
      %v588 = vunpack.c.h.b16 %v284
      %v589 = vunpack.c.l.b16 %v285
      %v590 = vunpack.c.h.b16 %v285
      %v591 = vunpack.c.l.b16 %v286
      %v592 = vunpack.c.h.b16 %v286
      %v593 = vunpack.c.l.b16 %v287
      %v594 = vunpack.c.h.b16 %v287
      %v595 = vunpack.c.l.b16 %v288
      %v596 = vunpack.c.h.b16 %v288
      %v597 = vunpack.c.l.b16 %v289
      %v598 = vunpack.c.h.b16 %v289
      %v599 = vunpack.c.l.b16 %v290
      %v600 = vunpack.c.h.b16 %v290
      %v601 = vunpack.c.l.b16 %v291
      %v602 = vunpack.c.h.b16 %v291
      %v603 = vunpack.c.l.b16 %v292
      %v604 = vunpack.c.h.b16 %v292
      %v605 = vunpack.c.l.b16 %v293
      %v606 = vunpack.c.h.b16 %v293
      %v607 = vunpack.c.l.b16 %v294
      %v608 = vunpack.c.h.b16 %v294
      %v609 = vunpack.c.l.b16 %v295
      %v610 = vunpack.c.h.b16 %v295
      %v611 = vunpack.c.l.b16 %v296
      %v612 = vunpack.c.h.b16 %v296
      %v613 = vunpack.c.l.b16 %v297
      %v614 = vunpack.c.h.b16 %v297
      %v615 = vunpack.c.l.b16 %v298
      %v616 = vunpack.c.h.b16 %v298
      %v617 = vpack.c.b16 %v419, %v417
      %v618 = vpack.c.b16 %v420, %v418
      %v619 = vpack.c.b16 %v423, %v421
      %v620 = vpack.c.b16 %v424, %v422
      %v621 = vpack.c.b16 %v427, %v425
      %v622 = vpack.c.b16 %v428, %v426
      %v623 = vpack.c.b16 %v431, %v429
      %v624 = vpack.c.b16 %v432, %v430
      %v625 = vpack.c.b16 %v435, %v433
      %v626 = vpack.c.b16 %v436, %v434
      %v627 = vpack.c.b16 %v439, %v437
      %v628 = vpack.c.b16 %v440, %v438
      %v629 = vpack.c.b16 %v443, %v441
      %v630 = vpack.c.b16 %v444, %v442
      %v631 = vpack.c.b16 %v447, %v445
      %v632 = vpack.c.b16 %v448, %v446
      %v633 = vpack.c.b16 %v451, %v449
      %v634 = vpack.c.b16 %v452, %v450
      %v635 = vpack.c.b16 %v455, %v453
      %v636 = vpack.c.b16 %v456, %v454
      %v637 = vpack.c.b16 %v459, %v457
      %v638 = vpack.c.b16 %v460, %v458
      %v639 = vpack.c.b16 %v463, %v461
      %v640 = vpack.c.b16 %v464, %v462
      %v641 = vpack.c.b16 %v467, %v465
      %v642 = vpack.c.b16 %v468, %v466
      %v643 = vpack.c.b16 %v471, %v469
      %v644 = vpack.c.b16 %v472, %v470
      %v645 = vpack.c.b16 %v475, %v473
      %v646 = vpack.c.b16 %v476, %v474
      %v647 = vpack.c.b16 %v479, %v477
      %v648 = vpack.c.b16 %v480, %v478
      %v649 = vpack.c.b16 %v483, %v481
      %v650 = vpack.c.b16 %v484, %v482
      %v651 = vpack.c.b16 %v487, %v485
      %v652 = vpack.c.b16 %v488, %v486
      %v653 = vpack.c.b16 %v491, %v489
      %v654 = vpack.c.b16 %v492, %v490
      %v655 = vpack.c.b16 %v495, %v493
      %v656 = vpack.c.b16 %v496, %v494
      %v657 = vpack.c.b16 %v499, %v497
      %v658 = vpack.c.b16 %v500, %v498
      %v659 = vpack.c.b16 %v503, %v501
      %v660 = vpack.c.b16 %v504, %v502
      %v661 = vpack.c.b16 %v507, %v505
      %v662 = vpack.c.b16 %v508, %v506
      %v663 = vpack.c.b16 %v511, %v509
      %v664 = vpack.c.b16 %v512, %v510
      %v665 = vpack.c.b16 %v515, %v513
      %v666 = vpack.c.b16 %v516, %v514
      %v667 = vpack.c.b16 %v519, %v517
      %v668 = vpack.c.b16 %v520, %v518
      %v669 = vpack.c.b16 %v523, %v521
      %v670 = vpack.c.b16 %v524, %v522
      %v671 = vpack.c.b16 %v527, %v525
      %v672 = vpack.c.b16 %v528, %v526
      %v673 = vpack.c.b16 %v531, %v529
      %v674 = vpack.c.b16 %v532, %v530
      %v675 = vpack.c.b16 %v535, %v533
      %v676 = vpack.c.b16 %v536, %v534
      %v677 = vpack.c.b16 %v539, %v537
      %v678 = vpack.c.b16 %v540, %v538
      %v679 = vpack.c.b16 %v543, %v541
      %v680 = vpack.c.b16 %v544, %v542
      %v681 = vpack.c.b16 %v547, %v545
      %v682 = vpack.c.b16 %v548, %v546
      %v683 = vpack.c.b16 %v551, %v549
      %v684 = vpack.c.b16 %v552, %v550
      %v685 = vpack.c.b16 %v555, %v553
      %v686 = vpack.c.b16 %v556, %v554
      %v687 = vpack.c.b16 %v559, %v557
      %v688 = vpack.c.b16 %v560, %v558
      %v689 = vpack.c.b16 %v563, %v561
      %v690 = vpack.c.b16 %v564, %v562
      %v691 = vpack.c.b16 %v567, %v565
      %v692 = vpack.c.b16 %v568, %v566
      %v693 = vpack.c.b16 %v571, %v569
      %v694 = vpack.c.b16 %v572, %v570
      %v695 = vpack.c.b16 %v575, %v573
      %v696 = vpack.c.b16 %v576, %v574
      %v697 = vpack.c.b16 %v579, %v577
      %v698 = vpack.c.b16 %v580, %v578
      %v699 = vpack.c.b16 %v583, %v581
      %v700 = vpack.c.b16 %v584, %v582
      %v701 = vpack.c.b16 %v587, %v585
      %v702 = vpack.c.b16 %v588, %v586
      %v703 = vpack.c.b16 %v591, %v589
      %v704 = vpack.c.b16 %v592, %v590
      %v705 = vpack.c.b16 %v595, %v593
      %v706 = vpack.c.b16 %v596, %v594
      %v707 = vpack.c.b16 %v599, %v597
      %v708 = vpack.c.b16 %v600, %v598
      %v709 = vpack.c.b16 %v603, %v601
      %v710 = vpack.c.b16 %v604, %v602
      %v711 = vpack.c.b16 %v607, %v605
      %v712 = vpack.c.b16 %v608, %v606
      %v713 = vpack.c.b16 %v611, %v609
      %v714 = vpack.c.b16 %v612, %v610
      %v715 = vpack.c.b16 %v615, %v613
      %v716 = vpack.c.b16 %v616, %v614
      %v785 = vunpack.c.l.b16 %v299
      %v786 = vunpack.c.l.b16 %v300
      %v787 = vunpack.c.l.b16 %v301
      %v788 = vunpack.c.l.b16 %v302
      %v789 = vunpack.c.l.b16 %v303
      %v790 = vunpack.c.l.b16 %v304
      %v791 = vunpack.c.l.b16 %v305
      %v792 = vunpack.c.l.b16 %v306
      %v793 = vunpack.c.l.b16 %v307
      %v794 = vunpack.c.l.b16 %v308
      %v795 = vunpack.c.l.b16 %v309
      %v796 = vunpack.c.l.b16 %v310
      %v797 = vunpack.c.l.b16 %v311
      %v798 = vunpack.c.l.b16 %v312
      %v799 = vunpack.c.l.b16 %v313
      %v800 = vunpack.c.l.b16 %v314
      %v801 = vunpack.c.l.b16 %v315
      %v802 = vunpack.c.l.b16 %v316
      %v803 = vpack.c.b16 %v786, %v785
      %v804 = vpack.c.b16 %v788, %v787
      %v805 = vpack.c.b16 %v790, %v789
      %v806 = vpack.c.b16 %v792, %v791
      %v807 = vpack.c.b16 %v794, %v793
      %v808 = vpack.c.b16 %v796, %v795
      %v809 = vpack.c.b16 %v798, %v797
      %v810 = vpack.c.b16 %v800, %v799
      %v811 = vpack.c.b16 %v802, %v801
      %vm821 = vcmask 130048
      %v823 = vsel %vm821, %v618, 0
      %v826 = vsel %vm821, %v620, 0
      %v829 = vsel %vm821, %v622, 0
      %v832 = vsel %vm821, %v624, 0
      %v835 = vsel %vm821, %v626, 0
      %v838 = vsel %vm821, %v628, 0
      %v841 = vsel %vm821, %v630, 0
      %v844 = vsel %vm821, %v632, 0
      %v847 = vsel %vm821, %v634, 0
      %v850 = vsel %vm821, %v636, 0
      %v853 = vsel %vm821, %v638, 0
      %v856 = vsel %vm821, %v640, 0
      %v859 = vsel %vm821, %v642, 0
      %v862 = vsel %vm821, %v644, 0
      %v865 = vsel %vm821, %v646, 0
      %v868 = vsel %vm821, %v648, 0
      %v871 = vsel %vm821, %v650, 0
      %v874 = vsel %vm821, %v652, 0
      %v877 = vsel %vm821, %v654, 0
      %v880 = vsel %vm821, %v656, 0
      %v883 = vsel %vm821, %v658, 0
      %v886 = vsel %vm821, %v660, 0
      %v889 = vsel %vm821, %v662, 0
      %v892 = vsel %vm821, %v664, 0
      %v895 = vsel %vm821, %v666, 0
      %v898 = vsel %vm821, %v668, 0
      %v901 = vsel %vm821, %v670, 0
      %v904 = vsel %vm821, %v672, 0
      %v907 = vsel %vm821, %v674, 0
      %v910 = vsel %vm821, %v676, 0
      %v913 = vsel %vm821, %v678, 0
      %v916 = vsel %vm821, %v680, 0
      %v919 = vsel %vm821, %v682, 0
      %v922 = vsel %vm821, %v684, 0
      %v925 = vsel %vm821, %v686, 0
      %v928 = vsel %vm821, %v688, 0
      %v931 = vsel %vm821, %v690, 0
      %v934 = vsel %vm821, %v692, 0
      %v937 = vsel %vm821, %v694, 0
      %v940 = vsel %vm821, %v696, 0
      %v943 = vsel %vm821, %v698, 0
      %v946 = vsel %vm821, %v700, 0
      %v949 = vsel %vm821, %v702, 0
      %v952 = vsel %vm821, %v704, 0
      %v955 = vsel %vm821, %v706, 0
      %v958 = vsel %vm821, %v708, 0
      %v961 = vsel %vm821, %v710, 0
      %v964 = vsel %vm821, %v712, 0
      %v967 = vsel %vm821, %v714, 0
      %v970 = vsel %vm821, %v716, 0
      %972 = vmatprep.subr.bf16.mxu0 0
      %973 = vmatpush1.bf16.msra.mxu0 %v803
      %974 = vmatprep.subr.bf16.mxu0 0
      %975 = vmatpush1.bf16.msra.mxu0 %v804
      %976 = vmatprep.subr.bf16.mxu0 0
      %977 = vmatpush1.bf16.msra.mxu0 %v805
      %978 = vmatprep.subr.bf16.mxu0 0
      %979 = vmatpush1.bf16.msra.mxu0 %v806
      %980 = vmatprep.subr.bf16.mxu0 0
      %981 = vmatpush1.bf16.msra.mxu0 %v807
      %982 = vmatprep.subr.bf16.mxu0 0
      %983 = vmatpush1.bf16.msra.mxu0 %v808
      %984 = vmatprep.subr.bf16.mxu0 0
      %985 = vmatpush1.bf16.msra.mxu0 %v809
      %986 = vmatprep.subr.bf16.mxu0 0
      %987 = vmatpush1.bf16.msra.mxu0 %v810
      %988 = vmatprep.subr.bf16.mxu0 0
      %989 = vmatpush1.bf16.msra.mxu0 %v811
      %990 = vmatprep.subr.bf16.mxu0 0
      %991 = vmatpush1.bf16.msra.mxu0 0
      %992 = vmatprep.subr.bf16.mxu0 0
      %993 = vmatpush1.bf16.msra.mxu0 0
      %994 = vmatprep.subr.bf16.mxu0 0
      %995 = vmatpush1.bf16.msra.mxu0 0
      %996 = vmatprep.subr.bf16.mxu0 0
      %997 = vmatpush1.bf16.msra.mxu0 0
      %998 = vmatprep.subr.bf16.mxu0 0
      %999 = vmatpush1.bf16.msra.mxu0 0
      %1000 = vmatprep.subr.bf16.mxu0 0
      %1001 = vmatpush1.bf16.msra.mxu0 0
      %1002 = vmatprep.subr.bf16.mxu0 0
      %1003 = vmatpush1.bf16.msra.mxu0 0
      %1004 = vmatprep.mubr.bf16.mxu0 %v823
      %1005 = vmatmul.mubr.bf16.gmra.mrb[0].mxu0 %v617
      %v1006 = vpop.f32.mrb[0].mxu0
      %v1007 = vadd.f32 0.0, %v1006
      %v1008 = vpop.f32.mrb[0].mxu0
      %v1009 = vpop.f32.mrb[0].mxu0
      %v1010 = vadd.f32 0.0, %v1009
      %v1011 = vpop.f32.mrb[0].mxu0
      %1012 = vmatprep.mubr.bf16.mxu0 %v826
      %1013 = vmatmul.mubr.bf16.gmra.mrb[0].mxu0 %v619
      %v1014 = vpop.f32.mrb[0].mxu0
      %v1015 = vadd.f32 0.0, %v1014
      %v1016 = vpop.f32.mrb[0].mxu0
      %v1017 = vpop.f32.mrb[0].mxu0
      %v1018 = vadd.f32 0.0, %v1017
      %v1019 = vpop.f32.mrb[0].mxu0
      %1020 = vmatprep.mubr.bf16.mxu0 %v829
      %1021 = vmatmul.mubr.bf16.gmra.mrb[0].mxu0 %v621
      %v1022 = vpop.f32.mrb[0].mxu0
      %v1023 = vadd.f32 0.0, %v1022
      %v1024 = vpop.f32.mrb[0].mxu0
      %v1025 = vpop.f32.mrb[0].mxu0
      %v1026 = vadd.f32 0.0, %v1025
      %v1027 = vpop.f32.mrb[0].mxu0
      %1028 = vmatprep.mubr.bf16.mxu0 %v832
      %1029 = vmatmul.mubr.bf16.gmra.mrb[0].mxu0 %v623
      %v1030 = vpop.f32.mrb[0].mxu0
      %v1031 = vadd.f32 0.0, %v1030
      %v1032 = vpop.f32.mrb[0].mxu0
      %v1033 = vpop.f32.mrb[0].mxu0
      %v1034 = vadd.f32 0.0, %v1033
      %v1035 = vpop.f32.mrb[0].mxu0
      %1036 = vmatprep.mubr.bf16.mxu0 %v835
      %1037 = vmatmul.mubr.bf16.gmra.mrb[0].mxu0 %v625
      %v1038 = vpop.f32.mrb[0].mxu0
      %v1039 = vadd.f32 0.0, %v1038
      %v1040 = vpop.f32.mrb[0].mxu0
      %v1041 = vpop.f32.mrb[0].mxu0
      %v1042 = vadd.f32 0.0, %v1041
      %v1043 = vpop.f32.mrb[0].mxu0
      %1044 = vmatprep.mubr.bf16.mxu0 %v838
      %1045 = vmatmul.mubr.bf16.gmra.mrb[0].mxu0 %v627
      %v1046 = vpop.f32.mrb[0].mxu0
      %v1047 = vadd.f32 0.0, %v1046
      %v1048 = vpop.f32.mrb[0].mxu0
      %v1049 = vpop.f32.mrb[0].mxu0
      %v1050 = vadd.f32 0.0, %v1049
      %v1051 = vpop.f32.mrb[0].mxu0
      %1052 = vmatprep.mubr.bf16.mxu0 %v841
      %1053 = vmatmul.mubr.bf16.gmra.mrb[0].mxu0 %v629
      %v1054 = vpop.f32.mrb[0].mxu0
      %v1055 = vadd.f32 0.0, %v1054
      %v1056 = vpop.f32.mrb[0].mxu0
      %v1057 = vpop.f32.mrb[0].mxu0
      %v1058 = vadd.f32 0.0, %v1057
      %v1059 = vpop.f32.mrb[0].mxu0
      %1060 = vmatprep.mubr.bf16.mxu0 %v844
      %1061 = vmatmul.mubr.bf16.gmra.mrb[0].mxu0 %v631
      %v1062 = vpop.f32.mrb[0].mxu0
      %v1063 = vadd.f32 0.0, %v1062
      %v1064 = vpop.f32.mrb[0].mxu0
      %v1065 = vpop.f32.mrb[0].mxu0
      %v1066 = vadd.f32 0.0, %v1065
      %v1067 = vpop.f32.mrb[0].mxu0
      %1068 = vmatprep.mubr.bf16.mxu0 %v847
      %1069 = vmatmul.mubr.bf16.gmra.mrb[0].mxu0 %v633
      %v1070 = vpop.f32.mrb[0].mxu0
      %v1071 = vadd.f32 0.0, %v1070
      %v1072 = vpop.f32.mrb[0].mxu0
      %v1073 = vpop.f32.mrb[0].mxu0
      %v1074 = vadd.f32 0.0, %v1073
      %v1075 = vpop.f32.mrb[0].mxu0
      %1076 = vmatprep.mubr.bf16.mxu0 %v850
      %1077 = vmatmul.mubr.bf16.gmra.mrb[0].mxu0 %v635
      %v1078 = vpop.f32.mrb[0].mxu0
      %v1079 = vadd.f32 0.0, %v1078
      %v1080 = vpop.f32.mrb[0].mxu0
      %v1081 = vpop.f32.mrb[0].mxu0
      %v1082 = vadd.f32 0.0, %v1081
      %v1083 = vpop.f32.mrb[0].mxu0
      %1084 = vmatprep.mubr.bf16.mxu0 %v853
      %1085 = vmatmul.mubr.bf16.gmra.mrb[0].mxu0 %v637
      %v1086 = vpop.f32.mrb[0].mxu0
      %v1087 = vadd.f32 0.0, %v1086
      %v1088 = vpop.f32.mrb[0].mxu0
      %v1089 = vpop.f32.mrb[0].mxu0
      %v1090 = vadd.f32 0.0, %v1089
      %v1091 = vpop.f32.mrb[0].mxu0
      %1092 = vmatprep.mubr.bf16.mxu0 %v856
      %1093 = vmatmul.mubr.bf16.gmra.mrb[0].mxu0 %v639
      %v1094 = vpop.f32.mrb[0].mxu0
      %v1095 = vadd.f32 0.0, %v1094
      %v1096 = vpop.f32.mrb[0].mxu0
      %v1097 = vpop.f32.mrb[0].mxu0
      %v1098 = vadd.f32 0.0, %v1097
      %v1099 = vpop.f32.mrb[0].mxu0
      %1100 = vmatprep.mubr.bf16.mxu0 %v859
      %1101 = vmatmul.mubr.bf16.gmra.mrb[0].mxu0 %v641
      %v1102 = vpop.f32.mrb[0].mxu0
      %v1103 = vadd.f32 0.0, %v1102
      %v1104 = vpop.f32.mrb[0].mxu0
      %v1105 = vpop.f32.mrb[0].mxu0
      %v1106 = vadd.f32 0.0, %v1105
      %v1107 = vpop.f32.mrb[0].mxu0
      %1108 = vmatprep.mubr.bf16.mxu0 %v862
      %1109 = vmatmul.mubr.bf16.gmra.mrb[0].mxu0 %v643
      %v1110 = vpop.f32.mrb[0].mxu0
      %v1111 = vadd.f32 0.0, %v1110
      %v1112 = vpop.f32.mrb[0].mxu0
      %v1113 = vpop.f32.mrb[0].mxu0
      %v1114 = vadd.f32 0.0, %v1113
      %v1115 = vpop.f32.mrb[0].mxu0
      %1116 = vmatprep.mubr.bf16.mxu0 %v865
      %1117 = vmatmul.mubr.bf16.gmra.mrb[0].mxu0 %v645
      %v1118 = vpop.f32.mrb[0].mxu0
      %v1119 = vadd.f32 0.0, %v1118
      %v1120 = vpop.f32.mrb[0].mxu0
      %v1121 = vpop.f32.mrb[0].mxu0
      %v1122 = vadd.f32 0.0, %v1121
      %v1123 = vpop.f32.mrb[0].mxu0
      %1124 = vmatprep.mubr.bf16.mxu0 %v868
      %1125 = vmatmul.mubr.bf16.gmra.mrb[0].mxu0 %v647
      %v1126 = vpop.f32.mrb[0].mxu0
      %v1127 = vadd.f32 0.0, %v1126
      %v1128 = vpop.f32.mrb[0].mxu0
      %v1129 = vpop.f32.mrb[0].mxu0
      %v1130 = vadd.f32 0.0, %v1129
      %v1131 = vpop.f32.mrb[0].mxu0
      %1132 = vmatprep.mubr.bf16.mxu0 %v871
      %1133 = vmatmul.mubr.bf16.gmra.mrb[0].mxu0 %v649
      %v1134 = vpop.f32.mrb[0].mxu0
      %v1135 = vadd.f32 0.0, %v1134
      %v1136 = vpop.f32.mrb[0].mxu0
      %v1137 = vpop.f32.mrb[0].mxu0
      %v1138 = vadd.f32 0.0, %v1137
      %v1139 = vpop.f32.mrb[0].mxu0
      %1140 = vmatprep.mubr.bf16.mxu0 %v874
      %1141 = vmatmul.mubr.bf16.gmra.mrb[0].mxu0 %v651
      %v1142 = vpop.f32.mrb[0].mxu0
      %v1143 = vadd.f32 0.0, %v1142
      %v1144 = vpop.f32.mrb[0].mxu0
      %v1145 = vpop.f32.mrb[0].mxu0
      %v1146 = vadd.f32 0.0, %v1145
      %v1147 = vpop.f32.mrb[0].mxu0
      %1148 = vmatprep.mubr.bf16.mxu0 %v877
      %1149 = vmatmul.mubr.bf16.gmra.mrb[0].mxu0 %v653
      %v1150 = vpop.f32.mrb[0].mxu0
      %v1151 = vadd.f32 0.0, %v1150
      %v1152 = vpop.f32.mrb[0].mxu0
      %v1153 = vpop.f32.mrb[0].mxu0
      %v1154 = vadd.f32 0.0, %v1153
      %v1155 = vpop.f32.mrb[0].mxu0
      %1156 = vmatprep.mubr.bf16.mxu0 %v880
      %1157 = vmatmul.mubr.bf16.gmra.mrb[0].mxu0 %v655
      %v1158 = vpop.f32.mrb[0].mxu0
      %v1159 = vadd.f32 0.0, %v1158
      %v1160 = vpop.f32.mrb[0].mxu0
      %v1161 = vpop.f32.mrb[0].mxu0
      %v1162 = vadd.f32 0.0, %v1161
      %v1163 = vpop.f32.mrb[0].mxu0
      %1164 = vmatprep.mubr.bf16.mxu0 %v883
      %1165 = vmatmul.mubr.bf16.gmra.mrb[0].mxu0 %v657
      %v1166 = vpop.f32.mrb[0].mxu0
      %v1167 = vadd.f32 0.0, %v1166
      %v1168 = vpop.f32.mrb[0].mxu0
      %v1169 = vpop.f32.mrb[0].mxu0
      %v1170 = vadd.f32 0.0, %v1169
      %v1171 = vpop.f32.mrb[0].mxu0
      %1172 = vmatprep.mubr.bf16.mxu0 %v886
      %1173 = vmatmul.mubr.bf16.gmra.mrb[0].mxu0 %v659
      %v1174 = vpop.f32.mrb[0].mxu0
      %v1175 = vadd.f32 0.0, %v1174
      %v1176 = vpop.f32.mrb[0].mxu0
      %v1177 = vpop.f32.mrb[0].mxu0
      %v1178 = vadd.f32 0.0, %v1177
      %v1179 = vpop.f32.mrb[0].mxu0
      %1180 = vmatprep.mubr.bf16.mxu0 %v889
      %1181 = vmatmul.mubr.bf16.gmra.mrb[0].mxu0 %v661
      %v1182 = vpop.f32.mrb[0].mxu0
      %v1183 = vadd.f32 0.0, %v1182
      %v1184 = vpop.f32.mrb[0].mxu0
      %v1185 = vpop.f32.mrb[0].mxu0
      %v1186 = vadd.f32 0.0, %v1185
      %v1187 = vpop.f32.mrb[0].mxu0
      %1188 = vmatprep.mubr.bf16.mxu0 %v892
      %1189 = vmatmul.mubr.bf16.gmra.mrb[0].mxu0 %v663
      %v1190 = vpop.f32.mrb[0].mxu0
      %v1191 = vadd.f32 0.0, %v1190
      %v1192 = vpop.f32.mrb[0].mxu0
      %v1193 = vpop.f32.mrb[0].mxu0
      %v1194 = vadd.f32 0.0, %v1193
      %v1195 = vpop.f32.mrb[0].mxu0
      %1196 = vmatprep.mubr.bf16.mxu0 %v895
      %1197 = vmatmul.mubr.bf16.gmra.mrb[0].mxu0 %v665
      %v1198 = vpop.f32.mrb[0].mxu0
      %v1199 = vadd.f32 0.0, %v1198
      %v1200 = vpop.f32.mrb[0].mxu0
      %v1201 = vpop.f32.mrb[0].mxu0
      %v1202 = vadd.f32 0.0, %v1201
      %v1203 = vpop.f32.mrb[0].mxu0
      %1204 = vmatprep.mubr.bf16.mxu0 %v898
      %1205 = vmatmul.mubr.bf16.gmra.mrb[0].mxu0 %v667
      %v1206 = vpop.f32.mrb[0].mxu0
      %v1207 = vadd.f32 0.0, %v1206
      %v1208 = vpop.f32.mrb[0].mxu0
      %v1209 = vpop.f32.mrb[0].mxu0
      %v1210 = vadd.f32 0.0, %v1209
      %v1211 = vpop.f32.mrb[0].mxu0
      %1212 = vmatprep.mubr.bf16.mxu0 %v901
      %1213 = vmatmul.mubr.bf16.gmra.mrb[0].mxu0 %v669
      %v1214 = vpop.f32.mrb[0].mxu0
      %v1215 = vadd.f32 0.0, %v1214
      %v1216 = vpop.f32.mrb[0].mxu0
      %v1217 = vpop.f32.mrb[0].mxu0
      %v1218 = vadd.f32 0.0, %v1217
      %v1219 = vpop.f32.mrb[0].mxu0
      %1220 = vmatprep.mubr.bf16.mxu0 %v904
      %1221 = vmatmul.mubr.bf16.gmra.mrb[0].mxu0 %v671
      %v1222 = vpop.f32.mrb[0].mxu0
      %v1223 = vadd.f32 0.0, %v1222
      %v1224 = vpop.f32.mrb[0].mxu0
      %v1225 = vpop.f32.mrb[0].mxu0
      %v1226 = vadd.f32 0.0, %v1225
      %v1227 = vpop.f32.mrb[0].mxu0
      %1228 = vmatprep.mubr.bf16.mxu0 %v907
      %1229 = vmatmul.mubr.bf16.gmra.mrb[0].mxu0 %v673
      %v1230 = vpop.f32.mrb[0].mxu0
      %v1231 = vadd.f32 0.0, %v1230
      %v1232 = vpop.f32.mrb[0].mxu0
      %v1233 = vpop.f32.mrb[0].mxu0
      %v1234 = vadd.f32 0.0, %v1233
      %v1235 = vpop.f32.mrb[0].mxu0
      %1236 = vmatprep.mubr.bf16.mxu0 %v910
      %1237 = vmatmul.mubr.bf16.gmra.mrb[0].mxu0 %v675
      %v1238 = vpop.f32.mrb[0].mxu0
      %v1239 = vadd.f32 0.0, %v1238
      %v1240 = vpop.f32.mrb[0].mxu0
      %v1241 = vpop.f32.mrb[0].mxu0
      %v1242 = vadd.f32 0.0, %v1241
      %v1243 = vpop.f32.mrb[0].mxu0
      %1244 = vmatprep.mubr.bf16.mxu0 %v913
      %1245 = vmatmul.mubr.bf16.gmra.mrb[0].mxu0 %v677
      %v1246 = vpop.f32.mrb[0].mxu0
      %v1247 = vadd.f32 0.0, %v1246
      %v1248 = vpop.f32.mrb[0].mxu0
      %v1249 = vpop.f32.mrb[0].mxu0
      %v1250 = vadd.f32 0.0, %v1249
      %v1251 = vpop.f32.mrb[0].mxu0
      %1252 = vmatprep.mubr.bf16.mxu0 %v916
      %1253 = vmatmul.mubr.bf16.gmra.mrb[0].mxu0 %v679
      %v1254 = vpop.f32.mrb[0].mxu0
      %v1255 = vadd.f32 0.0, %v1254
      %v1256 = vpop.f32.mrb[0].mxu0
      %v1257 = vpop.f32.mrb[0].mxu0
      %v1258 = vadd.f32 0.0, %v1257
      %v1259 = vpop.f32.mrb[0].mxu0
      %1260 = vmatprep.mubr.bf16.mxu0 %v919
      %1261 = vmatmul.mubr.bf16.gmra.mrb[0].mxu0 %v681
      %v1262 = vpop.f32.mrb[0].mxu0
      %v1263 = vadd.f32 0.0, %v1262
      %v1264 = vpop.f32.mrb[0].mxu0
      %v1265 = vpop.f32.mrb[0].mxu0
      %v1266 = vadd.f32 0.0, %v1265
      %v1267 = vpop.f32.mrb[0].mxu0
      %1268 = vmatprep.mubr.bf16.mxu0 %v922
      %1269 = vmatmul.mubr.bf16.gmra.mrb[0].mxu0 %v683
      %v1270 = vpop.f32.mrb[0].mxu0
      %v1271 = vadd.f32 0.0, %v1270
      %v1272 = vpop.f32.mrb[0].mxu0
      %v1273 = vpop.f32.mrb[0].mxu0
      %v1274 = vadd.f32 0.0, %v1273
      %v1275 = vpop.f32.mrb[0].mxu0
      %1276 = vmatprep.mubr.bf16.mxu0 %v925
      %1277 = vmatmul.mubr.bf16.gmra.mrb[0].mxu0 %v685
      %v1278 = vpop.f32.mrb[0].mxu0
      %v1279 = vadd.f32 0.0, %v1278
      %v1280 = vpop.f32.mrb[0].mxu0
      %v1281 = vpop.f32.mrb[0].mxu0
      %v1282 = vadd.f32 0.0, %v1281
      %v1283 = vpop.f32.mrb[0].mxu0
      %1284 = vmatprep.mubr.bf16.mxu0 %v928
      %1285 = vmatmul.mubr.bf16.gmra.mrb[0].mxu0 %v687
      %v1286 = vpop.f32.mrb[0].mxu0
      %v1287 = vadd.f32 0.0, %v1286
      %v1288 = vpop.f32.mrb[0].mxu0
      %v1289 = vpop.f32.mrb[0].mxu0
      %v1290 = vadd.f32 0.0, %v1289
      %v1291 = vpop.f32.mrb[0].mxu0
      %1292 = vmatprep.mubr.bf16.mxu0 %v931
      %1293 = vmatmul.mubr.bf16.gmra.mrb[0].mxu0 %v689
      %v1294 = vpop.f32.mrb[0].mxu0
      %v1295 = vadd.f32 0.0, %v1294
      %v1296 = vpop.f32.mrb[0].mxu0
      %v1297 = vpop.f32.mrb[0].mxu0
      %v1298 = vadd.f32 0.0, %v1297
      %v1299 = vpop.f32.mrb[0].mxu0
      %1300 = vmatprep.mubr.bf16.mxu0 %v934
      %1301 = vmatmul.mubr.bf16.gmra.mrb[0].mxu0 %v691
      %v1302 = vpop.f32.mrb[0].mxu0
      %v1303 = vadd.f32 0.0, %v1302
      %v1304 = vpop.f32.mrb[0].mxu0
      %v1305 = vpop.f32.mrb[0].mxu0
      %v1306 = vadd.f32 0.0, %v1305
      %v1307 = vpop.f32.mrb[0].mxu0
      %1308 = vmatprep.mubr.bf16.mxu0 %v937
      %1309 = vmatmul.mubr.bf16.gmra.mrb[0].mxu0 %v693
      %v1310 = vpop.f32.mrb[0].mxu0
      %v1311 = vadd.f32 0.0, %v1310
      %v1312 = vpop.f32.mrb[0].mxu0
      %v1313 = vpop.f32.mrb[0].mxu0
      %v1314 = vadd.f32 0.0, %v1313
      %v1315 = vpop.f32.mrb[0].mxu0
      %1316 = vmatprep.mubr.bf16.mxu0 %v940
      %1317 = vmatmul.mubr.bf16.gmra.mrb[0].mxu0 %v695
      %v1318 = vpop.f32.mrb[0].mxu0
      %v1319 = vadd.f32 0.0, %v1318
      %v1320 = vpop.f32.mrb[0].mxu0
      %v1321 = vpop.f32.mrb[0].mxu0
      %v1322 = vadd.f32 0.0, %v1321
      %v1323 = vpop.f32.mrb[0].mxu0
      %1324 = vmatprep.mubr.bf16.mxu0 %v943
      %1325 = vmatmul.mubr.bf16.gmra.mrb[0].mxu0 %v697
      %v1326 = vpop.f32.mrb[0].mxu0
      %v1327 = vadd.f32 0.0, %v1326
      %v1328 = vpop.f32.mrb[0].mxu0
      %v1329 = vpop.f32.mrb[0].mxu0
      %v1330 = vadd.f32 0.0, %v1329
      %v1331 = vpop.f32.mrb[0].mxu0
      %1332 = vmatprep.mubr.bf16.mxu0 %v946
      %1333 = vmatmul.mubr.bf16.gmra.mrb[0].mxu0 %v699
      %v1334 = vpop.f32.mrb[0].mxu0
      %v1335 = vadd.f32 0.0, %v1334
      %v1336 = vpop.f32.mrb[0].mxu0
      %v1337 = vpop.f32.mrb[0].mxu0
      %v1338 = vadd.f32 0.0, %v1337
      %v1339 = vpop.f32.mrb[0].mxu0
      %1340 = vmatprep.mubr.bf16.mxu0 %v949
      %1341 = vmatmul.mubr.bf16.gmra.mrb[0].mxu0 %v701
      %v1342 = vpop.f32.mrb[0].mxu0
      %v1343 = vadd.f32 0.0, %v1342
      %v1344 = vpop.f32.mrb[0].mxu0
      %v1345 = vpop.f32.mrb[0].mxu0
      %v1346 = vadd.f32 0.0, %v1345
      %v1347 = vpop.f32.mrb[0].mxu0
      %1348 = vmatprep.mubr.bf16.mxu0 %v952
      %1349 = vmatmul.mubr.bf16.gmra.mrb[0].mxu0 %v703
      %v1350 = vpop.f32.mrb[0].mxu0
      %v1351 = vadd.f32 0.0, %v1350
      %v1352 = vpop.f32.mrb[0].mxu0
      %v1353 = vpop.f32.mrb[0].mxu0
      %v1354 = vadd.f32 0.0, %v1353
      %v1355 = vpop.f32.mrb[0].mxu0
      %1356 = vmatprep.mubr.bf16.mxu0 %v955
      %1357 = vmatmul.mubr.bf16.gmra.mrb[0].mxu0 %v705
      %v1358 = vpop.f32.mrb[0].mxu0
      %v1359 = vadd.f32 0.0, %v1358
      %v1360 = vpop.f32.mrb[0].mxu0
      %v1361 = vpop.f32.mrb[0].mxu0
      %v1362 = vadd.f32 0.0, %v1361
      %v1363 = vpop.f32.mrb[0].mxu0
      %1364 = vmatprep.mubr.bf16.mxu0 %v958
      %1365 = vmatmul.mubr.bf16.gmra.mrb[0].mxu0 %v707
      %v1366 = vpop.f32.mrb[0].mxu0
      %v1367 = vadd.f32 0.0, %v1366
      %v1368 = vpop.f32.mrb[0].mxu0
      %v1369 = vpop.f32.mrb[0].mxu0
      %v1370 = vadd.f32 0.0, %v1369
      %v1371 = vpop.f32.mrb[0].mxu0
      %1372 = vmatprep.mubr.bf16.mxu0 %v961
      %1373 = vmatmul.mubr.bf16.gmra.mrb[0].mxu0 %v709
      %v1374 = vpop.f32.mrb[0].mxu0
      %v1375 = vadd.f32 0.0, %v1374
      %v1376 = vpop.f32.mrb[0].mxu0
      %v1377 = vpop.f32.mrb[0].mxu0
      %v1378 = vadd.f32 0.0, %v1377
      %v1379 = vpop.f32.mrb[0].mxu0
      %1380 = vmatprep.mubr.bf16.mxu0 %v964
      %1381 = vmatmul.mubr.bf16.gmra.mrb[0].mxu0 %v711
      %v1382 = vpop.f32.mrb[0].mxu0
      %v1383 = vadd.f32 0.0, %v1382
      %v1384 = vpop.f32.mrb[0].mxu0
      %v1385 = vpop.f32.mrb[0].mxu0
      %v1386 = vadd.f32 0.0, %v1385
      %v1387 = vpop.f32.mrb[0].mxu0
      %1388 = vmatprep.mubr.bf16.mxu0 %v967
      %1389 = vmatmul.mubr.bf16.gmra.mrb[0].mxu0 %v713
      %v1390 = vpop.f32.mrb[0].mxu0
      %v1391 = vadd.f32 0.0, %v1390
      %v1392 = vpop.f32.mrb[0].mxu0
      %v1393 = vpop.f32.mrb[0].mxu0
      %v1394 = vadd.f32 0.0, %v1393
      %v1395 = vpop.f32.mrb[0].mxu0
      %1396 = vmatprep.mubr.bf16.mxu0 %v970
      %1397 = vmatmul.mubr.bf16.gmra.mrb[0].mxu0 %v715
      %v1398 = vpop.f32.mrb[0].mxu0
      %v1399 = vadd.f32 0.0, %v1398
      %v1400 = vpop.f32.mrb[0].mxu0
      %v1401 = vpop.f32.mrb[0].mxu0
      %v1402 = vadd.f32 0.0, %v1401
      %v1403 = vpop.f32.mrb[0].mxu0
      %1404 = vdwg.mxu0
      %v1405 = vld [vmem:[%s2] sm:$0x1]
      %v1407 = vlaneseq
      %v1408 = vshrl.u32 %v1407, 7
      %v1409 = vsub.s32 0, %v1408
      %v1410 = vrot.slane %v1405, %v1409
      %v1412 = vmul.f32 %v1007, %v1410
      %v1413 = vmul.f32 %v1010, %v1410
      %v1414 = vmul.f32 %v1015, %v1410
      %v1415 = vmul.f32 %v1018, %v1410
      %v1416 = vmul.f32 %v1023, %v1410
      %v1417 = vmul.f32 %v1026, %v1410
      %v1418 = vmul.f32 %v1031, %v1410
      %v1419 = vmul.f32 %v1034, %v1410
      %v1420 = vmul.f32 %v1039, %v1410
      %v1421 = vmul.f32 %v1042, %v1410
      %v1422 = vmul.f32 %v1047, %v1410
      %v1423 = vmul.f32 %v1050, %v1410
      %v1424 = vmul.f32 %v1055, %v1410
      %v1425 = vmul.f32 %v1058, %v1410
      %v1426 = vmul.f32 %v1063, %v1410
      %v1427 = vmul.f32 %v1066, %v1410
      %v1428 = vmul.f32 %v1071, %v1410
      %v1429 = vmul.f32 %v1074, %v1410
      %v1430 = vmul.f32 %v1079, %v1410
      %v1431 = vmul.f32 %v1082, %v1410
      %v1432 = vmul.f32 %v1087, %v1410
      %v1433 = vmul.f32 %v1090, %v1410
      %v1434 = vmul.f32 %v1095, %v1410
      %v1435 = vmul.f32 %v1098, %v1410
      %v1436 = vmul.f32 %v1103, %v1410
      %v1437 = vmul.f32 %v1106, %v1410
      %v1438 = vmul.f32 %v1111, %v1410
      %v1439 = vmul.f32 %v1114, %v1410
      %v1440 = vmul.f32 %v1119, %v1410
      %v1441 = vmul.f32 %v1122, %v1410
      %v1442 = vmul.f32 %v1127, %v1410
      %v1443 = vmul.f32 %v1130, %v1410
      %v1444 = vmul.f32 %v1135, %v1410
      %v1445 = vmul.f32 %v1138, %v1410
      %v1446 = vmul.f32 %v1143, %v1410
      %v1447 = vmul.f32 %v1146, %v1410
      %v1448 = vmul.f32 %v1151, %v1410
      %v1449 = vmul.f32 %v1154, %v1410
      %v1450 = vmul.f32 %v1159, %v1410
      %v1451 = vmul.f32 %v1162, %v1410
      %v1452 = vmul.f32 %v1167, %v1410
      %v1453 = vmul.f32 %v1170, %v1410
      %v1454 = vmul.f32 %v1175, %v1410
      %v1455 = vmul.f32 %v1178, %v1410
      %v1456 = vmul.f32 %v1183, %v1410
      %v1457 = vmul.f32 %v1186, %v1410
      %v1458 = vmul.f32 %v1191, %v1410
      %v1459 = vmul.f32 %v1194, %v1410
      %v1460 = vmul.f32 %v1199, %v1410
      %v1461 = vmul.f32 %v1202, %v1410
      %v1462 = vmul.f32 %v1207, %v1410
      %v1463 = vmul.f32 %v1210, %v1410
      %v1464 = vmul.f32 %v1215, %v1410
      %v1465 = vmul.f32 %v1218, %v1410
      %v1466 = vmul.f32 %v1223, %v1410
      %v1467 = vmul.f32 %v1226, %v1410
      %v1468 = vmul.f32 %v1231, %v1410
      %v1469 = vmul.f32 %v1234, %v1410
      %v1470 = vmul.f32 %v1239, %v1410
      %v1471 = vmul.f32 %v1242, %v1410
      %v1472 = vmul.f32 %v1247, %v1410
      %v1473 = vmul.f32 %v1250, %v1410
      %v1474 = vmul.f32 %v1255, %v1410
      %v1475 = vmul.f32 %v1258, %v1410
      %v1476 = vmul.f32 %v1263, %v1410
      %v1477 = vmul.f32 %v1266, %v1410
      %v1478 = vmul.f32 %v1271, %v1410
      %v1479 = vmul.f32 %v1274, %v1410
      %v1480 = vmul.f32 %v1279, %v1410
      %v1481 = vmul.f32 %v1282, %v1410
      %v1482 = vmul.f32 %v1287, %v1410
      %v1483 = vmul.f32 %v1290, %v1410
      %v1484 = vmul.f32 %v1295, %v1410
      %v1485 = vmul.f32 %v1298, %v1410
      %v1486 = vmul.f32 %v1303, %v1410
      %v1487 = vmul.f32 %v1306, %v1410
      %v1488 = vmul.f32 %v1311, %v1410
      %v1489 = vmul.f32 %v1314, %v1410
      %v1490 = vmul.f32 %v1319, %v1410
      %v1491 = vmul.f32 %v1322, %v1410
      %v1492 = vmul.f32 %v1327, %v1410
      %v1493 = vmul.f32 %v1330, %v1410
      %v1494 = vmul.f32 %v1335, %v1410
      %v1495 = vmul.f32 %v1338, %v1410
      %v1496 = vmul.f32 %v1343, %v1410
      %v1497 = vmul.f32 %v1346, %v1410
      %v1498 = vmul.f32 %v1351, %v1410
      %v1499 = vmul.f32 %v1354, %v1410
      %v1500 = vmul.f32 %v1359, %v1410
      %v1501 = vmul.f32 %v1362, %v1410
      %v1502 = vmul.f32 %v1367, %v1410
      %v1503 = vmul.f32 %v1370, %v1410
      %v1504 = vmul.f32 %v1375, %v1410
      %v1505 = vmul.f32 %v1378, %v1410
      %v1506 = vmul.f32 %v1383, %v1410
      %v1507 = vmul.f32 %v1386, %v1410
      %v1508 = vmul.f32 %v1391, %v1410
      %v1509 = vmul.f32 %v1394, %v1410
      %v1510 = vmul.f32 %v1399, %v1410
      %v1511 = vmul.f32 %v1402, %v1410
      %v1512 = vld [vmem:[%s3] sm:$0x1]
      %v1514 = vlaneseq
      %v1515 = vshrl.u32 %v1514, 7
      %v1516 = vsub.s32 0, %v1515
      %v1517 = vrot.slane %v1512, %v1516
      %v1519 = vadd.f32 %v1412, %v1517
      %v1520 = vadd.f32 %v1413, %v1517
      %v1521 = vadd.f32 %v1414, %v1517
      %v1522 = vadd.f32 %v1415, %v1517
      %v1523 = vadd.f32 %v1416, %v1517
      %v1524 = vadd.f32 %v1417, %v1517
      %v1525 = vadd.f32 %v1418, %v1517
      %v1526 = vadd.f32 %v1419, %v1517
      %v1527 = vadd.f32 %v1420, %v1517
      %v1528 = vadd.f32 %v1421, %v1517
      %v1529 = vadd.f32 %v1422, %v1517
      %v1530 = vadd.f32 %v1423, %v1517
      %v1531 = vadd.f32 %v1424, %v1517
      %v1532 = vadd.f32 %v1425, %v1517
      %v1533 = vadd.f32 %v1426, %v1517
      %v1534 = vadd.f32 %v1427, %v1517
      %v1535 = vadd.f32 %v1428, %v1517
      %v1536 = vadd.f32 %v1429, %v1517
      %v1537 = vadd.f32 %v1430, %v1517
      %v1538 = vadd.f32 %v1431, %v1517
      %v1539 = vadd.f32 %v1432, %v1517
      %v1540 = vadd.f32 %v1433, %v1517
      %v1541 = vadd.f32 %v1434, %v1517
      %v1542 = vadd.f32 %v1435, %v1517
      %v1543 = vadd.f32 %v1436, %v1517
      %v1544 = vadd.f32 %v1437, %v1517
      %v1545 = vadd.f32 %v1438, %v1517
      %v1546 = vadd.f32 %v1439, %v1517
      %v1547 = vadd.f32 %v1440, %v1517
      %v1548 = vadd.f32 %v1441, %v1517
      %v1549 = vadd.f32 %v1442, %v1517
      %v1550 = vadd.f32 %v1443, %v1517
      %v1551 = vadd.f32 %v1444, %v1517
      %v1552 = vadd.f32 %v1445, %v1517
      %v1553 = vadd.f32 %v1446, %v1517
      %v1554 = vadd.f32 %v1447, %v1517
      %v1555 = vadd.f32 %v1448, %v1517
      %v1556 = vadd.f32 %v1449, %v1517
      %v1557 = vadd.f32 %v1450, %v1517
      %v1558 = vadd.f32 %v1451, %v1517
      %v1559 = vadd.f32 %v1452, %v1517
      %v1560 = vadd.f32 %v1453, %v1517
      %v1561 = vadd.f32 %v1454, %v1517
      %v1562 = vadd.f32 %v1455, %v1517
      %v1563 = vadd.f32 %v1456, %v1517
      %v1564 = vadd.f32 %v1457, %v1517
      %v1565 = vadd.f32 %v1458, %v1517
      %v1566 = vadd.f32 %v1459, %v1517
      %v1567 = vadd.f32 %v1460, %v1517
      %v1568 = vadd.f32 %v1461, %v1517
      %v1569 = vadd.f32 %v1462, %v1517
      %v1570 = vadd.f32 %v1463, %v1517
      %v1571 = vadd.f32 %v1464, %v1517
      %v1572 = vadd.f32 %v1465, %v1517
      %v1573 = vadd.f32 %v1466, %v1517
      %v1574 = vadd.f32 %v1467, %v1517
      %v1575 = vadd.f32 %v1468, %v1517
      %v1576 = vadd.f32 %v1469, %v1517
      %v1577 = vadd.f32 %v1470, %v1517
      %v1578 = vadd.f32 %v1471, %v1517
      %v1579 = vadd.f32 %v1472, %v1517
      %v1580 = vadd.f32 %v1473, %v1517
      %v1581 = vadd.f32 %v1474, %v1517
      %v1582 = vadd.f32 %v1475, %v1517
      %v1583 = vadd.f32 %v1476, %v1517
      %v1584 = vadd.f32 %v1477, %v1517
      %v1585 = vadd.f32 %v1478, %v1517
      %v1586 = vadd.f32 %v1479, %v1517
      %v1587 = vadd.f32 %v1480, %v1517
      %v1588 = vadd.f32 %v1481, %v1517
      %v1589 = vadd.f32 %v1482, %v1517
      %v1590 = vadd.f32 %v1483, %v1517
      %v1591 = vadd.f32 %v1484, %v1517
      %v1592 = vadd.f32 %v1485, %v1517
      %v1593 = vadd.f32 %v1486, %v1517
      %v1594 = vadd.f32 %v1487, %v1517
      %v1595 = vadd.f32 %v1488, %v1517
      %v1596 = vadd.f32 %v1489, %v1517
      %v1597 = vadd.f32 %v1490, %v1517
      %v1598 = vadd.f32 %v1491, %v1517
      %v1599 = vadd.f32 %v1492, %v1517
      %v1600 = vadd.f32 %v1493, %v1517
      %v1601 = vadd.f32 %v1494, %v1517
      %v1602 = vadd.f32 %v1495, %v1517
      %v1603 = vadd.f32 %v1496, %v1517
      %v1604 = vadd.f32 %v1497, %v1517
      %v1605 = vadd.f32 %v1498, %v1517
      %v1606 = vadd.f32 %v1499, %v1517
      %v1607 = vadd.f32 %v1500, %v1517
      %v1608 = vadd.f32 %v1501, %v1517
      %v1609 = vadd.f32 %v1502, %v1517
      %v1610 = vadd.f32 %v1503, %v1517
      %v1611 = vadd.f32 %v1504, %v1517
      %v1612 = vadd.f32 %v1505, %v1517
      %v1613 = vadd.f32 %v1506, %v1517
      %v1614 = vadd.f32 %v1507, %v1517
      %v1615 = vadd.f32 %v1508, %v1517
      %v1616 = vadd.f32 %v1509, %v1517
      %v1617 = vadd.f32 %v1510, %v1517
      %v1618 = vadd.f32 %v1511, %v1517
      %v1619 = vmax.f32 %v1519, 0.0
      %v1620 = vmax.f32 %v1520, 0.0
      %v1621 = vmax.f32 %v1521, 0.0
      %v1622 = vmax.f32 %v1522, 0.0
      %v1623 = vmax.f32 %v1523, 0.0
      %v1624 = vmax.f32 %v1524, 0.0
      %v1625 = vmax.f32 %v1525, 0.0
      %v1626 = vmax.f32 %v1526, 0.0
      %v1627 = vmax.f32 %v1527, 0.0
      %v1628 = vmax.f32 %v1528, 0.0
      %v1629 = vmax.f32 %v1529, 0.0
      %v1630 = vmax.f32 %v1530, 0.0
      %v1631 = vmax.f32 %v1531, 0.0
      %v1632 = vmax.f32 %v1532, 0.0
      %v1633 = vmax.f32 %v1533, 0.0
      %v1634 = vmax.f32 %v1534, 0.0
      %v1635 = vmax.f32 %v1535, 0.0
      %v1636 = vmax.f32 %v1536, 0.0
      %v1637 = vmax.f32 %v1537, 0.0
      %v1638 = vmax.f32 %v1538, 0.0
      %v1639 = vmax.f32 %v1539, 0.0
      %v1640 = vmax.f32 %v1540, 0.0
      %v1641 = vmax.f32 %v1541, 0.0
      %v1642 = vmax.f32 %v1542, 0.0
      %v1643 = vmax.f32 %v1543, 0.0
      %v1644 = vmax.f32 %v1544, 0.0
      %v1645 = vmax.f32 %v1545, 0.0
      %v1646 = vmax.f32 %v1546, 0.0
      %v1647 = vmax.f32 %v1547, 0.0
      %v1648 = vmax.f32 %v1548, 0.0
      %v1649 = vmax.f32 %v1549, 0.0
      %v1650 = vmax.f32 %v1550, 0.0
      %v1651 = vmax.f32 %v1551, 0.0
      %v1652 = vmax.f32 %v1552, 0.0
      %v1653 = vmax.f32 %v1553, 0.0
      %v1654 = vmax.f32 %v1554, 0.0
      %v1655 = vmax.f32 %v1555, 0.0
      %v1656 = vmax.f32 %v1556, 0.0
      %v1657 = vmax.f32 %v1557, 0.0
      %v1658 = vmax.f32 %v1558, 0.0
      %v1659 = vmax.f32 %v1559, 0.0
      %v1660 = vmax.f32 %v1560, 0.0
      %v1661 = vmax.f32 %v1561, 0.0
      %v1662 = vmax.f32 %v1562, 0.0
      %v1663 = vmax.f32 %v1563, 0.0
      %v1664 = vmax.f32 %v1564, 0.0
      %v1665 = vmax.f32 %v1565, 0.0
      %v1666 = vmax.f32 %v1566, 0.0
      %v1667 = vmax.f32 %v1567, 0.0
      %v1668 = vmax.f32 %v1568, 0.0
      %v1669 = vmax.f32 %v1569, 0.0
      %v1670 = vmax.f32 %v1570, 0.0
      %v1671 = vmax.f32 %v1571, 0.0
      %v1672 = vmax.f32 %v1572, 0.0
      %v1673 = vmax.f32 %v1573, 0.0
      %v1674 = vmax.f32 %v1574, 0.0
      %v1675 = vmax.f32 %v1575, 0.0
      %v1676 = vmax.f32 %v1576, 0.0
      %v1677 = vmax.f32 %v1577, 0.0
      %v1678 = vmax.f32 %v1578, 0.0
      %v1679 = vmax.f32 %v1579, 0.0
      %v1680 = vmax.f32 %v1580, 0.0
      %v1681 = vmax.f32 %v1581, 0.0
      %v1682 = vmax.f32 %v1582, 0.0
      %v1683 = vmax.f32 %v1583, 0.0
      %v1684 = vmax.f32 %v1584, 0.0
      %v1685 = vmax.f32 %v1585, 0.0
      %v1686 = vmax.f32 %v1586, 0.0
      %v1687 = vmax.f32 %v1587, 0.0
      %v1688 = vmax.f32 %v1588, 0.0
      %v1689 = vmax.f32 %v1589, 0.0
      %v1690 = vmax.f32 %v1590, 0.0
      %v1691 = vmax.f32 %v1591, 0.0
      %v1692 = vmax.f32 %v1592, 0.0
      %v1693 = vmax.f32 %v1593, 0.0
      %v1694 = vmax.f32 %v1594, 0.0
      %v1695 = vmax.f32 %v1595, 0.0
      %v1696 = vmax.f32 %v1596, 0.0
      %v1697 = vmax.f32 %v1597, 0.0
      %v1698 = vmax.f32 %v1598, 0.0
      %v1699 = vmax.f32 %v1599, 0.0
      %v1700 = vmax.f32 %v1600, 0.0
      %v1701 = vmax.f32 %v1601, 0.0
      %v1702 = vmax.f32 %v1602, 0.0
      %v1703 = vmax.f32 %v1603, 0.0
      %v1704 = vmax.f32 %v1604, 0.0
      %v1705 = vmax.f32 %v1605, 0.0
      %v1706 = vmax.f32 %v1606, 0.0
      %v1707 = vmax.f32 %v1607, 0.0
      %v1708 = vmax.f32 %v1608, 0.0
      %v1709 = vmax.f32 %v1609, 0.0
      %v1710 = vmax.f32 %v1610, 0.0
      %v1711 = vmax.f32 %v1611, 0.0
      %v1712 = vmax.f32 %v1612, 0.0
      %v1713 = vmax.f32 %v1613, 0.0
      %v1714 = vmax.f32 %v1614, 0.0
      %v1715 = vmax.f32 %v1615, 0.0
      %v1716 = vmax.f32 %v1616, 0.0
      %v1717 = vmax.f32 %v1617, 0.0
      %v1718 = vmax.f32 %v1618, 0.0
      %v1719 = vmax.f32 %v1619, %v1644
      %v1720 = vmax.f32 %v1620, %v1645
      %v1721 = vmax.f32 %v1621, %v1646
      %v1722 = vmax.f32 %v1622, %v1647
      %v1723 = vmax.f32 %v1623, %v1648
      %v1724 = vmax.f32 %v1624, %v1649
      %v1725 = vmax.f32 %v1625, %v1650
      %v1726 = vmax.f32 %v1626, %v1651
      %v1727 = vmax.f32 %v1627, %v1652
      %v1728 = vmax.f32 %v1628, %v1653
      %v1729 = vmax.f32 %v1629, %v1654
      %v1730 = vmax.f32 %v1630, %v1655
      %v1731 = vmax.f32 %v1631, %v1656
      %v1732 = vmax.f32 %v1632, %v1657
      %v1733 = vmax.f32 %v1633, %v1658
      %v1734 = vmax.f32 %v1634, %v1659
      %v1735 = vmax.f32 %v1635, %v1660
      %v1736 = vmax.f32 %v1636, %v1661
      %v1737 = vmax.f32 %v1637, %v1662
      %v1738 = vmax.f32 %v1638, %v1663
      %v1739 = vmax.f32 %v1639, %v1664
      %v1740 = vmax.f32 %v1640, %v1665
      %v1741 = vmax.f32 %v1641, %v1666
      %v1742 = vmax.f32 %v1642, %v1667
      %v1743 = vmax.f32 %v1643, %v1668
      %v1744 = vmax.f32 %v1669, %v1694
      %v1745 = vmax.f32 %v1670, %v1695
      %v1746 = vmax.f32 %v1671, %v1696
      %v1747 = vmax.f32 %v1672, %v1697
      %v1748 = vmax.f32 %v1673, %v1698
      %v1749 = vmax.f32 %v1674, %v1699
      %v1750 = vmax.f32 %v1675, %v1700
      %v1751 = vmax.f32 %v1676, %v1701
      %v1752 = vmax.f32 %v1677, %v1702
      %v1753 = vmax.f32 %v1678, %v1703
      %v1754 = vmax.f32 %v1679, %v1704
      %v1755 = vmax.f32 %v1680, %v1705
      %v1756 = vmax.f32 %v1681, %v1706
      %v1757 = vmax.f32 %v1682, %v1707
      %v1758 = vmax.f32 %v1683, %v1708
      %v1759 = vmax.f32 %v1684, %v1709
      %v1760 = vmax.f32 %v1685, %v1710
      %v1761 = vmax.f32 %v1686, %v1711
      %v1762 = vmax.f32 %v1687, %v1712
      %v1763 = vmax.f32 %v1688, %v1713
      %v1764 = vmax.f32 %v1689, %v1714
      %v1765 = vmax.f32 %v1690, %v1715
      %v1766 = vmax.f32 %v1691, %v1716
      %v1767 = vmax.f32 %v1692, %v1717
      %v1768 = vmax.f32 %v1693, %v1718
      %v1769 = vmax.f32 %v1719, %v1744
      %v1770 = vmax.f32 %v1720, %v1745
      %v1771 = vmax.f32 %v1721, %v1746
      %v1772 = vmax.f32 %v1722, %v1747
      %v1773 = vmax.f32 %v1723, %v1748
      %v1774 = vmax.f32 %v1724, %v1749
      %v1775 = vmax.f32 %v1725, %v1750
      %v1776 = vmax.f32 %v1726, %v1751
      %v1777 = vmax.f32 %v1727, %v1752
      %v1778 = vmax.f32 %v1728, %v1753
      %v1779 = vmax.f32 %v1729, %v1754
      %v1780 = vmax.f32 %v1730, %v1755
      %v1781 = vmax.f32 %v1731, %v1756
      %v1782 = vmax.f32 %v1732, %v1757
      %v1783 = vmax.f32 %v1733, %v1758
      %v1784 = vmax.f32 %v1734, %v1759
      %v1785 = vmax.f32 %v1735, %v1760
      %v1786 = vmax.f32 %v1736, %v1761
      %v1787 = vmax.f32 %v1737, %v1762
      %v1788 = vmax.f32 %v1738, %v1763
      %v1789 = vmax.f32 %v1739, %v1764
      %v1790 = vmax.f32 %v1740, %v1765
      %v1791 = vmax.f32 %v1741, %v1766
      %v1792 = vmax.f32 %v1742, %v1767
      %v1793 = vmax.f32 %v1743, %v1768
      %v1794 = vpack.c.bf16 %v1770, %v1769
      %v1795 = vpack.c.bf16 %v1772, %v1771
      %v1796 = vpack.c.bf16 %v1774, %v1773
      %v1797 = vpack.c.bf16 %v1776, %v1775
      %v1798 = vpack.c.bf16 %v1778, %v1777
      %v1799 = vpack.c.bf16 %v1780, %v1779
      %v1800 = vpack.c.bf16 %v1782, %v1781
      %v1801 = vpack.c.bf16 %v1784, %v1783
      %v1802 = vpack.c.bf16 %v1786, %v1785
      %v1803 = vpack.c.bf16 %v1788, %v1787
      %v1804 = vpack.c.bf16 %v1790, %v1789
      %v1805 = vpack.c.bf16 %v1792, %v1791
      %v1806 = vpack.c.bf16 %v1793, %v1793
      %v1820 = vunpack.c.l.b16 %v1794
      %v1821 = vunpack.c.h.b16 %v1794
      %v1822 = vunpack.c.l.b16 %v1795
      %v1823 = vunpack.c.h.b16 %v1795
      %v1824 = vunpack.c.l.b16 %v1796
      %v1825 = vunpack.c.h.b16 %v1796
      %v1826 = vunpack.c.l.b16 %v1797
      %v1827 = vunpack.c.h.b16 %v1797
      %v1828 = vunpack.c.l.b16 %v1798
      %v1829 = vunpack.c.h.b16 %v1798
      %v1830 = vunpack.c.l.b16 %v1799
      %v1831 = vunpack.c.h.b16 %v1799
      %v1832 = vunpack.c.l.b16 %v1800
      %v1833 = vunpack.c.h.b16 %v1800
      %v1834 = vunpack.c.l.b16 %v1801
      %v1835 = vunpack.c.h.b16 %v1801
      %v1836 = vunpack.c.l.b16 %v1802
      %v1837 = vunpack.c.h.b16 %v1802
      %v1838 = vunpack.c.l.b16 %v1803
      %v1839 = vunpack.c.h.b16 %v1803
      %v1840 = vunpack.c.l.b16 %v1804
      %v1841 = vunpack.c.h.b16 %v1804
      %v1842 = vunpack.c.l.b16 %v1805
      %v1843 = vunpack.c.h.b16 %v1805
      %v1844 = vunpack.c.l.b16 %v1806
      %v1845 = vpack.c.b16 %v1820, %v1820
      %v1846 = vpack.c.b16 %v1821, %v1821
      %v1847 = vpack.c.b16 %v1822, %v1822
      %v1848 = vpack.c.b16 %v1823, %v1823
      %v1849 = vpack.c.b16 %v1824, %v1824
      %v1850 = vpack.c.b16 %v1825, %v1825
      %v1851 = vpack.c.b16 %v1826, %v1826
      %v1852 = vpack.c.b16 %v1827, %v1827
      %v1853 = vpack.c.b16 %v1828, %v1828
      %v1854 = vpack.c.b16 %v1829, %v1829
      %v1855 = vpack.c.b16 %v1830, %v1830
      %v1856 = vpack.c.b16 %v1831, %v1831
      %v1857 = vpack.c.b16 %v1832, %v1832
      %v1858 = vpack.c.b16 %v1833, %v1833
      %v1859 = vpack.c.b16 %v1834, %v1834
      %v1860 = vpack.c.b16 %v1835, %v1835
      %v1861 = vpack.c.b16 %v1836, %v1836
      %v1862 = vpack.c.b16 %v1837, %v1837
      %v1863 = vpack.c.b16 %v1838, %v1838
      %v1864 = vpack.c.b16 %v1839, %v1839
      %v1865 = vpack.c.b16 %v1840, %v1840
      %v1866 = vpack.c.b16 %v1841, %v1841
      %v1867 = vpack.c.b16 %v1842, %v1842
      %v1868 = vpack.c.b16 %v1843, %v1843
      %v1869 = vpack.c.b16 %v1844, %v1844
      %vm1895 = vcmask 257024
      %1896 = vst.msk [vmem:[%s197] sm:$0xf] %vm1895, %v1845
      %1897 = vst.msk [vmem:[%s197 + $0x4] sm:$0xf] %vm1895, %v1846
      %1898 = vst.msk [vmem:[%s197 + $0x8] sm:$0xf] %vm1895, %v1847
      %1899 = vst.msk [vmem:[%s197 + $0xc] sm:$0xf] %vm1895, %v1848
      %1900 = vst.msk [vmem:[%s197 + $0x10] sm:$0xf] %vm1895, %v1849
      %1901 = vst.msk [vmem:[%s197 + $0x14] sm:$0xf] %vm1895, %v1850
      %1902 = vst.msk [vmem:[%s197 + $0x18] sm:$0xf] %vm1895, %v1851
      %1903 = vst.msk [vmem:[%s197 + $0x1c] sm:$0xf] %vm1895, %v1852
      %1904 = vst.msk [vmem:[%s197 + $0x20] sm:$0xf] %vm1895, %v1853
      %1905 = vst.msk [vmem:[%s197 + $0x24] sm:$0xf] %vm1895, %v1854
      %1906 = vst.msk [vmem:[%s197 + $0x28] sm:$0xf] %vm1895, %v1855
      %1907 = vst.msk [vmem:[%s197 + $0x2c] sm:$0xf] %vm1895, %v1856
      %1908 = vst.msk [vmem:[%s197 + $0x30] sm:$0xf] %vm1895, %v1857
      %1909 = vst.msk [vmem:[%s197 + $0x34] sm:$0xf] %vm1895, %v1858
      %1910 = vst.msk [vmem:[%s197 + $0x38] sm:$0xf] %vm1895, %v1859
      %1911 = vst.msk [vmem:[%s197 + $0x3c] sm:$0xf] %vm1895, %v1860
      %1912 = vst.msk [vmem:[%s197 + $0x40] sm:$0xf] %vm1895, %v1861
      %1913 = vst.msk [vmem:[%s197 + $0x44] sm:$0xf] %vm1895, %v1862
      %1914 = vst.msk [vmem:[%s197 + $0x48] sm:$0xf] %vm1895, %v1863
      %1915 = vst.msk [vmem:[%s197 + $0x4c] sm:$0xf] %vm1895, %v1864
      %1916 = vst.msk [vmem:[%s197 + $0x50] sm:$0xf] %vm1895, %v1865
      %1917 = vst.msk [vmem:[%s197 + $0x54] sm:$0xf] %vm1895, %v1866
      %1918 = vst.msk [vmem:[%s197 + $0x58] sm:$0xf] %vm1895, %v1867
      %1919 = vst.msk [vmem:[%s197 + $0x5c] sm:$0xf] %vm1895, %v1868
      %vm1920 = vcmask 254976
      %1921 = vst.msk [vmem:[%s197 + $0x60] sm:$0x3] %vm1920, %v1869
      %p1922 = scmp.lt.s32.totalorder %s15, 1
      %s1923 = scalar_select %p1922, %s15, 1
      %s1924 = smul.addr %s1923, 25
      %s1925 = smul.addr %s1924, 4
      %s1926 = scalar_lea.vmem %s4, %s1925
      // Predicated region
      $region37: #{cnn_forward.4} parent=35 // pred_check
        %p1927 = pneg %p122
      $region38: #{cnn_forward.4} parent=35 // pred_check_branch
        %1929 = sbr.rel (%p1927) target = $region40
      $region39: #{cnn_forward.4} parent=35 // pred_region
        _
      $region40: #{cnn_forward.4} parent=35 // pred_fallthru
        _
    $region36: #{cnn_forward.4} parent=5 // pred_fallthru
      _
    %p1930 = scmp.le.s32.totalorder 2, %s10
    // Predicated region
    $region41: #{cnn_forward.4} parent=5 // pred_check
      %p1931 = pneg %p1930
    $region42: #{cnn_forward.4} parent=5 // pred_check_branch
      %1933 = sbr.rel (%p1931) target = $region44
    $region43: #{cnn_forward.4} parent=5 // pred_region
      %s1934 = ssub.s32 %s10, 2
      // Predicated region
      $region45: #{cnn_forward.4} parent=43 // pred_check
        %p1935 = pneg %p128
      $region46: #{cnn_forward.4} parent=43 // pred_check_branch
        %1937 = sbr.rel (%p1935) target = $region48
      $region47: #{cnn_forward.4} parent=43 // pred_region
        %p1938 = scmp.lt.s32.totalorder %s16, 1
        %s1939 = scalar_select %p1938, %s16, 1
        %s1940 = smul.addr %s1939, 25
        %s1941 = smul.addr %s1940, 4
        %s1942 = scalar_lea.vmem %s4, %s1941
      $region48: #{cnn_forward.4} parent=43 // pred_fallthru
        _
    $region44: #{cnn_forward.4} parent=5 // pred_fallthru
      _
  $region6: #{cnn_forward.4} parent=0 // loop_footer
    %s14 = sadd.s32 1, %s10
  $region7: #{cnn_forward.4} parent=0 // loop_footer_branch
    %9 = sbr.rel target = $region3
  $region8: #{cnn_forward.4} parent=0 // loop_exit
    _

// kernel: cnn_forward.5
$region0: #{cnn_forward.5}
  #allocation0 [shape = 'u32[]', space=smem, size = 0x4, offset = 0x4, fixed_abs, tag = 'smem constant byte address 0x4 - core index']
  #allocation1 [shape = 'u32[144,128]{1,0:T(1,128)}', space=vmem, size = 0x12000, scoped, tag = 'internal scratch']
  %s0 = inlined_call_operand.vmem [shape: bf16[2,6272], index: 0, kind: input, shape index: {}]
  %s1 = inlined_call_operand.vmem [shape: bf16[6272,128], index: 1, kind: input, shape index: {}]
  %s2 = inlined_call_operand.vmem [shape: f32[1,128], index: 2, kind: input, shape index: {}]
  %s3 = inlined_call_operand.vmem [shape: bf16[128,64], index: 3, kind: input, shape index: {}]
  %s4 = inlined_call_operand.vmem [shape: f32[1,64], index: 4, kind: input, shape index: {}]
  %s5 = inlined_call_operand.vmem [shape: bf16[64,10], index: 5, kind: input, shape index: {}]
  %s6 = inlined_call_operand.vmem [shape: f32[1,10], index: 6, kind: input, shape index: {}]
  %s7 = inlined_call_operand.hbm [shape: f32[2,10], index: 7, kind: output, shape index: {}]
  %s8 = sld [smem:[#allocation0]]
  $region38: #{cnn_forward.5} parent=0
    _
  %s10 = ssub.s32 1, %s8
  %s11 = scalar_select 0, %s10, %s8
  $region1: #{cnn_forward.5} parent=0
    #allocation2 [shape = 'u8[1024]{0}', space=vmem, size = 0x400, scoped, tag = 'output window, operand 0, single buffered']
    #allocation3 [shape = 's32[1]{0}', space=sflag, size = 0x4, scoped, tag = 'scoped memory for cnn_forward.5']
    %12 = vsyncpa [#allocation3], 0
    // Predicated region
    $region2: #{cnn_forward.5} parent=1 // pred_check
      _
    $region3: #{cnn_forward.5} parent=1 // pred_check_branch
      %14 = sbr.rel (0) target = $region5
    $region4: #{cnn_forward.5} parent=1 // pred_region
      _
    $region5: #{cnn_forward.5} parent=1 // pred_fallthru
      _
    // Predicated region
    $region6: #{cnn_forward.5} parent=1 // pred_check
      _
    $region7: #{cnn_forward.5} parent=1 // pred_check_branch
      %16 = sbr.rel (0) target = $region9
    $region8: #{cnn_forward.5} parent=1 // pred_region
      _
    $region9: #{cnn_forward.5} parent=1 // pred_fallthru
      _
    // Predicated region
    $region10: #{cnn_forward.5} parent=1 // pred_check
      _
    $region11: #{cnn_forward.5} parent=1 // pred_check_branch
      %18 = sbr.rel (0) target = $region13
    $region12: #{cnn_forward.5} parent=1 // pred_region
      _
    $region13: #{cnn_forward.5} parent=1 // pred_fallthru
      _
    // Predicated region
    $region14: #{cnn_forward.5} parent=1 // pred_check
      _
    $region15: #{cnn_forward.5} parent=1 // pred_check_branch
      %20 = sbr.rel (0) target = $region17
    $region16: #{cnn_forward.5} parent=1 // pred_region
      _
    $region17: #{cnn_forward.5} parent=1 // pred_fallthru
      _
    // Predicated region
    $region18: #{cnn_forward.5} parent=1 // pred_check
      _
    $region19: #{cnn_forward.5} parent=1 // pred_check_branch
      %22 = sbr.rel (0) target = $region21
    $region20: #{cnn_forward.5} parent=1 // pred_region
      _
    $region21: #{cnn_forward.5} parent=1 // pred_fallthru
      _
    // Predicated region
    $region22: #{cnn_forward.5} parent=1 // pred_check
      _
    $region23: #{cnn_forward.5} parent=1 // pred_check_branch
      %24 = sbr.rel (0) target = $region25
    $region24: #{cnn_forward.5} parent=1 // pred_region
      _
    $region25: #{cnn_forward.5} parent=1 // pred_fallthru
      _
    // Predicated region
    $region26: #{cnn_forward.5} parent=1 // pred_check
      _
    $region27: #{cnn_forward.5} parent=1 // pred_check_branch
      %26 = sbr.rel (0) target = $region29
    $region28: #{cnn_forward.5} parent=1 // pred_region
      _
    $region29: #{cnn_forward.5} parent=1 // pred_fallthru
      _
    %v28 = vld [vmem:[%s0] sm:$0xff]
    %v29 = vld [vmem:[%s0 + $0x8] sm:$0xff]
    %v30 = vld [vmem:[%s0 + $0x10] sm:$0xff]
    %v31 = vld [vmem:[%s0 + $0x18] sm:$0xff]
    %v32 = vld [vmem:[%s0 + $0x20] sm:$0xff]
    %v33 = vld [vmem:[%s0 + $0x28] sm:$0xff]
    %v34 = vld [vmem:[%s0 + $0x30] sm:$0x1]
    %v35 = vld [vmem:[%s1] sm:$0xf]
    %v36 = vld [vmem:[%s1 + $0x4] sm:$0xf]
    %v37 = vld [vmem:[%s1 + $0x8] sm:$0xf]
    %v38 = vld [vmem:[%s1 + $0xc] sm:$0xf]
    %v39 = vld [vmem:[%s1 + $0x10] sm:$0xf]
    %v40 = vld [vmem:[%s1 + $0x14] sm:$0xf]
    %v41 = vld [vmem:[%s1 + $0x18] sm:$0xf]
    %v42 = vld [vmem:[%s1 + $0x1c] sm:$0xf]
    %v43 = vld [vmem:[%s1 + $0x20] sm:$0xf]
    %v44 = vld [vmem:[%s1 + $0x24] sm:$0xf]
    %v45 = vld [vmem:[%s1 + $0x28] sm:$0xf]
    %v46 = vld [vmem:[%s1 + $0x2c] sm:$0xf]
    %v47 = vld [vmem:[%s1 + $0x30] sm:$0xf]
    %v48 = vld [vmem:[%s1 + $0x34] sm:$0xf]
    %v49 = vld [vmem:[%s1 + $0x38] sm:$0xf]
    %v50 = vld [vmem:[%s1 + $0x3c] sm:$0xf]
    %v51 = vld [vmem:[%s1 + $0x40] sm:$0xf]
    %v52 = vld [vmem:[%s1 + $0x44] sm:$0xf]
    %v53 = vld [vmem:[%s1 + $0x48] sm:$0xf]
    %v54 = vld [vmem:[%s1 + $0x4c] sm:$0xf]
    %v55 = vld [vmem:[%s1 + $0x50] sm:$0xf]
    %v56 = vld [vmem:[%s1 + $0x54] sm:$0xf]
    %v57 = vld [vmem:[%s1 + $0x58] sm:$0xf]
    %v58 = vld [vmem:[%s1 + $0x5c] sm:$0xf]
    %v59 = vld [vmem:[%s1 + $0x60] sm:$0xf]
    %v60 = vld [vmem:[%s1 + $0x64] sm:$0xf]
    %v61 = vld [vmem:[%s1 + $0x68] sm:$0xf]
    %v62 = vld [vmem:[%s1 + $0x6c] sm:$0xf]
    %v63 = vld [vmem:[%s1 + $0x70] sm:$0xf]
    %v64 = vld [vmem:[%s1 + $0x74] sm:$0xf]
    %v65 = vld [vmem:[%s1 + $0x78] sm:$0xf]
    %v66 = vld [vmem:[%s1 + $0x7c] sm:$0xf]
    %v67 = vld [vmem:[%s1 + $0x80] sm:$0xf]
    %v68 = vld [vmem:[%s1 + $0x84] sm:$0xf]
    %v69 = vld [vmem:[%s1 + $0x88] sm:$0xf]
    %v70 = vld [vmem:[%s1 + $0x8c] sm:$0xf]
    %v71 = vld [vmem:[%s1 + $0x90] sm:$0xf]
    %v72 = vld [vmem:[%s1 + $0x94] sm:$0xf]
    %v73 = vld [vmem:[%s1 + $0x98] sm:$0xf]
    %v74 = vld [vmem:[%s1 + $0x9c] sm:$0xf]
    %v75 = vld [vmem:[%s1 + $0xa0] sm:$0xf]
    %v76 = vld [vmem:[%s1 + $0xa4] sm:$0xf]
    %v77 = vld [vmem:[%s1 + $0xa8] sm:$0xf]
    %v78 = vld [vmem:[%s1 + $0xac] sm:$0xf]
    %v79 = vld [vmem:[%s1 + $0xb0] sm:$0xf]
    %v80 = vld [vmem:[%s1 + $0xb4] sm:$0xf]
    %v81 = vld [vmem:[%s1 + $0xb8] sm:$0xf]
    %v82 = vld [vmem:[%s1 + $0xbc] sm:$0xf]
    %v83 = vld [vmem:[%s1 + $0xc0] sm:$0xf]
    %v84 = vld [vmem:[%s1 + $0xc4] sm:$0xf]
    %v85 = vld [vmem:[%s1 + $0xc8] sm:$0xf]
    %v86 = vld [vmem:[%s1 + $0xcc] sm:$0xf]
    %v87 = vld [vmem:[%s1 + $0xd0] sm:$0xf]
    %v88 = vld [vmem:[%s1 + $0xd4] sm:$0xf]
    %v89 = vld [vmem:[%s1 + $0xd8] sm:$0xf]
    %v90 = vld [vmem:[%s1 + $0xdc] sm:$0xf]
    %v91 = vld [vmem:[%s1 + $0xe0] sm:$0xf]
    %v92 = vld [vmem:[%s1 + $0xe4] sm:$0xf]
    %v93 = vld [vmem:[%s1 + $0xe8] sm:$0xf]
    %v94 = vld [vmem:[%s1 + $0xec] sm:$0xf]
    %v95 = vld [vmem:[%s1 + $0xf0] sm:$0xf]
    %v96 = vld [vmem:[%s1 + $0xf4] sm:$0xf]
    %v97 = vld [vmem:[%s1 + $0xf8] sm:$0xf]
    %v98 = vld [vmem:[%s1 + $0xfc] sm:$0xf]
    %v99 = vld [vmem:[%s1 + $0x100] sm:$0xf]
    %v100 = vld [vmem:[%s1 + $0x104] sm:$0xf]
    %v101 = vld [vmem:[%s1 + $0x108] sm:$0xf]
    %v102 = vld [vmem:[%s1 + $0x10c] sm:$0xf]
    %v103 = vld [vmem:[%s1 + $0x110] sm:$0xf]
    %v104 = vld [vmem:[%s1 + $0x114] sm:$0xf]
    %v105 = vld [vmem:[%s1 + $0x118] sm:$0xf]
    %v106 = vld [vmem:[%s1 + $0x11c] sm:$0xf]
    %v107 = vld [vmem:[%s1 + $0x120] sm:$0xf]
    %v108 = vld [vmem:[%s1 + $0x124] sm:$0xf]
    %v109 = vld [vmem:[%s1 + $0x128] sm:$0xf]
    %v110 = vld [vmem:[%s1 + $0x12c] sm:$0xf]
    %v111 = vld [vmem:[%s1 + $0x130] sm:$0xf]
    %v112 = vld [vmem:[%s1 + $0x134] sm:$0xf]
    %v113 = vld [vmem:[%s1 + $0x138] sm:$0xf]
    %v114 = vld [vmem:[%s1 + $0x13c] sm:$0xf]
    %v115 = vld [vmem:[%s1 + $0x140] sm:$0xf]
    %v116 = vld [vmem:[%s1 + $0x144] sm:$0xf]
    %v117 = vld [vmem:[%s1 + $0x148] sm:$0xf]
    %v118 = vld [vmem:[%s1 + $0x14c] sm:$0xf]
    %v119 = vld [vmem:[%s1 + $0x150] sm:$0xf]
    %v120 = vld [vmem:[%s1 + $0x154] sm:$0xf]
    %v121 = vld [vmem:[%s1 + $0x158] sm:$0xf]
    %v122 = vld [vmem:[%s1 + $0x15c] sm:$0xf]
    %v123 = vld [vmem:[%s1 + $0x160] sm:$0xf]
    %v124 = vld [vmem:[%s1 + $0x164] sm:$0xf]
    %v125 = vld [vmem:[%s1 + $0x168] sm:$0xf]
    %v126 = vld [vmem:[%s1 + $0x16c] sm:$0xf]
    %v127 = vld [vmem:[%s1 + $0x170] sm:$0xf]
    %v128 = vld [vmem:[%s1 + $0x174] sm:$0xf]
    %v129 = vld [vmem:[%s1 + $0x178] sm:$0xf]
    %v130 = vld [vmem:[%s1 + $0x17c] sm:$0xf]
    %v131 = vld [vmem:[%s1 + $0x180] sm:$0xf]
    %v132 = vld [vmem:[%s1 + $0x184] sm:$0xf]
    %v133 = vld [vmem:[%s1 + $0x188] sm:$0xf]
    %v134 = vld [vmem:[%s1 + $0x18c] sm:$0xf]
    %v135 = vld [vmem:[%s1 + $0x190] sm:$0xf]
    %v136 = vld [vmem:[%s1 + $0x194] sm:$0xf]
    %v137 = vld [vmem:[%s1 + $0x198] sm:$0xf]
    %v138 = vld [vmem:[%s1 + $0x19c] sm:$0xf]
    %v139 = vld [vmem:[%s1 + $0x1a0] sm:$0xf]
    %v140 = vld [vmem:[%s1 + $0x1a4] sm:$0xf]
    %v141 = vld [vmem:[%s1 + $0x1a8] sm:$0xf]
    %v142 = vld [vmem:[%s1 + $0x1ac] sm:$0xf]
    %v143 = vld [vmem:[%s1 + $0x1b0] sm:$0xf]
    %v144 = vld [vmem:[%s1 + $0x1b4] sm:$0xf]
    %v145 = vld [vmem:[%s1 + $0x1b8] sm:$0xf]
    %v146 = vld [vmem:[%s1 + $0x1bc] sm:$0xf]
    %v147 = vld [vmem:[%s1 + $0x1c0] sm:$0xf]
    %v148 = vld [vmem:[%s1 + $0x1c4] sm:$0xf]
    %v149 = vld [vmem:[%s1 + $0x1c8] sm:$0xf]
    %v150 = vld [vmem:[%s1 + $0x1cc] sm:$0xf]
    %v151 = vld [vmem:[%s1 + $0x1d0] sm:$0xf]
    %v152 = vld [vmem:[%s1 + $0x1d4] sm:$0xf]
    %v153 = vld [vmem:[%s1 + $0x1d8] sm:$0xf]
    %v154 = vld [vmem:[%s1 + $0x1dc] sm:$0xf]
    %v155 = vld [vmem:[%s1 + $0x1e0] sm:$0xf]
    %v156 = vld [vmem:[%s1 + $0x1e4] sm:$0xf]
    %v157 = vld [vmem:[%s1 + $0x1e8] sm:$0xf]
    %v158 = vld [vmem:[%s1 + $0x1ec] sm:$0xf]
    %v159 = vld [vmem:[%s1 + $0x1f0] sm:$0xf]
    %v160 = vld [vmem:[%s1 + $0x1f4] sm:$0xf]
    %v161 = vld [vmem:[%s1 + $0x1f8] sm:$0xf]
    %v162 = vld [vmem:[%s1 + $0x1fc] sm:$0xf]
    %v163 = vld [vmem:[%s1 + $0x200] sm:$0xf]
    %v164 = vld [vmem:[%s1 + $0x204] sm:$0xf]
    %v165 = vld [vmem:[%s1 + $0x208] sm:$0xf]
    %v166 = vld [vmem:[%s1 + $0x20c] sm:$0xf]
    %v167 = vld [vmem:[%s1 + $0x210] sm:$0xf]
    %v168 = vld [vmem:[%s1 + $0x214] sm:$0xf]
    %v169 = vld [vmem:[%s1 + $0x218] sm:$0xf]
    %v170 = vld [vmem:[%s1 + $0x21c] sm:$0xf]
    %v171 = vld [vmem:[%s1 + $0x220] sm:$0xf]
    %v172 = vld [vmem:[%s1 + $0x224] sm:$0xf]
    %v173 = vld [vmem:[%s1 + $0x228] sm:$0xf]
    %v174 = vld [vmem:[%s1 + $0x22c] sm:$0xf]
    %v175 = vld [vmem:[%s1 + $0x230] sm:$0xf]
    %v176 = vld [vmem:[%s1 + $0x234] sm:$0xf]
    %v177 = vld [vmem:[%s1 + $0x238] sm:$0xf]
    %v178 = vld [vmem:[%s1 + $0x23c] sm:$0xf]
    %v179 = vld [vmem:[%s1 + $0x240] sm:$0xf]
    %v180 = vld [vmem:[%s1 + $0x244] sm:$0xf]
    %v181 = vld [vmem:[%s1 + $0x248] sm:$0xf]
    %v182 = vld [vmem:[%s1 + $0x24c] sm:$0xf]
    %v183 = vld [vmem:[%s1 + $0x250] sm:$0xf]
    %v184 = vld [vmem:[%s1 + $0x254] sm:$0xf]
    %v185 = vld [vmem:[%s1 + $0x258] sm:$0xf]
    %v186 = vld [vmem:[%s1 + $0x25c] sm:$0xf]
    %v187 = vld [vmem:[%s1 + $0x260] sm:$0xf]
    %v188 = vld [vmem:[%s1 + $0x264] sm:$0xf]
    %v189 = vld [vmem:[%s1 + $0x268] sm:$0xf]
    %v190 = vld [vmem:[%s1 + $0x26c] sm:$0xf]
    %v191 = vld [vmem:[%s1 + $0x270] sm:$0xf]
    %v192 = vld [vmem:[%s1 + $0x274] sm:$0xf]
    %v193 = vld [vmem:[%s1 + $0x278] sm:$0xf]
    %v194 = vld [vmem:[%s1 + $0x27c] sm:$0xf]
    %v195 = vld [vmem:[%s1 + $0x280] sm:$0xf]
    %v196 = vld [vmem:[%s1 + $0x284] sm:$0xf]
    %v197 = vld [vmem:[%s1 + $0x288] sm:$0xf]
    %v198 = vld [vmem:[%s1 + $0x28c] sm:$0xf]
    %v199 = vld [vmem:[%s1 + $0x290] sm:$0xf]
    %v200 = vld [vmem:[%s1 + $0x294] sm:$0xf]
    %v201 = vld [vmem:[%s1 + $0x298] sm:$0xf]
    %v202 = vld [vmem:[%s1 + $0x29c] sm:$0xf]
    %v203 = vld [vmem:[%s1 + $0x2a0] sm:$0xf]
    %v204 = vld [vmem:[%s1 + $0x2a4] sm:$0xf]
    %v205 = vld [vmem:[%s1 + $0x2a8] sm:$0xf]
    %v206 = vld [vmem:[%s1 + $0x2ac] sm:$0xf]
    %v207 = vld [vmem:[%s1 + $0x2b0] sm:$0xf]
    %v208 = vld [vmem:[%s1 + $0x2b4] sm:$0xf]
    %v209 = vld [vmem:[%s1 + $0x2b8] sm:$0xf]
    %v210 = vld [vmem:[%s1 + $0x2bc] sm:$0xf]
    %v211 = vld [vmem:[%s1 + $0x2c0] sm:$0xf]
    %v212 = vld [vmem:[%s1 + $0x2c4] sm:$0xf]
    %v213 = vld [vmem:[%s1 + $0x2c8] sm:$0xf]
    %v214 = vld [vmem:[%s1 + $0x2cc] sm:$0xf]
    %v215 = vld [vmem:[%s1 + $0x2d0] sm:$0xf]
    %v216 = vld [vmem:[%s1 + $0x2d4] sm:$0xf]
    %v217 = vld [vmem:[%s1 + $0x2d8] sm:$0xf]
    %v218 = vld [vmem:[%s1 + $0x2dc] sm:$0xf]
    %v219 = vld [vmem:[%s1 + $0x2e0] sm:$0xf]
    %v220 = vld [vmem:[%s1 + $0x2e4] sm:$0xf]
    %v221 = vld [vmem:[%s1 + $0x2e8] sm:$0xf]
    %v222 = vld [vmem:[%s1 + $0x2ec] sm:$0xf]
    %v223 = vld [vmem:[%s1 + $0x2f0] sm:$0xf]
    %v224 = vld [vmem:[%s1 + $0x2f4] sm:$0xf]
    %v225 = vld [vmem:[%s1 + $0x2f8] sm:$0xf]
    %v226 = vld [vmem:[%s1 + $0x2fc] sm:$0xf]
    %v227 = vld [vmem:[%s1 + $0x300] sm:$0xf]
    %v228 = vld [vmem:[%s1 + $0x304] sm:$0xf]
    %v229 = vld [vmem:[%s1 + $0x308] sm:$0xf]
    %v230 = vld [vmem:[%s1 + $0x30c] sm:$0xf]
    %v231 = vld [vmem:[%s1 + $0x310] sm:$0xf]
    %v232 = vld [vmem:[%s1 + $0x314] sm:$0xf]
    %v233 = vld [vmem:[%s1 + $0x318] sm:$0xf]
    %v234 = vld [vmem:[%s1 + $0x31c] sm:$0xf]
    %v235 = vld [vmem:[%s1 + $0x320] sm:$0xf]
    %v236 = vld [vmem:[%s1 + $0x324] sm:$0xf]
    %v237 = vld [vmem:[%s1 + $0x328] sm:$0xf]
    %v238 = vld [vmem:[%s1 + $0x32c] sm:$0xf]
    %v239 = vld [vmem:[%s1 + $0x330] sm:$0xf]
    %v240 = vld [vmem:[%s1 + $0x334] sm:$0xf]
    %v241 = vld [vmem:[%s1 + $0x338] sm:$0xf]
    %v242 = vld [vmem:[%s1 + $0x33c] sm:$0xf]
    %v243 = vld [vmem:[%s1 + $0x340] sm:$0xf]
    %v244 = vld [vmem:[%s1 + $0x344] sm:$0xf]
    %v245 = vld [vmem:[%s1 + $0x348] sm:$0xf]
    %v246 = vld [vmem:[%s1 + $0x34c] sm:$0xf]
    %v247 = vld [vmem:[%s1 + $0x350] sm:$0xf]
    %v248 = vld [vmem:[%s1 + $0x354] sm:$0xf]
    %v249 = vld [vmem:[%s1 + $0x358] sm:$0xf]
    %v250 = vld [vmem:[%s1 + $0x35c] sm:$0xf]
    %v251 = vld [vmem:[%s1 + $0x360] sm:$0xf]
    %v252 = vld [vmem:[%s1 + $0x364] sm:$0xf]
    %v253 = vld [vmem:[%s1 + $0x368] sm:$0xf]
    %v254 = vld [vmem:[%s1 + $0x36c] sm:$0xf]
    %v255 = vld [vmem:[%s1 + $0x370] sm:$0xf]
    %v256 = vld [vmem:[%s1 + $0x374] sm:$0xf]
    %v257 = vld [vmem:[%s1 + $0x378] sm:$0xf]
    %v258 = vld [vmem:[%s1 + $0x37c] sm:$0xf]
    %v259 = vld [vmem:[%s1 + $0x380] sm:$0xf]
    %v260 = vld [vmem:[%s1 + $0x384] sm:$0xf]
    %v261 = vld [vmem:[%s1 + $0x388] sm:$0xf]
    %v262 = vld [vmem:[%s1 + $0x38c] sm:$0xf]
    %v263 = vld [vmem:[%s1 + $0x390] sm:$0xf]
    %v264 = vld [vmem:[%s1 + $0x394] sm:$0xf]
    %v265 = vld [vmem:[%s1 + $0x398] sm:$0xf]
    %v266 = vld [vmem:[%s1 + $0x39c] sm:$0xf]
    %v267 = vld [vmem:[%s1 + $0x3a0] sm:$0xf]
    %v268 = vld [vmem:[%s1 + $0x3a4] sm:$0xf]
    %v269 = vld [vmem:[%s1 + $0x3a8] sm:$0xf]
    %v270 = vld [vmem:[%s1 + $0x3ac] sm:$0xf]
    %v271 = vld [vmem:[%s1 + $0x3b0] sm:$0xf]
    %v272 = vld [vmem:[%s1 + $0x3b4] sm:$0xf]
    %v273 = vld [vmem:[%s1 + $0x3b8] sm:$0xf]
    %v274 = vld [vmem:[%s1 + $0x3bc] sm:$0xf]
    %v275 = vld [vmem:[%s1 + $0x3c0] sm:$0xf]
    %v276 = vld [vmem:[%s1 + $0x3c4] sm:$0xf]
    %v277 = vld [vmem:[%s1 + $0x3c8] sm:$0xf]
    %v278 = vld [vmem:[%s1 + $0x3cc] sm:$0xf]
    %v279 = vld [vmem:[%s1 + $0x3d0] sm:$0xf]
    %v280 = vld [vmem:[%s1 + $0x3d4] sm:$0xf]
    %v281 = vld [vmem:[%s1 + $0x3d8] sm:$0xf]
    %v282 = vld [vmem:[%s1 + $0x3dc] sm:$0xf]
    %v283 = vld [vmem:[%s1 + $0x3e0] sm:$0xf]
    %v284 = vld [vmem:[%s1 + $0x3e4] sm:$0xf]
    %v285 = vld [vmem:[%s1 + $0x3e8] sm:$0xf]
    %v286 = vld [vmem:[%s1 + $0x3ec] sm:$0xf]
    %v287 = vld [vmem:[%s1 + $0x3f0] sm:$0xf]
    %v288 = vld [vmem:[%s1 + $0x3f4] sm:$0xf]
    %v289 = vld [vmem:[%s1 + $0x3f8] sm:$0xf]
    %v290 = vld [vmem:[%s1 + $0x3fc] sm:$0xf]
    %v291 = vld [vmem:[%s1 + $0x400] sm:$0xf]
    %v292 = vld [vmem:[%s1 + $0x404] sm:$0xf]
    %v293 = vld [vmem:[%s1 + $0x408] sm:$0xf]
    %v294 = vld [vmem:[%s1 + $0x40c] sm:$0xf]
    %v295 = vld [vmem:[%s1 + $0x410] sm:$0xf]
    %v296 = vld [vmem:[%s1 + $0x414] sm:$0xf]
    %v297 = vld [vmem:[%s1 + $0x418] sm:$0xf]
    %v298 = vld [vmem:[%s1 + $0x41c] sm:$0xf]
    %v299 = vld [vmem:[%s1 + $0x420] sm:$0xf]
    %v300 = vld [vmem:[%s1 + $0x424] sm:$0xf]
    %v301 = vld [vmem:[%s1 + $0x428] sm:$0xf]
    %v302 = vld [vmem:[%s1 + $0x42c] sm:$0xf]
    %v303 = vld [vmem:[%s1 + $0x430] sm:$0xf]
    %v304 = vld [vmem:[%s1 + $0x434] sm:$0xf]
    %v305 = vld [vmem:[%s1 + $0x438] sm:$0xf]
    %v306 = vld [vmem:[%s1 + $0x43c] sm:$0xf]
    %v307 = vld [vmem:[%s1 + $0x440] sm:$0xf]
    %v308 = vld [vmem:[%s1 + $0x444] sm:$0xf]
    %v309 = vld [vmem:[%s1 + $0x448] sm:$0xf]
    %v310 = vld [vmem:[%s1 + $0x44c] sm:$0xf]
    %v311 = vld [vmem:[%s1 + $0x450] sm:$0xf]
    %v312 = vld [vmem:[%s1 + $0x454] sm:$0xf]
    %v313 = vld [vmem:[%s1 + $0x458] sm:$0xf]
    %v314 = vld [vmem:[%s1 + $0x45c] sm:$0xf]
    %v315 = vld [vmem:[%s1 + $0x460] sm:$0xf]
    %v316 = vld [vmem:[%s1 + $0x464] sm:$0xf]
    %v317 = vld [vmem:[%s1 + $0x468] sm:$0xf]
    %v318 = vld [vmem:[%s1 + $0x46c] sm:$0xf]
    %v319 = vld [vmem:[%s1 + $0x470] sm:$0xf]
    %v320 = vld [vmem:[%s1 + $0x474] sm:$0xf]
    %v321 = vld [vmem:[%s1 + $0x478] sm:$0xf]
    %v322 = vld [vmem:[%s1 + $0x47c] sm:$0xf]
    %v323 = vld [vmem:[%s1 + $0x480] sm:$0xf]
    %v324 = vld [vmem:[%s1 + $0x484] sm:$0xf]
    %v325 = vld [vmem:[%s1 + $0x488] sm:$0xf]
    %v326 = vld [vmem:[%s1 + $0x48c] sm:$0xf]
    %v327 = vld [vmem:[%s1 + $0x490] sm:$0xf]
    %v328 = vld [vmem:[%s1 + $0x494] sm:$0xf]
    %v329 = vld [vmem:[%s1 + $0x498] sm:$0xf]
    %v330 = vld [vmem:[%s1 + $0x49c] sm:$0xf]
    %v331 = vld [vmem:[%s1 + $0x4a0] sm:$0xf]
    %v332 = vld [vmem:[%s1 + $0x4a4] sm:$0xf]
    %v333 = vld [vmem:[%s1 + $0x4a8] sm:$0xf]
    %v334 = vld [vmem:[%s1 + $0x4ac] sm:$0xf]
    %v335 = vld [vmem:[%s1 + $0x4b0] sm:$0xf]
    %v336 = vld [vmem:[%s1 + $0x4b4] sm:$0xf]
    %v337 = vld [vmem:[%s1 + $0x4b8] sm:$0xf]
    %v338 = vld [vmem:[%s1 + $0x4bc] sm:$0xf]
    %v339 = vld [vmem:[%s1 + $0x4c0] sm:$0xf]
    %v340 = vld [vmem:[%s1 + $0x4c4] sm:$0xf]
    %v341 = vld [vmem:[%s1 + $0x4c8] sm:$0xf]
    %v342 = vld [vmem:[%s1 + $0x4cc] sm:$0xf]
    %v343 = vld [vmem:[%s1 + $0x4d0] sm:$0xf]
    %v344 = vld [vmem:[%s1 + $0x4d4] sm:$0xf]
    %v345 = vld [vmem:[%s1 + $0x4d8] sm:$0xf]
    %v346 = vld [vmem:[%s1 + $0x4dc] sm:$0xf]
    %v347 = vld [vmem:[%s1 + $0x4e0] sm:$0xf]
    %v348 = vld [vmem:[%s1 + $0x4e4] sm:$0xf]
    %v349 = vld [vmem:[%s1 + $0x4e8] sm:$0xf]
    %v350 = vld [vmem:[%s1 + $0x4ec] sm:$0xf]
    %v351 = vld [vmem:[%s1 + $0x4f0] sm:$0xf]
    %v352 = vld [vmem:[%s1 + $0x4f4] sm:$0xf]
    %v353 = vld [vmem:[%s1 + $0x4f8] sm:$0xf]
    %v354 = vld [vmem:[%s1 + $0x4fc] sm:$0xf]
    %v355 = vld [vmem:[%s1 + $0x500] sm:$0xf]
    %v356 = vld [vmem:[%s1 + $0x504] sm:$0xf]
    %v357 = vld [vmem:[%s1 + $0x508] sm:$0xf]
    %v358 = vld [vmem:[%s1 + $0x50c] sm:$0xf]
    %v359 = vld [vmem:[%s1 + $0x510] sm:$0xf]
    %v360 = vld [vmem:[%s1 + $0x514] sm:$0xf]
    %v361 = vld [vmem:[%s1 + $0x518] sm:$0xf]
    %v362 = vld [vmem:[%s1 + $0x51c] sm:$0xf]
    %v363 = vld [vmem:[%s1 + $0x520] sm:$0xf]
    %v364 = vld [vmem:[%s1 + $0x524] sm:$0xf]
    %v365 = vld [vmem:[%s1 + $0x528] sm:$0xf]
    %v366 = vld [vmem:[%s1 + $0x52c] sm:$0xf]
    %v367 = vld [vmem:[%s1 + $0x530] sm:$0xf]
    %v368 = vld [vmem:[%s1 + $0x534] sm:$0xf]
    %v369 = vld [vmem:[%s1 + $0x538] sm:$0xf]
    %v370 = vld [vmem:[%s1 + $0x53c] sm:$0xf]
    %v371 = vld [vmem:[%s1 + $0x540] sm:$0xf]
    %v372 = vld [vmem:[%s1 + $0x544] sm:$0xf]
    %v373 = vld [vmem:[%s1 + $0x548] sm:$0xf]
    %v374 = vld [vmem:[%s1 + $0x54c] sm:$0xf]
    %v375 = vld [vmem:[%s1 + $0x550] sm:$0xf]
    %v376 = vld [vmem:[%s1 + $0x554] sm:$0xf]
    %v377 = vld [vmem:[%s1 + $0x558] sm:$0xf]
    %v378 = vld [vmem:[%s1 + $0x55c] sm:$0xf]
    %v379 = vld [vmem:[%s1 + $0x560] sm:$0xf]
    %v380 = vld [vmem:[%s1 + $0x564] sm:$0xf]
    %v381 = vld [vmem:[%s1 + $0x568] sm:$0xf]
    %v382 = vld [vmem:[%s1 + $0x56c] sm:$0xf]
    %v383 = vld [vmem:[%s1 + $0x570] sm:$0xf]
    %v384 = vld [vmem:[%s1 + $0x574] sm:$0xf]
    %v385 = vld [vmem:[%s1 + $0x578] sm:$0xf]
    %v386 = vld [vmem:[%s1 + $0x57c] sm:$0xf]
    %v387 = vld [vmem:[%s1 + $0x580] sm:$0xf]
    %v388 = vld [vmem:[%s1 + $0x584] sm:$0xf]
    %v389 = vld [vmem:[%s1 + $0x588] sm:$0xf]
    %v390 = vld [vmem:[%s1 + $0x58c] sm:$0xf]
    %v391 = vld [vmem:[%s1 + $0x590] sm:$0xf]
    %v392 = vld [vmem:[%s1 + $0x594] sm:$0xf]
    %v393 = vld [vmem:[%s1 + $0x598] sm:$0xf]
    %v394 = vld [vmem:[%s1 + $0x59c] sm:$0xf]
    %v395 = vld [vmem:[%s1 + $0x5a0] sm:$0xf]
    %v396 = vld [vmem:[%s1 + $0x5a4] sm:$0xf]
    %v397 = vld [vmem:[%s1 + $0x5a8] sm:$0xf]
    %v398 = vld [vmem:[%s1 + $0x5ac] sm:$0xf]
    %v399 = vld [vmem:[%s1 + $0x5b0] sm:$0xf]
    %v400 = vld [vmem:[%s1 + $0x5b4] sm:$0xf]
    %v401 = vld [vmem:[%s1 + $0x5b8] sm:$0xf]
    %v402 = vld [vmem:[%s1 + $0x5bc] sm:$0xf]
    %v403 = vld [vmem:[%s1 + $0x5c0] sm:$0xf]
    %v404 = vld [vmem:[%s1 + $0x5c4] sm:$0xf]
    %v405 = vld [vmem:[%s1 + $0x5c8] sm:$0xf]
    %v406 = vld [vmem:[%s1 + $0x5cc] sm:$0xf]
    %v407 = vld [vmem:[%s1 + $0x5d0] sm:$0xf]
    %v408 = vld [vmem:[%s1 + $0x5d4] sm:$0xf]
    %v409 = vld [vmem:[%s1 + $0x5d8] sm:$0xf]
    %v410 = vld [vmem:[%s1 + $0x5dc] sm:$0xf]
    %v411 = vld [vmem:[%s1 + $0x5e0] sm:$0xf]
    %v412 = vld [vmem:[%s1 + $0x5e4] sm:$0xf]
    %v413 = vld [vmem:[%s1 + $0x5e8] sm:$0xf]
    %v414 = vld [vmem:[%s1 + $0x5ec] sm:$0xf]
    %v415 = vld [vmem:[%s1 + $0x5f0] sm:$0xf]
    %v416 = vld [vmem:[%s1 + $0x5f4] sm:$0xf]
    %v417 = vld [vmem:[%s1 + $0x5f8] sm:$0xf]
    %v418 = vld [vmem:[%s1 + $0x5fc] sm:$0xf]
    %v419 = vld [vmem:[%s1 + $0x600] sm:$0xf]
    %v420 = vld [vmem:[%s1 + $0x604] sm:$0xf]
    %v421 = vld [vmem:[%s1 + $0x608] sm:$0xf]
    %v422 = vld [vmem:[%s1 + $0x60c] sm:$0xf]
    %v423 = vld [vmem:[%s1 + $0x610] sm:$0xf]
    %v424 = vld [vmem:[%s1 + $0x614] sm:$0xf]
    %v425 = vld [vmem:[%s1 + $0x618] sm:$0xf]
    %v426 = vld [vmem:[%s1 + $0x61c] sm:$0xf]
    %v427 = vld [vmem:[%s1 + $0x620] sm:$0xf]
    %v428 = vld [vmem:[%s1 + $0x624] sm:$0xf]
    %v429 = vld [vmem:[%s1 + $0x628] sm:$0xf]
    %v430 = vld [vmem:[%s1 + $0x62c] sm:$0xf]
    %v431 = vld [vmem:[%s1 + $0x630] sm:$0xf]
    %v432 = vld [vmem:[%s1 + $0x634] sm:$0xf]
    %v433 = vld [vmem:[%s1 + $0x638] sm:$0xf]
    %v434 = vld [vmem:[%s1 + $0x63c] sm:$0xf]
    %v435 = vld [vmem:[%s1 + $0x640] sm:$0xf]
    %v436 = vld [vmem:[%s1 + $0x644] sm:$0xf]
    %v437 = vld [vmem:[%s1 + $0x648] sm:$0xf]
    %v438 = vld [vmem:[%s1 + $0x64c] sm:$0xf]
    %v439 = vld [vmem:[%s1 + $0x650] sm:$0xf]
    %v440 = vld [vmem:[%s1 + $0x654] sm:$0xf]
    %v441 = vld [vmem:[%s1 + $0x658] sm:$0xf]
    %v442 = vld [vmem:[%s1 + $0x65c] sm:$0xf]
    %v443 = vld [vmem:[%s1 + $0x660] sm:$0xf]
    %v444 = vld [vmem:[%s1 + $0x664] sm:$0xf]
    %v445 = vld [vmem:[%s1 + $0x668] sm:$0xf]
    %v446 = vld [vmem:[%s1 + $0x66c] sm:$0xf]
    %v447 = vld [vmem:[%s1 + $0x670] sm:$0xf]
    %v448 = vld [vmem:[%s1 + $0x674] sm:$0xf]
    %v449 = vld [vmem:[%s1 + $0x678] sm:$0xf]
    %v450 = vld [vmem:[%s1 + $0x67c] sm:$0xf]
    %v451 = vld [vmem:[%s1 + $0x680] sm:$0xf]
    %v452 = vld [vmem:[%s1 + $0x684] sm:$0xf]
    %v453 = vld [vmem:[%s1 + $0x688] sm:$0xf]
    %v454 = vld [vmem:[%s1 + $0x68c] sm:$0xf]
    %v455 = vld [vmem:[%s1 + $0x690] sm:$0xf]
    %v456 = vld [vmem:[%s1 + $0x694] sm:$0xf]
    %v457 = vld [vmem:[%s1 + $0x698] sm:$0xf]
    %v458 = vld [vmem:[%s1 + $0x69c] sm:$0xf]
    %v459 = vld [vmem:[%s1 + $0x6a0] sm:$0xf]
    %v460 = vld [vmem:[%s1 + $0x6a4] sm:$0xf]
    %v461 = vld [vmem:[%s1 + $0x6a8] sm:$0xf]
    %v462 = vld [vmem:[%s1 + $0x6ac] sm:$0xf]
    %v463 = vld [vmem:[%s1 + $0x6b0] sm:$0xf]
    %v464 = vld [vmem:[%s1 + $0x6b4] sm:$0xf]
    %v465 = vld [vmem:[%s1 + $0x6b8] sm:$0xf]
    %v466 = vld [vmem:[%s1 + $0x6bc] sm:$0xf]
    %v467 = vld [vmem:[%s1 + $0x6c0] sm:$0xf]
    %v468 = vld [vmem:[%s1 + $0x6c4] sm:$0xf]
    %v469 = vld [vmem:[%s1 + $0x6c8] sm:$0xf]
    %v470 = vld [vmem:[%s1 + $0x6cc] sm:$0xf]
    %v471 = vld [vmem:[%s1 + $0x6d0] sm:$0xf]
    %v472 = vld [vmem:[%s1 + $0x6d4] sm:$0xf]
    %v473 = vld [vmem:[%s1 + $0x6d8] sm:$0xf]
    %v474 = vld [vmem:[%s1 + $0x6dc] sm:$0xf]
    %v475 = vld [vmem:[%s1 + $0x6e0] sm:$0xf]
    %v476 = vld [vmem:[%s1 + $0x6e4] sm:$0xf]
    %v477 = vld [vmem:[%s1 + $0x6e8] sm:$0xf]
    %v478 = vld [vmem:[%s1 + $0x6ec] sm:$0xf]
    %v479 = vld [vmem:[%s1 + $0x6f0] sm:$0xf]
    %v480 = vld [vmem:[%s1 + $0x6f4] sm:$0xf]
    %v481 = vld [vmem:[%s1 + $0x6f8] sm:$0xf]
    %v482 = vld [vmem:[%s1 + $0x6fc] sm:$0xf]
    %v483 = vld [vmem:[%s1 + $0x700] sm:$0xf]
    %v484 = vld [vmem:[%s1 + $0x704] sm:$0xf]
    %v485 = vld [vmem:[%s1 + $0x708] sm:$0xf]
    %v486 = vld [vmem:[%s1 + $0x70c] sm:$0xf]
    %v487 = vld [vmem:[%s1 + $0x710] sm:$0xf]
    %v488 = vld [vmem:[%s1 + $0x714] sm:$0xf]
    %v489 = vld [vmem:[%s1 + $0x718] sm:$0xf]
    %v490 = vld [vmem:[%s1 + $0x71c] sm:$0xf]
    %v491 = vld [vmem:[%s1 + $0x720] sm:$0xf]
    %v492 = vld [vmem:[%s1 + $0x724] sm:$0xf]
    %v493 = vld [vmem:[%s1 + $0x728] sm:$0xf]
    %v494 = vld [vmem:[%s1 + $0x72c] sm:$0xf]
    %v495 = vld [vmem:[%s1 + $0x730] sm:$0xf]
    %v496 = vld [vmem:[%s1 + $0x734] sm:$0xf]
    %v497 = vld [vmem:[%s1 + $0x738] sm:$0xf]
    %v498 = vld [vmem:[%s1 + $0x73c] sm:$0xf]
    %v499 = vld [vmem:[%s1 + $0x740] sm:$0xf]
    %v500 = vld [vmem:[%s1 + $0x744] sm:$0xf]
    %v501 = vld [vmem:[%s1 + $0x748] sm:$0xf]
    %v502 = vld [vmem:[%s1 + $0x74c] sm:$0xf]
    %v503 = vld [vmem:[%s1 + $0x750] sm:$0xf]
    %v504 = vld [vmem:[%s1 + $0x754] sm:$0xf]
    %v505 = vld [vmem:[%s1 + $0x758] sm:$0xf]
    %v506 = vld [vmem:[%s1 + $0x75c] sm:$0xf]
    %v507 = vld [vmem:[%s1 + $0x760] sm:$0xf]
    %v508 = vld [vmem:[%s1 + $0x764] sm:$0xf]
    %v509 = vld [vmem:[%s1 + $0x768] sm:$0xf]
    %v510 = vld [vmem:[%s1 + $0x76c] sm:$0xf]
    %v511 = vld [vmem:[%s1 + $0x770] sm:$0xf]
    %v512 = vld [vmem:[%s1 + $0x774] sm:$0xf]
    %v513 = vld [vmem:[%s1 + $0x778] sm:$0xf]
    %v514 = vld [vmem:[%s1 + $0x77c] sm:$0xf]
    %v515 = vld [vmem:[%s1 + $0x780] sm:$0xf]
    %v516 = vld [vmem:[%s1 + $0x784] sm:$0xf]
    %v517 = vld [vmem:[%s1 + $0x788] sm:$0xf]
    %v518 = vld [vmem:[%s1 + $0x78c] sm:$0xf]
    %v519 = vld [vmem:[%s1 + $0x790] sm:$0xf]
    %v520 = vld [vmem:[%s1 + $0x794] sm:$0xf]
    %v521 = vld [vmem:[%s1 + $0x798] sm:$0xf]
    %v522 = vld [vmem:[%s1 + $0x79c] sm:$0xf]
    %v523 = vld [vmem:[%s1 + $0x7a0] sm:$0xf]
    %v524 = vld [vmem:[%s1 + $0x7a4] sm:$0xf]
    %v525 = vld [vmem:[%s1 + $0x7a8] sm:$0xf]
    %v526 = vld [vmem:[%s1 + $0x7ac] sm:$0xf]
    %v527 = vld [vmem:[%s1 + $0x7b0] sm:$0xf]
    %v528 = vld [vmem:[%s1 + $0x7b4] sm:$0xf]
    %v529 = vld [vmem:[%s1 + $0x7b8] sm:$0xf]
    %v530 = vld [vmem:[%s1 + $0x7bc] sm:$0xf]
    %v531 = vld [vmem:[%s1 + $0x7c0] sm:$0xf]
    %v532 = vld [vmem:[%s1 + $0x7c4] sm:$0xf]
    %v533 = vld [vmem:[%s1 + $0x7c8] sm:$0xf]
    %v534 = vld [vmem:[%s1 + $0x7cc] sm:$0xf]
    %v535 = vld [vmem:[%s1 + $0x7d0] sm:$0xf]
    %v536 = vld [vmem:[%s1 + $0x7d4] sm:$0xf]
    %v537 = vld [vmem:[%s1 + $0x7d8] sm:$0xf]
    %v538 = vld [vmem:[%s1 + $0x7dc] sm:$0xf]
    %v539 = vld [vmem:[%s1 + $0x7e0] sm:$0xf]
    %v540 = vld [vmem:[%s1 + $0x7e4] sm:$0xf]
    %v541 = vld [vmem:[%s1 + $0x7e8] sm:$0xf]
    %v542 = vld [vmem:[%s1 + $0x7ec] sm:$0xf]
    %v543 = vld [vmem:[%s1 + $0x7f0] sm:$0xf]
    %v544 = vld [vmem:[%s1 + $0x7f4] sm:$0xf]
    %v545 = vld [vmem:[%s1 + $0x7f8] sm:$0xf]
    %v546 = vld [vmem:[%s1 + $0x7fc] sm:$0xf]
    %v547 = vld [vmem:[%s1 + $0x800] sm:$0xf]
    %v548 = vld [vmem:[%s1 + $0x804] sm:$0xf]
    %v549 = vld [vmem:[%s1 + $0x808] sm:$0xf]
    %v550 = vld [vmem:[%s1 + $0x80c] sm:$0xf]
    %v551 = vld [vmem:[%s1 + $0x810] sm:$0xf]
    %v552 = vld [vmem:[%s1 + $0x814] sm:$0xf]
    %v553 = vld [vmem:[%s1 + $0x818] sm:$0xf]
    %v554 = vld [vmem:[%s1 + $0x81c] sm:$0xf]
    %v555 = vld [vmem:[%s1 + $0x820] sm:$0xf]
    %v556 = vld [vmem:[%s1 + $0x824] sm:$0xf]
    %v557 = vld [vmem:[%s1 + $0x828] sm:$0xf]
    %v558 = vld [vmem:[%s1 + $0x82c] sm:$0xf]
    %v559 = vld [vmem:[%s1 + $0x830] sm:$0xf]
    %v560 = vld [vmem:[%s1 + $0x834] sm:$0xf]
    %v561 = vld [vmem:[%s1 + $0x838] sm:$0xf]
    %v562 = vld [vmem:[%s1 + $0x83c] sm:$0xf]
    %v563 = vld [vmem:[%s1 + $0x840] sm:$0xf]
    %v564 = vld [vmem:[%s1 + $0x844] sm:$0xf]
    %v565 = vld [vmem:[%s1 + $0x848] sm:$0xf]
    %v566 = vld [vmem:[%s1 + $0x84c] sm:$0xf]
    %v567 = vld [vmem:[%s1 + $0x850] sm:$0xf]
    %v568 = vld [vmem:[%s1 + $0x854] sm:$0xf]
    %v569 = vld [vmem:[%s1 + $0x858] sm:$0xf]
    %v570 = vld [vmem:[%s1 + $0x85c] sm:$0xf]
    %v571 = vld [vmem:[%s1 + $0x860] sm:$0xf]
    %v572 = vld [vmem:[%s1 + $0x864] sm:$0xf]
    %v573 = vld [vmem:[%s1 + $0x868] sm:$0xf]
    %v574 = vld [vmem:[%s1 + $0x86c] sm:$0xf]
    %v575 = vld [vmem:[%s1 + $0x870] sm:$0xf]
    %v576 = vld [vmem:[%s1 + $0x874] sm:$0xf]
    %v577 = vld [vmem:[%s1 + $0x878] sm:$0xf]
    %v578 = vld [vmem:[%s1 + $0x87c] sm:$0xf]
    %v579 = vld [vmem:[%s1 + $0x880] sm:$0xf]
    %v580 = vld [vmem:[%s1 + $0x884] sm:$0xf]
    %v581 = vld [vmem:[%s1 + $0x888] sm:$0xf]
    %v582 = vld [vmem:[%s1 + $0x88c] sm:$0xf]
    %v583 = vld [vmem:[%s1 + $0x890] sm:$0xf]
    %v584 = vld [vmem:[%s1 + $0x894] sm:$0xf]
    %v585 = vld [vmem:[%s1 + $0x898] sm:$0xf]
    %v586 = vld [vmem:[%s1 + $0x89c] sm:$0xf]
    %v587 = vld [vmem:[%s1 + $0x8a0] sm:$0xf]
    %v588 = vld [vmem:[%s1 + $0x8a4] sm:$0xf]
    %v589 = vld [vmem:[%s1 + $0x8a8] sm:$0xf]
    %v590 = vld [vmem:[%s1 + $0x8ac] sm:$0xf]
    %v591 = vld [vmem:[%s1 + $0x8b0] sm:$0xf]
    %v592 = vld [vmem:[%s1 + $0x8b4] sm:$0xf]
    %v593 = vld [vmem:[%s1 + $0x8b8] sm:$0xf]
    %v594 = vld [vmem:[%s1 + $0x8bc] sm:$0xf]
    %v595 = vld [vmem:[%s1 + $0x8c0] sm:$0xf]
    %v596 = vld [vmem:[%s1 + $0x8c4] sm:$0xf]
    %v597 = vld [vmem:[%s1 + $0x8c8] sm:$0xf]
    %v598 = vld [vmem:[%s1 + $0x8cc] sm:$0xf]
    %v599 = vld [vmem:[%s1 + $0x8d0] sm:$0xf]
    %v600 = vld [vmem:[%s1 + $0x8d4] sm:$0xf]
    %v601 = vld [vmem:[%s1 + $0x8d8] sm:$0xf]
    %v602 = vld [vmem:[%s1 + $0x8dc] sm:$0xf]
    %v603 = vld [vmem:[%s1 + $0x8e0] sm:$0xf]
    %v604 = vld [vmem:[%s1 + $0x8e4] sm:$0xf]
    %v605 = vld [vmem:[%s1 + $0x8e8] sm:$0xf]
    %v606 = vld [vmem:[%s1 + $0x8ec] sm:$0xf]
    %v607 = vld [vmem:[%s1 + $0x8f0] sm:$0xf]
    %v608 = vld [vmem:[%s1 + $0x8f4] sm:$0xf]
    %v609 = vld [vmem:[%s1 + $0x8f8] sm:$0xf]
    %v610 = vld [vmem:[%s1 + $0x8fc] sm:$0xf]
    %v611 = vld [vmem:[%s1 + $0x900] sm:$0xf]
    %v612 = vld [vmem:[%s1 + $0x904] sm:$0xf]
    %v613 = vld [vmem:[%s1 + $0x908] sm:$0xf]
    %v614 = vld [vmem:[%s1 + $0x90c] sm:$0xf]
    %v615 = vld [vmem:[%s1 + $0x910] sm:$0xf]
    %v616 = vld [vmem:[%s1 + $0x914] sm:$0xf]
    %v617 = vld [vmem:[%s1 + $0x918] sm:$0xf]
    %v618 = vld [vmem:[%s1 + $0x91c] sm:$0xf]
    %v619 = vld [vmem:[%s1 + $0x920] sm:$0xf]
    %v620 = vld [vmem:[%s1 + $0x924] sm:$0xf]
    %v621 = vld [vmem:[%s1 + $0x928] sm:$0xf]
    %v622 = vld [vmem:[%s1 + $0x92c] sm:$0xf]
    %v623 = vld [vmem:[%s1 + $0x930] sm:$0xf]
    %v624 = vld [vmem:[%s1 + $0x934] sm:$0xf]
    %v625 = vld [vmem:[%s1 + $0x938] sm:$0xf]
    %v626 = vld [vmem:[%s1 + $0x93c] sm:$0xf]
    %v627 = vld [vmem:[%s1 + $0x940] sm:$0xf]
    %v628 = vld [vmem:[%s1 + $0x944] sm:$0xf]
    %v629 = vld [vmem:[%s1 + $0x948] sm:$0xf]
    %v630 = vld [vmem:[%s1 + $0x94c] sm:$0xf]
    %v631 = vld [vmem:[%s1 + $0x950] sm:$0xf]
    %v632 = vld [vmem:[%s1 + $0x954] sm:$0xf]
    %v633 = vld [vmem:[%s1 + $0x958] sm:$0xf]
    %v634 = vld [vmem:[%s1 + $0x95c] sm:$0xf]
    %v635 = vld [vmem:[%s1 + $0x960] sm:$0xf]
    %v636 = vld [vmem:[%s1 + $0x964] sm:$0xf]
    %v637 = vld [vmem:[%s1 + $0x968] sm:$0xf]
    %v638 = vld [vmem:[%s1 + $0x96c] sm:$0xf]
    %v639 = vld [vmem:[%s1 + $0x970] sm:$0xf]
    %v640 = vld [vmem:[%s1 + $0x974] sm:$0xf]
    %v641 = vld [vmem:[%s1 + $0x978] sm:$0xf]
    %v642 = vld [vmem:[%s1 + $0x97c] sm:$0xf]
    %v643 = vld [vmem:[%s1 + $0x980] sm:$0xf]
    %v644 = vld [vmem:[%s1 + $0x984] sm:$0xf]
    %v645 = vld [vmem:[%s1 + $0x988] sm:$0xf]
    %v646 = vld [vmem:[%s1 + $0x98c] sm:$0xf]
    %v647 = vld [vmem:[%s1 + $0x990] sm:$0xf]
    %v648 = vld [vmem:[%s1 + $0x994] sm:$0xf]
    %v649 = vld [vmem:[%s1 + $0x998] sm:$0xf]
    %v650 = vld [vmem:[%s1 + $0x99c] sm:$0xf]
    %v651 = vld [vmem:[%s1 + $0x9a0] sm:$0xf]
    %v652 = vld [vmem:[%s1 + $0x9a4] sm:$0xf]
    %v653 = vld [vmem:[%s1 + $0x9a8] sm:$0xf]
    %v654 = vld [vmem:[%s1 + $0x9ac] sm:$0xf]
    %v655 = vld [vmem:[%s1 + $0x9b0] sm:$0xf]
    %v656 = vld [vmem:[%s1 + $0x9b4] sm:$0xf]
    %v657 = vld [vmem:[%s1 + $0x9b8] sm:$0xf]
    %v658 = vld [vmem:[%s1 + $0x9bc] sm:$0xf]
    %v659 = vld [vmem:[%s1 + $0x9c0] sm:$0xf]
    %v660 = vld [vmem:[%s1 + $0x9c4] sm:$0xf]
    %v661 = vld [vmem:[%s1 + $0x9c8] sm:$0xf]
    %v662 = vld [vmem:[%s1 + $0x9cc] sm:$0xf]
    %v663 = vld [vmem:[%s1 + $0x9d0] sm:$0xf]
    %v664 = vld [vmem:[%s1 + $0x9d4] sm:$0xf]
    %v665 = vld [vmem:[%s1 + $0x9d8] sm:$0xf]
    %v666 = vld [vmem:[%s1 + $0x9dc] sm:$0xf]
    %v667 = vld [vmem:[%s1 + $0x9e0] sm:$0xf]
    %v668 = vld [vmem:[%s1 + $0x9e4] sm:$0xf]
    %v669 = vld [vmem:[%s1 + $0x9e8] sm:$0xf]
    %v670 = vld [vmem:[%s1 + $0x9ec] sm:$0xf]
    %v671 = vld [vmem:[%s1 + $0x9f0] sm:$0xf]
    %v672 = vld [vmem:[%s1 + $0x9f4] sm:$0xf]
    %v673 = vld [vmem:[%s1 + $0x9f8] sm:$0xf]
    %v674 = vld [vmem:[%s1 + $0x9fc] sm:$0xf]
    %v675 = vld [vmem:[%s1 + $0xa00] sm:$0xf]
    %v676 = vld [vmem:[%s1 + $0xa04] sm:$0xf]
    %v677 = vld [vmem:[%s1 + $0xa08] sm:$0xf]
    %v678 = vld [vmem:[%s1 + $0xa0c] sm:$0xf]
    %v679 = vld [vmem:[%s1 + $0xa10] sm:$0xf]
    %v680 = vld [vmem:[%s1 + $0xa14] sm:$0xf]
    %v681 = vld [vmem:[%s1 + $0xa18] sm:$0xf]
    %v682 = vld [vmem:[%s1 + $0xa1c] sm:$0xf]
    %v683 = vld [vmem:[%s1 + $0xa20] sm:$0xf]
    %v684 = vld [vmem:[%s1 + $0xa24] sm:$0xf]
    %v685 = vld [vmem:[%s1 + $0xa28] sm:$0xf]
    %v686 = vld [vmem:[%s1 + $0xa2c] sm:$0xf]
    %v687 = vld [vmem:[%s1 + $0xa30] sm:$0xf]
    %v688 = vld [vmem:[%s1 + $0xa34] sm:$0xf]
    %v689 = vld [vmem:[%s1 + $0xa38] sm:$0xf]
    %v690 = vld [vmem:[%s1 + $0xa3c] sm:$0xf]
    %v691 = vld [vmem:[%s1 + $0xa40] sm:$0xf]
    %v692 = vld [vmem:[%s1 + $0xa44] sm:$0xf]
    %v693 = vld [vmem:[%s1 + $0xa48] sm:$0xf]
    %v694 = vld [vmem:[%s1 + $0xa4c] sm:$0xf]
    %v695 = vld [vmem:[%s1 + $0xa50] sm:$0xf]
    %v696 = vld [vmem:[%s1 + $0xa54] sm:$0xf]
    %v697 = vld [vmem:[%s1 + $0xa58] sm:$0xf]
    %v698 = vld [vmem:[%s1 + $0xa5c] sm:$0xf]
    %v699 = vld [vmem:[%s1 + $0xa60] sm:$0xf]
    %v700 = vld [vmem:[%s1 + $0xa64] sm:$0xf]
    %v701 = vld [vmem:[%s1 + $0xa68] sm:$0xf]
    %v702 = vld [vmem:[%s1 + $0xa6c] sm:$0xf]
    %v703 = vld [vmem:[%s1 + $0xa70] sm:$0xf]
    %v704 = vld [vmem:[%s1 + $0xa74] sm:$0xf]
    %v705 = vld [vmem:[%s1 + $0xa78] sm:$0xf]
    %v706 = vld [vmem:[%s1 + $0xa7c] sm:$0xf]
    %v707 = vld [vmem:[%s1 + $0xa80] sm:$0xf]
    %v708 = vld [vmem:[%s1 + $0xa84] sm:$0xf]
    %v709 = vld [vmem:[%s1 + $0xa88] sm:$0xf]
    %v710 = vld [vmem:[%s1 + $0xa8c] sm:$0xf]
    %v711 = vld [vmem:[%s1 + $0xa90] sm:$0xf]
    %v712 = vld [vmem:[%s1 + $0xa94] sm:$0xf]
    %v713 = vld [vmem:[%s1 + $0xa98] sm:$0xf]
    %v714 = vld [vmem:[%s1 + $0xa9c] sm:$0xf]
    %v715 = vld [vmem:[%s1 + $0xaa0] sm:$0xf]
    %v716 = vld [vmem:[%s1 + $0xaa4] sm:$0xf]
    %v717 = vld [vmem:[%s1 + $0xaa8] sm:$0xf]
    %v718 = vld [vmem:[%s1 + $0xaac] sm:$0xf]
    %v719 = vld [vmem:[%s1 + $0xab0] sm:$0xf]
    %v720 = vld [vmem:[%s1 + $0xab4] sm:$0xf]
    %v721 = vld [vmem:[%s1 + $0xab8] sm:$0xf]
    %v722 = vld [vmem:[%s1 + $0xabc] sm:$0xf]
    %v723 = vld [vmem:[%s1 + $0xac0] sm:$0xf]
    %v724 = vld [vmem:[%s1 + $0xac4] sm:$0xf]
    %v725 = vld [vmem:[%s1 + $0xac8] sm:$0xf]
    %v726 = vld [vmem:[%s1 + $0xacc] sm:$0xf]
    %v727 = vld [vmem:[%s1 + $0xad0] sm:$0xf]
    %v728 = vld [vmem:[%s1 + $0xad4] sm:$0xf]
    %v729 = vld [vmem:[%s1 + $0xad8] sm:$0xf]
    %v730 = vld [vmem:[%s1 + $0xadc] sm:$0xf]
    %v731 = vld [vmem:[%s1 + $0xae0] sm:$0xf]
    %v732 = vld [vmem:[%s1 + $0xae4] sm:$0xf]
    %v733 = vld [vmem:[%s1 + $0xae8] sm:$0xf]
    %v734 = vld [vmem:[%s1 + $0xaec] sm:$0xf]
    %v735 = vld [vmem:[%s1 + $0xaf0] sm:$0xf]
    %v736 = vld [vmem:[%s1 + $0xaf4] sm:$0xf]
    %v737 = vld [vmem:[%s1 + $0xaf8] sm:$0xf]
    %v738 = vld [vmem:[%s1 + $0xafc] sm:$0xf]
    %v739 = vld [vmem:[%s1 + $0xb00] sm:$0xf]
    %v740 = vld [vmem:[%s1 + $0xb04] sm:$0xf]
    %v741 = vld [vmem:[%s1 + $0xb08] sm:$0xf]
    %v742 = vld [vmem:[%s1 + $0xb0c] sm:$0xf]
    %v743 = vld [vmem:[%s1 + $0xb10] sm:$0xf]
    %v744 = vld [vmem:[%s1 + $0xb14] sm:$0xf]
    %v745 = vld [vmem:[%s1 + $0xb18] sm:$0xf]
    %v746 = vld [vmem:[%s1 + $0xb1c] sm:$0xf]
    %v747 = vld [vmem:[%s1 + $0xb20] sm:$0xf]
    %v748 = vld [vmem:[%s1 + $0xb24] sm:$0xf]
    %v749 = vld [vmem:[%s1 + $0xb28] sm:$0xf]
    %v750 = vld [vmem:[%s1 + $0xb2c] sm:$0xf]
    %v751 = vld [vmem:[%s1 + $0xb30] sm:$0xf]
    %v752 = vld [vmem:[%s1 + $0xb34] sm:$0xf]
    %v753 = vld [vmem:[%s1 + $0xb38] sm:$0xf]
    %v754 = vld [vmem:[%s1 + $0xb3c] sm:$0xf]
    %v755 = vld [vmem:[%s1 + $0xb40] sm:$0xf]
    %v756 = vld [vmem:[%s1 + $0xb44] sm:$0xf]
    %v757 = vld [vmem:[%s1 + $0xb48] sm:$0xf]
    %v758 = vld [vmem:[%s1 + $0xb4c] sm:$0xf]
    %v759 = vld [vmem:[%s1 + $0xb50] sm:$0xf]
    %v760 = vld [vmem:[%s1 + $0xb54] sm:$0xf]
    %v761 = vld [vmem:[%s1 + $0xb58] sm:$0xf]
    %v762 = vld [vmem:[%s1 + $0xb5c] sm:$0xf]
    %v763 = vld [vmem:[%s1 + $0xb60] sm:$0xf]
    %v764 = vld [vmem:[%s1 + $0xb64] sm:$0xf]
    %v765 = vld [vmem:[%s1 + $0xb68] sm:$0xf]
    %v766 = vld [vmem:[%s1 + $0xb6c] sm:$0xf]
    %v767 = vld [vmem:[%s1 + $0xb70] sm:$0xf]
    %v768 = vld [vmem:[%s1 + $0xb74] sm:$0xf]
    %v769 = vld [vmem:[%s1 + $0xb78] sm:$0xf]
    %v770 = vld [vmem:[%s1 + $0xb7c] sm:$0xf]
    %v771 = vld [vmem:[%s1 + $0xb80] sm:$0xf]
    %v772 = vld [vmem:[%s1 + $0xb84] sm:$0xf]
    %v773 = vld [vmem:[%s1 + $0xb88] sm:$0xf]
    %v774 = vld [vmem:[%s1 + $0xb8c] sm:$0xf]
    %v775 = vld [vmem:[%s1 + $0xb90] sm:$0xf]
    %v776 = vld [vmem:[%s1 + $0xb94] sm:$0xf]
    %v777 = vld [vmem:[%s1 + $0xb98] sm:$0xf]
    %v778 = vld [vmem:[%s1 + $0xb9c] sm:$0xf]
    %v779 = vld [vmem:[%s1 + $0xba0] sm:$0xf]
    %v780 = vld [vmem:[%s1 + $0xba4] sm:$0xf]
    %v781 = vld [vmem:[%s1 + $0xba8] sm:$0xf]
    %v782 = vld [vmem:[%s1 + $0xbac] sm:$0xf]
    %v783 = vld [vmem:[%s1 + $0xbb0] sm:$0xf]
    %v784 = vld [vmem:[%s1 + $0xbb4] sm:$0xf]
    %v785 = vld [vmem:[%s1 + $0xbb8] sm:$0xf]
    %v786 = vld [vmem:[%s1 + $0xbbc] sm:$0xf]
    %v787 = vld [vmem:[%s1 + $0xbc0] sm:$0xf]
    %v788 = vld [vmem:[%s1 + $0xbc4] sm:$0xf]
    %v789 = vld [vmem:[%s1 + $0xbc8] sm:$0xf]
    %v790 = vld [vmem:[%s1 + $0xbcc] sm:$0xf]
    %v791 = vld [vmem:[%s1 + $0xbd0] sm:$0xf]
    %v792 = vld [vmem:[%s1 + $0xbd4] sm:$0xf]
    %v793 = vld [vmem:[%s1 + $0xbd8] sm:$0xf]
    %v794 = vld [vmem:[%s1 + $0xbdc] sm:$0xf]
    %v795 = vld [vmem:[%s1 + $0xbe0] sm:$0xf]
    %v796 = vld [vmem:[%s1 + $0xbe4] sm:$0xf]
    %v797 = vld [vmem:[%s1 + $0xbe8] sm:$0xf]
    %v798 = vld [vmem:[%s1 + $0xbec] sm:$0xf]
    %v799 = vld [vmem:[%s1 + $0xbf0] sm:$0xf]
    %v800 = vld [vmem:[%s1 + $0xbf4] sm:$0xf]
    %v801 = vld [vmem:[%s1 + $0xbf8] sm:$0xf]
    %v802 = vld [vmem:[%s1 + $0xbfc] sm:$0xf]
    %v803 = vld [vmem:[%s1 + $0xc00] sm:$0xf]
    %v804 = vld [vmem:[%s1 + $0xc04] sm:$0xf]
    %v805 = vld [vmem:[%s1 + $0xc08] sm:$0xf]
    %v806 = vld [vmem:[%s1 + $0xc0c] sm:$0xf]
    %v807 = vld [vmem:[%s1 + $0xc10] sm:$0xf]
    %v808 = vld [vmem:[%s1 + $0xc14] sm:$0xf]
    %v809 = vld [vmem:[%s1 + $0xc18] sm:$0xf]
    %v810 = vld [vmem:[%s1 + $0xc1c] sm:$0xf]
    %v811 = vld [vmem:[%s1 + $0xc20] sm:$0xf]
    %v812 = vld [vmem:[%s1 + $0xc24] sm:$0xf]
    %v813 = vld [vmem:[%s1 + $0xc28] sm:$0xf]
    %v814 = vld [vmem:[%s1 + $0xc2c] sm:$0xf]
    %v815 = vld [vmem:[%s1 + $0xc30] sm:$0xf]
    %v816 = vld [vmem:[%s1 + $0xc34] sm:$0xf]
    %v817 = vld [vmem:[%s1 + $0xc38] sm:$0xf]
    %v818 = vld [vmem:[%s1 + $0xc3c] sm:$0xf]
    %v819 = vld [vmem:[%s2] sm:$0x1]
    %v821 = vlaneseq
    %v822 = vshrl.u32 %v821, 7
    %v823 = vsub.s32 0, %v822
    %v824 = vrot.slane %v819, %v823
    %v833 = vcombine.high %v28, %v28
    %v835 = vunpack.c.l.s4 1966171168
    %v836 = vunpack.c.0.s8 %v835
    %v837 = vlaneseq
    %v838 = vshrl.u32 %v837, 7
    %v839 = vsub.s32 %v836, %v838
    %v840 = vrot.slane %v28, %v839
    %v842 = vunpack.c.l.s4 1966171168
    %v843 = vunpack.c.0.s8 %v842
    %v844 = vlaneseq
    %v845 = vshrl.u32 %v844, 7
    %v846 = vsub.s32 %v843, %v845
    %v847 = vrot.slane %v833, %v846
    %v848 = vcombine.high %v840, %v840
    %v849 = vcombine.high %v847, %v847
    %v851 = vunpack.c.l.s4 1966171168
    %v852 = vunpack.c.0.s8 %v851
    %v853 = vlaneseq
    %v854 = vshrl.u32 %v853, 7
    %v855 = vsub.s32 %v852, %v854
    %v856 = vrot.slane %v840, %v855
    %v858 = vunpack.c.l.s4 1966171168
    %v859 = vunpack.c.0.s8 %v858
    %v860 = vlaneseq
    %v861 = vshrl.u32 %v860, 7
    %v862 = vsub.s32 %v859, %v861
    %v863 = vrot.slane %v847, %v862
    %v865 = vunpack.c.l.s4 1966171168
    %v866 = vunpack.c.0.s8 %v865
    %v867 = vlaneseq
    %v868 = vshrl.u32 %v867, 7
    %v869 = vsub.s32 %v866, %v868
    %v870 = vrot.slane %v848, %v869
    %v872 = vunpack.c.l.s4 1966171168
    %v873 = vunpack.c.0.s8 %v872
    %v874 = vlaneseq
    %v875 = vshrl.u32 %v874, 7
    %v876 = vsub.s32 %v873, %v875
    %v877 = vrot.slane %v849, %v876
    %v878 = vcombine.high %v856, %v856
    %v879 = vcombine.high %v863, %v863
    %v880 = vcombine.high %v870, %v870
    %v881 = vcombine.high %v877, %v877
    %v882 = vcombine.high %v29, %v29
    %v884 = vunpack.c.l.s4 1966171168
    %v885 = vunpack.c.0.s8 %v884
    %v886 = vlaneseq
    %v887 = vshrl.u32 %v886, 7
    %v888 = vsub.s32 %v885, %v887
    %v889 = vrot.slane %v29, %v888
    %v891 = vunpack.c.l.s4 1966171168
    %v892 = vunpack.c.0.s8 %v891
    %v893 = vlaneseq
    %v894 = vshrl.u32 %v893, 7
    %v895 = vsub.s32 %v892, %v894
    %v896 = vrot.slane %v882, %v895
    %v897 = vcombine.high %v889, %v889
    %v898 = vcombine.high %v896, %v896
    %v900 = vunpack.c.l.s4 1966171168
    %v901 = vunpack.c.0.s8 %v900
    %v902 = vlaneseq
    %v903 = vshrl.u32 %v902, 7
    %v904 = vsub.s32 %v901, %v903
    %v905 = vrot.slane %v889, %v904
    %v907 = vunpack.c.l.s4 1966171168
    %v908 = vunpack.c.0.s8 %v907
    %v909 = vlaneseq
    %v910 = vshrl.u32 %v909, 7
    %v911 = vsub.s32 %v908, %v910
    %v912 = vrot.slane %v896, %v911
    %v914 = vunpack.c.l.s4 1966171168
    %v915 = vunpack.c.0.s8 %v914
    %v916 = vlaneseq
    %v917 = vshrl.u32 %v916, 7
    %v918 = vsub.s32 %v915, %v917
    %v919 = vrot.slane %v897, %v918
    %v921 = vunpack.c.l.s4 1966171168
    %v922 = vunpack.c.0.s8 %v921
    %v923 = vlaneseq
    %v924 = vshrl.u32 %v923, 7
    %v925 = vsub.s32 %v922, %v924
    %v926 = vrot.slane %v898, %v925
    %v927 = vcombine.high %v905, %v905
    %v928 = vcombine.high %v912, %v912
    %v929 = vcombine.high %v919, %v919
    %v930 = vcombine.high %v926, %v926
    %v931 = vcombine.high %v30, %v30
    %v933 = vunpack.c.l.s4 1966171168
    %v934 = vunpack.c.0.s8 %v933
    %v935 = vlaneseq
    %v936 = vshrl.u32 %v935, 7
    %v937 = vsub.s32 %v934, %v936
    %v938 = vrot.slane %v30, %v937
    %v940 = vunpack.c.l.s4 1966171168
    %v941 = vunpack.c.0.s8 %v940
    %v942 = vlaneseq
    %v943 = vshrl.u32 %v942, 7
    %v944 = vsub.s32 %v941, %v943
    %v945 = vrot.slane %v931, %v944
    %v946 = vcombine.high %v938, %v938
    %v947 = vcombine.high %v945, %v945
    %v949 = vunpack.c.l.s4 1966171168
    %v950 = vunpack.c.0.s8 %v949
    %v951 = vlaneseq
    %v952 = vshrl.u32 %v951, 7
    %v953 = vsub.s32 %v950, %v952
    %v954 = vrot.slane %v938, %v953
    %v956 = vunpack.c.l.s4 1966171168
    %v957 = vunpack.c.0.s8 %v956
    %v958 = vlaneseq
    %v959 = vshrl.u32 %v958, 7
    %v960 = vsub.s32 %v957, %v959
    %v961 = vrot.slane %v945, %v960
    %v963 = vunpack.c.l.s4 1966171168
    %v964 = vunpack.c.0.s8 %v963
    %v965 = vlaneseq
    %v966 = vshrl.u32 %v965, 7
    %v967 = vsub.s32 %v964, %v966
    %v968 = vrot.slane %v946, %v967
    %v970 = vunpack.c.l.s4 1966171168
    %v971 = vunpack.c.0.s8 %v970
    %v972 = vlaneseq
    %v973 = vshrl.u32 %v972, 7
    %v974 = vsub.s32 %v971, %v973
    %v975 = vrot.slane %v947, %v974
    %v976 = vcombine.high %v954, %v954
    %v977 = vcombine.high %v961, %v961
    %v978 = vcombine.high %v968, %v968
    %v979 = vcombine.high %v975, %v975
    %v980 = vcombine.high %v31, %v31
    %v982 = vunpack.c.l.s4 1966171168
    %v983 = vunpack.c.0.s8 %v982
    %v984 = vlaneseq
    %v985 = vshrl.u32 %v984, 7
    %v986 = vsub.s32 %v983, %v985
    %v987 = vrot.slane %v31, %v986
    %v989 = vunpack.c.l.s4 1966171168
    %v990 = vunpack.c.0.s8 %v989
    %v991 = vlaneseq
    %v992 = vshrl.u32 %v991, 7
    %v993 = vsub.s32 %v990, %v992
    %v994 = vrot.slane %v980, %v993
    %v995 = vcombine.high %v987, %v987
    %v996 = vcombine.high %v994, %v994
    %v998 = vunpack.c.l.s4 1966171168
    %v999 = vunpack.c.0.s8 %v998
    %v1000 = vlaneseq
    %v1001 = vshrl.u32 %v1000, 7
    %v1002 = vsub.s32 %v999, %v1001
    %v1003 = vrot.slane %v987, %v1002
    %v1005 = vunpack.c.l.s4 1966171168
    %v1006 = vunpack.c.0.s8 %v1005
    %v1007 = vlaneseq
    %v1008 = vshrl.u32 %v1007, 7
    %v1009 = vsub.s32 %v1006, %v1008
    %v1010 = vrot.slane %v994, %v1009
    %v1012 = vunpack.c.l.s4 1966171168
    %v1013 = vunpack.c.0.s8 %v1012
    %v1014 = vlaneseq
    %v1015 = vshrl.u32 %v1014, 7
    %v1016 = vsub.s32 %v1013, %v1015
    %v1017 = vrot.slane %v995, %v1016
    %v1019 = vunpack.c.l.s4 1966171168
    %v1020 = vunpack.c.0.s8 %v1019
    %v1021 = vlaneseq
    %v1022 = vshrl.u32 %v1021, 7
    %v1023 = vsub.s32 %v1020, %v1022
    %v1024 = vrot.slane %v996, %v1023
    %v1025 = vcombine.high %v1003, %v1003
    %v1026 = vcombine.high %v1010, %v1010
    %v1027 = vcombine.high %v1017, %v1017
    %v1028 = vcombine.high %v1024, %v1024
    %v1029 = vcombine.high %v32, %v32
    %v1031 = vunpack.c.l.s4 1966171168
    %v1032 = vunpack.c.0.s8 %v1031
    %v1033 = vlaneseq
    %v1034 = vshrl.u32 %v1033, 7
    %v1035 = vsub.s32 %v1032, %v1034
    %v1036 = vrot.slane %v32, %v1035
    %v1038 = vunpack.c.l.s4 1966171168
    %v1039 = vunpack.c.0.s8 %v1038
    %v1040 = vlaneseq
    %v1041 = vshrl.u32 %v1040, 7
    %v1042 = vsub.s32 %v1039, %v1041
    %v1043 = vrot.slane %v1029, %v1042
    %v1044 = vcombine.high %v1036, %v1036
    %v1045 = vcombine.high %v1043, %v1043
    %v1047 = vunpack.c.l.s4 1966171168
    %v1048 = vunpack.c.0.s8 %v1047
    %v1049 = vlaneseq
    %v1050 = vshrl.u32 %v1049, 7
    %v1051 = vsub.s32 %v1048, %v1050
    %v1052 = vrot.slane %v1036, %v1051
    %v1054 = vunpack.c.l.s4 1966171168
    %v1055 = vunpack.c.0.s8 %v1054
    %v1056 = vlaneseq
    %v1057 = vshrl.u32 %v1056, 7
    %v1058 = vsub.s32 %v1055, %v1057
    %v1059 = vrot.slane %v1043, %v1058
    %v1061 = vunpack.c.l.s4 1966171168
    %v1062 = vunpack.c.0.s8 %v1061
    %v1063 = vlaneseq
    %v1064 = vshrl.u32 %v1063, 7
    %v1065 = vsub.s32 %v1062, %v1064
    %v1066 = vrot.slane %v1044, %v1065
    %v1068 = vunpack.c.l.s4 1966171168
    %v1069 = vunpack.c.0.s8 %v1068
    %v1070 = vlaneseq
    %v1071 = vshrl.u32 %v1070, 7
    %v1072 = vsub.s32 %v1069, %v1071
    %v1073 = vrot.slane %v1045, %v1072
    %v1074 = vcombine.high %v1052, %v1052
    %v1075 = vcombine.high %v1059, %v1059
    %v1076 = vcombine.high %v1066, %v1066
    %v1077 = vcombine.high %v1073, %v1073
    %v1078 = vcombine.high %v33, %v33
    %v1080 = vunpack.c.l.s4 1966171168
    %v1081 = vunpack.c.0.s8 %v1080
    %v1082 = vlaneseq
    %v1083 = vshrl.u32 %v1082, 7
    %v1084 = vsub.s32 %v1081, %v1083
    %v1085 = vrot.slane %v33, %v1084
    %v1087 = vunpack.c.l.s4 1966171168
    %v1088 = vunpack.c.0.s8 %v1087
    %v1089 = vlaneseq
    %v1090 = vshrl.u32 %v1089, 7
    %v1091 = vsub.s32 %v1088, %v1090
    %v1092 = vrot.slane %v1078, %v1091
    %v1093 = vcombine.high %v1085, %v1085
    %v1094 = vcombine.high %v1092, %v1092
    %v1096 = vunpack.c.l.s4 1966171168
    %v1097 = vunpack.c.0.s8 %v1096
    %v1098 = vlaneseq
    %v1099 = vshrl.u32 %v1098, 7
    %v1100 = vsub.s32 %v1097, %v1099
    %v1101 = vrot.slane %v1085, %v1100
    %v1103 = vunpack.c.l.s4 1966171168
    %v1104 = vunpack.c.0.s8 %v1103
    %v1105 = vlaneseq
    %v1106 = vshrl.u32 %v1105, 7
    %v1107 = vsub.s32 %v1104, %v1106
    %v1108 = vrot.slane %v1092, %v1107
    %v1110 = vunpack.c.l.s4 1966171168
    %v1111 = vunpack.c.0.s8 %v1110
    %v1112 = vlaneseq
    %v1113 = vshrl.u32 %v1112, 7
    %v1114 = vsub.s32 %v1111, %v1113
    %v1115 = vrot.slane %v1093, %v1114
    %v1117 = vunpack.c.l.s4 1966171168
    %v1118 = vunpack.c.0.s8 %v1117
    %v1119 = vlaneseq
    %v1120 = vshrl.u32 %v1119, 7
    %v1121 = vsub.s32 %v1118, %v1120
    %v1122 = vrot.slane %v1094, %v1121
    %v1123 = vcombine.high %v1101, %v1101
    %v1124 = vcombine.high %v1108, %v1108
    %v1125 = vcombine.high %v1115, %v1115
    %v1126 = vcombine.high %v1122, %v1122
    %v1128 = vunpack.c.l.s4 1966171168
    %v1129 = vunpack.c.0.s8 %v1128
    %v1130 = vlaneseq
    %v1131 = vshrl.u32 %v1130, 7
    %v1132 = vsub.s32 %v1129, %v1131
    %v1133 = vrot.slane %v34, %v1132
    %v1135 = vunpack.c.l.s4 1966171168
    %v1136 = vunpack.c.0.s8 %v1135
    %v1137 = vlaneseq
    %v1138 = vshrl.u32 %v1137, 7
    %v1139 = vsub.s32 %v1136, %v1138
    %v1140 = vrot.slane %v1133, %v1139
    %v1974 = vunpack.c.l.b16 %v35
    %v1975 = vunpack.c.l.b16 %v36
    %v1976 = vunpack.c.l.b16 %v37
    %v1977 = vunpack.c.l.b16 %v38
    %v1978 = vunpack.c.l.b16 %v39
    %v1979 = vunpack.c.l.b16 %v40
    %v1980 = vunpack.c.l.b16 %v41
    %v1981 = vunpack.c.l.b16 %v42
    %v1982 = vunpack.c.l.b16 %v43
    %v1983 = vunpack.c.l.b16 %v44
    %v1984 = vunpack.c.l.b16 %v45
    %v1985 = vunpack.c.l.b16 %v46
    %v1986 = vunpack.c.l.b16 %v47
    %v1987 = vunpack.c.l.b16 %v48
    %v1988 = vunpack.c.l.b16 %v49
    %v1989 = vunpack.c.l.b16 %v50
    %v1990 = vunpack.c.l.b16 %v51
    %v1991 = vunpack.c.l.b16 %v52
    %v1992 = vunpack.c.l.b16 %v53
    %v1993 = vunpack.c.l.b16 %v54
    %v1994 = vunpack.c.l.b16 %v55
    %v1995 = vunpack.c.l.b16 %v56
    %v1996 = vunpack.c.l.b16 %v57
    %v1997 = vunpack.c.l.b16 %v58
    %v1998 = vunpack.c.l.b16 %v59
    %v1999 = vunpack.c.l.b16 %v60
    %v2000 = vunpack.c.l.b16 %v61
    %v2001 = vunpack.c.l.b16 %v62
    %v2002 = vunpack.c.l.b16 %v63
    %v2003 = vunpack.c.l.b16 %v64
    %v2004 = vunpack.c.l.b16 %v65
    %v2005 = vunpack.c.l.b16 %v66
    %v2006 = vunpack.c.l.b16 %v67
    %v2007 = vunpack.c.l.b16 %v68
    %v2008 = vunpack.c.l.b16 %v69
    %v2009 = vunpack.c.l.b16 %v70
    %v2010 = vunpack.c.l.b16 %v71
    %v2011 = vunpack.c.l.b16 %v72
    %v2012 = vunpack.c.l.b16 %v73
    %v2013 = vunpack.c.l.b16 %v74
    %v2014 = vunpack.c.l.b16 %v75
    %v2015 = vunpack.c.l.b16 %v76
    %v2016 = vunpack.c.l.b16 %v77
    %v2017 = vunpack.c.l.b16 %v78
    %v2018 = vunpack.c.l.b16 %v79
    %v2019 = vunpack.c.l.b16 %v80
    %v2020 = vunpack.c.l.b16 %v81
    %v2021 = vunpack.c.l.b16 %v82
    %v2022 = vunpack.c.l.b16 %v83
    %v2023 = vunpack.c.l.b16 %v84
    %v2024 = vunpack.c.l.b16 %v85
    %v2025 = vunpack.c.l.b16 %v86
    %v2026 = vunpack.c.l.b16 %v87
    %v2027 = vunpack.c.l.b16 %v88
    %v2028 = vunpack.c.l.b16 %v89
    %v2029 = vunpack.c.l.b16 %v90
    %v2030 = vunpack.c.l.b16 %v91
    %v2031 = vunpack.c.l.b16 %v92
    %v2032 = vunpack.c.l.b16 %v93
    %v2033 = vunpack.c.l.b16 %v94
    %v2034 = vunpack.c.l.b16 %v95
    %v2035 = vunpack.c.l.b16 %v96
    %v2036 = vunpack.c.l.b16 %v97
    %v2037 = vunpack.c.l.b16 %v98
    %v2038 = vunpack.c.l.b16 %v99
    %v2039 = vunpack.c.l.b16 %v100
    %v2040 = vunpack.c.l.b16 %v101
    %v2041 = vunpack.c.l.b16 %v102
    %v2042 = vunpack.c.l.b16 %v103
    %v2043 = vunpack.c.l.b16 %v104
    %v2044 = vunpack.c.l.b16 %v105
    %v2045 = vunpack.c.l.b16 %v106
    %v2046 = vunpack.c.l.b16 %v107
    %v2047 = vunpack.c.l.b16 %v108
    %v2048 = vunpack.c.l.b16 %v109
    %v2049 = vunpack.c.l.b16 %v110
    %v2050 = vunpack.c.l.b16 %v111
    %v2051 = vunpack.c.l.b16 %v112
    %v2052 = vunpack.c.l.b16 %v113
    %v2053 = vunpack.c.l.b16 %v114
    %v2054 = vunpack.c.l.b16 %v115
    %v2055 = vunpack.c.l.b16 %v116
    %v2056 = vunpack.c.l.b16 %v117
    %v2057 = vunpack.c.l.b16 %v118
    %v2058 = vunpack.c.l.b16 %v119
    %v2059 = vunpack.c.l.b16 %v120
    %v2060 = vunpack.c.l.b16 %v121
    %v2061 = vunpack.c.l.b16 %v122
    %v2062 = vunpack.c.l.b16 %v123
    %v2063 = vunpack.c.l.b16 %v124
    %v2064 = vunpack.c.l.b16 %v125
    %v2065 = vunpack.c.l.b16 %v126
    %v2066 = vunpack.c.l.b16 %v127
    %v2067 = vunpack.c.l.b16 %v128
    %v2068 = vunpack.c.l.b16 %v129
    %v2069 = vunpack.c.l.b16 %v130
    %v2070 = vunpack.c.l.b16 %v131
    %v2071 = vunpack.c.l.b16 %v132
    %v2072 = vunpack.c.l.b16 %v133
    %v2073 = vunpack.c.l.b16 %v134
    %v2074 = vunpack.c.l.b16 %v135
    %v2075 = vunpack.c.l.b16 %v136
    %v2076 = vunpack.c.l.b16 %v137
    %v2077 = vunpack.c.l.b16 %v138
    %v2078 = vunpack.c.l.b16 %v139
    %v2079 = vunpack.c.l.b16 %v140
    %v2080 = vunpack.c.l.b16 %v141
    %v2081 = vunpack.c.l.b16 %v142
    %v2082 = vunpack.c.l.b16 %v143
    %v2083 = vunpack.c.l.b16 %v144
    %v2084 = vunpack.c.l.b16 %v145
    %v2085 = vunpack.c.l.b16 %v146
    %v2086 = vunpack.c.l.b16 %v147
    %v2087 = vunpack.c.l.b16 %v148
    %v2088 = vunpack.c.l.b16 %v149
    %v2089 = vunpack.c.l.b16 %v150
    %v2090 = vunpack.c.l.b16 %v151
    %v2091 = vunpack.c.l.b16 %v152
    %v2092 = vunpack.c.l.b16 %v153
    %v2093 = vunpack.c.l.b16 %v154
    %v2094 = vunpack.c.l.b16 %v155
    %v2095 = vunpack.c.l.b16 %v156
    %v2096 = vunpack.c.l.b16 %v157
    %v2097 = vunpack.c.l.b16 %v158
    %v2098 = vunpack.c.l.b16 %v159
    %v2099 = vunpack.c.l.b16 %v160
    %v2100 = vunpack.c.l.b16 %v161
    %v2101 = vunpack.c.l.b16 %v162
    %v2102 = vunpack.c.l.b16 %v163
    %v2103 = vunpack.c.l.b16 %v164
    %v2104 = vunpack.c.l.b16 %v165
    %v2105 = vunpack.c.l.b16 %v166
    %v2106 = vunpack.c.l.b16 %v167
    %v2107 = vunpack.c.l.b16 %v168
    %v2108 = vunpack.c.l.b16 %v169
    %v2109 = vunpack.c.l.b16 %v170
    %v2110 = vunpack.c.l.b16 %v171
    %v2111 = vunpack.c.l.b16 %v172
    %v2112 = vunpack.c.l.b16 %v173
    %v2113 = vunpack.c.l.b16 %v174
    %v2114 = vunpack.c.l.b16 %v175
    %v2115 = vunpack.c.l.b16 %v176
    %v2116 = vunpack.c.l.b16 %v177
    %v2117 = vunpack.c.l.b16 %v178
    %v2118 = vunpack.c.l.b16 %v179
    %v2119 = vunpack.c.l.b16 %v180
    %v2120 = vunpack.c.l.b16 %v181
    %v2121 = vunpack.c.l.b16 %v182
    %v2122 = vunpack.c.l.b16 %v183
    %v2123 = vunpack.c.l.b16 %v184
    %v2124 = vunpack.c.l.b16 %v185
    %v2125 = vunpack.c.l.b16 %v186
    %v2126 = vunpack.c.l.b16 %v187
    %v2127 = vunpack.c.l.b16 %v188
    %v2128 = vunpack.c.l.b16 %v189
    %v2129 = vunpack.c.l.b16 %v190
    %v2130 = vunpack.c.l.b16 %v191
    %v2131 = vunpack.c.l.b16 %v192
    %v2132 = vunpack.c.l.b16 %v193
    %v2133 = vunpack.c.l.b16 %v194
    %v2134 = vunpack.c.l.b16 %v195
    %v2135 = vunpack.c.l.b16 %v196
    %v2136 = vunpack.c.l.b16 %v197
    %v2137 = vunpack.c.l.b16 %v198
    %v2138 = vunpack.c.l.b16 %v199
    %v2139 = vunpack.c.l.b16 %v200
    %v2140 = vunpack.c.l.b16 %v201
    %v2141 = vunpack.c.l.b16 %v202
    %v2142 = vunpack.c.l.b16 %v203
    %v2143 = vunpack.c.l.b16 %v204
    %v2144 = vunpack.c.l.b16 %v205
    %v2145 = vunpack.c.l.b16 %v206
    %v2146 = vunpack.c.l.b16 %v207
    %v2147 = vunpack.c.l.b16 %v208
    %v2148 = vunpack.c.l.b16 %v209
    %v2149 = vunpack.c.l.b16 %v210
    %v2150 = vunpack.c.l.b16 %v211
    %v2151 = vunpack.c.l.b16 %v212
    %v2152 = vunpack.c.l.b16 %v213
    %v2153 = vunpack.c.l.b16 %v214
    %v2154 = vunpack.c.l.b16 %v215
    %v2155 = vunpack.c.l.b16 %v216
    %v2156 = vunpack.c.l.b16 %v217
    %v2157 = vunpack.c.l.b16 %v218
    %v2158 = vunpack.c.l.b16 %v219
    %v2159 = vunpack.c.l.b16 %v220
    %v2160 = vunpack.c.l.b16 %v221
    %v2161 = vunpack.c.l.b16 %v222
    %v2162 = vunpack.c.l.b16 %v223
    %v2163 = vunpack.c.l.b16 %v224
    %v2164 = vunpack.c.l.b16 %v225
    %v2165 = vunpack.c.l.b16 %v226
    %v2166 = vunpack.c.l.b16 %v227
    %v2167 = vunpack.c.l.b16 %v228
    %v2168 = vunpack.c.l.b16 %v229
    %v2169 = vunpack.c.l.b16 %v230
    %v2170 = vunpack.c.l.b16 %v231
    %v2171 = vunpack.c.l.b16 %v232
    %v2172 = vunpack.c.l.b16 %v233
    %v2173 = vunpack.c.l.b16 %v234
    %v2174 = vunpack.c.l.b16 %v235
    %v2175 = vunpack.c.l.b16 %v236
    %v2176 = vunpack.c.l.b16 %v237
    %v2177 = vunpack.c.l.b16 %v238
    %v2178 = vunpack.c.l.b16 %v239
    %v2179 = vunpack.c.l.b16 %v240
    %v2180 = vunpack.c.l.b16 %v241
    %v2181 = vunpack.c.l.b16 %v242
    %v2182 = vunpack.c.l.b16 %v243
    %v2183 = vunpack.c.l.b16 %v244
    %v2184 = vunpack.c.l.b16 %v245
    %v2185 = vunpack.c.l.b16 %v246
    %v2186 = vunpack.c.l.b16 %v247
    %v2187 = vunpack.c.l.b16 %v248
    %v2188 = vunpack.c.l.b16 %v249
    %v2189 = vunpack.c.l.b16 %v250
    %v2190 = vunpack.c.l.b16 %v251
    %v2191 = vunpack.c.l.b16 %v252
    %v2192 = vunpack.c.l.b16 %v253
    %v2193 = vunpack.c.l.b16 %v254
    %v2194 = vunpack.c.l.b16 %v255
    %v2195 = vunpack.c.l.b16 %v256
    %v2196 = vunpack.c.l.b16 %v257
    %v2197 = vunpack.c.l.b16 %v258
    %v2198 = vunpack.c.l.b16 %v259
    %v2199 = vunpack.c.l.b16 %v260
    %v2200 = vunpack.c.l.b16 %v261
    %v2201 = vunpack.c.l.b16 %v262
    %v2202 = vunpack.c.l.b16 %v263
    %v2203 = vunpack.c.l.b16 %v264
    %v2204 = vunpack.c.l.b16 %v265
    %v2205 = vunpack.c.l.b16 %v266
    %v2206 = vunpack.c.l.b16 %v267
    %v2207 = vunpack.c.l.b16 %v268
    %v2208 = vunpack.c.l.b16 %v269
    %v2209 = vunpack.c.l.b16 %v270
    %v2210 = vunpack.c.l.b16 %v271
    %v2211 = vunpack.c.l.b16 %v272
    %v2212 = vunpack.c.l.b16 %v273
    %v2213 = vunpack.c.l.b16 %v274
    %v2214 = vunpack.c.l.b16 %v275
    %v2215 = vunpack.c.l.b16 %v276
    %v2216 = vunpack.c.l.b16 %v277
    %v2217 = vunpack.c.l.b16 %v278
    %v2218 = vunpack.c.l.b16 %v279
    %v2219 = vunpack.c.l.b16 %v280
    %v2220 = vunpack.c.l.b16 %v281
    %v2221 = vunpack.c.l.b16 %v282
    %v2222 = vunpack.c.l.b16 %v283
    %v2223 = vunpack.c.l.b16 %v284
    %v2224 = vunpack.c.l.b16 %v285
    %v2225 = vunpack.c.l.b16 %v286
    %v2226 = vunpack.c.l.b16 %v287
    %v2227 = vunpack.c.l.b16 %v288
    %v2228 = vunpack.c.l.b16 %v289
    %v2229 = vunpack.c.l.b16 %v290
    %v2230 = vunpack.c.l.b16 %v291
    %v2231 = vunpack.c.l.b16 %v292
    %v2232 = vunpack.c.l.b16 %v293
    %v2233 = vunpack.c.l.b16 %v294
    %v2234 = vunpack.c.l.b16 %v295
    %v2235 = vunpack.c.l.b16 %v296
    %v2236 = vunpack.c.l.b16 %v297
    %v2237 = vunpack.c.l.b16 %v298
    %v2238 = vunpack.c.l.b16 %v299
    %v2239 = vunpack.c.l.b16 %v300
    %v2240 = vunpack.c.l.b16 %v301
    %v2241 = vunpack.c.l.b16 %v302
    %v2242 = vunpack.c.l.b16 %v303
    %v2243 = vunpack.c.l.b16 %v304
    %v2244 = vunpack.c.l.b16 %v305
    %v2245 = vunpack.c.l.b16 %v306
    %v2246 = vunpack.c.l.b16 %v307
    %v2247 = vunpack.c.l.b16 %v308
    %v2248 = vunpack.c.l.b16 %v309
    %v2249 = vunpack.c.l.b16 %v310
    %v2250 = vunpack.c.l.b16 %v311
    %v2251 = vunpack.c.l.b16 %v312
    %v2252 = vunpack.c.l.b16 %v313
    %v2253 = vunpack.c.l.b16 %v314
    %v2254 = vunpack.c.l.b16 %v315
    %v2255 = vunpack.c.l.b16 %v316
    %v2256 = vunpack.c.l.b16 %v317
    %v2257 = vunpack.c.l.b16 %v318
    %v2258 = vunpack.c.l.b16 %v319
    %v2259 = vunpack.c.l.b16 %v320
    %v2260 = vunpack.c.l.b16 %v321
    %v2261 = vunpack.c.l.b16 %v322
    %v2262 = vunpack.c.l.b16 %v323
    %v2263 = vunpack.c.l.b16 %v324
    %v2264 = vunpack.c.l.b16 %v325
    %v2265 = vunpack.c.l.b16 %v326
    %v2266 = vunpack.c.l.b16 %v327
    %v2267 = vunpack.c.l.b16 %v328
    %v2268 = vunpack.c.l.b16 %v329
    %v2269 = vunpack.c.l.b16 %v330
    %v2270 = vunpack.c.l.b16 %v331
    %v2271 = vunpack.c.l.b16 %v332
    %v2272 = vunpack.c.l.b16 %v333
    %v2273 = vunpack.c.l.b16 %v334
    %v2274 = vunpack.c.l.b16 %v335
    %v2275 = vunpack.c.l.b16 %v336
    %v2276 = vunpack.c.l.b16 %v337
    %v2277 = vunpack.c.l.b16 %v338
    %v2278 = vunpack.c.l.b16 %v339
    %v2279 = vunpack.c.l.b16 %v340
    %v2280 = vunpack.c.l.b16 %v341
    %v2281 = vunpack.c.l.b16 %v342
    %v2282 = vunpack.c.l.b16 %v343
    %v2283 = vunpack.c.l.b16 %v344
    %v2284 = vunpack.c.l.b16 %v345
    %v2285 = vunpack.c.l.b16 %v346
    %v2286 = vunpack.c.l.b16 %v347
    %v2287 = vunpack.c.l.b16 %v348
    %v2288 = vunpack.c.l.b16 %v349
    %v2289 = vunpack.c.l.b16 %v350
    %v2290 = vunpack.c.l.b16 %v351
    %v2291 = vunpack.c.l.b16 %v352
    %v2292 = vunpack.c.l.b16 %v353
    %v2293 = vunpack.c.l.b16 %v354
    %v2294 = vunpack.c.l.b16 %v355
    %v2295 = vunpack.c.l.b16 %v356
    %v2296 = vunpack.c.l.b16 %v357
    %v2297 = vunpack.c.l.b16 %v358
    %v2298 = vunpack.c.l.b16 %v359
    %v2299 = vunpack.c.l.b16 %v360
    %v2300 = vunpack.c.l.b16 %v361
    %v2301 = vunpack.c.l.b16 %v362
    %v2302 = vunpack.c.l.b16 %v363
    %v2303 = vunpack.c.l.b16 %v364
    %v2304 = vunpack.c.l.b16 %v365
    %v2305 = vunpack.c.l.b16 %v366
    %v2306 = vunpack.c.l.b16 %v367
    %v2307 = vunpack.c.l.b16 %v368
    %v2308 = vunpack.c.l.b16 %v369
    %v2309 = vunpack.c.l.b16 %v370
    %v2310 = vunpack.c.l.b16 %v371
    %v2311 = vunpack.c.l.b16 %v372
    %v2312 = vunpack.c.l.b16 %v373
    %v2313 = vunpack.c.l.b16 %v374
    %v2314 = vunpack.c.l.b16 %v375
    %v2315 = vunpack.c.l.b16 %v376
    %v2316 = vunpack.c.l.b16 %v377
    %v2317 = vunpack.c.l.b16 %v378
    %v2318 = vunpack.c.l.b16 %v379
    %v2319 = vunpack.c.l.b16 %v380
    %v2320 = vunpack.c.l.b16 %v381
    %v2321 = vunpack.c.l.b16 %v382
    %v2322 = vunpack.c.l.b16 %v383
    %v2323 = vunpack.c.l.b16 %v384
    %v2324 = vunpack.c.l.b16 %v385
    %v2325 = vunpack.c.l.b16 %v386
    %v2326 = vunpack.c.l.b16 %v387
    %v2327 = vunpack.c.l.b16 %v388
    %v2328 = vunpack.c.l.b16 %v389
    %v2329 = vunpack.c.l.b16 %v390
    %v2330 = vunpack.c.l.b16 %v391
    %v2331 = vunpack.c.l.b16 %v392
    %v2332 = vunpack.c.l.b16 %v393
    %v2333 = vunpack.c.l.b16 %v394
    %v2334 = vunpack.c.l.b16 %v395
    %v2335 = vunpack.c.l.b16 %v396
    %v2336 = vunpack.c.l.b16 %v397
    %v2337 = vunpack.c.l.b16 %v398
    %v2338 = vunpack.c.l.b16 %v399
    %v2339 = vunpack.c.l.b16 %v400
    %v2340 = vunpack.c.l.b16 %v401
    %v2341 = vunpack.c.l.b16 %v402
    %v2342 = vunpack.c.l.b16 %v403
    %v2343 = vunpack.c.l.b16 %v404
    %v2344 = vunpack.c.l.b16 %v405
    %v2345 = vunpack.c.l.b16 %v406
    %v2346 = vunpack.c.l.b16 %v407
    %v2347 = vunpack.c.l.b16 %v408
    %v2348 = vunpack.c.l.b16 %v409
    %v2349 = vunpack.c.l.b16 %v410
    %v2350 = vunpack.c.l.b16 %v411
    %v2351 = vunpack.c.l.b16 %v412
    %v2352 = vunpack.c.l.b16 %v413
    %v2353 = vunpack.c.l.b16 %v414
    %v2354 = vunpack.c.l.b16 %v415
    %v2355 = vunpack.c.l.b16 %v416
    %v2356 = vunpack.c.l.b16 %v417
    %v2357 = vunpack.c.l.b16 %v418
    %v2358 = vunpack.c.l.b16 %v419
    %v2359 = vunpack.c.l.b16 %v420
    %v2360 = vunpack.c.l.b16 %v421
    %v2361 = vunpack.c.l.b16 %v422
    %v2362 = vunpack.c.l.b16 %v423
    %v2363 = vunpack.c.l.b16 %v424
    %v2364 = vunpack.c.l.b16 %v425
    %v2365 = vunpack.c.l.b16 %v426
    %v2366 = vunpack.c.l.b16 %v427
    %v2367 = vunpack.c.l.b16 %v428
    %v2368 = vunpack.c.l.b16 %v429
    %v2369 = vunpack.c.l.b16 %v430
    %v2370 = vunpack.c.l.b16 %v431
    %v2371 = vunpack.c.l.b16 %v432
    %v2372 = vunpack.c.l.b16 %v433
    %v2373 = vunpack.c.l.b16 %v434
    %v2374 = vunpack.c.l.b16 %v435
    %v2375 = vunpack.c.l.b16 %v436
    %v2376 = vunpack.c.l.b16 %v437
    %v2377 = vunpack.c.l.b16 %v438
    %v2378 = vunpack.c.l.b16 %v439
    %v2379 = vunpack.c.l.b16 %v440
    %v2380 = vunpack.c.l.b16 %v441
    %v2381 = vunpack.c.l.b16 %v442
    %v2382 = vunpack.c.l.b16 %v443
    %v2383 = vunpack.c.l.b16 %v444
    %v2384 = vunpack.c.l.b16 %v445
    %v2385 = vunpack.c.l.b16 %v446
    %v2386 = vunpack.c.l.b16 %v447
    %v2387 = vunpack.c.l.b16 %v448
    %v2388 = vunpack.c.l.b16 %v449
    %v2389 = vunpack.c.l.b16 %v450
    %v2390 = vunpack.c.l.b16 %v451
    %v2391 = vunpack.c.l.b16 %v452
    %v2392 = vunpack.c.l.b16 %v453
    %v2393 = vunpack.c.l.b16 %v454
    %v2394 = vunpack.c.l.b16 %v455
    %v2395 = vunpack.c.l.b16 %v456
    %v2396 = vunpack.c.l.b16 %v457
    %v2397 = vunpack.c.l.b16 %v458
    %v2398 = vunpack.c.l.b16 %v459
    %v2399 = vunpack.c.l.b16 %v460
    %v2400 = vunpack.c.l.b16 %v461
    %v2401 = vunpack.c.l.b16 %v462
    %v2402 = vunpack.c.l.b16 %v463
    %v2403 = vunpack.c.l.b16 %v464
    %v2404 = vunpack.c.l.b16 %v465
    %v2405 = vunpack.c.l.b16 %v466
    %v2406 = vunpack.c.l.b16 %v467
    %v2407 = vunpack.c.l.b16 %v468
    %v2408 = vunpack.c.l.b16 %v469
    %v2409 = vunpack.c.l.b16 %v470
    %v2410 = vunpack.c.l.b16 %v471
    %v2411 = vunpack.c.l.b16 %v472
    %v2412 = vunpack.c.l.b16 %v473
    %v2413 = vunpack.c.l.b16 %v474
    %v2414 = vunpack.c.l.b16 %v475
    %v2415 = vunpack.c.l.b16 %v476
    %v2416 = vunpack.c.l.b16 %v477
    %v2417 = vunpack.c.l.b16 %v478
    %v2418 = vunpack.c.l.b16 %v479
    %v2419 = vunpack.c.l.b16 %v480
    %v2420 = vunpack.c.l.b16 %v481
    %v2421 = vunpack.c.l.b16 %v482
    %v2422 = vunpack.c.l.b16 %v483
    %v2423 = vunpack.c.l.b16 %v484
    %v2424 = vunpack.c.l.b16 %v485
    %v2425 = vunpack.c.l.b16 %v486
    %v2426 = vunpack.c.l.b16 %v487
    %v2427 = vunpack.c.l.b16 %v488
    %v2428 = vunpack.c.l.b16 %v489
    %v2429 = vunpack.c.l.b16 %v490
    %v2430 = vunpack.c.l.b16 %v491
    %v2431 = vunpack.c.l.b16 %v492
    %v2432 = vunpack.c.l.b16 %v493
    %v2433 = vunpack.c.l.b16 %v494
    %v2434 = vunpack.c.l.b16 %v495
    %v2435 = vunpack.c.l.b16 %v496
    %v2436 = vunpack.c.l.b16 %v497
    %v2437 = vunpack.c.l.b16 %v498
    %v2438 = vunpack.c.l.b16 %v499
    %v2439 = vunpack.c.l.b16 %v500
    %v2440 = vunpack.c.l.b16 %v501
    %v2441 = vunpack.c.l.b16 %v502
    %v2442 = vunpack.c.l.b16 %v503
    %v2443 = vunpack.c.l.b16 %v504
    %v2444 = vunpack.c.l.b16 %v505
    %v2445 = vunpack.c.l.b16 %v506
    %v2446 = vunpack.c.l.b16 %v507
    %v2447 = vunpack.c.l.b16 %v508
    %v2448 = vunpack.c.l.b16 %v509
    %v2449 = vunpack.c.l.b16 %v510
    %v2450 = vunpack.c.l.b16 %v511
    %v2451 = vunpack.c.l.b16 %v512
    %v2452 = vunpack.c.l.b16 %v513
    %v2453 = vunpack.c.l.b16 %v514
    %v2454 = vunpack.c.l.b16 %v515
    %v2455 = vunpack.c.l.b16 %v516
    %v2456 = vunpack.c.l.b16 %v517
    %v2457 = vunpack.c.l.b16 %v518
    %v2458 = vunpack.c.l.b16 %v519
    %v2459 = vunpack.c.l.b16 %v520
    %v2460 = vunpack.c.l.b16 %v521
    %v2461 = vunpack.c.l.b16 %v522
    %v2462 = vunpack.c.l.b16 %v523
    %v2463 = vunpack.c.l.b16 %v524
    %v2464 = vunpack.c.l.b16 %v525
    %v2465 = vunpack.c.l.b16 %v526
    %v2466 = vunpack.c.l.b16 %v527
    %v2467 = vunpack.c.l.b16 %v528
    %v2468 = vunpack.c.l.b16 %v529
    %v2469 = vunpack.c.l.b16 %v530
    %v2470 = vunpack.c.l.b16 %v531
    %v2471 = vunpack.c.l.b16 %v532
    %v2472 = vunpack.c.l.b16 %v533
    %v2473 = vunpack.c.l.b16 %v534
    %v2474 = vunpack.c.l.b16 %v535
    %v2475 = vunpack.c.l.b16 %v536
    %v2476 = vunpack.c.l.b16 %v537
    %v2477 = vunpack.c.l.b16 %v538
    %v2478 = vunpack.c.l.b16 %v539
    %v2479 = vunpack.c.l.b16 %v540
    %v2480 = vunpack.c.l.b16 %v541
    %v2481 = vunpack.c.l.b16 %v542
    %v2482 = vunpack.c.l.b16 %v543
    %v2483 = vunpack.c.l.b16 %v544
    %v2484 = vunpack.c.l.b16 %v545
    %v2485 = vunpack.c.l.b16 %v546
    %v2486 = vunpack.c.l.b16 %v547
    %v2487 = vunpack.c.l.b16 %v548
    %v2488 = vunpack.c.l.b16 %v549
    %v2489 = vunpack.c.l.b16 %v550
    %v2490 = vunpack.c.l.b16 %v551
    %v2491 = vunpack.c.l.b16 %v552
    %v2492 = vunpack.c.l.b16 %v553
    %v2493 = vunpack.c.l.b16 %v554
    %v2494 = vunpack.c.l.b16 %v555
    %v2495 = vunpack.c.l.b16 %v556
    %v2496 = vunpack.c.l.b16 %v557
    %v2497 = vunpack.c.l.b16 %v558
    %v2498 = vunpack.c.l.b16 %v559
    %v2499 = vunpack.c.l.b16 %v560
    %v2500 = vunpack.c.l.b16 %v561
    %v2501 = vunpack.c.l.b16 %v562
    %v2502 = vunpack.c.l.b16 %v563
    %v2503 = vunpack.c.l.b16 %v564
    %v2504 = vunpack.c.l.b16 %v565
    %v2505 = vunpack.c.l.b16 %v566
    %v2506 = vunpack.c.l.b16 %v567
    %v2507 = vunpack.c.l.b16 %v568
    %v2508 = vunpack.c.l.b16 %v569
    %v2509 = vunpack.c.l.b16 %v570
    %v2510 = vunpack.c.l.b16 %v571
    %v2511 = vunpack.c.l.b16 %v572
    %v2512 = vunpack.c.l.b16 %v573
    %v2513 = vunpack.c.l.b16 %v574
    %v2514 = vunpack.c.l.b16 %v575
    %v2515 = vunpack.c.l.b16 %v576
    %v2516 = vunpack.c.l.b16 %v577
    %v2517 = vunpack.c.l.b16 %v578
    %v2518 = vunpack.c.l.b16 %v579
    %v2519 = vunpack.c.l.b16 %v580
    %v2520 = vunpack.c.l.b16 %v581
    %v2521 = vunpack.c.l.b16 %v582
    %v2522 = vunpack.c.l.b16 %v583
    %v2523 = vunpack.c.l.b16 %v584
    %v2524 = vunpack.c.l.b16 %v585
    %v2525 = vunpack.c.l.b16 %v586
    %v2526 = vunpack.c.l.b16 %v587
    %v2527 = vunpack.c.l.b16 %v588
    %v2528 = vunpack.c.l.b16 %v589
    %v2529 = vunpack.c.l.b16 %v590
    %v2530 = vunpack.c.l.b16 %v591
    %v2531 = vunpack.c.l.b16 %v592
    %v2532 = vunpack.c.l.b16 %v593
    %v2533 = vunpack.c.l.b16 %v594
    %v2534 = vunpack.c.l.b16 %v595
    %v2535 = vunpack.c.l.b16 %v596
    %v2536 = vunpack.c.l.b16 %v597
    %v2537 = vunpack.c.l.b16 %v598
    %v2538 = vunpack.c.l.b16 %v599
    %v2539 = vunpack.c.l.b16 %v600
    %v2540 = vunpack.c.l.b16 %v601
    %v2541 = vunpack.c.l.b16 %v602
    %v2542 = vunpack.c.l.b16 %v603
    %v2543 = vunpack.c.l.b16 %v604
    %v2544 = vunpack.c.l.b16 %v605
    %v2545 = vunpack.c.l.b16 %v606
    %v2546 = vunpack.c.l.b16 %v607
    %v2547 = vunpack.c.l.b16 %v608
    %v2548 = vunpack.c.l.b16 %v609
    %v2549 = vunpack.c.l.b16 %v610
    %v2550 = vunpack.c.l.b16 %v611
    %v2551 = vunpack.c.l.b16 %v612
    %v2552 = vunpack.c.l.b16 %v613
    %v2553 = vunpack.c.l.b16 %v614
    %v2554 = vunpack.c.l.b16 %v615
    %v2555 = vunpack.c.l.b16 %v616
    %v2556 = vunpack.c.l.b16 %v617
    %v2557 = vunpack.c.l.b16 %v618
    %v2558 = vunpack.c.l.b16 %v619
    %v2559 = vunpack.c.l.b16 %v620
    %v2560 = vunpack.c.l.b16 %v621
    %v2561 = vunpack.c.l.b16 %v622
    %v2562 = vunpack.c.l.b16 %v623
    %v2563 = vunpack.c.l.b16 %v624
    %v2564 = vunpack.c.l.b16 %v625
    %v2565 = vunpack.c.l.b16 %v626
    %v2566 = vunpack.c.l.b16 %v627
    %v2567 = vunpack.c.l.b16 %v628
    %v2568 = vunpack.c.l.b16 %v629
    %v2569 = vunpack.c.l.b16 %v630
    %v2570 = vunpack.c.l.b16 %v631
    %v2571 = vunpack.c.l.b16 %v632
    %v2572 = vunpack.c.l.b16 %v633
    %v2573 = vunpack.c.l.b16 %v634
    %v2574 = vunpack.c.l.b16 %v635
    %v2575 = vunpack.c.l.b16 %v636
    %v2576 = vunpack.c.l.b16 %v637
    %v2577 = vunpack.c.l.b16 %v638
    %v2578 = vunpack.c.l.b16 %v639
    %v2579 = vunpack.c.l.b16 %v640
    %v2580 = vunpack.c.l.b16 %v641
    %v2581 = vunpack.c.l.b16 %v642
    %v2582 = vunpack.c.l.b16 %v643
    %v2583 = vunpack.c.l.b16 %v644
    %v2584 = vunpack.c.l.b16 %v645
    %v2585 = vunpack.c.l.b16 %v646
    %v2586 = vunpack.c.l.b16 %v647
    %v2587 = vunpack.c.l.b16 %v648
    %v2588 = vunpack.c.l.b16 %v649
    %v2589 = vunpack.c.l.b16 %v650
    %v2590 = vunpack.c.l.b16 %v651
    %v2591 = vunpack.c.l.b16 %v652
    %v2592 = vunpack.c.l.b16 %v653
    %v2593 = vunpack.c.l.b16 %v654
    %v2594 = vunpack.c.l.b16 %v655
    %v2595 = vunpack.c.l.b16 %v656
    %v2596 = vunpack.c.l.b16 %v657
    %v2597 = vunpack.c.l.b16 %v658
    %v2598 = vunpack.c.l.b16 %v659
    %v2599 = vunpack.c.l.b16 %v660
    %v2600 = vunpack.c.l.b16 %v661
    %v2601 = vunpack.c.l.b16 %v662
    %v2602 = vunpack.c.l.b16 %v663
    %v2603 = vunpack.c.l.b16 %v664
    %v2604 = vunpack.c.l.b16 %v665
    %v2605 = vunpack.c.l.b16 %v666
    %v2606 = vunpack.c.l.b16 %v667
    %v2607 = vunpack.c.l.b16 %v668
    %v2608 = vunpack.c.l.b16 %v669
    %v2609 = vunpack.c.l.b16 %v670
    %v2610 = vunpack.c.l.b16 %v671
    %v2611 = vunpack.c.l.b16 %v672
    %v2612 = vunpack.c.l.b16 %v673
    %v2613 = vunpack.c.l.b16 %v674
    %v2614 = vunpack.c.l.b16 %v675
    %v2615 = vunpack.c.l.b16 %v676
    %v2616 = vunpack.c.l.b16 %v677
    %v2617 = vunpack.c.l.b16 %v678
    %v2618 = vunpack.c.l.b16 %v679
    %v2619 = vunpack.c.l.b16 %v680
    %v2620 = vunpack.c.l.b16 %v681
    %v2621 = vunpack.c.l.b16 %v682
    %v2622 = vunpack.c.l.b16 %v683
    %v2623 = vunpack.c.l.b16 %v684
    %v2624 = vunpack.c.l.b16 %v685
    %v2625 = vunpack.c.l.b16 %v686
    %v2626 = vunpack.c.l.b16 %v687
    %v2627 = vunpack.c.l.b16 %v688
    %v2628 = vunpack.c.l.b16 %v689
    %v2629 = vunpack.c.l.b16 %v690
    %v2630 = vunpack.c.l.b16 %v691
    %v2631 = vunpack.c.l.b16 %v692
    %v2632 = vunpack.c.l.b16 %v693
    %v2633 = vunpack.c.l.b16 %v694
    %v2634 = vunpack.c.l.b16 %v695
    %v2635 = vunpack.c.l.b16 %v696
    %v2636 = vunpack.c.l.b16 %v697
    %v2637 = vunpack.c.l.b16 %v698
    %v2638 = vunpack.c.l.b16 %v699
    %v2639 = vunpack.c.l.b16 %v700
    %v2640 = vunpack.c.l.b16 %v701
    %v2641 = vunpack.c.l.b16 %v702
    %v2642 = vunpack.c.l.b16 %v703
    %v2643 = vunpack.c.l.b16 %v704
    %v2644 = vunpack.c.l.b16 %v705
    %v2645 = vunpack.c.l.b16 %v706
    %v2646 = vunpack.c.l.b16 %v707
    %v2647 = vunpack.c.l.b16 %v708
    %v2648 = vunpack.c.l.b16 %v709
    %v2649 = vunpack.c.l.b16 %v710
    %v2650 = vunpack.c.l.b16 %v711
    %v2651 = vunpack.c.l.b16 %v712
    %v2652 = vunpack.c.l.b16 %v713
    %v2653 = vunpack.c.l.b16 %v714
    %v2654 = vunpack.c.l.b16 %v715
    %v2655 = vunpack.c.l.b16 %v716
    %v2656 = vunpack.c.l.b16 %v717
    %v2657 = vunpack.c.l.b16 %v718
    %v2658 = vunpack.c.l.b16 %v719
    %v2659 = vunpack.c.l.b16 %v720
    %v2660 = vunpack.c.l.b16 %v721
    %v2661 = vunpack.c.l.b16 %v722
    %v2662 = vunpack.c.l.b16 %v723
    %v2663 = vunpack.c.l.b16 %v724
    %v2664 = vunpack.c.l.b16 %v725
    %v2665 = vunpack.c.l.b16 %v726
    %v2666 = vunpack.c.l.b16 %v727
    %v2667 = vunpack.c.l.b16 %v728
    %v2668 = vunpack.c.l.b16 %v729
    %v2669 = vunpack.c.l.b16 %v730
    %v2670 = vunpack.c.l.b16 %v731
    %v2671 = vunpack.c.l.b16 %v732
    %v2672 = vunpack.c.l.b16 %v733
    %v2673 = vunpack.c.l.b16 %v734
    %v2674 = vunpack.c.l.b16 %v735
    %v2675 = vunpack.c.l.b16 %v736
    %v2676 = vunpack.c.l.b16 %v737
    %v2677 = vunpack.c.l.b16 %v738
    %v2678 = vunpack.c.l.b16 %v739
    %v2679 = vunpack.c.l.b16 %v740
    %v2680 = vunpack.c.l.b16 %v741
    %v2681 = vunpack.c.l.b16 %v742
    %v2682 = vunpack.c.l.b16 %v743
    %v2683 = vunpack.c.l.b16 %v744
    %v2684 = vunpack.c.l.b16 %v745
    %v2685 = vunpack.c.l.b16 %v746
    %v2686 = vunpack.c.l.b16 %v747
    %v2687 = vunpack.c.l.b16 %v748
    %v2688 = vunpack.c.l.b16 %v749
    %v2689 = vunpack.c.l.b16 %v750
    %v2690 = vunpack.c.l.b16 %v751
    %v2691 = vunpack.c.l.b16 %v752
    %v2692 = vunpack.c.l.b16 %v753
    %v2693 = vunpack.c.l.b16 %v754
    %v2694 = vunpack.c.l.b16 %v755
    %v2695 = vunpack.c.l.b16 %v756
    %v2696 = vunpack.c.l.b16 %v757
    %v2697 = vunpack.c.l.b16 %v758
    %v2698 = vunpack.c.l.b16 %v759
    %v2699 = vunpack.c.l.b16 %v760
    %v2700 = vunpack.c.l.b16 %v761
    %v2701 = vunpack.c.l.b16 %v762
    %v2702 = vunpack.c.l.b16 %v763
    %v2703 = vunpack.c.l.b16 %v764
    %v2704 = vunpack.c.l.b16 %v765
    %v2705 = vunpack.c.l.b16 %v766
    %v2706 = vunpack.c.l.b16 %v767
    %v2707 = vunpack.c.l.b16 %v768
    %v2708 = vunpack.c.l.b16 %v769
    %v2709 = vunpack.c.l.b16 %v770
    %v2710 = vunpack.c.l.b16 %v771
    %v2711 = vunpack.c.l.b16 %v772
    %v2712 = vunpack.c.l.b16 %v773
    %v2713 = vunpack.c.l.b16 %v774
    %v2714 = vunpack.c.l.b16 %v775
    %v2715 = vunpack.c.l.b16 %v776
    %v2716 = vunpack.c.l.b16 %v777
    %v2717 = vunpack.c.l.b16 %v778
    %v2718 = vunpack.c.l.b16 %v779
    %v2719 = vunpack.c.l.b16 %v780
    %v2720 = vunpack.c.l.b16 %v781
    %v2721 = vunpack.c.l.b16 %v782
    %v2722 = vunpack.c.l.b16 %v783
    %v2723 = vunpack.c.l.b16 %v784
    %v2724 = vunpack.c.l.b16 %v785
    %v2725 = vunpack.c.l.b16 %v786
    %v2726 = vunpack.c.l.b16 %v787
    %v2727 = vunpack.c.l.b16 %v788
    %v2728 = vunpack.c.l.b16 %v789
    %v2729 = vunpack.c.l.b16 %v790
    %v2730 = vunpack.c.l.b16 %v791
    %v2731 = vunpack.c.l.b16 %v792
    %v2732 = vunpack.c.l.b16 %v793
    %v2733 = vunpack.c.l.b16 %v794
    %v2734 = vunpack.c.l.b16 %v795
    %v2735 = vunpack.c.l.b16 %v796
    %v2736 = vunpack.c.l.b16 %v797
    %v2737 = vunpack.c.l.b16 %v798
    %v2738 = vunpack.c.l.b16 %v799
    %v2739 = vunpack.c.l.b16 %v800
    %v2740 = vunpack.c.l.b16 %v801
    %v2741 = vunpack.c.l.b16 %v802
    %v2742 = vunpack.c.l.b16 %v803
    %v2743 = vunpack.c.l.b16 %v804
    %v2744 = vunpack.c.l.b16 %v805
    %v2745 = vunpack.c.l.b16 %v806
    %v2746 = vunpack.c.l.b16 %v807
    %v2747 = vunpack.c.l.b16 %v808
    %v2748 = vunpack.c.l.b16 %v809
    %v2749 = vunpack.c.l.b16 %v810
    %v2750 = vunpack.c.l.b16 %v811
    %v2751 = vunpack.c.l.b16 %v812
    %v2752 = vunpack.c.l.b16 %v813
    %v2753 = vunpack.c.l.b16 %v814
    %v2754 = vunpack.c.l.b16 %v815
    %v2755 = vunpack.c.l.b16 %v816
    %v2756 = vunpack.c.l.b16 %v817
    %v2757 = vunpack.c.l.b16 %v818
    %v2758 = vpack.c.b16 %v1975, %v1974
    %v2759 = vpack.c.b16 %v1977, %v1976
    %v2760 = vpack.c.b16 %v1979, %v1978
    %v2761 = vpack.c.b16 %v1981, %v1980
    %v2762 = vpack.c.b16 %v1983, %v1982
    %v2763 = vpack.c.b16 %v1985, %v1984
    %v2764 = vpack.c.b16 %v1987, %v1986
    %v2765 = vpack.c.b16 %v1989, %v1988
    %v2766 = vpack.c.b16 %v1991, %v1990
    %v2767 = vpack.c.b16 %v1993, %v1992
    %v2768 = vpack.c.b16 %v1995, %v1994
    %v2769 = vpack.c.b16 %v1997, %v1996
    %v2770 = vpack.c.b16 %v1999, %v1998
    %v2771 = vpack.c.b16 %v2001, %v2000
    %v2772 = vpack.c.b16 %v2003, %v2002
    %v2773 = vpack.c.b16 %v2005, %v2004
    %v2774 = vpack.c.b16 %v2007, %v2006
    %v2775 = vpack.c.b16 %v2009, %v2008
    %v2776 = vpack.c.b16 %v2011, %v2010
    %v2777 = vpack.c.b16 %v2013, %v2012
    %v2778 = vpack.c.b16 %v2015, %v2014
    %v2779 = vpack.c.b16 %v2017, %v2016
    %v2780 = vpack.c.b16 %v2019, %v2018
    %v2781 = vpack.c.b16 %v2021, %v2020
    %v2782 = vpack.c.b16 %v2023, %v2022
    %v2783 = vpack.c.b16 %v2025, %v2024
    %v2784 = vpack.c.b16 %v2027, %v2026
    %v2785 = vpack.c.b16 %v2029, %v2028
    %v2786 = vpack.c.b16 %v2031, %v2030
    %v2787 = vpack.c.b16 %v2033, %v2032
    %v2788 = vpack.c.b16 %v2035, %v2034
    %v2789 = vpack.c.b16 %v2037, %v2036
    %v2790 = vpack.c.b16 %v2039, %v2038
    %v2791 = vpack.c.b16 %v2041, %v2040
    %v2792 = vpack.c.b16 %v2043, %v2042
    %v2793 = vpack.c.b16 %v2045, %v2044
    %v2794 = vpack.c.b16 %v2047, %v2046
    %v2795 = vpack.c.b16 %v2049, %v2048
    %v2796 = vpack.c.b16 %v2051, %v2050
    %v2797 = vpack.c.b16 %v2053, %v2052
    %v2798 = vpack.c.b16 %v2055, %v2054
    %v2799 = vpack.c.b16 %v2057, %v2056
    %v2800 = vpack.c.b16 %v2059, %v2058
    %v2801 = vpack.c.b16 %v2061, %v2060
    %v2802 = vpack.c.b16 %v2063, %v2062
    %v2803 = vpack.c.b16 %v2065, %v2064
    %v2804 = vpack.c.b16 %v2067, %v2066
    %v2805 = vpack.c.b16 %v2069, %v2068
    %v2806 = vpack.c.b16 %v2071, %v2070
    %v2807 = vpack.c.b16 %v2073, %v2072
    %v2808 = vpack.c.b16 %v2075, %v2074
    %v2809 = vpack.c.b16 %v2077, %v2076
    %v2810 = vpack.c.b16 %v2079, %v2078
    %v2811 = vpack.c.b16 %v2081, %v2080
    %v2812 = vpack.c.b16 %v2083, %v2082
    %v2813 = vpack.c.b16 %v2085, %v2084
    %v2814 = vpack.c.b16 %v2087, %v2086
    %v2815 = vpack.c.b16 %v2089, %v2088
    %v2816 = vpack.c.b16 %v2091, %v2090
    %v2817 = vpack.c.b16 %v2093, %v2092
    %v2818 = vpack.c.b16 %v2095, %v2094
    %v2819 = vpack.c.b16 %v2097, %v2096
    %v2820 = vpack.c.b16 %v2099, %v2098
    %v2821 = vpack.c.b16 %v2101, %v2100
    %v2822 = vpack.c.b16 %v2103, %v2102
    %v2823 = vpack.c.b16 %v2105, %v2104
    %v2824 = vpack.c.b16 %v2107, %v2106
    %v2825 = vpack.c.b16 %v2109, %v2108
    %v2826 = vpack.c.b16 %v2111, %v2110
    %v2827 = vpack.c.b16 %v2113, %v2112
    %v2828 = vpack.c.b16 %v2115, %v2114
    %v2829 = vpack.c.b16 %v2117, %v2116
    %v2830 = vpack.c.b16 %v2119, %v2118
    %v2831 = vpack.c.b16 %v2121, %v2120
    %v2832 = vpack.c.b16 %v2123, %v2122
    %v2833 = vpack.c.b16 %v2125, %v2124
    %v2834 = vpack.c.b16 %v2127, %v2126
    %v2835 = vpack.c.b16 %v2129, %v2128
    %v2836 = vpack.c.b16 %v2131, %v2130
    %v2837 = vpack.c.b16 %v2133, %v2132
    %v2838 = vpack.c.b16 %v2135, %v2134
    %v2839 = vpack.c.b16 %v2137, %v2136
    %v2840 = vpack.c.b16 %v2139, %v2138
    %v2841 = vpack.c.b16 %v2141, %v2140
    %v2842 = vpack.c.b16 %v2143, %v2142
    %v2843 = vpack.c.b16 %v2145, %v2144
    %v2844 = vpack.c.b16 %v2147, %v2146
    %v2845 = vpack.c.b16 %v2149, %v2148
    %v2846 = vpack.c.b16 %v2151, %v2150
    %v2847 = vpack.c.b16 %v2153, %v2152
    %v2848 = vpack.c.b16 %v2155, %v2154
    %v2849 = vpack.c.b16 %v2157, %v2156
    %v2850 = vpack.c.b16 %v2159, %v2158
    %v2851 = vpack.c.b16 %v2161, %v2160
    %v2852 = vpack.c.b16 %v2163, %v2162
    %v2853 = vpack.c.b16 %v2165, %v2164
    %v2854 = vpack.c.b16 %v2167, %v2166
    %v2855 = vpack.c.b16 %v2169, %v2168
    %v2856 = vpack.c.b16 %v2171, %v2170
    %v2857 = vpack.c.b16 %v2173, %v2172
    %v2858 = vpack.c.b16 %v2175, %v2174
    %v2859 = vpack.c.b16 %v2177, %v2176
    %v2860 = vpack.c.b16 %v2179, %v2178
    %v2861 = vpack.c.b16 %v2181, %v2180
    %v2862 = vpack.c.b16 %v2183, %v2182
    %v2863 = vpack.c.b16 %v2185, %v2184
    %v2864 = vpack.c.b16 %v2187, %v2186
    %v2865 = vpack.c.b16 %v2189, %v2188
    %v2866 = vpack.c.b16 %v2191, %v2190
    %v2867 = vpack.c.b16 %v2193, %v2192
    %v2868 = vpack.c.b16 %v2195, %v2194
    %v2869 = vpack.c.b16 %v2197, %v2196
    %v2870 = vpack.c.b16 %v2199, %v2198
    %v2871 = vpack.c.b16 %v2201, %v2200
    %v2872 = vpack.c.b16 %v2203, %v2202
    %v2873 = vpack.c.b16 %v2205, %v2204
    %v2874 = vpack.c.b16 %v2207, %v2206
    %v2875 = vpack.c.b16 %v2209, %v2208
    %v2876 = vpack.c.b16 %v2211, %v2210
    %v2877 = vpack.c.b16 %v2213, %v2212
    %v2878 = vpack.c.b16 %v2215, %v2214
    %v2879 = vpack.c.b16 %v2217, %v2216
    %v2880 = vpack.c.b16 %v2219, %v2218
    %v2881 = vpack.c.b16 %v2221, %v2220
    %v2882 = vpack.c.b16 %v2223, %v2222
    %v2883 = vpack.c.b16 %v2225, %v2224
    %v2884 = vpack.c.b16 %v2227, %v2226
    %v2885 = vpack.c.b16 %v2229, %v2228
    %v2886 = vpack.c.b16 %v2231, %v2230
    %v2887 = vpack.c.b16 %v2233, %v2232
    %v2888 = vpack.c.b16 %v2235, %v2234
    %v2889 = vpack.c.b16 %v2237, %v2236
    %v2890 = vpack.c.b16 %v2239, %v2238
    %v2891 = vpack.c.b16 %v2241, %v2240
    %v2892 = vpack.c.b16 %v2243, %v2242
    %v2893 = vpack.c.b16 %v2245, %v2244
    %v2894 = vpack.c.b16 %v2247, %v2246
    %v2895 = vpack.c.b16 %v2249, %v2248
    %v2896 = vpack.c.b16 %v2251, %v2250
    %v2897 = vpack.c.b16 %v2253, %v2252
    %v2898 = vpack.c.b16 %v2255, %v2254
    %v2899 = vpack.c.b16 %v2257, %v2256
    %v2900 = vpack.c.b16 %v2259, %v2258
    %v2901 = vpack.c.b16 %v2261, %v2260
    %v2902 = vpack.c.b16 %v2263, %v2262
    %v2903 = vpack.c.b16 %v2265, %v2264
    %v2904 = vpack.c.b16 %v2267, %v2266
    %v2905 = vpack.c.b16 %v2269, %v2268
    %v2906 = vpack.c.b16 %v2271, %v2270
    %v2907 = vpack.c.b16 %v2273, %v2272
    %v2908 = vpack.c.b16 %v2275, %v2274
    %v2909 = vpack.c.b16 %v2277, %v2276
    %v2910 = vpack.c.b16 %v2279, %v2278
    %v2911 = vpack.c.b16 %v2281, %v2280
    %v2912 = vpack.c.b16 %v2283, %v2282
    %v2913 = vpack.c.b16 %v2285, %v2284
    %v2914 = vpack.c.b16 %v2287, %v2286
    %v2915 = vpack.c.b16 %v2289, %v2288
    %v2916 = vpack.c.b16 %v2291, %v2290
    %v2917 = vpack.c.b16 %v2293, %v2292
    %v2918 = vpack.c.b16 %v2295, %v2294
    %v2919 = vpack.c.b16 %v2297, %v2296
    %v2920 = vpack.c.b16 %v2299, %v2298
    %v2921 = vpack.c.b16 %v2301, %v2300
    %v2922 = vpack.c.b16 %v2303, %v2302
    %v2923 = vpack.c.b16 %v2305, %v2304
    %v2924 = vpack.c.b16 %v2307, %v2306
    %v2925 = vpack.c.b16 %v2309, %v2308
    %v2926 = vpack.c.b16 %v2311, %v2310
    %v2927 = vpack.c.b16 %v2313, %v2312
    %v2928 = vpack.c.b16 %v2315, %v2314
    %v2929 = vpack.c.b16 %v2317, %v2316
    %v2930 = vpack.c.b16 %v2319, %v2318
    %v2931 = vpack.c.b16 %v2321, %v2320
    %v2932 = vpack.c.b16 %v2323, %v2322
    %v2933 = vpack.c.b16 %v2325, %v2324
    %v2934 = vpack.c.b16 %v2327, %v2326
    %v2935 = vpack.c.b16 %v2329, %v2328
    %v2936 = vpack.c.b16 %v2331, %v2330
    %v2937 = vpack.c.b16 %v2333, %v2332
    %v2938 = vpack.c.b16 %v2335, %v2334
    %v2939 = vpack.c.b16 %v2337, %v2336
    %v2940 = vpack.c.b16 %v2339, %v2338
    %v2941 = vpack.c.b16 %v2341, %v2340
    %v2942 = vpack.c.b16 %v2343, %v2342
    %v2943 = vpack.c.b16 %v2345, %v2344
    %v2944 = vpack.c.b16 %v2347, %v2346
    %v2945 = vpack.c.b16 %v2349, %v2348
    %v2946 = vpack.c.b16 %v2351, %v2350
    %v2947 = vpack.c.b16 %v2353, %v2352
    %v2948 = vpack.c.b16 %v2355, %v2354
    %v2949 = vpack.c.b16 %v2357, %v2356
    %v2950 = vpack.c.b16 %v2359, %v2358
    %v2951 = vpack.c.b16 %v2361, %v2360
    %v2952 = vpack.c.b16 %v2363, %v2362
    %v2953 = vpack.c.b16 %v2365, %v2364
    %v2954 = vpack.c.b16 %v2367, %v2366
    %v2955 = vpack.c.b16 %v2369, %v2368
    %v2956 = vpack.c.b16 %v2371, %v2370
    %v2957 = vpack.c.b16 %v2373, %v2372
    %v2958 = vpack.c.b16 %v2375, %v2374
    %v2959 = vpack.c.b16 %v2377, %v2376
    %v2960 = vpack.c.b16 %v2379, %v2378
    %v2961 = vpack.c.b16 %v2381, %v2380
    %v2962 = vpack.c.b16 %v2383, %v2382
    %v2963 = vpack.c.b16 %v2385, %v2384
    %v2964 = vpack.c.b16 %v2387, %v2386
    %v2965 = vpack.c.b16 %v2389, %v2388
    %v2966 = vpack.c.b16 %v2391, %v2390
    %v2967 = vpack.c.b16 %v2393, %v2392
    %v2968 = vpack.c.b16 %v2395, %v2394
    %v2969 = vpack.c.b16 %v2397, %v2396
    %v2970 = vpack.c.b16 %v2399, %v2398
    %v2971 = vpack.c.b16 %v2401, %v2400
    %v2972 = vpack.c.b16 %v2403, %v2402
    %v2973 = vpack.c.b16 %v2405, %v2404
    %v2974 = vpack.c.b16 %v2407, %v2406
    %v2975 = vpack.c.b16 %v2409, %v2408
    %v2976 = vpack.c.b16 %v2411, %v2410
    %v2977 = vpack.c.b16 %v2413, %v2412
    %v2978 = vpack.c.b16 %v2415, %v2414
    %v2979 = vpack.c.b16 %v2417, %v2416
    %v2980 = vpack.c.b16 %v2419, %v2418
    %v2981 = vpack.c.b16 %v2421, %v2420
    %v2982 = vpack.c.b16 %v2423, %v2422
    %v2983 = vpack.c.b16 %v2425, %v2424
    %v2984 = vpack.c.b16 %v2427, %v2426
    %v2985 = vpack.c.b16 %v2429, %v2428
    %v2986 = vpack.c.b16 %v2431, %v2430
    %v2987 = vpack.c.b16 %v2433, %v2432
    %v2988 = vpack.c.b16 %v2435, %v2434
    %v2989 = vpack.c.b16 %v2437, %v2436
    %v2990 = vpack.c.b16 %v2439, %v2438
    %v2991 = vpack.c.b16 %v2441, %v2440
    %v2992 = vpack.c.b16 %v2443, %v2442
    %v2993 = vpack.c.b16 %v2445, %v2444
    %v2994 = vpack.c.b16 %v2447, %v2446
    %v2995 = vpack.c.b16 %v2449, %v2448
    %v2996 = vpack.c.b16 %v2451, %v2450
    %v2997 = vpack.c.b16 %v2453, %v2452
    %v2998 = vpack.c.b16 %v2455, %v2454
    %v2999 = vpack.c.b16 %v2457, %v2456
    %v3000 = vpack.c.b16 %v2459, %v2458
    %v3001 = vpack.c.b16 %v2461, %v2460
    %v3002 = vpack.c.b16 %v2463, %v2462
    %v3003 = vpack.c.b16 %v2465, %v2464
    %v3004 = vpack.c.b16 %v2467, %v2466
    %v3005 = vpack.c.b16 %v2469, %v2468
    %v3006 = vpack.c.b16 %v2471, %v2470
    %v3007 = vpack.c.b16 %v2473, %v2472
    %v3008 = vpack.c.b16 %v2475, %v2474
    %v3009 = vpack.c.b16 %v2477, %v2476
    %v3010 = vpack.c.b16 %v2479, %v2478
    %v3011 = vpack.c.b16 %v2481, %v2480
    %v3012 = vpack.c.b16 %v2483, %v2482
    %v3013 = vpack.c.b16 %v2485, %v2484
    %v3014 = vpack.c.b16 %v2487, %v2486
    %v3015 = vpack.c.b16 %v2489, %v2488
    %v3016 = vpack.c.b16 %v2491, %v2490
    %v3017 = vpack.c.b16 %v2493, %v2492
    %v3018 = vpack.c.b16 %v2495, %v2494
    %v3019 = vpack.c.b16 %v2497, %v2496
    %v3020 = vpack.c.b16 %v2499, %v2498
    %v3021 = vpack.c.b16 %v2501, %v2500
    %v3022 = vpack.c.b16 %v2503, %v2502
    %v3023 = vpack.c.b16 %v2505, %v2504
    %v3024 = vpack.c.b16 %v2507, %v2506
    %v3025 = vpack.c.b16 %v2509, %v2508
    %v3026 = vpack.c.b16 %v2511, %v2510
    %v3027 = vpack.c.b16 %v2513, %v2512
    %v3028 = vpack.c.b16 %v2515, %v2514
    %v3029 = vpack.c.b16 %v2517, %v2516
    %v3030 = vpack.c.b16 %v2519, %v2518
    %v3031 = vpack.c.b16 %v2521, %v2520
    %v3032 = vpack.c.b16 %v2523, %v2522
    %v3033 = vpack.c.b16 %v2525, %v2524
    %v3034 = vpack.c.b16 %v2527, %v2526
    %v3035 = vpack.c.b16 %v2529, %v2528
    %v3036 = vpack.c.b16 %v2531, %v2530
    %v3037 = vpack.c.b16 %v2533, %v2532
    %v3038 = vpack.c.b16 %v2535, %v2534
    %v3039 = vpack.c.b16 %v2537, %v2536
    %v3040 = vpack.c.b16 %v2539, %v2538
    %v3041 = vpack.c.b16 %v2541, %v2540
    %v3042 = vpack.c.b16 %v2543, %v2542
    %v3043 = vpack.c.b16 %v2545, %v2544
    %v3044 = vpack.c.b16 %v2547, %v2546
    %v3045 = vpack.c.b16 %v2549, %v2548
    %v3046 = vpack.c.b16 %v2551, %v2550
    %v3047 = vpack.c.b16 %v2553, %v2552
    %v3048 = vpack.c.b16 %v2555, %v2554
    %v3049 = vpack.c.b16 %v2557, %v2556
    %v3050 = vpack.c.b16 %v2559, %v2558
    %v3051 = vpack.c.b16 %v2561, %v2560
    %v3052 = vpack.c.b16 %v2563, %v2562
    %v3053 = vpack.c.b16 %v2565, %v2564
    %v3054 = vpack.c.b16 %v2567, %v2566
    %v3055 = vpack.c.b16 %v2569, %v2568
    %v3056 = vpack.c.b16 %v2571, %v2570
    %v3057 = vpack.c.b16 %v2573, %v2572
    %v3058 = vpack.c.b16 %v2575, %v2574
    %v3059 = vpack.c.b16 %v2577, %v2576
    %v3060 = vpack.c.b16 %v2579, %v2578
    %v3061 = vpack.c.b16 %v2581, %v2580
    %v3062 = vpack.c.b16 %v2583, %v2582
    %v3063 = vpack.c.b16 %v2585, %v2584
    %v3064 = vpack.c.b16 %v2587, %v2586
    %v3065 = vpack.c.b16 %v2589, %v2588
    %v3066 = vpack.c.b16 %v2591, %v2590
    %v3067 = vpack.c.b16 %v2593, %v2592
    %v3068 = vpack.c.b16 %v2595, %v2594
    %v3069 = vpack.c.b16 %v2597, %v2596
    %v3070 = vpack.c.b16 %v2599, %v2598
    %v3071 = vpack.c.b16 %v2601, %v2600
    %v3072 = vpack.c.b16 %v2603, %v2602
    %v3073 = vpack.c.b16 %v2605, %v2604
    %v3074 = vpack.c.b16 %v2607, %v2606
    %v3075 = vpack.c.b16 %v2609, %v2608
    %v3076 = vpack.c.b16 %v2611, %v2610
    %v3077 = vpack.c.b16 %v2613, %v2612
    %v3078 = vpack.c.b16 %v2615, %v2614
    %v3079 = vpack.c.b16 %v2617, %v2616
    %v3080 = vpack.c.b16 %v2619, %v2618
    %v3081 = vpack.c.b16 %v2621, %v2620
    %v3082 = vpack.c.b16 %v2623, %v2622
    %v3083 = vpack.c.b16 %v2625, %v2624
    %v3084 = vpack.c.b16 %v2627, %v2626
    %v3085 = vpack.c.b16 %v2629, %v2628
    %v3086 = vpack.c.b16 %v2631, %v2630
    %v3087 = vpack.c.b16 %v2633, %v2632
    %v3088 = vpack.c.b16 %v2635, %v2634
    %v3089 = vpack.c.b16 %v2637, %v2636
    %v3090 = vpack.c.b16 %v2639, %v2638
    %v3091 = vpack.c.b16 %v2641, %v2640
    %v3092 = vpack.c.b16 %v2643, %v2642
    %v3093 = vpack.c.b16 %v2645, %v2644
    %v3094 = vpack.c.b16 %v2647, %v2646
    %v3095 = vpack.c.b16 %v2649, %v2648
    %v3096 = vpack.c.b16 %v2651, %v2650
    %v3097 = vpack.c.b16 %v2653, %v2652
    %v3098 = vpack.c.b16 %v2655, %v2654
    %v3099 = vpack.c.b16 %v2657, %v2656
    %v3100 = vpack.c.b16 %v2659, %v2658
    %v3101 = vpack.c.b16 %v2661, %v2660
    %v3102 = vpack.c.b16 %v2663, %v2662
    %v3103 = vpack.c.b16 %v2665, %v2664
    %v3104 = vpack.c.b16 %v2667, %v2666
    %v3105 = vpack.c.b16 %v2669, %v2668
    %v3106 = vpack.c.b16 %v2671, %v2670
    %v3107 = vpack.c.b16 %v2673, %v2672
    %v3108 = vpack.c.b16 %v2675, %v2674
    %v3109 = vpack.c.b16 %v2677, %v2676
    %v3110 = vpack.c.b16 %v2679, %v2678
    %v3111 = vpack.c.b16 %v2681, %v2680
    %v3112 = vpack.c.b16 %v2683, %v2682
    %v3113 = vpack.c.b16 %v2685, %v2684
    %v3114 = vpack.c.b16 %v2687, %v2686
    %v3115 = vpack.c.b16 %v2689, %v2688
    %v3116 = vpack.c.b16 %v2691, %v2690
    %v3117 = vpack.c.b16 %v2693, %v2692
    %v3118 = vpack.c.b16 %v2695, %v2694
    %v3119 = vpack.c.b16 %v2697, %v2696
    %v3120 = vpack.c.b16 %v2699, %v2698
    %v3121 = vpack.c.b16 %v2701, %v2700
    %v3122 = vpack.c.b16 %v2703, %v2702
    %v3123 = vpack.c.b16 %v2705, %v2704
    %v3124 = vpack.c.b16 %v2707, %v2706
    %v3125 = vpack.c.b16 %v2709, %v2708
    %v3126 = vpack.c.b16 %v2711, %v2710
    %v3127 = vpack.c.b16 %v2713, %v2712
    %v3128 = vpack.c.b16 %v2715, %v2714
    %v3129 = vpack.c.b16 %v2717, %v2716
    %v3130 = vpack.c.b16 %v2719, %v2718
    %v3131 = vpack.c.b16 %v2721, %v2720
    %v3132 = vpack.c.b16 %v2723, %v2722
    %v3133 = vpack.c.b16 %v2725, %v2724
    %v3134 = vpack.c.b16 %v2727, %v2726
    %v3135 = vpack.c.b16 %v2729, %v2728
    %v3136 = vpack.c.b16 %v2731, %v2730
    %v3137 = vpack.c.b16 %v2733, %v2732
    %v3138 = vpack.c.b16 %v2735, %v2734
    %v3139 = vpack.c.b16 %v2737, %v2736
    %v3140 = vpack.c.b16 %v2739, %v2738
    %v3141 = vpack.c.b16 %v2741, %v2740
    %v3142 = vpack.c.b16 %v2743, %v2742
    %v3143 = vpack.c.b16 %v2745, %v2744
    %v3144 = vpack.c.b16 %v2747, %v2746
    %v3145 = vpack.c.b16 %v2749, %v2748
    %v3146 = vpack.c.b16 %v2751, %v2750
    %v3147 = vpack.c.b16 %v2753, %v2752
    %v3148 = vpack.c.b16 %v2755, %v2754
    %v3149 = vpack.c.b16 %v2757, %v2756
    %3542 = vmatprep.subr.bf16.mxu0 0
    %3543 = vmatpush1.bf16.msra.mxu0 %v2758
    %3544 = vmatprep.subr.bf16.mxu0 0
    %3545 = vmatpush1.bf16.msra.mxu0 %v2759
    %3546 = vmatprep.subr.bf16.mxu0 0
    %3547 = vmatpush1.bf16.msra.mxu0 %v2760
    %3548 = vmatprep.subr.bf16.mxu0 0
    %3549 = vmatpush1.bf16.msra.mxu0 %v2761
    %3550 = vmatprep.subr.bf16.mxu0 0
    %3551 = vmatpush1.bf16.msra.mxu0 %v2762
    %3552 = vmatprep.subr.bf16.mxu0 0
    %3553 = vmatpush1.bf16.msra.mxu0 %v2763
    %3554 = vmatprep.subr.bf16.mxu0 0
    %3555 = vmatpush1.bf16.msra.mxu0 %v2764
    %3556 = vmatprep.subr.bf16.mxu0 0
    %3557 = vmatpush1.bf16.msra.mxu0 %v2765
    %3558 = vmatprep.subr.bf16.mxu0 0
    %3559 = vmatpush1.bf16.msra.mxu0 %v2766
    %3560 = vmatprep.subr.bf16.mxu0 0
    %3561 = vmatpush1.bf16.msra.mxu0 %v2767
    %3562 = vmatprep.subr.bf16.mxu0 0
    %3563 = vmatpush1.bf16.msra.mxu0 %v2768
    %3564 = vmatprep.subr.bf16.mxu0 0
    %3565 = vmatpush1.bf16.msra.mxu0 %v2769
    %3566 = vmatprep.subr.bf16.mxu0 0
    %3567 = vmatpush1.bf16.msra.mxu0 %v2770
    %3568 = vmatprep.subr.bf16.mxu0 0
    %3569 = vmatpush1.bf16.msra.mxu0 %v2771
    %3570 = vmatprep.subr.bf16.mxu0 0
    %3571 = vmatpush1.bf16.msra.mxu0 %v2772
    %3572 = vmatprep.subr.bf16.mxu0 0
    %3573 = vmatpush1.bf16.msra.mxu0 %v2773
    %3574 = vmatprep.mubr.bf16.mxu0 %v870
    %3575 = vmatmul.mubr.bf16.gmra.mrb[0].mxu0 %v856
    %v3576 = vpop.f32.mrb[0].mxu0
    %v3577 = vadd.f32 %v824, %v3576
    %v3578 = vpop.f32.mrb[0].mxu0
    %v3579 = vpop.f32.mrb[0].mxu0
    %v3580 = vpop.f32.mrb[0].mxu0
    %3581 = vdwg.mxu0
    %3582 = vmatprep.subr.bf16.mxu0 0
    %3583 = vmatpush1.bf16.msra.mxu0 %v2774
    %3584 = vmatprep.subr.bf16.mxu0 0
    %3585 = vmatpush1.bf16.msra.mxu0 %v2775
    %3586 = vmatprep.subr.bf16.mxu0 0
    %3587 = vmatpush1.bf16.msra.mxu0 %v2776
    %3588 = vmatprep.subr.bf16.mxu0 0
    %3589 = vmatpush1.bf16.msra.mxu0 %v2777
    %3590 = vmatprep.subr.bf16.mxu0 0
    %3591 = vmatpush1.bf16.msra.mxu0 %v2778
    %3592 = vmatprep.subr.bf16.mxu0 0
    %3593 = vmatpush1.bf16.msra.mxu0 %v2779
    %3594 = vmatprep.subr.bf16.mxu0 0
    %3595 = vmatpush1.bf16.msra.mxu0 %v2780
    %3596 = vmatprep.subr.bf16.mxu0 0
    %3597 = vmatpush1.bf16.msra.mxu0 %v2781
    %3598 = vmatprep.subr.bf16.mxu0 0
    %3599 = vmatpush1.bf16.msra.mxu0 %v2782
    %3600 = vmatprep.subr.bf16.mxu0 0
    %3601 = vmatpush1.bf16.msra.mxu0 %v2783
    %3602 = vmatprep.subr.bf16.mxu0 0
    %3603 = vmatpush1.bf16.msra.mxu0 %v2784
    %3604 = vmatprep.subr.bf16.mxu0 0
    %3605 = vmatpush1.bf16.msra.mxu0 %v2785
    %3606 = vmatprep.subr.bf16.mxu0 0
    %3607 = vmatpush1.bf16.msra.mxu0 %v2786
    %3608 = vmatprep.subr.bf16.mxu0 0
    %3609 = vmatpush1.bf16.msra.mxu0 %v2787
    %3610 = vmatprep.subr.bf16.mxu0 0
    %3611 = vmatpush1.bf16.msra.mxu0 %v2788
    %3612 = vmatprep.subr.bf16.mxu0 0
    %3613 = vmatpush1.bf16.msra.mxu0 %v2789
    %3614 = vmatprep.mubr.bf16.mxu0 %v880
    %3615 = vmatmul.mubr.bf16.gmra.mrb[0].mxu0 %v878
    %v3616 = vpop.f32.mrb[0].mxu0
    %v3617 = vadd.f32 %v3577, %v3616
    %v3618 = vpop.f32.mrb[0].mxu0
    %v3619 = vpop.f32.mrb[0].mxu0
    %v3620 = vpop.f32.mrb[0].mxu0
    %3621 = vdwg.mxu0
    %3622 = vmatprep.subr.bf16.mxu0 0
    %3623 = vmatpush1.bf16.msra.mxu0 %v2790
    %3624 = vmatprep.subr.bf16.mxu0 0
    %3625 = vmatpush1.bf16.msra.mxu0 %v2791
    %3626 = vmatprep.subr.bf16.mxu0 0
    %3627 = vmatpush1.bf16.msra.mxu0 %v2792
    %3628 = vmatprep.subr.bf16.mxu0 0
    %3629 = vmatpush1.bf16.msra.mxu0 %v2793
    %3630 = vmatprep.subr.bf16.mxu0 0
    %3631 = vmatpush1.bf16.msra.mxu0 %v2794
    %3632 = vmatprep.subr.bf16.mxu0 0
    %3633 = vmatpush1.bf16.msra.mxu0 %v2795
    %3634 = vmatprep.subr.bf16.mxu0 0
    %3635 = vmatpush1.bf16.msra.mxu0 %v2796
    %3636 = vmatprep.subr.bf16.mxu0 0
    %3637 = vmatpush1.bf16.msra.mxu0 %v2797
    %3638 = vmatprep.subr.bf16.mxu0 0
    %3639 = vmatpush1.bf16.msra.mxu0 %v2798
    %3640 = vmatprep.subr.bf16.mxu0 0
    %3641 = vmatpush1.bf16.msra.mxu0 %v2799
    %3642 = vmatprep.subr.bf16.mxu0 0
    %3643 = vmatpush1.bf16.msra.mxu0 %v2800
    %3644 = vmatprep.subr.bf16.mxu0 0
    %3645 = vmatpush1.bf16.msra.mxu0 %v2801
    %3646 = vmatprep.subr.bf16.mxu0 0
    %3647 = vmatpush1.bf16.msra.mxu0 %v2802
    %3648 = vmatprep.subr.bf16.mxu0 0
    %3649 = vmatpush1.bf16.msra.mxu0 %v2803
    %3650 = vmatprep.subr.bf16.mxu0 0
    %3651 = vmatpush1.bf16.msra.mxu0 %v2804
    %3652 = vmatprep.subr.bf16.mxu0 0
    %3653 = vmatpush1.bf16.msra.mxu0 %v2805
    %3654 = vmatprep.mubr.bf16.mxu0 %v877
    %3655 = vmatmul.mubr.bf16.gmra.mrb[0].mxu0 %v863
    %v3656 = vpop.f32.mrb[0].mxu0
    %v3657 = vadd.f32 %v3617, %v3656
    %v3658 = vpop.f32.mrb[0].mxu0
    %v3659 = vpop.f32.mrb[0].mxu0
    %v3660 = vpop.f32.mrb[0].mxu0
    %3661 = vdwg.mxu0
    %3662 = vmatprep.subr.bf16.mxu0 0
    %3663 = vmatpush1.bf16.msra.mxu0 %v2806
    %3664 = vmatprep.subr.bf16.mxu0 0
    %3665 = vmatpush1.bf16.msra.mxu0 %v2807
    %3666 = vmatprep.subr.bf16.mxu0 0
    %3667 = vmatpush1.bf16.msra.mxu0 %v2808
    %3668 = vmatprep.subr.bf16.mxu0 0
    %3669 = vmatpush1.bf16.msra.mxu0 %v2809
    %3670 = vmatprep.subr.bf16.mxu0 0
    %3671 = vmatpush1.bf16.msra.mxu0 %v2810
    %3672 = vmatprep.subr.bf16.mxu0 0
    %3673 = vmatpush1.bf16.msra.mxu0 %v2811
    %3674 = vmatprep.subr.bf16.mxu0 0
    %3675 = vmatpush1.bf16.msra.mxu0 %v2812
    %3676 = vmatprep.subr.bf16.mxu0 0
    %3677 = vmatpush1.bf16.msra.mxu0 %v2813
    %3678 = vmatprep.subr.bf16.mxu0 0
    %3679 = vmatpush1.bf16.msra.mxu0 %v2814
    %3680 = vmatprep.subr.bf16.mxu0 0
    %3681 = vmatpush1.bf16.msra.mxu0 %v2815
    %3682 = vmatprep.subr.bf16.mxu0 0
    %3683 = vmatpush1.bf16.msra.mxu0 %v2816
    %3684 = vmatprep.subr.bf16.mxu0 0
    %3685 = vmatpush1.bf16.msra.mxu0 %v2817
    %3686 = vmatprep.subr.bf16.mxu0 0
    %3687 = vmatpush1.bf16.msra.mxu0 %v2818
    %3688 = vmatprep.subr.bf16.mxu0 0
    %3689 = vmatpush1.bf16.msra.mxu0 %v2819
    %3690 = vmatprep.subr.bf16.mxu0 0
    %3691 = vmatpush1.bf16.msra.mxu0 %v2820
    %3692 = vmatprep.subr.bf16.mxu0 0
    %3693 = vmatpush1.bf16.msra.mxu0 %v2821
    %3694 = vmatprep.mubr.bf16.mxu0 %v881
    %3695 = vmatmul.mubr.bf16.gmra.mrb[0].mxu0 %v879
    %v3696 = vpop.f32.mrb[0].mxu0
    %v3697 = vadd.f32 %v3657, %v3696
    %v3698 = vpop.f32.mrb[0].mxu0
    %v3699 = vpop.f32.mrb[0].mxu0
    %v3700 = vpop.f32.mrb[0].mxu0
    %3701 = vdwg.mxu0
    %3702 = vmatprep.subr.bf16.mxu0 0
    %3703 = vmatpush1.bf16.msra.mxu0 %v2822
    %3704 = vmatprep.subr.bf16.mxu0 0
    %3705 = vmatpush1.bf16.msra.mxu0 %v2823
    %3706 = vmatprep.subr.bf16.mxu0 0
    %3707 = vmatpush1.bf16.msra.mxu0 %v2824
    %3708 = vmatprep.subr.bf16.mxu0 0
    %3709 = vmatpush1.bf16.msra.mxu0 %v2825
    %3710 = vmatprep.subr.bf16.mxu0 0
    %3711 = vmatpush1.bf16.msra.mxu0 %v2826
    %3712 = vmatprep.subr.bf16.mxu0 0
    %3713 = vmatpush1.bf16.msra.mxu0 %v2827
    %3714 = vmatprep.subr.bf16.mxu0 0
    %3715 = vmatpush1.bf16.msra.mxu0 %v2828
    %3716 = vmatprep.subr.bf16.mxu0 0
    %3717 = vmatpush1.bf16.msra.mxu0 %v2829
    %3718 = vmatprep.subr.bf16.mxu0 0
    %3719 = vmatpush1.bf16.msra.mxu0 %v2830
    %3720 = vmatprep.subr.bf16.mxu0 0
    %3721 = vmatpush1.bf16.msra.mxu0 %v2831
    %3722 = vmatprep.subr.bf16.mxu0 0
    %3723 = vmatpush1.bf16.msra.mxu0 %v2832
    %3724 = vmatprep.subr.bf16.mxu0 0
    %3725 = vmatpush1.bf16.msra.mxu0 %v2833
    %3726 = vmatprep.subr.bf16.mxu0 0
    %3727 = vmatpush1.bf16.msra.mxu0 %v2834
    %3728 = vmatprep.subr.bf16.mxu0 0
    %3729 = vmatpush1.bf16.msra.mxu0 %v2835
    %3730 = vmatprep.subr.bf16.mxu0 0
    %3731 = vmatpush1.bf16.msra.mxu0 %v2836
    %3732 = vmatprep.subr.bf16.mxu0 0
    %3733 = vmatpush1.bf16.msra.mxu0 %v2837
    %3734 = vmatprep.mubr.bf16.mxu0 %v919
    %3735 = vmatmul.mubr.bf16.gmra.mrb[0].mxu0 %v905
    %v3736 = vpop.f32.mrb[0].mxu0
    %v3737 = vadd.f32 %v3697, %v3736
    %v3738 = vpop.f32.mrb[0].mxu0
    %v3739 = vpop.f32.mrb[0].mxu0
    %v3740 = vpop.f32.mrb[0].mxu0
    %3741 = vdwg.mxu0
    %3742 = vmatprep.subr.bf16.mxu0 0
    %3743 = vmatpush1.bf16.msra.mxu0 %v2838
    %3744 = vmatprep.subr.bf16.mxu0 0
    %3745 = vmatpush1.bf16.msra.mxu0 %v2839
    %3746 = vmatprep.subr.bf16.mxu0 0
    %3747 = vmatpush1.bf16.msra.mxu0 %v2840
    %3748 = vmatprep.subr.bf16.mxu0 0
    %3749 = vmatpush1.bf16.msra.mxu0 %v2841
    %3750 = vmatprep.subr.bf16.mxu0 0
    %3751 = vmatpush1.bf16.msra.mxu0 %v2842
    %3752 = vmatprep.subr.bf16.mxu0 0
    %3753 = vmatpush1.bf16.msra.mxu0 %v2843
    %3754 = vmatprep.subr.bf16.mxu0 0
    %3755 = vmatpush1.bf16.msra.mxu0 %v2844
    %3756 = vmatprep.subr.bf16.mxu0 0
    %3757 = vmatpush1.bf16.msra.mxu0 %v2845
    %3758 = vmatprep.subr.bf16.mxu0 0
    %3759 = vmatpush1.bf16.msra.mxu0 %v2846
    %3760 = vmatprep.subr.bf16.mxu0 0
    %3761 = vmatpush1.bf16.msra.mxu0 %v2847
    %3762 = vmatprep.subr.bf16.mxu0 0
    %3763 = vmatpush1.bf16.msra.mxu0 %v2848
    %3764 = vmatprep.subr.bf16.mxu0 0
    %3765 = vmatpush1.bf16.msra.mxu0 %v2849
    %3766 = vmatprep.subr.bf16.mxu0 0
    %3767 = vmatpush1.bf16.msra.mxu0 %v2850
    %3768 = vmatprep.subr.bf16.mxu0 0
    %3769 = vmatpush1.bf16.msra.mxu0 %v2851
    %3770 = vmatprep.subr.bf16.mxu0 0
    %3771 = vmatpush1.bf16.msra.mxu0 %v2852
    %3772 = vmatprep.subr.bf16.mxu0 0
    %3773 = vmatpush1.bf16.msra.mxu0 %v2853
    %3774 = vmatprep.mubr.bf16.mxu0 %v929
    %3775 = vmatmul.mubr.bf16.gmra.mrb[0].mxu0 %v927
    %v3776 = vpop.f32.mrb[0].mxu0
    %v3777 = vadd.f32 %v3737, %v3776
    %v3778 = vpop.f32.mrb[0].mxu0
    %v3779 = vpop.f32.mrb[0].mxu0
    %v3780 = vpop.f32.mrb[0].mxu0
    %3781 = vdwg.mxu0
    %3782 = vmatprep.subr.bf16.mxu0 0
    %3783 = vmatpush1.bf16.msra.mxu0 %v2854
    %3784 = vmatprep.subr.bf16.mxu0 0
    %3785 = vmatpush1.bf16.msra.mxu0 %v2855
    %3786 = vmatprep.subr.bf16.mxu0 0
    %3787 = vmatpush1.bf16.msra.mxu0 %v2856
    %3788 = vmatprep.subr.bf16.mxu0 0
    %3789 = vmatpush1.bf16.msra.mxu0 %v2857
    %3790 = vmatprep.subr.bf16.mxu0 0
    %3791 = vmatpush1.bf16.msra.mxu0 %v2858
    %3792 = vmatprep.subr.bf16.mxu0 0
    %3793 = vmatpush1.bf16.msra.mxu0 %v2859
    %3794 = vmatprep.subr.bf16.mxu0 0
    %3795 = vmatpush1.bf16.msra.mxu0 %v2860
    %3796 = vmatprep.subr.bf16.mxu0 0
    %3797 = vmatpush1.bf16.msra.mxu0 %v2861
    %3798 = vmatprep.subr.bf16.mxu0 0
    %3799 = vmatpush1.bf16.msra.mxu0 %v2862
    %3800 = vmatprep.subr.bf16.mxu0 0
    %3801 = vmatpush1.bf16.msra.mxu0 %v2863
    %3802 = vmatprep.subr.bf16.mxu0 0
    %3803 = vmatpush1.bf16.msra.mxu0 %v2864
    %3804 = vmatprep.subr.bf16.mxu0 0
    %3805 = vmatpush1.bf16.msra.mxu0 %v2865
    %3806 = vmatprep.subr.bf16.mxu0 0
    %3807 = vmatpush1.bf16.msra.mxu0 %v2866
    %3808 = vmatprep.subr.bf16.mxu0 0
    %3809 = vmatpush1.bf16.msra.mxu0 %v2867
    %3810 = vmatprep.subr.bf16.mxu0 0
    %3811 = vmatpush1.bf16.msra.mxu0 %v2868
    %3812 = vmatprep.subr.bf16.mxu0 0
    %3813 = vmatpush1.bf16.msra.mxu0 %v2869
    %3814 = vmatprep.mubr.bf16.mxu0 %v926
    %3815 = vmatmul.mubr.bf16.gmra.mrb[0].mxu0 %v912
    %v3816 = vpop.f32.mrb[0].mxu0
    %v3817 = vadd.f32 %v3777, %v3816
    %v3818 = vpop.f32.mrb[0].mxu0
    %v3819 = vpop.f32.mrb[0].mxu0
    %v3820 = vpop.f32.mrb[0].mxu0
    %3821 = vdwg.mxu0
    %3822 = vmatprep.subr.bf16.mxu0 0
    %3823 = vmatpush1.bf16.msra.mxu0 %v2870
    %3824 = vmatprep.subr.bf16.mxu0 0
    %3825 = vmatpush1.bf16.msra.mxu0 %v2871
    %3826 = vmatprep.subr.bf16.mxu0 0
    %3827 = vmatpush1.bf16.msra.mxu0 %v2872
    %3828 = vmatprep.subr.bf16.mxu0 0
    %3829 = vmatpush1.bf16.msra.mxu0 %v2873
    %3830 = vmatprep.subr.bf16.mxu0 0
    %3831 = vmatpush1.bf16.msra.mxu0 %v2874
    %3832 = vmatprep.subr.bf16.mxu0 0
    %3833 = vmatpush1.bf16.msra.mxu0 %v2875
    %3834 = vmatprep.subr.bf16.mxu0 0
    %3835 = vmatpush1.bf16.msra.mxu0 %v2876
    %3836 = vmatprep.subr.bf16.mxu0 0
    %3837 = vmatpush1.bf16.msra.mxu0 %v2877
    %3838 = vmatprep.subr.bf16.mxu0 0
    %3839 = vmatpush1.bf16.msra.mxu0 %v2878
    %3840 = vmatprep.subr.bf16.mxu0 0
    %3841 = vmatpush1.bf16.msra.mxu0 %v2879
    %3842 = vmatprep.subr.bf16.mxu0 0
    %3843 = vmatpush1.bf16.msra.mxu0 %v2880
    %3844 = vmatprep.subr.bf16.mxu0 0
    %3845 = vmatpush1.bf16.msra.mxu0 %v2881
    %3846 = vmatprep.subr.bf16.mxu0 0
    %3847 = vmatpush1.bf16.msra.mxu0 %v2882
    %3848 = vmatprep.subr.bf16.mxu0 0
    %3849 = vmatpush1.bf16.msra.mxu0 %v2883
    %3850 = vmatprep.subr.bf16.mxu0 0
    %3851 = vmatpush1.bf16.msra.mxu0 %v2884
    %3852 = vmatprep.subr.bf16.mxu0 0
    %3853 = vmatpush1.bf16.msra.mxu0 %v2885
    %3854 = vmatprep.mubr.bf16.mxu0 %v930
    %3855 = vmatmul.mubr.bf16.gmra.mrb[0].mxu0 %v928
    %v3856 = vpop.f32.mrb[0].mxu0
    %v3857 = vadd.f32 %v3817, %v3856
    %v3858 = vpop.f32.mrb[0].mxu0
    %v3859 = vpop.f32.mrb[0].mxu0
    %v3860 = vpop.f32.mrb[0].mxu0
    %3861 = vdwg.mxu0
    %3862 = vmatprep.subr.bf16.mxu0 0
    %3863 = vmatpush1.bf16.msra.mxu0 %v2886
    %3864 = vmatprep.subr.bf16.mxu0 0
    %3865 = vmatpush1.bf16.msra.mxu0 %v2887
    %3866 = vmatprep.subr.bf16.mxu0 0
    %3867 = vmatpush1.bf16.msra.mxu0 %v2888
    %3868 = vmatprep.subr.bf16.mxu0 0
    %3869 = vmatpush1.bf16.msra.mxu0 %v2889
    %3870 = vmatprep.subr.bf16.mxu0 0
    %3871 = vmatpush1.bf16.msra.mxu0 %v2890
    %3872 = vmatprep.subr.bf16.mxu0 0
    %3873 = vmatpush1.bf16.msra.mxu0 %v2891
    %3874 = vmatprep.subr.bf16.mxu0 0
    %3875 = vmatpush1.bf16.msra.mxu0 %v2892
    %3876 = vmatprep.subr.bf16.mxu0 0
    %3877 = vmatpush1.bf16.msra.mxu0 %v2893
    %3878 = vmatprep.subr.bf16.mxu0 0
    %3879 = vmatpush1.bf16.msra.mxu0 %v2894
    %3880 = vmatprep.subr.bf16.mxu0 0
    %3881 = vmatpush1.bf16.msra.mxu0 %v2895
    %3882 = vmatprep.subr.bf16.mxu0 0
    %3883 = vmatpush1.bf16.msra.mxu0 %v2896
    %3884 = vmatprep.subr.bf16.mxu0 0
    %3885 = vmatpush1.bf16.msra.mxu0 %v2897
    %3886 = vmatprep.subr.bf16.mxu0 0
    %3887 = vmatpush1.bf16.msra.mxu0 %v2898
    %3888 = vmatprep.subr.bf16.mxu0 0
    %3889 = vmatpush1.bf16.msra.mxu0 %v2899
    %3890 = vmatprep.subr.bf16.mxu0 0
    %3891 = vmatpush1.bf16.msra.mxu0 %v2900
    %3892 = vmatprep.subr.bf16.mxu0 0
    %3893 = vmatpush1.bf16.msra.mxu0 %v2901
    %3894 = vmatprep.mubr.bf16.mxu0 %v968
    %3895 = vmatmul.mubr.bf16.gmra.mrb[0].mxu0 %v954
    %v3896 = vpop.f32.mrb[0].mxu0
    %v3897 = vadd.f32 %v3857, %v3896
    %v3898 = vpop.f32.mrb[0].mxu0
    %v3899 = vpop.f32.mrb[0].mxu0
    %v3900 = vpop.f32.mrb[0].mxu0
    %3901 = vdwg.mxu0
    %3902 = vmatprep.subr.bf16.mxu0 0
    %3903 = vmatpush1.bf16.msra.mxu0 %v2902
    %3904 = vmatprep.subr.bf16.mxu0 0
    %3905 = vmatpush1.bf16.msra.mxu0 %v2903
    %3906 = vmatprep.subr.bf16.mxu0 0
    %3907 = vmatpush1.bf16.msra.mxu0 %v2904
    %3908 = vmatprep.subr.bf16.mxu0 0
    %3909 = vmatpush1.bf16.msra.mxu0 %v2905
    %3910 = vmatprep.subr.bf16.mxu0 0
    %3911 = vmatpush1.bf16.msra.mxu0 %v2906
    %3912 = vmatprep.subr.bf16.mxu0 0
    %3913 = vmatpush1.bf16.msra.mxu0 %v2907
    %3914 = vmatprep.subr.bf16.mxu0 0
    %3915 = vmatpush1.bf16.msra.mxu0 %v2908
    %3916 = vmatprep.subr.bf16.mxu0 0
    %3917 = vmatpush1.bf16.msra.mxu0 %v2909
    %3918 = vmatprep.subr.bf16.mxu0 0
    %3919 = vmatpush1.bf16.msra.mxu0 %v2910
    %3920 = vmatprep.subr.bf16.mxu0 0
    %3921 = vmatpush1.bf16.msra.mxu0 %v2911
    %3922 = vmatprep.subr.bf16.mxu0 0
    %3923 = vmatpush1.bf16.msra.mxu0 %v2912
    %3924 = vmatprep.subr.bf16.mxu0 0
    %3925 = vmatpush1.bf16.msra.mxu0 %v2913
    %3926 = vmatprep.subr.bf16.mxu0 0
    %3927 = vmatpush1.bf16.msra.mxu0 %v2914
    %3928 = vmatprep.subr.bf16.mxu0 0
    %3929 = vmatpush1.bf16.msra.mxu0 %v2915
    %3930 = vmatprep.subr.bf16.mxu0 0
    %3931 = vmatpush1.bf16.msra.mxu0 %v2916
    %3932 = vmatprep.subr.bf16.mxu0 0
    %3933 = vmatpush1.bf16.msra.mxu0 %v2917
    %3934 = vmatprep.mubr.bf16.mxu0 %v978
    %3935 = vmatmul.mubr.bf16.gmra.mrb[0].mxu0 %v976
    %v3936 = vpop.f32.mrb[0].mxu0
    %v3937 = vadd.f32 %v3897, %v3936
    %v3938 = vpop.f32.mrb[0].mxu0
    %v3939 = vpop.f32.mrb[0].mxu0
    %v3940 = vpop.f32.mrb[0].mxu0
    %3941 = vdwg.mxu0
    %3942 = vmatprep.subr.bf16.mxu0 0
    %3943 = vmatpush1.bf16.msra.mxu0 %v2918
    %3944 = vmatprep.subr.bf16.mxu0 0
    %3945 = vmatpush1.bf16.msra.mxu0 %v2919
    %3946 = vmatprep.subr.bf16.mxu0 0
    %3947 = vmatpush1.bf16.msra.mxu0 %v2920
    %3948 = vmatprep.subr.bf16.mxu0 0
    %3949 = vmatpush1.bf16.msra.mxu0 %v2921
    %3950 = vmatprep.subr.bf16.mxu0 0
    %3951 = vmatpush1.bf16.msra.mxu0 %v2922
    %3952 = vmatprep.subr.bf16.mxu0 0
    %3953 = vmatpush1.bf16.msra.mxu0 %v2923
    %3954 = vmatprep.subr.bf16.mxu0 0
    %3955 = vmatpush1.bf16.msra.mxu0 %v2924
    %3956 = vmatprep.subr.bf16.mxu0 0
    %3957 = vmatpush1.bf16.msra.mxu0 %v2925
    %3958 = vmatprep.subr.bf16.mxu0 0
    %3959 = vmatpush1.bf16.msra.mxu0 %v2926
    %3960 = vmatprep.subr.bf16.mxu0 0
    %3961 = vmatpush1.bf16.msra.mxu0 %v2927
    %3962 = vmatprep.subr.bf16.mxu0 0
    %3963 = vmatpush1.bf16.msra.mxu0 %v2928
    %3964 = vmatprep.subr.bf16.mxu0 0
    %3965 = vmatpush1.bf16.msra.mxu0 %v2929
    %3966 = vmatprep.subr.bf16.mxu0 0
    %3967 = vmatpush1.bf16.msra.mxu0 %v2930
    %3968 = vmatprep.subr.bf16.mxu0 0
    %3969 = vmatpush1.bf16.msra.mxu0 %v2931
    %3970 = vmatprep.subr.bf16.mxu0 0
    %3971 = vmatpush1.bf16.msra.mxu0 %v2932
    %3972 = vmatprep.subr.bf16.mxu0 0
    %3973 = vmatpush1.bf16.msra.mxu0 %v2933
    %3974 = vmatprep.mubr.bf16.mxu0 %v975
    %3975 = vmatmul.mubr.bf16.gmra.mrb[0].mxu0 %v961
    %v3976 = vpop.f32.mrb[0].mxu0
    %v3977 = vadd.f32 %v3937, %v3976
    %v3978 = vpop.f32.mrb[0].mxu0
    %v3979 = vpop.f32.mrb[0].mxu0
    %v3980 = vpop.f32.mrb[0].mxu0
    %3981 = vdwg.mxu0
    %3982 = vmatprep.subr.bf16.mxu0 0
    %3983 = vmatpush1.bf16.msra.mxu0 %v2934
    %3984 = vmatprep.subr.bf16.mxu0 0
    %3985 = vmatpush1.bf16.msra.mxu0 %v2935
    %3986 = vmatprep.subr.bf16.mxu0 0
    %3987 = vmatpush1.bf16.msra.mxu0 %v2936
    %3988 = vmatprep.subr.bf16.mxu0 0
    %3989 = vmatpush1.bf16.msra.mxu0 %v2937
    %3990 = vmatprep.subr.bf16.mxu0 0
    %3991 = vmatpush1.bf16.msra.mxu0 %v2938
    %3992 = vmatprep.subr.bf16.mxu0 0
    %3993 = vmatpush1.bf16.msra.mxu0 %v2939
    %3994 = vmatprep.subr.bf16.mxu0 0
    %3995 = vmatpush1.bf16.msra.mxu0 %v2940
    %3996 = vmatprep.subr.bf16.mxu0 0
    %3997 = vmatpush1.bf16.msra.mxu0 %v2941
    %3998 = vmatprep.subr.bf16.mxu0 0
    %3999 = vmatpush1.bf16.msra.mxu0 %v2942
    %4000 = vmatprep.subr.bf16.mxu0 0
    %4001 = vmatpush1.bf16.msra.mxu0 %v2943
    %4002 = vmatprep.subr.bf16.mxu0 0
    %4003 = vmatpush1.bf16.msra.mxu0 %v2944
    %4004 = vmatprep.subr.bf16.mxu0 0
    %4005 = vmatpush1.bf16.msra.mxu0 %v2945
    %4006 = vmatprep.subr.bf16.mxu0 0
    %4007 = vmatpush1.bf16.msra.mxu0 %v2946
    %4008 = vmatprep.subr.bf16.mxu0 0
    %4009 = vmatpush1.bf16.msra.mxu0 %v2947
    %4010 = vmatprep.subr.bf16.mxu0 0
    %4011 = vmatpush1.bf16.msra.mxu0 %v2948
    %4012 = vmatprep.subr.bf16.mxu0 0
    %4013 = vmatpush1.bf16.msra.mxu0 %v2949
    %4014 = vmatprep.mubr.bf16.mxu0 %v979
    %4015 = vmatmul.mubr.bf16.gmra.mrb[0].mxu0 %v977
    %v4016 = vpop.f32.mrb[0].mxu0
    %v4017 = vadd.f32 %v3977, %v4016
    %v4018 = vpop.f32.mrb[0].mxu0
    %v4019 = vpop.f32.mrb[0].mxu0
    %v4020 = vpop.f32.mrb[0].mxu0
    %4021 = vdwg.mxu0
    %4022 = vmatprep.subr.bf16.mxu0 0
    %4023 = vmatpush1.bf16.msra.mxu0 %v2950
    %4024 = vmatprep.subr.bf16.mxu0 0
    %4025 = vmatpush1.bf16.msra.mxu0 %v2951
    %4026 = vmatprep.subr.bf16.mxu0 0
    %4027 = vmatpush1.bf16.msra.mxu0 %v2952
    %4028 = vmatprep.subr.bf16.mxu0 0
    %4029 = vmatpush1.bf16.msra.mxu0 %v2953
    %4030 = vmatprep.subr.bf16.mxu0 0
    %4031 = vmatpush1.bf16.msra.mxu0 %v2954
    %4032 = vmatprep.subr.bf16.mxu0 0
    %4033 = vmatpush1.bf16.msra.mxu0 %v2955
    %4034 = vmatprep.subr.bf16.mxu0 0
    %4035 = vmatpush1.bf16.msra.mxu0 %v2956
    %4036 = vmatprep.subr.bf16.mxu0 0
    %4037 = vmatpush1.bf16.msra.mxu0 %v2957
    %4038 = vmatprep.subr.bf16.mxu0 0
    %4039 = vmatpush1.bf16.msra.mxu0 %v2958
    %4040 = vmatprep.subr.bf16.mxu0 0
    %4041 = vmatpush1.bf16.msra.mxu0 %v2959
    %4042 = vmatprep.subr.bf16.mxu0 0
    %4043 = vmatpush1.bf16.msra.mxu0 %v2960
    %4044 = vmatprep.subr.bf16.mxu0 0
    %4045 = vmatpush1.bf16.msra.mxu0 %v2961
    %4046 = vmatprep.subr.bf16.mxu0 0
    %4047 = vmatpush1.bf16.msra.mxu0 %v2962
    %4048 = vmatprep.subr.bf16.mxu0 0
    %4049 = vmatpush1.bf16.msra.mxu0 %v2963
    %4050 = vmatprep.subr.bf16.mxu0 0
    %4051 = vmatpush1.bf16.msra.mxu0 %v2964
    %4052 = vmatprep.subr.bf16.mxu0 0
    %4053 = vmatpush1.bf16.msra.mxu0 %v2965
    %4054 = vmatprep.mubr.bf16.mxu0 %v1017
    %4055 = vmatmul.mubr.bf16.gmra.mrb[0].mxu0 %v1003
    %v4056 = vpop.f32.mrb[0].mxu0
    %v4057 = vadd.f32 %v4017, %v4056
    %v4058 = vpop.f32.mrb[0].mxu0
    %v4059 = vpop.f32.mrb[0].mxu0
    %v4060 = vpop.f32.mrb[0].mxu0
    %4061 = vdwg.mxu0
    %4062 = vmatprep.subr.bf16.mxu0 0
    %4063 = vmatpush1.bf16.msra.mxu0 %v2966
    %4064 = vmatprep.subr.bf16.mxu0 0
    %4065 = vmatpush1.bf16.msra.mxu0 %v2967
    %4066 = vmatprep.subr.bf16.mxu0 0
    %4067 = vmatpush1.bf16.msra.mxu0 %v2968
    %4068 = vmatprep.subr.bf16.mxu0 0
    %4069 = vmatpush1.bf16.msra.mxu0 %v2969
    %4070 = vmatprep.subr.bf16.mxu0 0
    %4071 = vmatpush1.bf16.msra.mxu0 %v2970
    %4072 = vmatprep.subr.bf16.mxu0 0
    %4073 = vmatpush1.bf16.msra.mxu0 %v2971
    %4074 = vmatprep.subr.bf16.mxu0 0
    %4075 = vmatpush1.bf16.msra.mxu0 %v2972
    %4076 = vmatprep.subr.bf16.mxu0 0
    %4077 = vmatpush1.bf16.msra.mxu0 %v2973
    %4078 = vmatprep.subr.bf16.mxu0 0
    %4079 = vmatpush1.bf16.msra.mxu0 %v2974
    %4080 = vmatprep.subr.bf16.mxu0 0
    %4081 = vmatpush1.bf16.msra.mxu0 %v2975
    %4082 = vmatprep.subr.bf16.mxu0 0
    %4083 = vmatpush1.bf16.msra.mxu0 %v2976
    %4084 = vmatprep.subr.bf16.mxu0 0
    %4085 = vmatpush1.bf16.msra.mxu0 %v2977
    %4086 = vmatprep.subr.bf16.mxu0 0
    %4087 = vmatpush1.bf16.msra.mxu0 %v2978
    %4088 = vmatprep.subr.bf16.mxu0 0
    %4089 = vmatpush1.bf16.msra.mxu0 %v2979
    %4090 = vmatprep.subr.bf16.mxu0 0
    %4091 = vmatpush1.bf16.msra.mxu0 %v2980
    %4092 = vmatprep.subr.bf16.mxu0 0
    %4093 = vmatpush1.bf16.msra.mxu0 %v2981
    %4094 = vmatprep.mubr.bf16.mxu0 %v1027
    %4095 = vmatmul.mubr.bf16.gmra.mrb[0].mxu0 %v1025
    %v4096 = vpop.f32.mrb[0].mxu0
    %v4097 = vadd.f32 %v4057, %v4096
    %v4098 = vpop.f32.mrb[0].mxu0
    %v4099 = vpop.f32.mrb[0].mxu0
    %v4100 = vpop.f32.mrb[0].mxu0
    %4101 = vdwg.mxu0
    %4102 = vmatprep.subr.bf16.mxu0 0
    %4103 = vmatpush1.bf16.msra.mxu0 %v2982
    %4104 = vmatprep.subr.bf16.mxu0 0
    %4105 = vmatpush1.bf16.msra.mxu0 %v2983
    %4106 = vmatprep.subr.bf16.mxu0 0
    %4107 = vmatpush1.bf16.msra.mxu0 %v2984
    %4108 = vmatprep.subr.bf16.mxu0 0
    %4109 = vmatpush1.bf16.msra.mxu0 %v2985
    %4110 = vmatprep.subr.bf16.mxu0 0
    %4111 = vmatpush1.bf16.msra.mxu0 %v2986
    %4112 = vmatprep.subr.bf16.mxu0 0
    %4113 = vmatpush1.bf16.msra.mxu0 %v2987
    %4114 = vmatprep.subr.bf16.mxu0 0
    %4115 = vmatpush1.bf16.msra.mxu0 %v2988
    %4116 = vmatprep.subr.bf16.mxu0 0
    %4117 = vmatpush1.bf16.msra.mxu0 %v2989
    %4118 = vmatprep.subr.bf16.mxu0 0
    %4119 = vmatpush1.bf16.msra.mxu0 %v2990
    %4120 = vmatprep.subr.bf16.mxu0 0
    %4121 = vmatpush1.bf16.msra.mxu0 %v2991
    %4122 = vmatprep.subr.bf16.mxu0 0
    %4123 = vmatpush1.bf16.msra.mxu0 %v2992
    %4124 = vmatprep.subr.bf16.mxu0 0
    %4125 = vmatpush1.bf16.msra.mxu0 %v2993
    %4126 = vmatprep.subr.bf16.mxu0 0
    %4127 = vmatpush1.bf16.msra.mxu0 %v2994
    %4128 = vmatprep.subr.bf16.mxu0 0
    %4129 = vmatpush1.bf16.msra.mxu0 %v2995
    %4130 = vmatprep.subr.bf16.mxu0 0
    %4131 = vmatpush1.bf16.msra.mxu0 %v2996
    %4132 = vmatprep.subr.bf16.mxu0 0
    %4133 = vmatpush1.bf16.msra.mxu0 %v2997
    %4134 = vmatprep.mubr.bf16.mxu0 %v1024
    %4135 = vmatmul.mubr.bf16.gmra.mrb[0].mxu0 %v1010
    %v4136 = vpop.f32.mrb[0].mxu0
    %v4137 = vadd.f32 %v4097, %v4136
    %v4138 = vpop.f32.mrb[0].mxu0
    %v4139 = vpop.f32.mrb[0].mxu0
    %v4140 = vpop.f32.mrb[0].mxu0
    %4141 = vdwg.mxu0
    %4142 = vmatprep.subr.bf16.mxu0 0
    %4143 = vmatpush1.bf16.msra.mxu0 %v2998
    %4144 = vmatprep.subr.bf16.mxu0 0
    %4145 = vmatpush1.bf16.msra.mxu0 %v2999
    %4146 = vmatprep.subr.bf16.mxu0 0
    %4147 = vmatpush1.bf16.msra.mxu0 %v3000
    %4148 = vmatprep.subr.bf16.mxu0 0
    %4149 = vmatpush1.bf16.msra.mxu0 %v3001
    %4150 = vmatprep.subr.bf16.mxu0 0
    %4151 = vmatpush1.bf16.msra.mxu0 %v3002
    %4152 = vmatprep.subr.bf16.mxu0 0
    %4153 = vmatpush1.bf16.msra.mxu0 %v3003
    %4154 = vmatprep.subr.bf16.mxu0 0
    %4155 = vmatpush1.bf16.msra.mxu0 %v3004
    %4156 = vmatprep.subr.bf16.mxu0 0
    %4157 = vmatpush1.bf16.msra.mxu0 %v3005
    %4158 = vmatprep.subr.bf16.mxu0 0
    %4159 = vmatpush1.bf16.msra.mxu0 %v3006
    %4160 = vmatprep.subr.bf16.mxu0 0
    %4161 = vmatpush1.bf16.msra.mxu0 %v3007
    %4162 = vmatprep.subr.bf16.mxu0 0
    %4163 = vmatpush1.bf16.msra.mxu0 %v3008
    %4164 = vmatprep.subr.bf16.mxu0 0
    %4165 = vmatpush1.bf16.msra.mxu0 %v3009
    %4166 = vmatprep.subr.bf16.mxu0 0
    %4167 = vmatpush1.bf16.msra.mxu0 %v3010
    %4168 = vmatprep.subr.bf16.mxu0 0
    %4169 = vmatpush1.bf16.msra.mxu0 %v3011
    %4170 = vmatprep.subr.bf16.mxu0 0
    %4171 = vmatpush1.bf16.msra.mxu0 %v3012
    %4172 = vmatprep.subr.bf16.mxu0 0
    %4173 = vmatpush1.bf16.msra.mxu0 %v3013
    %4174 = vmatprep.mubr.bf16.mxu0 %v1028
    %4175 = vmatmul.mubr.bf16.gmra.mrb[0].mxu0 %v1026
    %v4176 = vpop.f32.mrb[0].mxu0
    %v4177 = vadd.f32 %v4137, %v4176
    %v4178 = vpop.f32.mrb[0].mxu0
    %v4179 = vpop.f32.mrb[0].mxu0
    %v4180 = vpop.f32.mrb[0].mxu0
    %4181 = vdwg.mxu0
    %4182 = vmatprep.subr.bf16.mxu0 0
    %4183 = vmatpush1.bf16.msra.mxu0 %v3014
    %4184 = vmatprep.subr.bf16.mxu0 0
    %4185 = vmatpush1.bf16.msra.mxu0 %v3015
    %4186 = vmatprep.subr.bf16.mxu0 0
    %4187 = vmatpush1.bf16.msra.mxu0 %v3016
    %4188 = vmatprep.subr.bf16.mxu0 0
    %4189 = vmatpush1.bf16.msra.mxu0 %v3017
    %4190 = vmatprep.subr.bf16.mxu0 0
    %4191 = vmatpush1.bf16.msra.mxu0 %v3018
    %4192 = vmatprep.subr.bf16.mxu0 0
    %4193 = vmatpush1.bf16.msra.mxu0 %v3019
    %4194 = vmatprep.subr.bf16.mxu0 0
    %4195 = vmatpush1.bf16.msra.mxu0 %v3020
    %4196 = vmatprep.subr.bf16.mxu0 0
    %4197 = vmatpush1.bf16.msra.mxu0 %v3021
    %4198 = vmatprep.subr.bf16.mxu0 0
    %4199 = vmatpush1.bf16.msra.mxu0 %v3022
    %4200 = vmatprep.subr.bf16.mxu0 0
    %4201 = vmatpush1.bf16.msra.mxu0 %v3023
    %4202 = vmatprep.subr.bf16.mxu0 0
    %4203 = vmatpush1.bf16.msra.mxu0 %v3024
    %4204 = vmatprep.subr.bf16.mxu0 0
    %4205 = vmatpush1.bf16.msra.mxu0 %v3025
    %4206 = vmatprep.subr.bf16.mxu0 0
    %4207 = vmatpush1.bf16.msra.mxu0 %v3026
    %4208 = vmatprep.subr.bf16.mxu0 0
    %4209 = vmatpush1.bf16.msra.mxu0 %v3027
    %4210 = vmatprep.subr.bf16.mxu0 0
    %4211 = vmatpush1.bf16.msra.mxu0 %v3028
    %4212 = vmatprep.subr.bf16.mxu0 0
    %4213 = vmatpush1.bf16.msra.mxu0 %v3029
    %4214 = vmatprep.mubr.bf16.mxu0 %v1066
    %4215 = vmatmul.mubr.bf16.gmra.mrb[0].mxu0 %v1052
    %v4216 = vpop.f32.mrb[0].mxu0
    %v4217 = vadd.f32 %v4177, %v4216
    %v4218 = vpop.f32.mrb[0].mxu0
    %v4219 = vpop.f32.mrb[0].mxu0
    %v4220 = vpop.f32.mrb[0].mxu0
    %4221 = vdwg.mxu0
    %4222 = vmatprep.subr.bf16.mxu0 0
    %4223 = vmatpush1.bf16.msra.mxu0 %v3030
    %4224 = vmatprep.subr.bf16.mxu0 0
    %4225 = vmatpush1.bf16.msra.mxu0 %v3031
    %4226 = vmatprep.subr.bf16.mxu0 0
    %4227 = vmatpush1.bf16.msra.mxu0 %v3032
    %4228 = vmatprep.subr.bf16.mxu0 0
    %4229 = vmatpush1.bf16.msra.mxu0 %v3033
    %4230 = vmatprep.subr.bf16.mxu0 0
    %4231 = vmatpush1.bf16.msra.mxu0 %v3034
    %4232 = vmatprep.subr.bf16.mxu0 0
    %4233 = vmatpush1.bf16.msra.mxu0 %v3035
    %4234 = vmatprep.subr.bf16.mxu0 0
    %4235 = vmatpush1.bf16.msra.mxu0 %v3036
    %4236 = vmatprep.subr.bf16.mxu0 0
    %4237 = vmatpush1.bf16.msra.mxu0 %v3037
    %4238 = vmatprep.subr.bf16.mxu0 0
    %4239 = vmatpush1.bf16.msra.mxu0 %v3038
    %4240 = vmatprep.subr.bf16.mxu0 0
    %4241 = vmatpush1.bf16.msra.mxu0 %v3039
    %4242 = vmatprep.subr.bf16.mxu0 0
    %4243 = vmatpush1.bf16.msra.mxu0 %v3040
    %4244 = vmatprep.subr.bf16.mxu0 0
    %4245 = vmatpush1.bf16.msra.mxu0 %v3041
    %4246 = vmatprep.subr.bf16.mxu0 0
    %4247 = vmatpush1.bf16.msra.mxu0 %v3042
    %4248 = vmatprep.subr.bf16.mxu0 0
    %4249 = vmatpush1.bf16.msra.mxu0 %v3043
    %4250 = vmatprep.subr.bf16.mxu0 0
    %4251 = vmatpush1.bf16.msra.mxu0 %v3044
    %4252 = vmatprep.subr.bf16.mxu0 0
    %4253 = vmatpush1.bf16.msra.mxu0 %v3045
    %4254 = vmatprep.mubr.bf16.mxu0 %v1076
    %4255 = vmatmul.mubr.bf16.gmra.mrb[0].mxu0 %v1074
    %v4256 = vpop.f32.mrb[0].mxu0
    %v4257 = vadd.f32 %v4217, %v4256
    %v4258 = vpop.f32.mrb[0].mxu0
    %v4259 = vpop.f32.mrb[0].mxu0
    %v4260 = vpop.f32.mrb[0].mxu0
    %4261 = vdwg.mxu0
    %4262 = vmatprep.subr.bf16.mxu0 0
    %4263 = vmatpush1.bf16.msra.mxu0 %v3046
    %4264 = vmatprep.subr.bf16.mxu0 0
    %4265 = vmatpush1.bf16.msra.mxu0 %v3047
    %4266 = vmatprep.subr.bf16.mxu0 0
    %4267 = vmatpush1.bf16.msra.mxu0 %v3048
    %4268 = vmatprep.subr.bf16.mxu0 0
    %4269 = vmatpush1.bf16.msra.mxu0 %v3049
    %4270 = vmatprep.subr.bf16.mxu0 0
    %4271 = vmatpush1.bf16.msra.mxu0 %v3050
    %4272 = vmatprep.subr.bf16.mxu0 0
    %4273 = vmatpush1.bf16.msra.mxu0 %v3051
    %4274 = vmatprep.subr.bf16.mxu0 0
    %4275 = vmatpush1.bf16.msra.mxu0 %v3052
    %4276 = vmatprep.subr.bf16.mxu0 0
    %4277 = vmatpush1.bf16.msra.mxu0 %v3053
    %4278 = vmatprep.subr.bf16.mxu0 0
    %4279 = vmatpush1.bf16.msra.mxu0 %v3054
    %4280 = vmatprep.subr.bf16.mxu0 0
    %4281 = vmatpush1.bf16.msra.mxu0 %v3055
    %4282 = vmatprep.subr.bf16.mxu0 0
    %4283 = vmatpush1.bf16.msra.mxu0 %v3056
    %4284 = vmatprep.subr.bf16.mxu0 0
    %4285 = vmatpush1.bf16.msra.mxu0 %v3057
    %4286 = vmatprep.subr.bf16.mxu0 0
    %4287 = vmatpush1.bf16.msra.mxu0 %v3058
    %4288 = vmatprep.subr.bf16.mxu0 0
    %4289 = vmatpush1.bf16.msra.mxu0 %v3059
    %4290 = vmatprep.subr.bf16.mxu0 0
    %4291 = vmatpush1.bf16.msra.mxu0 %v3060
    %4292 = vmatprep.subr.bf16.mxu0 0
    %4293 = vmatpush1.bf16.msra.mxu0 %v3061
    %4294 = vmatprep.mubr.bf16.mxu0 %v1073
    %4295 = vmatmul.mubr.bf16.gmra.mrb[0].mxu0 %v1059
    %v4296 = vpop.f32.mrb[0].mxu0
    %v4297 = vadd.f32 %v4257, %v4296
    %v4298 = vpop.f32.mrb[0].mxu0
    %v4299 = vpop.f32.mrb[0].mxu0
    %v4300 = vpop.f32.mrb[0].mxu0
    %4301 = vdwg.mxu0
    %4302 = vmatprep.subr.bf16.mxu0 0
    %4303 = vmatpush1.bf16.msra.mxu0 %v3062
    %4304 = vmatprep.subr.bf16.mxu0 0
    %4305 = vmatpush1.bf16.msra.mxu0 %v3063
    %4306 = vmatprep.subr.bf16.mxu0 0
    %4307 = vmatpush1.bf16.msra.mxu0 %v3064
    %4308 = vmatprep.subr.bf16.mxu0 0
    %4309 = vmatpush1.bf16.msra.mxu0 %v3065
    %4310 = vmatprep.subr.bf16.mxu0 0
    %4311 = vmatpush1.bf16.msra.mxu0 %v3066
    %4312 = vmatprep.subr.bf16.mxu0 0
    %4313 = vmatpush1.bf16.msra.mxu0 %v3067
    %4314 = vmatprep.subr.bf16.mxu0 0
    %4315 = vmatpush1.bf16.msra.mxu0 %v3068
    %4316 = vmatprep.subr.bf16.mxu0 0
    %4317 = vmatpush1.bf16.msra.mxu0 %v3069
    %4318 = vmatprep.subr.bf16.mxu0 0
    %4319 = vmatpush1.bf16.msra.mxu0 %v3070
    %4320 = vmatprep.subr.bf16.mxu0 0
    %4321 = vmatpush1.bf16.msra.mxu0 %v3071
    %4322 = vmatprep.subr.bf16.mxu0 0
    %4323 = vmatpush1.bf16.msra.mxu0 %v3072
    %4324 = vmatprep.subr.bf16.mxu0 0
    %4325 = vmatpush1.bf16.msra.mxu0 %v3073
    %4326 = vmatprep.subr.bf16.mxu0 0
    %4327 = vmatpush1.bf16.msra.mxu0 %v3074
    %4328 = vmatprep.subr.bf16.mxu0 0
    %4329 = vmatpush1.bf16.msra.mxu0 %v3075
    %4330 = vmatprep.subr.bf16.mxu0 0
    %4331 = vmatpush1.bf16.msra.mxu0 %v3076
    %4332 = vmatprep.subr.bf16.mxu0 0
    %4333 = vmatpush1.bf16.msra.mxu0 %v3077
    %4334 = vmatprep.mubr.bf16.mxu0 %v1077
    %4335 = vmatmul.mubr.bf16.gmra.mrb[0].mxu0 %v1075
    %v4336 = vpop.f32.mrb[0].mxu0
    %v4337 = vadd.f32 %v4297, %v4336
    %v4338 = vpop.f32.mrb[0].mxu0
    %v4339 = vpop.f32.mrb[0].mxu0
    %v4340 = vpop.f32.mrb[0].mxu0
    %4341 = vdwg.mxu0
    %4342 = vmatprep.subr.bf16.mxu0 0
    %4343 = vmatpush1.bf16.msra.mxu0 %v3078
    %4344 = vmatprep.subr.bf16.mxu0 0
    %4345 = vmatpush1.bf16.msra.mxu0 %v3079
    %4346 = vmatprep.subr.bf16.mxu0 0
    %4347 = vmatpush1.bf16.msra.mxu0 %v3080
    %4348 = vmatprep.subr.bf16.mxu0 0
    %4349 = vmatpush1.bf16.msra.mxu0 %v3081
    %4350 = vmatprep.subr.bf16.mxu0 0
    %4351 = vmatpush1.bf16.msra.mxu0 %v3082
    %4352 = vmatprep.subr.bf16.mxu0 0
    %4353 = vmatpush1.bf16.msra.mxu0 %v3083
    %4354 = vmatprep.subr.bf16.mxu0 0
    %4355 = vmatpush1.bf16.msra.mxu0 %v3084
    %4356 = vmatprep.subr.bf16.mxu0 0
    %4357 = vmatpush1.bf16.msra.mxu0 %v3085
    %4358 = vmatprep.subr.bf16.mxu0 0
    %4359 = vmatpush1.bf16.msra.mxu0 %v3086
    %4360 = vmatprep.subr.bf16.mxu0 0
    %4361 = vmatpush1.bf16.msra.mxu0 %v3087
    %4362 = vmatprep.subr.bf16.mxu0 0
    %4363 = vmatpush1.bf16.msra.mxu0 %v3088
    %4364 = vmatprep.subr.bf16.mxu0 0
    %4365 = vmatpush1.bf16.msra.mxu0 %v3089
    %4366 = vmatprep.subr.bf16.mxu0 0
    %4367 = vmatpush1.bf16.msra.mxu0 %v3090
    %4368 = vmatprep.subr.bf16.mxu0 0
    %4369 = vmatpush1.bf16.msra.mxu0 %v3091
    %4370 = vmatprep.subr.bf16.mxu0 0
    %4371 = vmatpush1.bf16.msra.mxu0 %v3092
    %4372 = vmatprep.subr.bf16.mxu0 0
    %4373 = vmatpush1.bf16.msra.mxu0 %v3093
    %4374 = vmatprep.mubr.bf16.mxu0 %v1115
    %4375 = vmatmul.mubr.bf16.gmra.mrb[0].mxu0 %v1101
    %v4376 = vpop.f32.mrb[0].mxu0
    %v4377 = vadd.f32 %v4337, %v4376
    %v4378 = vpop.f32.mrb[0].mxu0
    %v4379 = vpop.f32.mrb[0].mxu0
    %v4380 = vpop.f32.mrb[0].mxu0
    %4381 = vdwg.mxu0
    %4382 = vmatprep.subr.bf16.mxu0 0
    %4383 = vmatpush1.bf16.msra.mxu0 %v3094
    %4384 = vmatprep.subr.bf16.mxu0 0
    %4385 = vmatpush1.bf16.msra.mxu0 %v3095
    %4386 = vmatprep.subr.bf16.mxu0 0
    %4387 = vmatpush1.bf16.msra.mxu0 %v3096
    %4388 = vmatprep.subr.bf16.mxu0 0
    %4389 = vmatpush1.bf16.msra.mxu0 %v3097
    %4390 = vmatprep.subr.bf16.mxu0 0
    %4391 = vmatpush1.bf16.msra.mxu0 %v3098
    %4392 = vmatprep.subr.bf16.mxu0 0
    %4393 = vmatpush1.bf16.msra.mxu0 %v3099
    %4394 = vmatprep.subr.bf16.mxu0 0
    %4395 = vmatpush1.bf16.msra.mxu0 %v3100
    %4396 = vmatprep.subr.bf16.mxu0 0
    %4397 = vmatpush1.bf16.msra.mxu0 %v3101
    %4398 = vmatprep.subr.bf16.mxu0 0
    %4399 = vmatpush1.bf16.msra.mxu0 %v3102
    %4400 = vmatprep.subr.bf16.mxu0 0
    %4401 = vmatpush1.bf16.msra.mxu0 %v3103
    %4402 = vmatprep.subr.bf16.mxu0 0
    %4403 = vmatpush1.bf16.msra.mxu0 %v3104
    %4404 = vmatprep.subr.bf16.mxu0 0
    %4405 = vmatpush1.bf16.msra.mxu0 %v3105
    %4406 = vmatprep.subr.bf16.mxu0 0
    %4407 = vmatpush1.bf16.msra.mxu0 %v3106
    %4408 = vmatprep.subr.bf16.mxu0 0
    %4409 = vmatpush1.bf16.msra.mxu0 %v3107
    %4410 = vmatprep.subr.bf16.mxu0 0
    %4411 = vmatpush1.bf16.msra.mxu0 %v3108
    %4412 = vmatprep.subr.bf16.mxu0 0
    %4413 = vmatpush1.bf16.msra.mxu0 %v3109
    %4414 = vmatprep.mubr.bf16.mxu0 %v1125
    %4415 = vmatmul.mubr.bf16.gmra.mrb[0].mxu0 %v1123
    %v4416 = vpop.f32.mrb[0].mxu0
    %v4417 = vadd.f32 %v4377, %v4416
    %v4418 = vpop.f32.mrb[0].mxu0
    %v4419 = vpop.f32.mrb[0].mxu0
    %v4420 = vpop.f32.mrb[0].mxu0
    %4421 = vdwg.mxu0
    %4422 = vmatprep.subr.bf16.mxu0 0
    %4423 = vmatpush1.bf16.msra.mxu0 %v3110
    %4424 = vmatprep.subr.bf16.mxu0 0
    %4425 = vmatpush1.bf16.msra.mxu0 %v3111
    %4426 = vmatprep.subr.bf16.mxu0 0
    %4427 = vmatpush1.bf16.msra.mxu0 %v3112
    %4428 = vmatprep.subr.bf16.mxu0 0
    %4429 = vmatpush1.bf16.msra.mxu0 %v3113
    %4430 = vmatprep.subr.bf16.mxu0 0
    %4431 = vmatpush1.bf16.msra.mxu0 %v3114
    %4432 = vmatprep.subr.bf16.mxu0 0
    %4433 = vmatpush1.bf16.msra.mxu0 %v3115
    %4434 = vmatprep.subr.bf16.mxu0 0
    %4435 = vmatpush1.bf16.msra.mxu0 %v3116
    %4436 = vmatprep.subr.bf16.mxu0 0
    %4437 = vmatpush1.bf16.msra.mxu0 %v3117
    %4438 = vmatprep.subr.bf16.mxu0 0
    %4439 = vmatpush1.bf16.msra.mxu0 %v3118
    %4440 = vmatprep.subr.bf16.mxu0 0
    %4441 = vmatpush1.bf16.msra.mxu0 %v3119
    %4442 = vmatprep.subr.bf16.mxu0 0
    %4443 = vmatpush1.bf16.msra.mxu0 %v3120
    %4444 = vmatprep.subr.bf16.mxu0 0
    %4445 = vmatpush1.bf16.msra.mxu0 %v3121
    %4446 = vmatprep.subr.bf16.mxu0 0
    %4447 = vmatpush1.bf16.msra.mxu0 %v3122
    %4448 = vmatprep.subr.bf16.mxu0 0
    %4449 = vmatpush1.bf16.msra.mxu0 %v3123
    %4450 = vmatprep.subr.bf16.mxu0 0
    %4451 = vmatpush1.bf16.msra.mxu0 %v3124
    %4452 = vmatprep.subr.bf16.mxu0 0
    %4453 = vmatpush1.bf16.msra.mxu0 %v3125
    %4454 = vmatprep.mubr.bf16.mxu0 %v1122
    %4455 = vmatmul.mubr.bf16.gmra.mrb[0].mxu0 %v1108
    %v4456 = vpop.f32.mrb[0].mxu0
    %v4457 = vadd.f32 %v4417, %v4456
    %v4458 = vpop.f32.mrb[0].mxu0
    %v4459 = vpop.f32.mrb[0].mxu0
    %v4460 = vpop.f32.mrb[0].mxu0
    %4461 = vdwg.mxu0
    %4462 = vmatprep.subr.bf16.mxu0 0
    %4463 = vmatpush1.bf16.msra.mxu0 %v3126
    %4464 = vmatprep.subr.bf16.mxu0 0
    %4465 = vmatpush1.bf16.msra.mxu0 %v3127
    %4466 = vmatprep.subr.bf16.mxu0 0
    %4467 = vmatpush1.bf16.msra.mxu0 %v3128
    %4468 = vmatprep.subr.bf16.mxu0 0
    %4469 = vmatpush1.bf16.msra.mxu0 %v3129
    %4470 = vmatprep.subr.bf16.mxu0 0
    %4471 = vmatpush1.bf16.msra.mxu0 %v3130
    %4472 = vmatprep.subr.bf16.mxu0 0
    %4473 = vmatpush1.bf16.msra.mxu0 %v3131
    %4474 = vmatprep.subr.bf16.mxu0 0
    %4475 = vmatpush1.bf16.msra.mxu0 %v3132
    %4476 = vmatprep.subr.bf16.mxu0 0
    %4477 = vmatpush1.bf16.msra.mxu0 %v3133
    %4478 = vmatprep.subr.bf16.mxu0 0
    %4479 = vmatpush1.bf16.msra.mxu0 %v3134
    %4480 = vmatprep.subr.bf16.mxu0 0
    %4481 = vmatpush1.bf16.msra.mxu0 %v3135
    %4482 = vmatprep.subr.bf16.mxu0 0
    %4483 = vmatpush1.bf16.msra.mxu0 %v3136
    %4484 = vmatprep.subr.bf16.mxu0 0
    %4485 = vmatpush1.bf16.msra.mxu0 %v3137
    %4486 = vmatprep.subr.bf16.mxu0 0
    %4487 = vmatpush1.bf16.msra.mxu0 %v3138
    %4488 = vmatprep.subr.bf16.mxu0 0
    %4489 = vmatpush1.bf16.msra.mxu0 %v3139
    %4490 = vmatprep.subr.bf16.mxu0 0
    %4491 = vmatpush1.bf16.msra.mxu0 %v3140
    %4492 = vmatprep.subr.bf16.mxu0 0
    %4493 = vmatpush1.bf16.msra.mxu0 %v3141
    %4494 = vmatprep.mubr.bf16.mxu0 %v1126
    %4495 = vmatmul.mubr.bf16.gmra.mrb[0].mxu0 %v1124
    %v4496 = vpop.f32.mrb[0].mxu0
    %v4497 = vadd.f32 %v4457, %v4496
    %v4498 = vpop.f32.mrb[0].mxu0
    %v4499 = vpop.f32.mrb[0].mxu0
    %v4500 = vpop.f32.mrb[0].mxu0
    %4501 = vdwg.mxu0
    %4502 = vmatprep.subr.bf16.mxu0 0
    %4503 = vmatpush1.bf16.msra.mxu0 %v3142
    %4504 = vmatprep.subr.bf16.mxu0 0
    %4505 = vmatpush1.bf16.msra.mxu0 %v3143
    %4506 = vmatprep.subr.bf16.mxu0 0
    %4507 = vmatpush1.bf16.msra.mxu0 %v3144
    %4508 = vmatprep.subr.bf16.mxu0 0
    %4509 = vmatpush1.bf16.msra.mxu0 %v3145
    %4510 = vmatprep.subr.bf16.mxu0 0
    %4511 = vmatpush1.bf16.msra.mxu0 %v3146
    %4512 = vmatprep.subr.bf16.mxu0 0
    %4513 = vmatpush1.bf16.msra.mxu0 %v3147
    %4514 = vmatprep.subr.bf16.mxu0 0
    %4515 = vmatpush1.bf16.msra.mxu0 %v3148
    %4516 = vmatprep.subr.bf16.mxu0 0
    %4517 = vmatpush1.bf16.msra.mxu0 %v3149
    %4518 = vmatprep.subr.bf16.mxu0 0
    %4519 = vmatpush1.bf16.msra.mxu0 0
    %4520 = vmatprep.subr.bf16.mxu0 0
    %4521 = vmatpush1.bf16.msra.mxu0 0
    %4522 = vmatprep.subr.bf16.mxu0 0
    %4523 = vmatpush1.bf16.msra.mxu0 0
    %4524 = vmatprep.subr.bf16.mxu0 0
    %4525 = vmatpush1.bf16.msra.mxu0 0
    %4526 = vmatprep.subr.bf16.mxu0 0
    %4527 = vmatpush1.bf16.msra.mxu0 0
    %4528 = vmatprep.subr.bf16.mxu0 0
    %4529 = vmatpush1.bf16.msra.mxu0 0
    %4530 = vmatprep.subr.bf16.mxu0 0
    %4531 = vmatpush1.bf16.msra.mxu0 0
    %4532 = vmatprep.subr.bf16.mxu0 0
    %4533 = vmatpush1.bf16.msra.mxu0 0
    %4534 = vmatprep.mubr.bf16.mxu0 0
    %4535 = vmatmul.mubr.bf16.gmra.mrb[0].mxu0 %v1140
    %v4536 = vpop.f32.mrb[0].mxu0
    %v4537 = vadd.f32 %v4497, %v4536
    %v4538 = vpop.f32.mrb[0].mxu0
    %v4539 = vpop.f32.mrb[0].mxu0
    %v4540 = vpop.f32.mrb[0].mxu0
    %4541 = vdwg.mxu0
    %v4542 = vmax.f32 %v4537, 0.0
    %v4543 = vpack.c.bf16 %v4542, %v4542
    %v4544 = vld [vmem:[%s3] sm:$0xf]
    %v4545 = vld [vmem:[%s3 + $0x4] sm:$0xf]
    %v4546 = vld [vmem:[%s3 + $0x8] sm:$0xf]
    %v4547 = vld [vmem:[%s3 + $0xc] sm:$0xf]
    %v4548 = vld [vmem:[%s3 + $0x10] sm:$0xf]
    %v4549 = vld [vmem:[%s3 + $0x14] sm:$0xf]
    %v4550 = vld [vmem:[%s3 + $0x18] sm:$0xf]
    %v4551 = vld [vmem:[%s3 + $0x1c] sm:$0xf]
    %v4552 = vld [vmem:[%s3 + $0x20] sm:$0xf]
    %v4553 = vld [vmem:[%s3 + $0x24] sm:$0xf]
    %v4554 = vld [vmem:[%s3 + $0x28] sm:$0xf]
    %v4555 = vld [vmem:[%s3 + $0x2c] sm:$0xf]
    %v4556 = vld [vmem:[%s3 + $0x30] sm:$0xf]
    %v4557 = vld [vmem:[%s3 + $0x34] sm:$0xf]
    %v4558 = vld [vmem:[%s3 + $0x38] sm:$0xf]
    %v4559 = vld [vmem:[%s3 + $0x3c] sm:$0xf]
    %v4560 = vld [vmem:[%s4] sm:$0x1]
    %v4562 = vlaneseq
    %v4563 = vshrl.u32 %v4562, 7
    %v4564 = vsub.s32 0, %v4563
    %v4565 = vrot.slane %v4560, %v4564
    %v4583 = vunpack.c.l.b16 %v4544
    %v4584 = vunpack.c.l.b16 %v4545
    %v4585 = vunpack.c.l.b16 %v4546
    %v4586 = vunpack.c.l.b16 %v4547
    %v4587 = vunpack.c.l.b16 %v4548
    %v4588 = vunpack.c.l.b16 %v4549
    %v4589 = vunpack.c.l.b16 %v4550
    %v4590 = vunpack.c.l.b16 %v4551
    %v4591 = vunpack.c.l.b16 %v4552
    %v4592 = vunpack.c.l.b16 %v4553
    %v4593 = vunpack.c.l.b16 %v4554
    %v4594 = vunpack.c.l.b16 %v4555
    %v4595 = vunpack.c.l.b16 %v4556
    %v4596 = vunpack.c.l.b16 %v4557
    %v4597 = vunpack.c.l.b16 %v4558
    %v4598 = vunpack.c.l.b16 %v4559
    %v4599 = vpack.c.b16 %v4584, %v4583
    %v4600 = vpack.c.b16 %v4586, %v4585
    %v4601 = vpack.c.b16 %v4588, %v4587
    %v4602 = vpack.c.b16 %v4590, %v4589
    %v4603 = vpack.c.b16 %v4592, %v4591
    %v4604 = vpack.c.b16 %v4594, %v4593
    %v4605 = vpack.c.b16 %v4596, %v4595
    %v4606 = vpack.c.b16 %v4598, %v4597
    %4615 = vmatprep.subr.bf16.mxu0 0
    %4616 = vmatpush1.bf16.msra.mxu0 %v4599
    %4617 = vmatprep.subr.bf16.mxu0 0
    %4618 = vmatpush1.bf16.msra.mxu0 %v4600
    %4619 = vmatprep.subr.bf16.mxu0 0
    %4620 = vmatpush1.bf16.msra.mxu0 %v4601
    %4621 = vmatprep.subr.bf16.mxu0 0
    %4622 = vmatpush1.bf16.msra.mxu0 %v4602
    %4623 = vmatprep.subr.bf16.mxu0 0
    %4624 = vmatpush1.bf16.msra.mxu0 %v4603
    %4625 = vmatprep.subr.bf16.mxu0 0
    %4626 = vmatpush1.bf16.msra.mxu0 %v4604
    %4627 = vmatprep.subr.bf16.mxu0 0
    %4628 = vmatpush1.bf16.msra.mxu0 %v4605
    %4629 = vmatprep.subr.bf16.mxu0 0
    %4630 = vmatpush1.bf16.msra.mxu0 %v4606
    %4631 = vmatprep.subr.bf16.mxu0 0
    %4632 = vmatpush1.bf16.msra.mxu0 0
    %4633 = vmatprep.subr.bf16.mxu0 0
    %4634 = vmatpush1.bf16.msra.mxu0 0
    %4635 = vmatprep.subr.bf16.mxu0 0
    %4636 = vmatpush1.bf16.msra.mxu0 0
    %4637 = vmatprep.subr.bf16.mxu0 0
    %4638 = vmatpush1.bf16.msra.mxu0 0
    %4639 = vmatprep.subr.bf16.mxu0 0
    %4640 = vmatpush1.bf16.msra.mxu0 0
    %4641 = vmatprep.subr.bf16.mxu0 0
    %4642 = vmatpush1.bf16.msra.mxu0 0
    %4643 = vmatprep.subr.bf16.mxu0 0
    %4644 = vmatpush1.bf16.msra.mxu0 0
    %4645 = vmatprep.subr.bf16.mxu0 0
    %4646 = vmatpush1.bf16.msra.mxu0 0
    %4647 = vmatprep.mubr.bf16.mxu0 0
    %4648 = vmatmul.mubr.bf16.gmra.mrb[0].mxu0 %v4543
    %v4649 = vpop.f32.mrb[0].mxu0
    %v4650 = vadd.f32 %v4565, %v4649
    %v4651 = vpop.f32.mrb[0].mxu0
    %v4652 = vpop.f32.mrb[0].mxu0
    %v4653 = vpop.f32.mrb[0].mxu0
    %4654 = vdwg.mxu0
    %v4655 = vmax.f32 %v4650, 0.0
    %v4656 = vpack.c.bf16 %v4655, %v4655
    %v4657 = vld [vmem:[%s5] sm:$0xf]
    %v4658 = vld [vmem:[%s5 + $0x4] sm:$0xf]
    %v4659 = vld [vmem:[%s5 + $0x8] sm:$0xf]
    %v4660 = vld [vmem:[%s5 + $0xc] sm:$0xf]
    %v4661 = vld [vmem:[%s5 + $0x10] sm:$0xf]
    %v4662 = vld [vmem:[%s5 + $0x14] sm:$0xf]
    %v4663 = vld [vmem:[%s5 + $0x18] sm:$0xf]
    %v4664 = vld [vmem:[%s5 + $0x1c] sm:$0xf]
    %v4665 = vld [vmem:[%s6] sm:$0x1]
    %v4667 = vlaneseq
    %v4668 = vshrl.u32 %v4667, 7
    %v4669 = vsub.s32 0, %v4668
    %v4670 = vrot.slane %v4665, %v4669
    %v4680 = vunpack.c.l.b16 %v4657
    %v4681 = vunpack.c.l.b16 %v4658
    %v4682 = vunpack.c.l.b16 %v4659
    %v4683 = vunpack.c.l.b16 %v4660
    %v4684 = vunpack.c.l.b16 %v4661
    %v4685 = vunpack.c.l.b16 %v4662
    %v4686 = vunpack.c.l.b16 %v4663
    %v4687 = vunpack.c.l.b16 %v4664
    %v4688 = vpack.c.b16 %v4681, %v4680
    %v4689 = vpack.c.b16 %v4683, %v4682
    %v4690 = vpack.c.b16 %v4685, %v4684
    %v4691 = vpack.c.b16 %v4687, %v4686
    %vm4696 = vcmask 523264
    %v4698 = vsel %vm4696, %v4656, 0
    %4700 = vmatprep.subr.bf16.mxu0 0
    %4701 = vmatpush1.bf16.msra.mxu0 %v4688
    %4702 = vmatprep.subr.bf16.mxu0 0
    %4703 = vmatpush1.bf16.msra.mxu0 %v4689
    %4704 = vmatprep.subr.bf16.mxu0 0
    %4705 = vmatpush1.bf16.msra.mxu0 %v4690
    %4706 = vmatprep.subr.bf16.mxu0 0
    %4707 = vmatpush1.bf16.msra.mxu0 %v4691
    %4708 = vmatprep.subr.bf16.mxu0 0
    %4709 = vmatpush1.bf16.msra.mxu0 0
    %4710 = vmatprep.subr.bf16.mxu0 0
    %4711 = vmatpush1.bf16.msra.mxu0 0
    %4712 = vmatprep.subr.bf16.mxu0 0
    %4713 = vmatpush1.bf16.msra.mxu0 0
    %4714 = vmatprep.subr.bf16.mxu0 0
    %4715 = vmatpush1.bf16.msra.mxu0 0
    %4716 = vmatprep.subr.bf16.mxu0 0
    %4717 = vmatpush1.bf16.msra.mxu0 0
    %4718 = vmatprep.subr.bf16.mxu0 0
    %4719 = vmatpush1.bf16.msra.mxu0 0
    %4720 = vmatprep.subr.bf16.mxu0 0
    %4721 = vmatpush1.bf16.msra.mxu0 0
    %4722 = vmatprep.subr.bf16.mxu0 0
    %4723 = vmatpush1.bf16.msra.mxu0 0
    %4724 = vmatprep.subr.bf16.mxu0 0
    %4725 = vmatpush1.bf16.msra.mxu0 0
    %4726 = vmatprep.subr.bf16.mxu0 0
    %4727 = vmatpush1.bf16.msra.mxu0 0
    %4728 = vmatprep.subr.bf16.mxu0 0
    %4729 = vmatpush1.bf16.msra.mxu0 0
    %4730 = vmatprep.subr.bf16.mxu0 0
    %4731 = vmatpush1.bf16.msra.mxu0 0
    %4732 = vmatprep.mubr.bf16.mxu0 0
    %4733 = vmatmul.mubr.bf16.gmra.mrb[0].mxu0 %v4698
    %v4734 = vpop.f32.mrb[0].mxu0
    %v4735 = vadd.f32 %v4670, %v4734
    %v4736 = vpop.f32.mrb[0].mxu0
    %v4737 = vpop.f32.mrb[0].mxu0
    %v4738 = vpop.f32.mrb[0].mxu0
    %4739 = vdwg.mxu0
    %vm4740 = vcmask 74752
    %4741 = vst.msk [vmem:[#allocation2] sm:$0x3] %vm4740, %v4735
    // Predicated region
    $region30: #{cnn_forward.5} parent=1 // pred_check
      _
    $region31: #{cnn_forward.5} parent=1 // pred_check_branch
      %4743 = sbr.rel (0) target = $region33
    $region32: #{cnn_forward.5} parent=1 // pred_region
      %s4745 = ssub.s32 32, 32
      %4746 = vsyncadd [#allocation3], %s4745
      %s4748 = sshll.u32 [#allocation2], 4
      %s4749 = int_to_ptr.vmem [resolvable:$true] %s4748
      %4751 = dma.vmem_to_hbm [thread:$0]  %s4749, 32, %s7, [#allocation3]
    $region33: #{cnn_forward.5} parent=1 // pred_fallthru
      _
    // Predicated region
    $region34: #{cnn_forward.5} parent=1 // pred_check
      _
    $region35: #{cnn_forward.5} parent=1 // pred_check_branch
      %4753 = sbr.rel (0) target = $region37
    $region36: #{cnn_forward.5} parent=1 // pred_region
      %4754 = dma.done [#allocation3], 32
    $region37: #{cnn_forward.5} parent=1 // pred_fallthru
      _
    %4755 = vsyncpa [#allocation3], 1

</llo_original>
